<compile_context>
chip_gen: v5e
topology: v5e:2x2
jax: 0.10.0
libtpu: 0.0.40
codegen_flags: <defaults>
</compile_context>

<pallas_src>
import jax
import jax.numpy as jnp
from jax.experimental import pallas as pl
from jax.experimental.pallas import tpu as pltpu


_COMPILER_PARAMS = pltpu.CompilerParams(
    dimension_semantics=("parallel",),        # shard batch grid across TCs
    vmem_limit_bytes=48 * 1024 * 1024,        # stay inside v7x's 64 MiB VMEM
)


# ----------------------------------------------------------------------------
# BlockSpec helpers (grid = (N,): batch-blocked activations, broadcast weights)
# ----------------------------------------------------------------------------
def _batched_spec(shape):
    nd = len(shape)
    return pl.BlockSpec((1,) + tuple(shape[1:]),
                        lambda n: (n,) + (0,) * (nd - 1))


def _bcast_spec(shape):
    nd = len(shape)
    return pl.BlockSpec(tuple(shape), lambda n: (0,) * nd)


# ----------------------------------------------------------------------------
# Down-path kernel: [optional fused 1x1 input conv] + in-kernel zero pad +
# KxK stride-s conv (bf16 MXU taps, f32 acc) + bias + leaky_relu +
# [optional fused 1x1 logit head]
# ----------------------------------------------------------------------------
def _make_down_kernel(K, stride, pad, has_pre, has_logit, act_slope):
    def kernel(*refs):
        it = iter(refs)
        x_ref = next(it)                                   # (1, H, W, Cin)
        wi_ref = next(it) if has_pre else None             # (Cin, Cmid)
        bi_ref = next(it) if has_pre else None             # (1, Cmid)
        w_ref = next(it)                                   # (K, K, Cmid, Cout)
        b_ref = next(it)                                   # (1, Cout)
        wl_ref = next(it) if has_logit else None           # (Cout, out_ch)
        bl_ref = next(it) if has_logit else None           # (1, out_ch)
        y_ref = next(it)                                   # (1, Ho*Wo, Cout)
        lg_ref = next(it) if has_logit else None           # (1, Ho*Wo, out_ch)
        xpad_ref = next(it)                                # (1, Hp, Wp, Cmid) f32

        _, H, W, _ = x_ref.shape
        _, M, Cout = y_ref.shape
        Cmid = xpad_ref.shape[-1]
        Ho = (H + 2 * pad - K) // stride + 1
        Wo = (W + 2 * pad - K) // stride + 1

        # prologue: zero-pad into a VMEM scratch (no HBM padding pass); if this
        # is the first level, fuse the affine-folded 1x1 input conv here so its
        # full-resolution output never round-trips HBM.
        xpad_ref[...] = jnp.zeros_like(xpad_ref)
        xin = x_ref[...]
        if has_pre:
            z = jnp.dot(xin.reshape(H * W, xin.shape[-1]), wi_ref[...],
                        preferred_element_type=jnp.float32) + bi_ref[...]
            xpad_ref[:, pad:pad + H, pad:pad + W, :] = z.reshape(1, H, W, Cmid)
        else:
            xpad_ref[:, pad:pad + H, pad:pad + W, :] = xin.astype(jnp.float32)

        # KxK / stride-s conv as a tap loop of MXU matmuls (bf16 in, f32 acc).
        # (scratch kept f32 so the strided sublane reads stay on the proven
        #  unpacked path; taps are cast to bf16 right before the MXU.)
        acc = jnp.zeros((M, Cout), jnp.float32)
        for kh in range(K):
            for kw in range(K):
                if stride == 1:
                    patch = xpad_ref[:, kh:kh + Ho, kw:kw + Wo, :]
                else:
                    patch = xpad_ref[:, pl.ds(kh, Ho, stride),
                                     pl.ds(kw, Wo, stride), :]
                patch = patch.reshape(M, Cmid).astype(jnp.bfloat16)
                acc = acc + jnp.dot(patch, w_ref[kh, kw, :, :],
                                    preferred_element_type=jnp.float32)

        y = acc + b_ref[...]
        y = jnp.where(y >= 0, y, act_slope * y)            # leaky_relu(0.2)
        y_ref[...] = y.reshape(1, M, Cout).astype(y_ref.dtype)

        if has_logit:
            # fused 1x1 logit head on the already-resident activation
            lg = jnp.dot(y, wl_ref[...],
                         preferred_element_type=jnp.float32) + bl_ref[...]
            lg_ref[...] = lg.reshape(1, M, -1).astype(lg_ref.dtype)
    return kernel


def _down_block(x_nhwc, w, b, *, stride, w_pre=None, b_pre=None,
                w_logit=None, b_logit=None, act_slope=0.2):
    """x: (N,H,W,Cin) bf16.  Returns (y NHWC bf16, logit NCHW f32 or None)."""
    N, H, W, _ = x_nhwc.shape
    K = int(w.shape[0])
    Cmid, Cout = int(w.shape[2]), int(w.shape[3])
    pad = K // 2
    Ho = (H + 2 * pad - K) // stride + 1
    Wo = (W + 2 * pad - K) // stride + 1
    has_pre = w_pre is not None
    has_logit = w_logit is not None

    inputs, in_specs = [x_nhwc], [_batched_spec(x_nhwc.shape)]
    if has_pre:
        inputs += [w_pre, b_pre]
        in_specs += [_bcast_spec(w_pre.shape), _bcast_spec(b_pre.shape)]
    inputs += [w, b]
    in_specs += [_bcast_spec(w.shape), _bcast_spec(b.shape)]
    if has_logit:
        inputs += [w_logit, b_logit]
        in_specs += [_bcast_spec(w_logit.shape), _bcast_spec(b_logit.shape)]

    y_shape = (N, Ho * Wo, Cout)                 # lane/sublane-dense flat slab
    out_shape = jax.ShapeDtypeStruct(y_shape, jnp.bfloat16)
    out_specs = _batched_spec(y_shape)
    if has_logit:
        out_ch = int(w_logit.shape[1])
        lg_shape = (N, Ho * Wo, out_ch)
        out_shape = (out_shape, jax.ShapeDtypeStruct(lg_shape, jnp.float32))
        out_specs = (out_specs, _batched_spec(lg_shape))

    grid_spec = pltpu.PrefetchScalarGridSpec(
        num_scalar_prefetch=0, grid=(N,),
        in_specs=in_specs, out_specs=out_specs,
        scratch_shapes=[pltpu.VMEM((1, H + 2 * pad, W + 2 * pad, Cmid),
                                   jnp.float32)])
    out = pl.pallas_call(
        _make_down_kernel(K, stride, pad, has_pre, has_logit, act_slope),
        grid_spec=grid_spec, out_shape=out_shape,
        compiler_params=_COMPILER_PARAMS)(*inputs)

    if has_logit:
        y_flat, lg_flat = out
        lg = jnp.transpose(lg_flat.reshape(N, Ho, Wo, -1), (0, 3, 1, 2))
    else:
        y_flat, lg = out, None
    return y_flat.reshape(N, Ho, Wo, Cout), lg


# ----------------------------------------------------------------------------
# Up-path kernel: fused up_c(x) + up_s(shortcut) (both transposed convs via
# sub-pixel phase decomposition; channel-concatenated so each tap is ONE
# MXU matmul) + bias + leaky_relu + 1x1 logit head.
# ----------------------------------------------------------------------------
def _transpose_phase_taps(k, s, p):
    """ConvTranspose2d(kernel=k, stride=s, padding=p, output_padding=s-1):
    for each output phase r in [0, s):  out[m*s + r] += x[m + d] @ w[kk]
    with kk = r + p - s*d in [0, k).  Applied separably to H and W."""
    taps = []
    for r in range(s):
        lst = []
        for d in range(-k, k + 1):
            kk = r + p - s * d
            if 0 <= kk < k:
                lst.append((d, kk))
        taps.append(lst)
    return taps


def _make_up_kernel(taps, pad_lo, s, act_slope):
    def kernel(x_ref, sc_ref, wcat_ref, b_ref, wl_ref, bl_ref,
               y_ref, lg_ref, xpad_ref):
        _, Hd, Wd, Cd = x_ref.shape
        Cu = y_ref.shape[-1]
        C2 = xpad_ref.shape[-1]            # 2 * Cd (x channels ++ sc channels)
        M = Hd * Wd

        # zero-pad both inputs side-by-side (channel concat) into one bf16
        # VMEM scratch: no HBM padding pass, no zero-dilated buffer, and each
        # tap below becomes a single wide matmul over both branches.
        xpad_ref[...] = jnp.zeros_like(xpad_ref)
        xpad_ref[:, pad_lo:pad_lo + Hd, pad_lo:pad_lo + Wd, 0:Cd] = x_ref[...]
        xpad_ref[:, pad_lo:pad_lo + Hd, pad_lo:pad_lo + Wd, Cd:C2] = sc_ref[...]

        b = b_ref[...]            # (1, Cu)  = up_c bias + up_s bias
        wl = wl_ref[...]          # (Cu, out_ch)
        bl = bl_ref[...]          # (1, out_ch)

        # sub-pixel decomposition: each output phase only multiplies the taps
        # that actually hit it -> ~stride^2 fewer MXU flops than dilate+conv.
        for ry in range(s):
            for rx in range(s):
                acc = jnp.zeros((M, Cu), jnp.float32)
                for dy, kh in taps[ry]:
                    for dx, kw in taps[rx]:
                        p2 = xpad_ref[:, pad_lo + dy:pad_lo + dy + Hd,
                                      pad_lo + dx:pad_lo + dx + Wd, :]
                        acc = acc + jnp.dot(p2.reshape(M, C2),
                                            wcat_ref[kh, kw, :, :],
                                            preferred_element_type=jnp.float32)
                y = acc + b
                y = jnp.where(y >= 0, y, act_slope * y)    # leaky_relu(0.2)
                y_ref[0, ry, rx, :, :] = y.astype(y_ref.dtype)
                lg = jnp.dot(y, wl, preferred_element_type=jnp.float32) + bl
                lg_ref[0, ry, rx, :, :] = lg.astype(lg_ref.dtype)
    return kernel


def _assemble_phases(t_ph, s, Hd, Wd):
    """(N, s, s, Hd*Wd, C) phase-major -> (N, Hd*s, Wd*s, C) NHWC."""
    N, _, _, _, C = t_ph.shape
    t = t_ph.reshape(N, s, s, Hd, Wd, C)
    t = jnp.transpose(t, (0, 3, 1, 4, 2, 5))
    return t.reshape(N, Hd * s, Wd * s, C)


def _up_block(x_deep, sc, w_cat, b_sum, w_logit, b_logit, *, k, s,
              act_slope=0.2, need_y=True):
    """One up level: leaky_relu(up_c(x) + up_s(sc)) and its 1x1 logit.
    w_cat: (k, k, 2*Cd, Cu) = concat([w_up_c, w_up_s], axis=Cin)."""
    assert k % 2 == 1, "module uses odd kernels (k in {3,5,7})"
    N, Hd, Wd, Cd = x_deep.shape
    Cu = int(w_cat.shape[3])
    out_ch = int(w_logit.shape[1])
    p = k // 2
    taps = _transpose_phase_taps(k, s, p)
    all_d = [d for lst in taps for d, _ in lst]
    d_lo, d_hi = -min(0, min(all_d)), max(0, max(all_d))
    Hp, Wp = Hd + d_lo + d_hi, Wd + d_lo + d_hi

    y_shape = (N, s, s, Hd * Wd, Cu)
    lg_shape = (N, s, s, Hd * Wd, out_ch)
    grid_spec = pltpu.PrefetchScalarGridSpec(
        num_scalar_prefetch=0, grid=(N,),
        in_specs=[_batched_spec(x_deep.shape), _batched_spec(sc.shape),
                  _bcast_spec(w_cat.shape), _bcast_spec(b_sum.shape),
                  _bcast_spec(w_logit.shape), _bcast_spec(b_logit.shape)],
        out_specs=(_batched_spec(y_shape), _batched_spec(lg_shape)),
        scratch_shapes=[pltpu.VMEM((1, Hp, Wp, 2 * Cd), jnp.bfloat16)])
    y_ph, lg_ph = pl.pallas_call(
        _make_up_kernel(taps, d_lo, s, act_slope),
        grid_spec=grid_spec,
        out_shape=(jax.ShapeDtypeStruct(y_shape, jnp.bfloat16),
                   jax.ShapeDtypeStruct(lg_shape, jnp.float32)),
        compiler_params=_COMPILER_PARAMS)(
            x_deep, sc, w_cat, b_sum, w_logit, b_logit)

    lg = jnp.transpose(_assemble_phases(lg_ph, s, Hd, Wd), (0, 3, 1, 2))
    y = _assemble_phases(y_ph, s, Hd, Wd) if need_y else None
    return y, lg


# ----------------------------------------------------------------------------
# Parameters (deterministic xavier-uniform-style init; synthetic, no checkpoint)
# ----------------------------------------------------------------------------
def init_params(key, in_ch, out_ch, base_dim, layers_cfg):
    L = len(layers_cfg)
    dim_mults = [min(2 ** i, 8) for i in range(L + 1)]
    dims = [base_dim * m for m in dim_mults]
    keys = iter(jax.random.split(key, 8 * L + 8))

    def xu(shape, fan_in, fan_out):
        bound = (6.0 / float(fan_in + fan_out)) ** 0.5
        return jax.random.uniform(next(keys), shape, jnp.float32, -bound, bound)

    p = {
        'in_beta': jnp.zeros((in_ch,), jnp.float32),
        'in_gamma': jnp.ones((in_ch,), jnp.float32),
        'in_w': xu((in_ch, base_dim), in_ch, base_dim),        # 1x1, no bias
        'down_w': [], 'down_b': [],
    }
    up_c_w, up_c_b, up_s_w, up_s_b, logit_w, logit_b = [], [], [], [], [], []
    for level, (k, s) in enumerate(layers_cfg):
        up_ch, down_ch = dims[level], dims[level + 1]
        p['down_w'].append(xu((k, k, up_ch, down_ch), up_ch * k * k, down_ch * k * k))
        p['down_b'].append(xu((down_ch,), up_ch * k * k, down_ch))
        # ConvTranspose2d weights in PyTorch layout (Cin=down_ch, Cout=up_ch, k, k)
        up_c_w.insert(0, xu((down_ch, up_ch, k, k), down_ch * k * k, up_ch * k * k))
        up_c_b.insert(0, xu((up_ch,), down_ch, up_ch))
        up_s_w.insert(0, xu((down_ch, up_ch, k, k), down_ch * k * k, up_ch * k * k))
        up_s_b.insert(0, xu((up_ch,), down_ch, up_ch))
        logit_w.insert(0, xu((up_ch, out_ch), up_ch, out_ch))
        logit_b.insert(0, xu((out_ch,), up_ch, out_ch))
        if level == L - 1:
            p['mid_logit_w'] = xu((down_ch, out_ch), down_ch, out_ch)
            p['mid_logit_b'] = xu((out_ch,), down_ch, out_ch)
    p.update(up_c_w=up_c_w, up_c_b=up_c_b, up_s_w=up_s_w, up_s_b=up_s_b,
             logit_w=logit_w, logit_b=logit_b)
    return p


# ----------------------------------------------------------------------------
# Forward pass (matches PatchDiscriminator.forward)
# ----------------------------------------------------------------------------
def patch_discriminator_forward(x_nchw, params, layers_cfg):
    L = len(layers_cfg)
    x = jnp.transpose(x_nchw, (0, 2, 3, 1)).astype(jnp.bfloat16)   # NCHW->NHWC

    # fold the input affine (x + beta) * gamma into the bias-free 1x1 input conv
    w_in = params['in_w']
    gamma, beta = params['in_gamma'], params['in_beta']
    w_in_eff = (gamma[:, None] * w_in).astype(jnp.bfloat16)
    b_in_eff = ((beta * gamma) @ w_in)[None, :].astype(jnp.float32)

    # ---- down path (in-conv fused into level 0, mid-logit into level L-1) ----
    shortcuts, mid_logit = [], None
    for level, (k, s) in enumerate(layers_cfg):
        kw = dict(stride=s)
        if level == 0:
            kw.update(w_pre=w_in_eff, b_pre=b_in_eff)
        if level == L - 1:
            kw.update(w_logit=params['mid_logit_w'].astype(jnp.float32),
                      b_logit=params['mid_logit_b'][None, :].astype(jnp.float32))
        x, lg = _down_block(x, params['down_w'][level].astype(jnp.bfloat16),
                            params['down_b'][level][None, :].astype(jnp.float32),
                            **kw)
        if lg is not None:
            mid_logit = lg
        shortcuts.insert(0, x)

    # ---- up path (up_c + up_s channel-concat + lrelu + logit fused per level) ----
    logits = [mid_logit]
    for i in range(L):
        k, s = layers_cfg[L - 1 - i]
        w_c = jnp.transpose(params['up_c_w'][i], (2, 3, 0, 1)).astype(jnp.bfloat16)
        w_s = jnp.transpose(params['up_s_w'][i], (2, 3, 0, 1)).astype(jnp.bfloat16)
        w_cat = jnp.concatenate([w_c, w_s], axis=2)        # (k, k, 2*Cd, Cu)
        b_sum = (params['up_c_b'][i] + params['up_s_b'][i])[None, :].astype(jnp.float32)
        wl = params['logit_w'][i].astype(jnp.float32)
        bl = params['logit_b'][i][None, :].astype(jnp.float32)
        x, lg = _up_block(x, shortcuts[i], w_cat, b_sum, wl, bl,
                          k=k, s=s, need_y=(i < L - 1))
        logits.append(lg)
    return logits


if __name__ == "__main__":
    key = jax.random.PRNGKey(0)
    in_ch, out_ch, base_dim = 3, 1, 32
    layers_cfg = [(3, 2), (3, 2)]          # (kernel_size, stride) per down level
    N, H, W = 2, 16, 16

    kp, kx = jax.random.split(key)
    params = init_params(kp, in_ch, out_ch, base_dim, layers_cfg)
    x = jax.random.normal(kx, (N, in_ch, H, W), jnp.float32)   # NCHW input

    fwd = jax.jit(lambda xx, pp: patch_discriminator_forward(xx, pp, layers_cfg))
    logits = fwd(x, params)
    logits = jax.block_until_ready(logits)

    expected = [(N, out_ch, 4, 4), (N, out_ch, 8, 8), (N, out_ch, 16, 16)]
    got = [tuple(int(d) for d in l.shape) for l in logits]
    assert got == expected, got
    assert all(bool(jnp.all(jnp.isfinite(l))) for l in logits)
    print("KERNEL_OK")
</pallas_src>

<mosaic_0001>
module attributes {stable_mosaic.version = 11 : i64} {
  func.func @kernel(%arg0: i32, %arg1: memref<1x16x16x3xbf16, #tpu.memory_space<vmem>>, %arg2: memref<3x32xbf16, #tpu.memory_space<vmem>>, %arg3: memref<1x32xf32, #tpu.memory_space<vmem>>, %arg4: memref<3x3x32x64xbf16, #tpu.memory_space<vmem>>, %arg5: memref<1x64xf32, #tpu.memory_space<vmem>>, %arg6: memref<1x64x64xbf16, #tpu.memory_space<vmem>>, %arg7: memref<1x18x18x32xf32, #tpu.memory_space<vmem>>) attributes {dimension_semantics = [#tpu.dimension_semantics<parallel>], iteration_bounds = array<i64: 2>, scalar_prefetch = 0 : i64, scratch_operands = 1 : i64, tpu.core_type = #tpu.core_type<tc>, window_params = [{transform_indices = @transform_0, window_bounds = array<i64: 1, 16, 16, 3>}, {pipeline_mode = #tpu.pipeline_mode<synchronous>, transform_indices = @transform_1, window_bounds = array<i64: 3, 32>}, {pipeline_mode = #tpu.pipeline_mode<synchronous>, transform_indices = @transform_2, window_bounds = array<i64: 1, 32>}, {pipeline_mode = #tpu.pipeline_mode<synchronous>, transform_indices = @transform_3, window_bounds = array<i64: 3, 3, 32, 64>}, {pipeline_mode = #tpu.pipeline_mode<synchronous>, transform_indices = @transform_4, window_bounds = array<i64: 1, 64>}, {transform_indices = @transform_5, window_bounds = array<i64: 1, 64, 64>}]} {
    %cst = arith.constant 0.000000e+00 : f32
    %0 = vector.broadcast %cst : f32 to vector<1x18x18x32xf32>
    %c0 = arith.constant 0 : index
    %c0_0 = arith.constant 0 : index
    %c0_1 = arith.constant 0 : index
    %c0_2 = arith.constant 0 : index
    %1 = vector.load %arg7[%c0, %c0_0, %c0_1, %c0_2] : memref<1x18x18x32xf32, #tpu.memory_space<vmem>>, vector<1x18x18x32xf32>
    tpu.vector_store %arg7[%c0, %c0_0, %c0_1, %c0_2], %0 {strides = array<i32>} : memref<1x18x18x32xf32, #tpu.memory_space<vmem>>, vector<1x18x18x32xf32>,
    %c0_3 = arith.constant 0 : index
    %c0_4 = arith.constant 0 : index
    %c0_5 = arith.constant 0 : index
    %c0_6 = arith.constant 0 : index
    %2 = vector.load %arg1[%c0_3, %c0_4, %c0_5, %c0_6] : memref<1x16x16x3xbf16, #tpu.memory_space<vmem>>, vector<1x16x16x3xbf16>
    %3 = vector.shape_cast %2 : vector<1x16x16x3xbf16> to vector<256x3xbf16>
    %c0_7 = arith.constant 0 : index
    %c0_8 = arith.constant 0 : index
    %4 = vector.load %arg2[%c0_7, %c0_8] : memref<3x32xbf16, #tpu.memory_space<vmem>>, vector<3x32xbf16>
    %cst_9 = arith.constant dense<0.000000e+00> : vector<256x32xf32>
    %5 = tpu.matmul %3, %4, %cst_9 {dimension_numbers = #tpu.dot_dimension_numbers<[1], [0], [0], [1], [0, 0, 1, 1], [], []>} : vector<256x3xbf16>, vector<3x32xbf16>, vector<256x32xf32> -> vector<256x32xf32>
    %c0_10 = arith.constant 0 : index
    %c0_11 = arith.constant 0 : index
    %6 = vector.load %arg3[%c0_10, %c0_11] : memref<1x32xf32, #tpu.memory_space<vmem>>, vector<1x32xf32>
    %7 = vector.broadcast %6 : vector<1x32xf32> to vector<256x32xf32>
    %8 = arith.addf %5, %7 : vector<256x32xf32>
    %9 = vector.shape_cast %8 : vector<256x32xf32> to vector<1x16x16x32xf32>
    %c0_12 = arith.constant 0 : index
    %c1 = arith.constant 1 : index
    %c1_13 = arith.constant 1 : index
    %c0_14 = arith.constant 0 : index
    %10 = vector.load %arg7[%c0_12, %c1, %c1_13, %c0_14] : memref<1x18x18x32xf32, #tpu.memory_space<vmem>>, vector<1x16x16x32xf32>
    tpu.vector_store %arg7[%c0_12, %c1, %c1_13, %c0_14], %9 {strides = array<i32>} : memref<1x18x18x32xf32, #tpu.memory_space<vmem>>, vector<1x16x16x32xf32>,
    %cst_15 = arith.constant 0.000000e+00 : f32
    %11 = vector.broadcast %cst_15 : f32 to vector<64x64xf32>
    %c0_16 = arith.constant 0 : index
    %c0_17 = arith.constant 0 : index
    %c0_18 = arith.constant 0 : index
    %c0_19 = arith.constant 0 : index
    %12 = tpu.strided_load %arg7[%c0_16, %c0_17, %c0_18, %c0_19] {strides = array<i32: 1, 2, 2, 1>} : memref<1x18x18x32xf32, #tpu.memory_space<vmem>>, vector<1x8x8x32xf32>
    %13 = vector.shape_cast %12 : vector<1x8x8x32xf32> to vector<64x32xf32>
    %14 = arith.truncf %13 : vector<64x32xf32> to vector<64x32xbf16>
    %c0_20 = arith.constant 0 : index
    %c0_21 = arith.constant 0 : index
    %c0_22 = arith.constant 0 : index
    %c0_23 = arith.constant 0 : index
    %15 = vector.load %arg4[%c0_20, %c0_21, %c0_22, %c0_23] : memref<3x3x32x64xbf16, #tpu.memory_space<vmem>>, vector<1x1x32x64xbf16>
    %16 = vector.shape_cast %15 : vector<1x1x32x64xbf16> to vector<32x64xbf16>
    %cst_24 = arith.constant dense<0.000000e+00> : vector<64x64xf32>
    %17 = tpu.matmul %14, %16, %cst_24 {dimension_numbers = #tpu.dot_dimension_numbers<[1], [0], [0], [1], [0, 0, 1, 1], [], []>} : vector<64x32xbf16>, vector<32x64xbf16>, vector<64x64xf32> -> vector<64x64xf32>
    %18 = arith.addf %11, %17 : vector<64x64xf32>
    %c0_25 = arith.constant 0 : index
    %c0_26 = arith.constant 0 : index
    %c1_27 = arith.constant 1 : index
    %c0_28 = arith.constant 0 : index
    %19 = tpu.strided_load %arg7[%c0_25, %c0_26, %c1_27, %c0_28] {strides = array<i32: 1, 2, 2, 1>} : memref<1x18x18x32xf32, #tpu.memory_space<vmem>>, vector<1x8x8x32xf32>
    %20 = vector.shape_cast %19 : vector<1x8x8x32xf32> to vector<64x32xf32>
    %21 = arith.truncf %20 : vector<64x32xf32> to vector<64x32xbf16>
    %c0_29 = arith.constant 0 : index
    %c1_30 = arith.constant 1 : index
    %c0_31 = arith.constant 0 : index
    %c0_32 = arith.constant 0 : index
    %22 = vector.load %arg4[%c0_29, %c1_30, %c0_31, %c0_32] : memref<3x3x32x64xbf16, #tpu.memory_space<vmem>>, vector<1x1x32x64xbf16>
    %23 = vector.shape_cast %22 : vector<1x1x32x64xbf16> to vector<32x64xbf16>
    %cst_33 = arith.constant dense<0.000000e+00> : vector<64x64xf32>
    %24 = tpu.matmul %21, %23, %cst_33 {dimension_numbers = #tpu.dot_dimension_numbers<[1], [0], [0], [1], [0, 0, 1, 1], [], []>} : vector<64x32xbf16>, vector<32x64xbf16>, vector<64x64xf32> -> vector<64x64xf32>
    %25 = arith.addf %18, %24 : vector<64x64xf32>
    %c0_34 = arith.constant 0 : index
    %c0_35 = arith.constant 0 : index
    %c2 = arith.constant 2 : index
    %c0_36 = arith.constant 0 : index
    %26 = tpu.strided_load %arg7[%c0_34, %c0_35, %c2, %c0_36] {strides = array<i32: 1, 2, 2, 1>} : memref<1x18x18x32xf32, #tpu.memory_space<vmem>>, vector<1x8x8x32xf32>
    %27 = vector.shape_cast %26 : vector<1x8x8x32xf32> to vector<64x32xf32>
    %28 = arith.truncf %27 : vector<64x32xf32> to vector<64x32xbf16>
    %c0_37 = arith.constant 0 : index
    %c2_38 = arith.constant 2 : index
    %c0_39 = arith.constant 0 : index
    %c0_40 = arith.constant 0 : index
    %29 = vector.load %arg4[%c0_37, %c2_38, %c0_39, %c0_40] : memref<3x3x32x64xbf16, #tpu.memory_space<vmem>>, vector<1x1x32x64xbf16>
    %30 = vector.shape_cast %29 : vector<1x1x32x64xbf16> to vector<32x64xbf16>
    %cst_41 = arith.constant dense<0.000000e+00> : vector<64x64xf32>
    %31 = tpu.matmul %28, %30, %cst_41 {dimension_numbers = #tpu.dot_dimension_numbers<[1], [0], [0], [1], [0, 0, 1, 1], [], []>} : vector<64x32xbf16>, vector<32x64xbf16>, vector<64x64xf32> -> vector<64x64xf32>
    %32 = arith.addf %25, %31 : vector<64x64xf32>
    %c0_42 = arith.constant 0 : index
    %c1_43 = arith.constant 1 : index
    %c0_44 = arith.constant 0 : index
    %c0_45 = arith.constant 0 : index
    %33 = tpu.strided_load %arg7[%c0_42, %c1_43, %c0_44, %c0_45] {strides = array<i32: 1, 2, 2, 1>} : memref<1x18x18x32xf32, #tpu.memory_space<vmem>>, vector<1x8x8x32xf32>
    %34 = vector.shape_cast %33 : vector<1x8x8x32xf32> to vector<64x32xf32>
    %35 = arith.truncf %34 : vector<64x32xf32> to vector<64x32xbf16>
    %c1_46 = arith.constant 1 : index
    %c0_47 = arith.constant 0 : index
    %c0_48 = arith.constant 0 : index
    %c0_49 = arith.constant 0 : index
    %36 = vector.load %arg4[%c1_46, %c0_47, %c0_48, %c0_49] : memref<3x3x32x64xbf16, #tpu.memory_space<vmem>>, vector<1x1x32x64xbf16>
    %37 = vector.shape_cast %36 : vector<1x1x32x64xbf16> to vector<32x64xbf16>
    %cst_50 = arith.constant dense<0.000000e+00> : vector<64x64xf32>
    %38 = tpu.matmul %35, %37, %cst_50 {dimension_numbers = #tpu.dot_dimension_numbers<[1], [0], [0], [1], [0, 0, 1, 1], [], []>} : vector<64x32xbf16>, vector<32x64xbf16>, vector<64x64xf32> -> vector<64x64xf32>
    %39 = arith.addf %32, %38 : vector<64x64xf32>
    %c0_51 = arith.constant 0 : index
    %c1_52 = arith.constant 1 : index
    %c1_53 = arith.constant 1 : index
    %c0_54 = arith.constant 0 : index
    %40 = tpu.strided_load %arg7[%c0_51, %c1_52, %c1_53, %c0_54] {strides = array<i32: 1, 2, 2, 1>} : memref<1x18x18x32xf32, #tpu.memory_space<vmem>>, vector<1x8x8x32xf32>
    %41 = vector.shape_cast %40 : vector<1x8x8x32xf32> to vector<64x32xf32>
    %42 = arith.truncf %41 : vector<64x32xf32> to vector<64x32xbf16>
    %c1_55 = arith.constant 1 : index
    %c1_56 = arith.constant 1 : index
    %c0_57 = arith.constant 0 : index
    %c0_58 = arith.constant 0 : index
    %43 = vector.load %arg4[%c1_55, %c1_56, %c0_57, %c0_58] : memref<3x3x32x64xbf16, #tpu.memory_space<vmem>>, vector<1x1x32x64xbf16>
    %44 = vector.shape_cast %43 : vector<1x1x32x64xbf16> to vector<32x64xbf16>
    %cst_59 = arith.constant dense<0.000000e+00> : vector<64x64xf32>
    %45 = tpu.matmul %42, %44, %cst_59 {dimension_numbers = #tpu.dot_dimension_numbers<[1], [0], [0], [1], [0, 0, 1, 1], [], []>} : vector<64x32xbf16>, vector<32x64xbf16>, vector<64x64xf32> -> vector<64x64xf32>
    %46 = arith.addf %39, %45 : vector<64x64xf32>
    %c0_60 = arith.constant 0 : index
    %c1_61 = arith.constant 1 : index
    %c2_62 = arith.constant 2 : index
    %c0_63 = arith.constant 0 : index
    %47 = tpu.strided_load %arg7[%c0_60, %c1_61, %c2_62, %c0_63] {strides = array<i32: 1, 2, 2, 1>} : memref<1x18x18x32xf32, #tpu.memory_space<vmem>>, vector<1x8x8x32xf32>
    %48 = vector.shape_cast %47 : vector<1x8x8x32xf32> to vector<64x32xf32>
    %49 = arith.truncf %48 : vector<64x32xf32> to vector<64x32xbf16>
    %c1_64 = arith.constant 1 : index
    %c2_65 = arith.constant 2 : index
    %c0_66 = arith.constant 0 : index
    %c0_67 = arith.constant 0 : index
    %50 = vector.load %arg4[%c1_64, %c2_65, %c0_66, %c0_67] : memref<3x3x32x64xbf16, #tpu.memory_space<vmem>>, vector<1x1x32x64xbf16>
    %51 = vector.shape_cast %50 : vector<1x1x32x64xbf16> to vector<32x64xbf16>
    %cst_68 = arith.constant dense<0.000000e+00> : vector<64x64xf32>
    %52 = tpu.matmul %49, %51, %cst_68 {dimension_numbers = #tpu.dot_dimension_numbers<[1], [0], [0], [1], [0, 0, 1, 1], [], []>} : vector<64x32xbf16>, vector<32x64xbf16>, vector<64x64xf32> -> vector<64x64xf32>
    %53 = arith.addf %46, %52 : vector<64x64xf32>
    %c0_69 = arith.constant 0 : index
    %c2_70 = arith.constant 2 : index
    %c0_71 = arith.constant 0 : index
    %c0_72 = arith.constant 0 : index
    %54 = tpu.strided_load %arg7[%c0_69, %c2_70, %c0_71, %c0_72] {strides = array<i32: 1, 2, 2, 1>} : memref<1x18x18x32xf32, #tpu.memory_space<vmem>>, vector<1x8x8x32xf32>
    %55 = vector.shape_cast %54 : vector<1x8x8x32xf32> to vector<64x32xf32>
    %56 = arith.truncf %55 : vector<64x32xf32> to vector<64x32xbf16>
    %c2_73 = arith.constant 2 : index
    %c0_74 = arith.constant 0 : index
    %c0_75 = arith.constant 0 : index
    %c0_76 = arith.constant 0 : index
    %57 = vector.load %arg4[%c2_73, %c0_74, %c0_75, %c0_76] : memref<3x3x32x64xbf16, #tpu.memory_space<vmem>>, vector<1x1x32x64xbf16>
    %58 = vector.shape_cast %57 : vector<1x1x32x64xbf16> to vector<32x64xbf16>
    %cst_77 = arith.constant dense<0.000000e+00> : vector<64x64xf32>
    %59 = tpu.matmul %56, %58, %cst_77 {dimension_numbers = #tpu.dot_dimension_numbers<[1], [0], [0], [1], [0, 0, 1, 1], [], []>} : vector<64x32xbf16>, vector<32x64xbf16>, vector<64x64xf32> -> vector<64x64xf32>
    %60 = arith.addf %53, %59 : vector<64x64xf32>
    %c0_78 = arith.constant 0 : index
    %c2_79 = arith.constant 2 : index
    %c1_80 = arith.constant 1 : index
    %c0_81 = arith.constant 0 : index
    %61 = tpu.strided_load %arg7[%c0_78, %c2_79, %c1_80, %c0_81] {strides = array<i32: 1, 2, 2, 1>} : memref<1x18x18x32xf32, #tpu.memory_space<vmem>>, vector<1x8x8x32xf32>
    %62 = vector.shape_cast %61 : vector<1x8x8x32xf32> to vector<64x32xf32>
    %63 = arith.truncf %62 : vector<64x32xf32> to vector<64x32xbf16>
    %c2_82 = arith.constant 2 : index
    %c1_83 = arith.constant 1 : index
    %c0_84 = arith.constant 0 : index
    %c0_85 = arith.constant 0 : index
    %64 = vector.load %arg4[%c2_82, %c1_83, %c0_84, %c0_85] : memref<3x3x32x64xbf16, #tpu.memory_space<vmem>>, vector<1x1x32x64xbf16>
    %65 = vector.shape_cast %64 : vector<1x1x32x64xbf16> to vector<32x64xbf16>
    %cst_86 = arith.constant dense<0.000000e+00> : vector<64x64xf32>
    %66 = tpu.matmul %63, %65, %cst_86 {dimension_numbers = #tpu.dot_dimension_numbers<[1], [0], [0], [1], [0, 0, 1, 1], [], []>} : vector<64x32xbf16>, vector<32x64xbf16>, vector<64x64xf32> -> vector<64x64xf32>
    %67 = arith.addf %60, %66 : vector<64x64xf32>
    %c0_87 = arith.constant 0 : index
    %c2_88 = arith.constant 2 : index
    %c2_89 = arith.constant 2 : index
    %c0_90 = arith.constant 0 : index
    %68 = tpu.strided_load %arg7[%c0_87, %c2_88, %c2_89, %c0_90] {strides = array<i32: 1, 2, 2, 1>} : memref<1x18x18x32xf32, #tpu.memory_space<vmem>>, vector<1x8x8x32xf32>
    %69 = vector.shape_cast %68 : vector<1x8x8x32xf32> to vector<64x32xf32>
    %70 = arith.truncf %69 : vector<64x32xf32> to vector<64x32xbf16>
    %c2_91 = arith.constant 2 : index
    %c2_92 = arith.constant 2 : index
    %c0_93 = arith.constant 0 : index
    %c0_94 = arith.constant 0 : index
    %71 = vector.load %arg4[%c2_91, %c2_92, %c0_93, %c0_94] : memref<3x3x32x64xbf16, #tpu.memory_space<vmem>>, vector<1x1x32x64xbf16>
    %72 = vector.shape_cast %71 : vector<1x1x32x64xbf16> to vector<32x64xbf16>
    %cst_95 = arith.constant dense<0.000000e+00> : vector<64x64xf32>
    %73 = tpu.matmul %70, %72, %cst_95 {dimension_numbers = #tpu.dot_dimension_numbers<[1], [0], [0], [1], [0, 0, 1, 1], [], []>} : vector<64x32xbf16>, vector<32x64xbf16>, vector<64x64xf32> -> vector<64x64xf32>
    %74 = arith.addf %67, %73 : vector<64x64xf32>
    %c0_96 = arith.constant 0 : index
    %c0_97 = arith.constant 0 : index
    %75 = vector.load %arg5[%c0_96, %c0_97] : memref<1x64xf32, #tpu.memory_space<vmem>>, vector<1x64xf32>
    %76 = vector.broadcast %75 : vector<1x64xf32> to vector<64x64xf32>
    %77 = arith.addf %74, %76 : vector<64x64xf32>
    %cst_98 = arith.constant 0.000000e+00 : f32
    %78 = vector.broadcast %cst_98 : f32 to vector<64x64xf32>
    %79 = arith.cmpf oge, %77, %78 : vector<64x64xf32>
    %cst_99 = arith.constant 2.000000e-01 : f32
    %80 = vector.broadcast %cst_99 : f32 to vector<64x64xf32>
    %81 = arith.mulf %80, %77 : vector<64x64xf32>
    %82 = arith.select %79, %77, %81 : vector<64x64xi1>, vector<64x64xf32>
    %83 = vector.shape_cast %82 : vector<64x64xf32> to vector<1x64x64xf32>
    %84 = arith.truncf %83 : vector<1x64x64xf32> to vector<1x64x64xbf16>
    %c0_100 = arith.constant 0 : index
    %c0_101 = arith.constant 0 : index
    %c0_102 = arith.constant 0 : index
    %85 = vector.load %arg6[%c0_100, %c0_101, %c0_102] : memref<1x64x64xbf16, #tpu.memory_space<vmem>>, vector<1x64x64xbf16>
    tpu.vector_store %arg6[%c0_100, %c0_101, %c0_102], %84 {strides = array<i32>} : memref<1x64x64xbf16, #tpu.memory_space<vmem>>, vector<1x64x64xbf16>,
    return
  }
  func.func @transform_0(%arg0: i32) -> (i32, i32, i32, i32) {
    %c0_i32 = arith.constant 0 : i32
    %c0_i32_0 = arith.constant 0 : i32
    %c0_i32_1 = arith.constant 0 : i32
    %c0_i32_2 = arith.constant 0 : i32
    return %arg0, %c0_i32, %c0_i32_0, %c0_i32_1 : i32, i32, i32, i32
  }
  func.func @transform_1(%arg0: i32) -> (i32, i32) {
    %c0_i32 = arith.constant 0 : i32
    %c0_i32_0 = arith.constant 0 : i32
    %c0_i32_1 = arith.constant 0 : i32
    return %c0_i32, %c0_i32_0 : i32, i32
  }
  func.func @transform_2(%arg0: i32) -> (i32, i32) {
    %c0_i32 = arith.constant 0 : i32
    %c0_i32_0 = arith.constant 0 : i32
    %c0_i32_1 = arith.constant 0 : i32
    return %c0_i32, %c0_i32_0 : i32, i32
  }
  func.func @transform_3(%arg0: i32) -> (i32, i32, i32, i32) {
    %c0_i32 = arith.constant 0 : i32
    %c0_i32_0 = arith.constant 0 : i32
    %c0_i32_1 = arith.constant 0 : i32
    %c0_i32_2 = arith.constant 0 : i32
    %c0_i32_3 = arith.constant 0 : i32
    return %c0_i32, %c0_i32_0, %c0_i32_1, %c0_i32_2 : i32, i32, i32, i32
  }
  func.func @transform_4(%arg0: i32) -> (i32, i32) {
    %c0_i32 = arith.constant 0 : i32
    %c0_i32_0 = arith.constant 0 : i32
    %c0_i32_1 = arith.constant 0 : i32
    return %c0_i32, %c0_i32_0 : i32, i32
  }
  func.func @transform_5(%arg0: i32) -> (i32, i32, i32) {
    %c0_i32 = arith.constant 0 : i32
    %c0_i32_0 = arith.constant 0 : i32
    %c0_i32_1 = arith.constant 0 : i32
    return %arg0, %c0_i32, %c0_i32_0 : i32, i32, i32
  }
}

module attributes {stable_mosaic.version = 11 : i64} {
  func.func @kernel(%arg0: i32, %arg1: memref<1x8x8x64xbf16, #tpu.memory_space<vmem>>, %arg2: memref<3x3x64x128xbf16, #tpu.memory_space<vmem>>, %arg3: memref<1x128xf32, #tpu.memory_space<vmem>>, %arg4: memref<128x1xf32, #tpu.memory_space<vmem>>, %arg5: memref<1x1xf32, #tpu.memory_space<vmem>>, %arg6: memref<1x16x128xbf16, #tpu.memory_space<vmem>>, %arg7: memref<1x16x1xf32, #tpu.memory_space<vmem>>, %arg8: memref<1x10x10x64xf32, #tpu.memory_space<vmem>>) attributes {dimension_semantics = [#tpu.dimension_semantics<parallel>], iteration_bounds = array<i64: 2>, scalar_prefetch = 0 : i64, scratch_operands = 1 : i64, tpu.core_type = #tpu.core_type<tc>, window_params = [{transform_indices = @transform_0, window_bounds = array<i64: 1, 8, 8, 64>}, {pipeline_mode = #tpu.pipeline_mode<synchronous>, transform_indices = @transform_1, window_bounds = array<i64: 3, 3, 64, 128>}, {pipeline_mode = #tpu.pipeline_mode<synchronous>, transform_indices = @transform_2, window_bounds = array<i64: 1, 128>}, {pipeline_mode = #tpu.pipeline_mode<synchronous>, transform_indices = @transform_3, window_bounds = array<i64: 128, 1>}, {pipeline_mode = #tpu.pipeline_mode<synchronous>, transform_indices = @transform_4, window_bounds = array<i64: 1, 1>}, {transform_indices = @transform_5, window_bounds = array<i64: 1, 16, 128>}, {transform_indices = @transform_6, window_bounds = array<i64: 1, 16, 1>}]} {
    %cst = arith.constant 0.000000e+00 : f32
    %0 = vector.broadcast %cst : f32 to vector<1x10x10x64xf32>
    %c0 = arith.constant 0 : index
    %c0_0 = arith.constant 0 : index
    %c0_1 = arith.constant 0 : index
    %c0_2 = arith.constant 0 : index
    %1 = vector.load %arg8[%c0, %c0_0, %c0_1, %c0_2] : memref<1x10x10x64xf32, #tpu.memory_space<vmem>>, vector<1x10x10x64xf32>
    tpu.vector_store %arg8[%c0, %c0_0, %c0_1, %c0_2], %0 {strides = array<i32>} : memref<1x10x10x64xf32, #tpu.memory_space<vmem>>, vector<1x10x10x64xf32>,
    %c0_3 = arith.constant 0 : index
    %c0_4 = arith.constant 0 : index
    %c0_5 = arith.constant 0 : index
    %c0_6 = arith.constant 0 : index
    %2 = vector.load %arg1[%c0_3, %c0_4, %c0_5, %c0_6] : memref<1x8x8x64xbf16, #tpu.memory_space<vmem>>, vector<1x8x8x64xbf16>
    %3 = arith.extf %2 : vector<1x8x8x64xbf16> to vector<1x8x8x64xf32>
    %c0_7 = arith.constant 0 : index
    %c1 = arith.constant 1 : index
    %c1_8 = arith.constant 1 : index
    %c0_9 = arith.constant 0 : index
    %4 = vector.load %arg8[%c0_7, %c1, %c1_8, %c0_9] : memref<1x10x10x64xf32, #tpu.memory_space<vmem>>, vector<1x8x8x64xf32>
    tpu.vector_store %arg8[%c0_7, %c1, %c1_8, %c0_9], %3 {strides = array<i32>} : memref<1x10x10x64xf32, #tpu.memory_space<vmem>>, vector<1x8x8x64xf32>,
    %cst_10 = arith.constant 0.000000e+00 : f32
    %5 = vector.broadcast %cst_10 : f32 to vector<16x128xf32>
    %c0_11 = arith.constant 0 : index
    %c0_12 = arith.constant 0 : index
    %c0_13 = arith.constant 0 : index
    %c0_14 = arith.constant 0 : index
    %6 = tpu.strided_load %arg8[%c0_11, %c0_12, %c0_13, %c0_14] {strides = array<i32: 1, 2, 2, 1>} : memref<1x10x10x64xf32, #tpu.memory_space<vmem>>, vector<1x4x4x64xf32>
    %7 = vector.shape_cast %6 : vector<1x4x4x64xf32> to vector<16x64xf32>
    %8 = arith.truncf %7 : vector<16x64xf32> to vector<16x64xbf16>
    %c0_15 = arith.constant 0 : index
    %c0_16 = arith.constant 0 : index
    %c0_17 = arith.constant 0 : index
    %c0_18 = arith.constant 0 : index
    %9 = vector.load %arg2[%c0_15, %c0_16, %c0_17, %c0_18] : memref<3x3x64x128xbf16, #tpu.memory_space<vmem>>, vector<1x1x64x128xbf16>
    %10 = vector.shape_cast %9 : vector<1x1x64x128xbf16> to vector<64x128xbf16>
    %cst_19 = arith.constant dense<0.000000e+00> : vector<16x128xf32>
    %11 = tpu.matmul %8, %10, %cst_19 {dimension_numbers = #tpu.dot_dimension_numbers<[1], [0], [0], [1], [0, 0, 1, 1], [], []>} : vector<16x64xbf16>, vector<64x128xbf16>, vector<16x128xf32> -> vector<16x128xf32>
    %12 = arith.addf %5, %11 : vector<16x128xf32>
    %c0_20 = arith.constant 0 : index
    %c0_21 = arith.constant 0 : index
    %c1_22 = arith.constant 1 : index
    %c0_23 = arith.constant 0 : index
    %13 = tpu.strided_load %arg8[%c0_20, %c0_21, %c1_22, %c0_23] {strides = array<i32: 1, 2, 2, 1>} : memref<1x10x10x64xf32, #tpu.memory_space<vmem>>, vector<1x4x4x64xf32>
    %14 = vector.shape_cast %13 : vector<1x4x4x64xf32> to vector<16x64xf32>
    %15 = arith.truncf %14 : vector<16x64xf32> to vector<16x64xbf16>
    %c0_24 = arith.constant 0 : index
    %c1_25 = arith.constant 1 : index
    %c0_26 = arith.constant 0 : index
    %c0_27 = arith.constant 0 : index
    %16 = vector.load %arg2[%c0_24, %c1_25, %c0_26, %c0_27] : memref<3x3x64x128xbf16, #tpu.memory_space<vmem>>, vector<1x1x64x128xbf16>
    %17 = vector.shape_cast %16 : vector<1x1x64x128xbf16> to vector<64x128xbf16>
    %cst_28 = arith.constant dense<0.000000e+00> : vector<16x128xf32>
    %18 = tpu.matmul %15, %17, %cst_28 {dimension_numbers = #tpu.dot_dimension_numbers<[1], [0], [0], [1], [0, 0, 1, 1], [], []>} : vector<16x64xbf16>, vector<64x128xbf16>, vector<16x128xf32> -> vector<16x128xf32>
    %19 = arith.addf %12, %18 : vector<16x128xf32>
    %c0_29 = arith.constant 0 : index
    %c0_30 = arith.constant 0 : index
    %c2 = arith.constant 2 : index
    %c0_31 = arith.constant 0 : index
    %20 = tpu.strided_load %arg8[%c0_29, %c0_30, %c2, %c0_31] {strides = array<i32: 1, 2, 2, 1>} : memref<1x10x10x64xf32, #tpu.memory_space<vmem>>, vector<1x4x4x64xf32>
    %21 = vector.shape_cast %20 : vector<1x4x4x64xf32> to vector<16x64xf32>
    %22 = arith.truncf %21 : vector<16x64xf32> to vector<16x64xbf16>
    %c0_32 = arith.constant 0 : index
    %c2_33 = arith.constant 2 : index
    %c0_34 = arith.constant 0 : index
    %c0_35 = arith.constant 0 : index
    %23 = vector.load %arg2[%c0_32, %c2_33, %c0_34, %c0_35] : memref<3x3x64x128xbf16, #tpu.memory_space<vmem>>, vector<1x1x64x128xbf16>
    %24 = vector.shape_cast %23 : vector<1x1x64x128xbf16> to vector<64x128xbf16>
    %cst_36 = arith.constant dense<0.000000e+00> : vector<16x128xf32>
    %25 = tpu.matmul %22, %24, %cst_36 {dimension_numbers = #tpu.dot_dimension_numbers<[1], [0], [0], [1], [0, 0, 1, 1], [], []>} : vector<16x64xbf16>, vector<64x128xbf16>, vector<16x128xf32> -> vector<16x128xf32>
    %26 = arith.addf %19, %25 : vector<16x128xf32>
    %c0_37 = arith.constant 0 : index
    %c1_38 = arith.constant 1 : index
    %c0_39 = arith.constant 0 : index
    %c0_40 = arith.constant 0 : index
    %27 = tpu.strided_load %arg8[%c0_37, %c1_38, %c0_39, %c0_40] {strides = array<i32: 1, 2, 2, 1>} : memref<1x10x10x64xf32, #tpu.memory_space<vmem>>, vector<1x4x4x64xf32>
    %28 = vector.shape_cast %27 : vector<1x4x4x64xf32> to vector<16x64xf32>
    %29 = arith.truncf %28 : vector<16x64xf32> to vector<16x64xbf16>
    %c1_41 = arith.constant 1 : index
    %c0_42 = arith.constant 0 : index
    %c0_43 = arith.constant 0 : index
    %c0_44 = arith.constant 0 : index
    %30 = vector.load %arg2[%c1_41, %c0_42, %c0_43, %c0_44] : memref<3x3x64x128xbf16, #tpu.memory_space<vmem>>, vector<1x1x64x128xbf16>
    %31 = vector.shape_cast %30 : vector<1x1x64x128xbf16> to vector<64x128xbf16>
    %cst_45 = arith.constant dense<0.000000e+00> : vector<16x128xf32>
    %32 = tpu.matmul %29, %31, %cst_45 {dimension_numbers = #tpu.dot_dimension_numbers<[1], [0], [0], [1], [0, 0, 1, 1], [], []>} : vector<16x64xbf16>, vector<64x128xbf16>, vector<16x128xf32> -> vector<16x128xf32>
    %33 = arith.addf %26, %32 : vector<16x128xf32>
    %c0_46 = arith.constant 0 : index
    %c1_47 = arith.constant 1 : index
    %c1_48 = arith.constant 1 : index
    %c0_49 = arith.constant 0 : index
    %34 = tpu.strided_load %arg8[%c0_46, %c1_47, %c1_48, %c0_49] {strides = array<i32: 1, 2, 2, 1>} : memref<1x10x10x64xf32, #tpu.memory_space<vmem>>, vector<1x4x4x64xf32>
    %35 = vector.shape_cast %34 : vector<1x4x4x64xf32> to vector<16x64xf32>
    %36 = arith.truncf %35 : vector<16x64xf32> to vector<16x64xbf16>
    %c1_50 = arith.constant 1 : index
    %c1_51 = arith.constant 1 : index
    %c0_52 = arith.constant 0 : index
    %c0_53 = arith.constant 0 : index
    %37 = vector.load %arg2[%c1_50, %c1_51, %c0_52, %c0_53] : memref<3x3x64x128xbf16, #tpu.memory_space<vmem>>, vector<1x1x64x128xbf16>
    %38 = vector.shape_cast %37 : vector<1x1x64x128xbf16> to vector<64x128xbf16>
    %cst_54 = arith.constant dense<0.000000e+00> : vector<16x128xf32>
    %39 = tpu.matmul %36, %38, %cst_54 {dimension_numbers = #tpu.dot_dimension_numbers<[1], [0], [0], [1], [0, 0, 1, 1], [], []>} : vector<16x64xbf16>, vector<64x128xbf16>, vector<16x128xf32> -> vector<16x128xf32>
    %40 = arith.addf %33, %39 : vector<16x128xf32>
    %c0_55 = arith.constant 0 : index
    %c1_56 = arith.constant 1 : index
    %c2_57 = arith.constant 2 : index
    %c0_58 = arith.constant 0 : index
    %41 = tpu.strided_load %arg8[%c0_55, %c1_56, %c2_57, %c0_58] {strides = array<i32: 1, 2, 2, 1>} : memref<1x10x10x64xf32, #tpu.memory_space<vmem>>, vector<1x4x4x64xf32>
    %42 = vector.shape_cast %41 : vector<1x4x4x64xf32> to vector<16x64xf32>
    %43 = arith.truncf %42 : vector<16x64xf32> to vector<16x64xbf16>
    %c1_59 = arith.constant 1 : index
    %c2_60 = arith.constant 2 : index
    %c0_61 = arith.constant 0 : index
    %c0_62 = arith.constant 0 : index
    %44 = vector.load %arg2[%c1_59, %c2_60, %c0_61, %c0_62] : memref<3x3x64x128xbf16, #tpu.memory_space<vmem>>, vector<1x1x64x128xbf16>
    %45 = vector.shape_cast %44 : vector<1x1x64x128xbf16> to vector<64x128xbf16>
    %cst_63 = arith.constant dense<0.000000e+00> : vector<16x128xf32>
    %46 = tpu.matmul %43, %45, %cst_63 {dimension_numbers = #tpu.dot_dimension_numbers<[1], [0], [0], [1], [0, 0, 1, 1], [], []>} : vector<16x64xbf16>, vector<64x128xbf16>, vector<16x128xf32> -> vector<16x128xf32>
    %47 = arith.addf %40, %46 : vector<16x128xf32>
    %c0_64 = arith.constant 0 : index
    %c2_65 = arith.constant 2 : index
    %c0_66 = arith.constant 0 : index
    %c0_67 = arith.constant 0 : index
    %48 = tpu.strided_load %arg8[%c0_64, %c2_65, %c0_66, %c0_67] {strides = array<i32: 1, 2, 2, 1>} : memref<1x10x10x64xf32, #tpu.memory_space<vmem>>, vector<1x4x4x64xf32>
    %49 = vector.shape_cast %48 : vector<1x4x4x64xf32> to vector<16x64xf32>
    %50 = arith.truncf %49 : vector<16x64xf32> to vector<16x64xbf16>
    %c2_68 = arith.constant 2 : index
    %c0_69 = arith.constant 0 : index
    %c0_70 = arith.constant 0 : index
    %c0_71 = arith.constant 0 : index
    %51 = vector.load %arg2[%c2_68, %c0_69, %c0_70, %c0_71] : memref<3x3x64x128xbf16, #tpu.memory_space<vmem>>, vector<1x1x64x128xbf16>
    %52 = vector.shape_cast %51 : vector<1x1x64x128xbf16> to vector<64x128xbf16>
    %cst_72 = arith.constant dense<0.000000e+00> : vector<16x128xf32>
    %53 = tpu.matmul %50, %52, %cst_72 {dimension_numbers = #tpu.dot_dimension_numbers<[1], [0], [0], [1], [0, 0, 1, 1], [], []>} : vector<16x64xbf16>, vector<64x128xbf16>, vector<16x128xf32> -> vector<16x128xf32>
    %54 = arith.addf %47, %53 : vector<16x128xf32>
    %c0_73 = arith.constant 0 : index
    %c2_74 = arith.constant 2 : index
    %c1_75 = arith.constant 1 : index
    %c0_76 = arith.constant 0 : index
    %55 = tpu.strided_load %arg8[%c0_73, %c2_74, %c1_75, %c0_76] {strides = array<i32: 1, 2, 2, 1>} : memref<1x10x10x64xf32, #tpu.memory_space<vmem>>, vector<1x4x4x64xf32>
    %56 = vector.shape_cast %55 : vector<1x4x4x64xf32> to vector<16x64xf32>
    %57 = arith.truncf %56 : vector<16x64xf32> to vector<16x64xbf16>
    %c2_77 = arith.constant 2 : index
    %c1_78 = arith.constant 1 : index
    %c0_79 = arith.constant 0 : index
    %c0_80 = arith.constant 0 : index
    %58 = vector.load %arg2[%c2_77, %c1_78, %c0_79, %c0_80] : memref<3x3x64x128xbf16, #tpu.memory_space<vmem>>, vector<1x1x64x128xbf16>
    %59 = vector.shape_cast %58 : vector<1x1x64x128xbf16> to vector<64x128xbf16>
    %cst_81 = arith.constant dense<0.000000e+00> : vector<16x128xf32>
    %60 = tpu.matmul %57, %59, %cst_81 {dimension_numbers = #tpu.dot_dimension_numbers<[1], [0], [0], [1], [0, 0, 1, 1], [], []>} : vector<16x64xbf16>, vector<64x128xbf16>, vector<16x128xf32> -> vector<16x128xf32>
    %61 = arith.addf %54, %60 : vector<16x128xf32>
    %c0_82 = arith.constant 0 : index
    %c2_83 = arith.constant 2 : index
    %c2_84 = arith.constant 2 : index
    %c0_85 = arith.constant 0 : index
    %62 = tpu.strided_load %arg8[%c0_82, %c2_83, %c2_84, %c0_85] {strides = array<i32: 1, 2, 2, 1>} : memref<1x10x10x64xf32, #tpu.memory_space<vmem>>, vector<1x4x4x64xf32>
    %63 = vector.shape_cast %62 : vector<1x4x4x64xf32> to vector<16x64xf32>
    %64 = arith.truncf %63 : vector<16x64xf32> to vector<16x64xbf16>
    %c2_86 = arith.constant 2 : index
    %c2_87 = arith.constant 2 : index
    %c0_88 = arith.constant 0 : index
    %c0_89 = arith.constant 0 : index
    %65 = vector.load %arg2[%c2_86, %c2_87, %c0_88, %c0_89] : memref<3x3x64x128xbf16, #tpu.memory_space<vmem>>, vector<1x1x64x128xbf16>
    %66 = vector.shape_cast %65 : vector<1x1x64x128xbf16> to vector<64x128xbf16>
    %cst_90 = arith.constant dense<0.000000e+00> : vector<16x128xf32>
    %67 = tpu.matmul %64, %66, %cst_90 {dimension_numbers = #tpu.dot_dimension_numbers<[1], [0], [0], [1], [0, 0, 1, 1], [], []>} : vector<16x64xbf16>, vector<64x128xbf16>, vector<16x128xf32> -> vector<16x128xf32>
    %68 = arith.addf %61, %67 : vector<16x128xf32>
    %c0_91 = arith.constant 0 : index
    %c0_92 = arith.constant 0 : index
    %69 = vector.load %arg3[%c0_91, %c0_92] : memref<1x128xf32, #tpu.memory_space<vmem>>, vector<1x128xf32>
    %70 = vector.broadcast %69 : vector<1x128xf32> to vector<16x128xf32>
    %71 = arith.addf %68, %70 : vector<16x128xf32>
    %cst_93 = arith.constant 0.000000e+00 : f32
    %72 = vector.broadcast %cst_93 : f32 to vector<16x128xf32>
    %73 = arith.cmpf oge, %71, %72 : vector<16x128xf32>
    %cst_94 = arith.constant 2.000000e-01 : f32
    %74 = vector.broadcast %cst_94 : f32 to vector<16x128xf32>
    %75 = arith.mulf %74, %71 : vector<16x128xf32>
    %76 = arith.select %73, %71, %75 : vector<16x128xi1>, vector<16x128xf32>
    %77 = vector.shape_cast %76 : vector<16x128xf32> to vector<1x16x128xf32>
    %78 = arith.truncf %77 : vector<1x16x128xf32> to vector<1x16x128xbf16>
    %c0_95 = arith.constant 0 : index
    %c0_96 = arith.constant 0 : index
    %c0_97 = arith.constant 0 : index
    %79 = vector.load %arg6[%c0_95, %c0_96, %c0_97] : memref<1x16x128xbf16, #tpu.memory_space<vmem>>, vector<1x16x128xbf16>
    tpu.vector_store %arg6[%c0_95, %c0_96, %c0_97], %78 {strides = array<i32>} : memref<1x16x128xbf16, #tpu.memory_space<vmem>>, vector<1x16x128xbf16>,
    %c0_98 = arith.constant 0 : index
    %c0_99 = arith.constant 0 : index
    %80 = vector.load %arg4[%c0_98, %c0_99] : memref<128x1xf32, #tpu.memory_space<vmem>>, vector<128x1xf32>
    %cst_100 = arith.constant dense<0.000000e+00> : vector<16x1xf32>
    %81 = tpu.matmul %76, %80, %cst_100 {dimension_numbers = #tpu.dot_dimension_numbers<[1], [0], [0], [1], [0, 0, 1, 1], [], []>} : vector<16x128xf32>, vector<128x1xf32>, vector<16x1xf32> -> vector<16x1xf32>
    %c0_101 = arith.constant 0 : index
    %c0_102 = arith.constant 0 : index
    %82 = vector.load %arg5[%c0_101, %c0_102] : memref<1x1xf32, #tpu.memory_space<vmem>>, vector<1x1xf32>
    %83 = vector.broadcast %82 : vector<1x1xf32> to vector<16x1xf32>
    %84 = arith.addf %81, %83 : vector<16x1xf32>
    %85 = vector.shape_cast %84 : vector<16x1xf32> to vector<1x16x1xf32>
    %c0_103 = arith.constant 0 : index
    %c0_104 = arith.constant 0 : index
    %c0_105 = arith.constant 0 : index
    %86 = vector.load %arg7[%c0_103, %c0_104, %c0_105] : memref<1x16x1xf32, #tpu.memory_space<vmem>>, vector<1x16x1xf32>
    tpu.vector_store %arg7[%c0_103, %c0_104, %c0_105], %85 {strides = array<i32>} : memref<1x16x1xf32, #tpu.memory_space<vmem>>, vector<1x16x1xf32>,
    return
  }
  func.func @transform_0(%arg0: i32) -> (i32, i32, i32, i32) {
    %c0_i32 = arith.constant 0 : i32
    %c0_i32_0 = arith.constant 0 : i32
    %c0_i32_1 = arith.constant 0 : i32
    %c0_i32_2 = arith.constant 0 : i32
    return %arg0, %c0_i32, %c0_i32_0, %c0_i32_1 : i32, i32, i32, i32
  }
  func.func @transform_1(%arg0: i32) -> (i32, i32, i32, i32) {
    %c0_i32 = arith.constant 0 : i32
    %c0_i32_0 = arith.constant 0 : i32
    %c0_i32_1 = arith.constant 0 : i32
    %c0_i32_2 = arith.constant 0 : i32
    %c0_i32_3 = arith.constant 0 : i32
    return %c0_i32, %c0_i32_0, %c0_i32_1, %c0_i32_2 : i32, i32, i32, i32
  }
  func.func @transform_2(%arg0: i32) -> (i32, i32) {
    %c0_i32 = arith.constant 0 : i32
    %c0_i32_0 = arith.constant 0 : i32
    %c0_i32_1 = arith.constant 0 : i32
    return %c0_i32, %c0_i32_0 : i32, i32
  }
  func.func @transform_3(%arg0: i32) -> (i32, i32) {
    %c0_i32 = arith.constant 0 : i32
    %c0_i32_0 = arith.constant 0 : i32
    %c0_i32_1 = arith.constant 0 : i32
    return %c0_i32, %c0_i32_0 : i32, i32
  }
  func.func @transform_4(%arg0: i32) -> (i32, i32) {
    %c0_i32 = arith.constant 0 : i32
    %c0_i32_0 = arith.constant 0 : i32
    %c0_i32_1 = arith.constant 0 : i32
    return %c0_i32, %c0_i32_0 : i32, i32
  }
  func.func @transform_5(%arg0: i32) -> (i32, i32, i32) {
    %c0_i32 = arith.constant 0 : i32
    %c0_i32_0 = arith.constant 0 : i32
    %c0_i32_1 = arith.constant 0 : i32
    return %arg0, %c0_i32, %c0_i32_0 : i32, i32, i32
  }
  func.func @transform_6(%arg0: i32) -> (i32, i32, i32) {
    %c0_i32 = arith.constant 0 : i32
    %c0_i32_0 = arith.constant 0 : i32
    %c0_i32_1 = arith.constant 0 : i32
    return %arg0, %c0_i32, %c0_i32_0 : i32, i32, i32
  }
}

module attributes {stable_mosaic.version = 11 : i64} {
  func.func @kernel(%arg0: i32, %arg1: memref<1x4x4x128xbf16, #tpu.memory_space<vmem>>, %arg2: memref<1x4x4x128xbf16, #tpu.memory_space<vmem>>, %arg3: memref<3x3x256x64xbf16, #tpu.memory_space<vmem>>, %arg4: memref<1x64xf32, #tpu.memory_space<vmem>>, %arg5: memref<64x1xf32, #tpu.memory_space<vmem>>, %arg6: memref<1x1xf32, #tpu.memory_space<vmem>>, %arg7: memref<1x2x2x16x64xbf16, #tpu.memory_space<vmem>>, %arg8: memref<1x2x2x16x1xf32, #tpu.memory_space<vmem>>, %arg9: memref<1x5x5x256xbf16, #tpu.memory_space<vmem>>) attributes {dimension_semantics = [#tpu.dimension_semantics<parallel>], iteration_bounds = array<i64: 2>, scalar_prefetch = 0 : i64, scratch_operands = 1 : i64, tpu.core_type = #tpu.core_type<tc>, window_params = [{transform_indices = @transform_0, window_bounds = array<i64: 1, 4, 4, 128>}, {transform_indices = @transform_1, window_bounds = array<i64: 1, 4, 4, 128>}, {pipeline_mode = #tpu.pipeline_mode<synchronous>, transform_indices = @transform_2, window_bounds = array<i64: 3, 3, 256, 64>}, {pipeline_mode = #tpu.pipeline_mode<synchronous>, transform_indices = @transform_3, window_bounds = array<i64: 1, 64>}, {pipeline_mode = #tpu.pipeline_mode<synchronous>, transform_indices = @transform_4, window_bounds = array<i64: 64, 1>}, {pipeline_mode = #tpu.pipeline_mode<synchronous>, transform_indices = @transform_5, window_bounds = array<i64: 1, 1>}, {transform_indices = @transform_6, window_bounds = array<i64: 1, 2, 2, 16, 64>}, {transform_indices = @transform_7, window_bounds = array<i64: 1, 2, 2, 16, 1>}]} {
    %cst = arith.constant 0.000000e+00 : bf16
    %0 = vector.broadcast %cst : bf16 to vector<1x5x5x256xbf16>
    %c0 = arith.constant 0 : index
    %c0_0 = arith.constant 0 : index
    %c0_1 = arith.constant 0 : index
    %c0_2 = arith.constant 0 : index
    %1 = vector.load %arg9[%c0, %c0_0, %c0_1, %c0_2] : memref<1x5x5x256xbf16, #tpu.memory_space<vmem>>, vector<1x5x5x256xbf16>
    tpu.vector_store %arg9[%c0, %c0_0, %c0_1, %c0_2], %0 {strides = array<i32>} : memref<1x5x5x256xbf16, #tpu.memory_space<vmem>>, vector<1x5x5x256xbf16>,
    %c0_3 = arith.constant 0 : index
    %c0_4 = arith.constant 0 : index
    %c0_5 = arith.constant 0 : index
    %c0_6 = arith.constant 0 : index
    %2 = vector.load %arg1[%c0_3, %c0_4, %c0_5, %c0_6] : memref<1x4x4x128xbf16, #tpu.memory_space<vmem>>, vector<1x4x4x128xbf16>
    %c0_7 = arith.constant 0 : index
    %c0_8 = arith.constant 0 : index
    %c0_9 = arith.constant 0 : index
    %c0_10 = arith.constant 0 : index
    %3 = vector.load %arg9[%c0_7, %c0_8, %c0_9, %c0_10] : memref<1x5x5x256xbf16, #tpu.memory_space<vmem>>, vector<1x4x4x128xbf16>
    tpu.vector_store %arg9[%c0_7, %c0_8, %c0_9, %c0_10], %2 {strides = array<i32>} : memref<1x5x5x256xbf16, #tpu.memory_space<vmem>>, vector<1x4x4x128xbf16>,
    %c0_11 = arith.constant 0 : index
    %c0_12 = arith.constant 0 : index
    %c0_13 = arith.constant 0 : index
    %c0_14 = arith.constant 0 : index
    %4 = vector.load %arg2[%c0_11, %c0_12, %c0_13, %c0_14] : memref<1x4x4x128xbf16, #tpu.memory_space<vmem>>, vector<1x4x4x128xbf16>
    %c0_15 = arith.constant 0 : index
    %c0_16 = arith.constant 0 : index
    %c0_17 = arith.constant 0 : index
    %c128 = arith.constant 128 : index
    %5 = vector.load %arg9[%c0_15, %c0_16, %c0_17, %c128] : memref<1x5x5x256xbf16, #tpu.memory_space<vmem>>, vector<1x4x4x128xbf16>
    tpu.vector_store %arg9[%c0_15, %c0_16, %c0_17, %c128], %4 {strides = array<i32>} : memref<1x5x5x256xbf16, #tpu.memory_space<vmem>>, vector<1x4x4x128xbf16>,
    %c0_18 = arith.constant 0 : index
    %c0_19 = arith.constant 0 : index
    %6 = vector.load %arg4[%c0_18, %c0_19] : memref<1x64xf32, #tpu.memory_space<vmem>>, vector<1x64xf32>
    %c0_20 = arith.constant 0 : index
    %c0_21 = arith.constant 0 : index
    %7 = vector.load %arg5[%c0_20, %c0_21] : memref<64x1xf32, #tpu.memory_space<vmem>>, vector<64x1xf32>
    %c0_22 = arith.constant 0 : index
    %c0_23 = arith.constant 0 : index
    %8 = vector.load %arg6[%c0_22, %c0_23] : memref<1x1xf32, #tpu.memory_space<vmem>>, vector<1x1xf32>
    %cst_24 = arith.constant 0.000000e+00 : f32
    %9 = vector.broadcast %cst_24 : f32 to vector<16x64xf32>
    %c0_25 = arith.constant 0 : index
    %c0_26 = arith.constant 0 : index
    %c0_27 = arith.constant 0 : index
    %c0_28 = arith.constant 0 : index
    %10 = vector.load %arg9[%c0_25, %c0_26, %c0_27, %c0_28] : memref<1x5x5x256xbf16, #tpu.memory_space<vmem>>, vector<1x4x4x256xbf16>
    %11 = vector.shape_cast %10 : vector<1x4x4x256xbf16> to vector<16x256xbf16>
    %c1 = arith.constant 1 : index
    %c1_29 = arith.constant 1 : index
    %c0_30 = arith.constant 0 : index
    %c0_31 = arith.constant 0 : index
    %12 = vector.load %arg3[%c1, %c1_29, %c0_30, %c0_31] : memref<3x3x256x64xbf16, #tpu.memory_space<vmem>>, vector<1x1x256x64xbf16>
    %13 = vector.shape_cast %12 : vector<1x1x256x64xbf16> to vector<256x64xbf16>
    %cst_32 = arith.constant dense<0.000000e+00> : vector<16x64xf32>
    %14 = tpu.matmul %11, %13, %cst_32 {dimension_numbers = #tpu.dot_dimension_numbers<[1], [0], [0], [1], [0, 0, 1, 1], [], []>} : vector<16x256xbf16>, vector<256x64xbf16>, vector<16x64xf32> -> vector<16x64xf32>
    %15 = arith.addf %9, %14 : vector<16x64xf32>
    %16 = vector.broadcast %6 : vector<1x64xf32> to vector<16x64xf32>
    %17 = arith.addf %15, %16 : vector<16x64xf32>
    %cst_33 = arith.constant 0.000000e+00 : f32
    %18 = vector.broadcast %cst_33 : f32 to vector<16x64xf32>
    %19 = arith.cmpf oge, %17, %18 : vector<16x64xf32>
    %cst_34 = arith.constant 2.000000e-01 : f32
    %20 = vector.broadcast %cst_34 : f32 to vector<16x64xf32>
    %21 = arith.mulf %20, %17 : vector<16x64xf32>
    %22 = arith.select %19, %17, %21 : vector<16x64xi1>, vector<16x64xf32>
    %23 = arith.truncf %22 : vector<16x64xf32> to vector<16x64xbf16>
    %c0_35 = arith.constant 0 : index
    %c0_36 = arith.constant 0 : index
    %c0_37 = arith.constant 0 : index
    %c0_38 = arith.constant 0 : index
    %c0_39 = arith.constant 0 : index
    %24 = vector.load %arg7[%c0_35, %c0_36, %c0_37, %c0_38, %c0_39] : memref<1x2x2x16x64xbf16, #tpu.memory_space<vmem>>, vector<1x1x1x16x64xbf16>
    %25 = vector.shape_cast %24 : vector<1x1x1x16x64xbf16> to vector<16x64xbf16>
    %26 = vector.shape_cast %23 : vector<16x64xbf16> to vector<1x1x1x16x64xbf16>
    tpu.vector_store %arg7[%c0_35, %c0_36, %c0_37, %c0_38, %c0_39], %26 {strides = array<i32>} : memref<1x2x2x16x64xbf16, #tpu.memory_space<vmem>>, vector<1x1x1x16x64xbf16>,
    %cst_40 = arith.constant dense<0.000000e+00> : vector<16x1xf32>
    %27 = tpu.matmul %22, %7, %cst_40 {dimension_numbers = #tpu.dot_dimension_numbers<[1], [0], [0], [1], [0, 0, 1, 1], [], []>} : vector<16x64xf32>, vector<64x1xf32>, vector<16x1xf32> -> vector<16x1xf32>
    %28 = vector.broadcast %8 : vector<1x1xf32> to vector<16x1xf32>
    %29 = arith.addf %27, %28 : vector<16x1xf32>
    %c0_41 = arith.constant 0 : index
    %c0_42 = arith.constant 0 : index
    %c0_43 = arith.constant 0 : index
    %c0_44 = arith.constant 0 : index
    %c0_45 = arith.constant 0 : index
    %30 = vector.load %arg8[%c0_41, %c0_42, %c0_43, %c0_44, %c0_45] : memref<1x2x2x16x1xf32, #tpu.memory_space<vmem>>, vector<1x1x1x16x1xf32>
    %31 = vector.shape_cast %30 : vector<1x1x1x16x1xf32> to vector<16x1xf32>
    %32 = vector.shape_cast %29 : vector<16x1xf32> to vector<1x1x1x16x1xf32>
    tpu.vector_store %arg8[%c0_41, %c0_42, %c0_43, %c0_44, %c0_45], %32 {strides = array<i32>} : memref<1x2x2x16x1xf32, #tpu.memory_space<vmem>>, vector<1x1x1x16x1xf32>,
    %cst_46 = arith.constant 0.000000e+00 : f32
    %33 = vector.broadcast %cst_46 : f32 to vector<16x64xf32>
    %c0_47 = arith.constant 0 : index
    %c0_48 = arith.constant 0 : index
    %c0_49 = arith.constant 0 : index
    %c0_50 = arith.constant 0 : index
    %34 = vector.load %arg9[%c0_47, %c0_48, %c0_49, %c0_50] : memref<1x5x5x256xbf16, #tpu.memory_space<vmem>>, vector<1x4x4x256xbf16>
    %35 = vector.shape_cast %34 : vector<1x4x4x256xbf16> to vector<16x256xbf16>
    %c1_51 = arith.constant 1 : index
    %c2 = arith.constant 2 : index
    %c0_52 = arith.constant 0 : index
    %c0_53 = arith.constant 0 : index
    %36 = vector.load %arg3[%c1_51, %c2, %c0_52, %c0_53] : memref<3x3x256x64xbf16, #tpu.memory_space<vmem>>, vector<1x1x256x64xbf16>
    %37 = vector.shape_cast %36 : vector<1x1x256x64xbf16> to vector<256x64xbf16>
    %cst_54 = arith.constant dense<0.000000e+00> : vector<16x64xf32>
    %38 = tpu.matmul %35, %37, %cst_54 {dimension_numbers = #tpu.dot_dimension_numbers<[1], [0], [0], [1], [0, 0, 1, 1], [], []>} : vector<16x256xbf16>, vector<256x64xbf16>, vector<16x64xf32> -> vector<16x64xf32>
    %39 = arith.addf %33, %38 : vector<16x64xf32>
    %c0_55 = arith.constant 0 : index
    %c0_56 = arith.constant 0 : index
    %c1_57 = arith.constant 1 : index
    %c0_58 = arith.constant 0 : index
    %40 = vector.load %arg9[%c0_55, %c0_56, %c1_57, %c0_58] : memref<1x5x5x256xbf16, #tpu.memory_space<vmem>>, vector<1x4x4x256xbf16>
    %41 = vector.shape_cast %40 : vector<1x4x4x256xbf16> to vector<16x256xbf16>
    %c1_59 = arith.constant 1 : index
    %c0_60 = arith.constant 0 : index
    %c0_61 = arith.constant 0 : index
    %c0_62 = arith.constant 0 : index
    %42 = vector.load %arg3[%c1_59, %c0_60, %c0_61, %c0_62] : memref<3x3x256x64xbf16, #tpu.memory_space<vmem>>, vector<1x1x256x64xbf16>
    %43 = vector.shape_cast %42 : vector<1x1x256x64xbf16> to vector<256x64xbf16>
    %cst_63 = arith.constant dense<0.000000e+00> : vector<16x64xf32>
    %44 = tpu.matmul %41, %43, %cst_63 {dimension_numbers = #tpu.dot_dimension_numbers<[1], [0], [0], [1], [0, 0, 1, 1], [], []>} : vector<16x256xbf16>, vector<256x64xbf16>, vector<16x64xf32> -> vector<16x64xf32>
    %45 = arith.addf %39, %44 : vector<16x64xf32>
    %46 = vector.broadcast %6 : vector<1x64xf32> to vector<16x64xf32>
    %47 = arith.addf %45, %46 : vector<16x64xf32>
    %cst_64 = arith.constant 0.000000e+00 : f32
    %48 = vector.broadcast %cst_64 : f32 to vector<16x64xf32>
    %49 = arith.cmpf oge, %47, %48 : vector<16x64xf32>
    %cst_65 = arith.constant 2.000000e-01 : f32
    %50 = vector.broadcast %cst_65 : f32 to vector<16x64xf32>
    %51 = arith.mulf %50, %47 : vector<16x64xf32>
    %52 = arith.select %49, %47, %51 : vector<16x64xi1>, vector<16x64xf32>
    %53 = arith.truncf %52 : vector<16x64xf32> to vector<16x64xbf16>
    %c0_66 = arith.constant 0 : index
    %c0_67 = arith.constant 0 : index
    %c1_68 = arith.constant 1 : index
    %c0_69 = arith.constant 0 : index
    %c0_70 = arith.constant 0 : index
    %54 = vector.load %arg7[%c0_66, %c0_67, %c1_68, %c0_69, %c0_70] : memref<1x2x2x16x64xbf16, #tpu.memory_space<vmem>>, vector<1x1x1x16x64xbf16>
    %55 = vector.shape_cast %54 : vector<1x1x1x16x64xbf16> to vector<16x64xbf16>
    %56 = vector.shape_cast %53 : vector<16x64xbf16> to vector<1x1x1x16x64xbf16>
    tpu.vector_store %arg7[%c0_66, %c0_67, %c1_68, %c0_69, %c0_70], %56 {strides = array<i32>} : memref<1x2x2x16x64xbf16, #tpu.memory_space<vmem>>, vector<1x1x1x16x64xbf16>,
    %cst_71 = arith.constant dense<0.000000e+00> : vector<16x1xf32>
    %57 = tpu.matmul %52, %7, %cst_71 {dimension_numbers = #tpu.dot_dimension_numbers<[1], [0], [0], [1], [0, 0, 1, 1], [], []>} : vector<16x64xf32>, vector<64x1xf32>, vector<16x1xf32> -> vector<16x1xf32>
    %58 = vector.broadcast %8 : vector<1x1xf32> to vector<16x1xf32>
    %59 = arith.addf %57, %58 : vector<16x1xf32>
    %c0_72 = arith.constant 0 : index
    %c0_73 = arith.constant 0 : index
    %c1_74 = arith.constant 1 : index
    %c0_75 = arith.constant 0 : index
    %c0_76 = arith.constant 0 : index
    %60 = vector.load %arg8[%c0_72, %c0_73, %c1_74, %c0_75, %c0_76] : memref<1x2x2x16x1xf32, #tpu.memory_space<vmem>>, vector<1x1x1x16x1xf32>
    %61 = vector.shape_cast %60 : vector<1x1x1x16x1xf32> to vector<16x1xf32>
    %62 = vector.shape_cast %59 : vector<16x1xf32> to vector<1x1x1x16x1xf32>
    tpu.vector_store %arg8[%c0_72, %c0_73, %c1_74, %c0_75, %c0_76], %62 {strides = array<i32>} : memref<1x2x2x16x1xf32, #tpu.memory_space<vmem>>, vector<1x1x1x16x1xf32>,
    %cst_77 = arith.constant 0.000000e+00 : f32
    %63 = vector.broadcast %cst_77 : f32 to vector<16x64xf32>
    %c0_78 = arith.constant 0 : index
    %c0_79 = arith.constant 0 : index
    %c0_80 = arith.constant 0 : index
    %c0_81 = arith.constant 0 : index
    %64 = vector.load %arg9[%c0_78, %c0_79, %c0_80, %c0_81] : memref<1x5x5x256xbf16, #tpu.memory_space<vmem>>, vector<1x4x4x256xbf16>
    %65 = vector.shape_cast %64 : vector<1x4x4x256xbf16> to vector<16x256xbf16>
    %c2_82 = arith.constant 2 : index
    %c1_83 = arith.constant 1 : index
    %c0_84 = arith.constant 0 : index
    %c0_85 = arith.constant 0 : index
    %66 = vector.load %arg3[%c2_82, %c1_83, %c0_84, %c0_85] : memref<3x3x256x64xbf16, #tpu.memory_space<vmem>>, vector<1x1x256x64xbf16>
    %67 = vector.shape_cast %66 : vector<1x1x256x64xbf16> to vector<256x64xbf16>
    %cst_86 = arith.constant dense<0.000000e+00> : vector<16x64xf32>
    %68 = tpu.matmul %65, %67, %cst_86 {dimension_numbers = #tpu.dot_dimension_numbers<[1], [0], [0], [1], [0, 0, 1, 1], [], []>} : vector<16x256xbf16>, vector<256x64xbf16>, vector<16x64xf32> -> vector<16x64xf32>
    %69 = arith.addf %63, %68 : vector<16x64xf32>
    %c0_87 = arith.constant 0 : index
    %c1_88 = arith.constant 1 : index
    %c0_89 = arith.constant 0 : index
    %c0_90 = arith.constant 0 : index
    %70 = vector.load %arg9[%c0_87, %c1_88, %c0_89, %c0_90] : memref<1x5x5x256xbf16, #tpu.memory_space<vmem>>, vector<1x4x4x256xbf16>
    %71 = vector.shape_cast %70 : vector<1x4x4x256xbf16> to vector<16x256xbf16>
    %c0_91 = arith.constant 0 : index
    %c1_92 = arith.constant 1 : index
    %c0_93 = arith.constant 0 : index
    %c0_94 = arith.constant 0 : index
    %72 = vector.load %arg3[%c0_91, %c1_92, %c0_93, %c0_94] : memref<3x3x256x64xbf16, #tpu.memory_space<vmem>>, vector<1x1x256x64xbf16>
    %73 = vector.shape_cast %72 : vector<1x1x256x64xbf16> to vector<256x64xbf16>
    %cst_95 = arith.constant dense<0.000000e+00> : vector<16x64xf32>
    %74 = tpu.matmul %71, %73, %cst_95 {dimension_numbers = #tpu.dot_dimension_numbers<[1], [0], [0], [1], [0, 0, 1, 1], [], []>} : vector<16x256xbf16>, vector<256x64xbf16>, vector<16x64xf32> -> vector<16x64xf32>
    %75 = arith.addf %69, %74 : vector<16x64xf32>
    %76 = vector.broadcast %6 : vector<1x64xf32> to vector<16x64xf32>
    %77 = arith.addf %75, %76 : vector<16x64xf32>
    %cst_96 = arith.constant 0.000000e+00 : f32
    %78 = vector.broadcast %cst_96 : f32 to vector<16x64xf32>
    %79 = arith.cmpf oge, %77, %78 : vector<16x64xf32>
    %cst_97 = arith.constant 2.000000e-01 : f32
    %80 = vector.broadcast %cst_97 : f32 to vector<16x64xf32>
    %81 = arith.mulf %80, %77 : vector<16x64xf32>
    %82 = arith.select %79, %77, %81 : vector<16x64xi1>, vector<16x64xf32>
    %83 = arith.truncf %82 : vector<16x64xf32> to vector<16x64xbf16>
    %c0_98 = arith.constant 0 : index
    %c1_99 = arith.constant 1 : index
    %c0_100 = arith.constant 0 : index
    %c0_101 = arith.constant 0 : index
    %c0_102 = arith.constant 0 : index
    %84 = vector.load %arg7[%c0_98, %c1_99, %c0_100, %c0_101, %c0_102] : memref<1x2x2x16x64xbf16, #tpu.memory_space<vmem>>, vector<1x1x1x16x64xbf16>
    %85 = vector.shape_cast %84 : vector<1x1x1x16x64xbf16> to vector<16x64xbf16>
    %86 = vector.shape_cast %83 : vector<16x64xbf16> to vector<1x1x1x16x64xbf16>
    tpu.vector_store %arg7[%c0_98, %c1_99, %c0_100, %c0_101, %c0_102], %86 {strides = array<i32>} : memref<1x2x2x16x64xbf16, #tpu.memory_space<vmem>>, vector<1x1x1x16x64xbf16>,
    %cst_103 = arith.constant dense<0.000000e+00> : vector<16x1xf32>
    %87 = tpu.matmul %82, %7, %cst_103 {dimension_numbers = #tpu.dot_dimension_numbers<[1], [0], [0], [1], [0, 0, 1, 1], [], []>} : vector<16x64xf32>, vector<64x1xf32>, vector<16x1xf32> -> vector<16x1xf32>
    %88 = vector.broadcast %8 : vector<1x1xf32> to vector<16x1xf32>
    %89 = arith.addf %87, %88 : vector<16x1xf32>
    %c0_104 = arith.constant 0 : index
    %c1_105 = arith.constant 1 : index
    %c0_106 = arith.constant 0 : index
    %c0_107 = arith.constant 0 : index
    %c0_108 = arith.constant 0 : index
    %90 = vector.load %arg8[%c0_104, %c1_105, %c0_106, %c0_107, %c0_108] : memref<1x2x2x16x1xf32, #tpu.memory_space<vmem>>, vector<1x1x1x16x1xf32>
    %91 = vector.shape_cast %90 : vector<1x1x1x16x1xf32> to vector<16x1xf32>
    %92 = vector.shape_cast %89 : vector<16x1xf32> to vector<1x1x1x16x1xf32>
    tpu.vector_store %arg8[%c0_104, %c1_105, %c0_106, %c0_107, %c0_108], %92 {strides = array<i32>} : memref<1x2x2x16x1xf32, #tpu.memory_space<vmem>>, vector<1x1x1x16x1xf32>,
    %cst_109 = arith.constant 0.000000e+00 : f32
    %93 = vector.broadcast %cst_109 : f32 to vector<16x64xf32>
    %c0_110 = arith.constant 0 : index
    %c0_111 = arith.constant 0 : index
    %c0_112 = arith.constant 0 : index
    %c0_113 = arith.constant 0 : index
    %94 = vector.load %arg9[%c0_110, %c0_111, %c0_112, %c0_113] : memref<1x5x5x256xbf16, #tpu.memory_space<vmem>>, vector<1x4x4x256xbf16>
    %95 = vector.shape_cast %94 : vector<1x4x4x256xbf16> to vector<16x256xbf16>
    %c2_114 = arith.constant 2 : index
    %c2_115 = arith.constant 2 : index
    %c0_116 = arith.constant 0 : index
    %c0_117 = arith.constant 0 : index
    %96 = vector.load %arg3[%c2_114, %c2_115, %c0_116, %c0_117] : memref<3x3x256x64xbf16, #tpu.memory_space<vmem>>, vector<1x1x256x64xbf16>
    %97 = vector.shape_cast %96 : vector<1x1x256x64xbf16> to vector<256x64xbf16>
    %cst_118 = arith.constant dense<0.000000e+00> : vector<16x64xf32>
    %98 = tpu.matmul %95, %97, %cst_118 {dimension_numbers = #tpu.dot_dimension_numbers<[1], [0], [0], [1], [0, 0, 1, 1], [], []>} : vector<16x256xbf16>, vector<256x64xbf16>, vector<16x64xf32> -> vector<16x64xf32>
    %99 = arith.addf %93, %98 : vector<16x64xf32>
    %c0_119 = arith.constant 0 : index
    %c0_120 = arith.constant 0 : index
    %c1_121 = arith.constant 1 : index
    %c0_122 = arith.constant 0 : index
    %100 = vector.load %arg9[%c0_119, %c0_120, %c1_121, %c0_122] : memref<1x5x5x256xbf16, #tpu.memory_space<vmem>>, vector<1x4x4x256xbf16>
    %101 = vector.shape_cast %100 : vector<1x4x4x256xbf16> to vector<16x256xbf16>
    %c2_123 = arith.constant 2 : index
    %c0_124 = arith.constant 0 : index
    %c0_125 = arith.constant 0 : index
    %c0_126 = arith.constant 0 : index
    %102 = vector.load %arg3[%c2_123, %c0_124, %c0_125, %c0_126] : memref<3x3x256x64xbf16, #tpu.memory_space<vmem>>, vector<1x1x256x64xbf16>
    %103 = vector.shape_cast %102 : vector<1x1x256x64xbf16> to vector<256x64xbf16>
    %cst_127 = arith.constant dense<0.000000e+00> : vector<16x64xf32>
    %104 = tpu.matmul %101, %103, %cst_127 {dimension_numbers = #tpu.dot_dimension_numbers<[1], [0], [0], [1], [0, 0, 1, 1], [], []>} : vector<16x256xbf16>, vector<256x64xbf16>, vector<16x64xf32> -> vector<16x64xf32>
    %105 = arith.addf %99, %104 : vector<16x64xf32>
    %c0_128 = arith.constant 0 : index
    %c1_129 = arith.constant 1 : index
    %c0_130 = arith.constant 0 : index
    %c0_131 = arith.constant 0 : index
    %106 = vector.load %arg9[%c0_128, %c1_129, %c0_130, %c0_131] : memref<1x5x5x256xbf16, #tpu.memory_space<vmem>>, vector<1x4x4x256xbf16>
    %107 = vector.shape_cast %106 : vector<1x4x4x256xbf16> to vector<16x256xbf16>
    %c0_132 = arith.constant 0 : index
    %c2_133 = arith.constant 2 : index
    %c0_134 = arith.constant 0 : index
    %c0_135 = arith.constant 0 : index
    %108 = vector.load %arg3[%c0_132, %c2_133, %c0_134, %c0_135] : memref<3x3x256x64xbf16, #tpu.memory_space<vmem>>, vector<1x1x256x64xbf16>
    %109 = vector.shape_cast %108 : vector<1x1x256x64xbf16> to vector<256x64xbf16>
    %cst_136 = arith.constant dense<0.000000e+00> : vector<16x64xf32>
    %110 = tpu.matmul %107, %109, %cst_136 {dimension_numbers = #tpu.dot_dimension_numbers<[1], [0], [0], [1], [0, 0, 1, 1], [], []>} : vector<16x256xbf16>, vector<256x64xbf16>, vector<16x64xf32> -> vector<16x64xf32>
    %111 = arith.addf %105, %110 : vector<16x64xf32>
    %c0_137 = arith.constant 0 : index
    %c1_138 = arith.constant 1 : index
    %c1_139 = arith.constant 1 : index
    %c0_140 = arith.constant 0 : index
    %112 = vector.load %arg9[%c0_137, %c1_138, %c1_139, %c0_140] : memref<1x5x5x256xbf16, #tpu.memory_space<vmem>>, vector<1x4x4x256xbf16>
    %113 = vector.shape_cast %112 : vector<1x4x4x256xbf16> to vector<16x256xbf16>
    %c0_141 = arith.constant 0 : index
    %c0_142 = arith.constant 0 : index
    %c0_143 = arith.constant 0 : index
    %c0_144 = arith.constant 0 : index
    %114 = vector.load %arg3[%c0_141, %c0_142, %c0_143, %c0_144] : memref<3x3x256x64xbf16, #tpu.memory_space<vmem>>, vector<1x1x256x64xbf16>
    %115 = vector.shape_cast %114 : vector<1x1x256x64xbf16> to vector<256x64xbf16>
    %cst_145 = arith.constant dense<0.000000e+00> : vector<16x64xf32>
    %116 = tpu.matmul %113, %115, %cst_145 {dimension_numbers = #tpu.dot_dimension_numbers<[1], [0], [0], [1], [0, 0, 1, 1], [], []>} : vector<16x256xbf16>, vector<256x64xbf16>, vector<16x64xf32> -> vector<16x64xf32>
    %117 = arith.addf %111, %116 : vector<16x64xf32>
    %118 = vector.broadcast %6 : vector<1x64xf32> to vector<16x64xf32>
    %119 = arith.addf %117, %118 : vector<16x64xf32>
    %cst_146 = arith.constant 0.000000e+00 : f32
    %120 = vector.broadcast %cst_146 : f32 to vector<16x64xf32>
    %121 = arith.cmpf oge, %119, %120 : vector<16x64xf32>
    %cst_147 = arith.constant 2.000000e-01 : f32
    %122 = vector.broadcast %cst_147 : f32 to vector<16x64xf32>
    %123 = arith.mulf %122, %119 : vector<16x64xf32>
    %124 = arith.select %121, %119, %123 : vector<16x64xi1>, vector<16x64xf32>
    %125 = arith.truncf %124 : vector<16x64xf32> to vector<16x64xbf16>
    %c0_148 = arith.constant 0 : index
    %c1_149 = arith.constant 1 : index
    %c1_150 = arith.constant 1 : index
    %c0_151 = arith.constant 0 : index
    %c0_152 = arith.constant 0 : index
    %126 = vector.load %arg7[%c0_148, %c1_149, %c1_150, %c0_151, %c0_152] : memref<1x2x2x16x64xbf16, #tpu.memory_space<vmem>>, vector<1x1x1x16x64xbf16>
    %127 = vector.shape_cast %126 : vector<1x1x1x16x64xbf16> to vector<16x64xbf16>
    %128 = vector.shape_cast %125 : vector<16x64xbf16> to vector<1x1x1x16x64xbf16>
    tpu.vector_store %arg7[%c0_148, %c1_149, %c1_150, %c0_151, %c0_152], %128 {strides = array<i32>} : memref<1x2x2x16x64xbf16, #tpu.memory_space<vmem>>, vector<1x1x1x16x64xbf16>,
    %cst_153 = arith.constant dense<0.000000e+00> : vector<16x1xf32>
    %129 = tpu.matmul %124, %7, %cst_153 {dimension_numbers = #tpu.dot_dimension_numbers<[1], [0], [0], [1], [0, 0, 1, 1], [], []>} : vector<16x64xf32>, vector<64x1xf32>, vector<16x1xf32> -> vector<16x1xf32>
    %130 = vector.broadcast %8 : vector<1x1xf32> to vector<16x1xf32>
    %131 = arith.addf %129, %130 : vector<16x1xf32>
    %c0_154 = arith.constant 0 : index
    %c1_155 = arith.constant 1 : index
    %c1_156 = arith.constant 1 : index
    %c0_157 = arith.constant 0 : index
    %c0_158 = arith.constant 0 : index
    %132 = vector.load %arg8[%c0_154, %c1_155, %c1_156, %c0_157, %c0_158] : memref<1x2x2x16x1xf32, #tpu.memory_space<vmem>>, vector<1x1x1x16x1xf32>
    %133 = vector.shape_cast %132 : vector<1x1x1x16x1xf32> to vector<16x1xf32>
    %134 = vector.shape_cast %131 : vector<16x1xf32> to vector<1x1x1x16x1xf32>
    tpu.vector_store %arg8[%c0_154, %c1_155, %c1_156, %c0_157, %c0_158], %134 {strides = array<i32>} : memref<1x2x2x16x1xf32, #tpu.memory_space<vmem>>, vector<1x1x1x16x1xf32>,
    return
  }
  func.func @transform_0(%arg0: i32) -> (i32, i32, i32, i32) {
    %c0_i32 = arith.constant 0 : i32
    %c0_i32_0 = arith.constant 0 : i32
    %c0_i32_1 = arith.constant 0 : i32
    %c0_i32_2 = arith.constant 0 : i32
    return %arg0, %c0_i32, %c0_i32_0, %c0_i32_1 : i32, i32, i32, i32
  }
  func.func @transform_1(%arg0: i32) -> (i32, i32, i32, i32) {
    %c0_i32 = arith.constant 0 : i32
    %c0_i32_0 = arith.constant 0 : i32
    %c0_i32_1 = arith.constant 0 : i32
    %c0_i32_2 = arith.constant 0 : i32
    return %arg0, %c0_i32, %c0_i32_0, %c0_i32_1 : i32, i32, i32, i32
  }
  func.func @transform_2(%arg0: i32) -> (i32, i32, i32, i32) {
    %c0_i32 = arith.constant 0 : i32
    %c0_i32_0 = arith.constant 0 : i32
    %c0_i32_1 = arith.constant 0 : i32
    %c0_i32_2 = arith.constant 0 : i32
    %c0_i32_3 = arith.constant 0 : i32
    return %c0_i32, %c0_i32_0, %c0_i32_1, %c0_i32_2 : i32, i32, i32, i32
  }
  func.func @transform_3(%arg0: i32) -> (i32, i32) {
    %c0_i32 = arith.constant 0 : i32
    %c0_i32_0 = arith.constant 0 : i32
    %c0_i32_1 = arith.constant 0 : i32
    return %c0_i32, %c0_i32_0 : i32, i32
  }
  func.func @transform_4(%arg0: i32) -> (i32, i32) {
    %c0_i32 = arith.constant 0 : i32
    %c0_i32_0 = arith.constant 0 : i32
    %c0_i32_1 = arith.constant 0 : i32
    return %c0_i32, %c0_i32_0 : i32, i32
  }
  func.func @transform_5(%arg0: i32) -> (i32, i32) {
    %c0_i32 = arith.constant 0 : i32
    %c0_i32_0 = arith.constant 0 : i32
    %c0_i32_1 = arith.constant 0 : i32
    return %c0_i32, %c0_i32_0 : i32, i32
  }
  func.func @transform_6(%arg0: i32) -> (i32, i32, i32, i32, i32) {
    %c0_i32 = arith.constant 0 : i32
    %c0_i32_0 = arith.constant 0 : i32
    %c0_i32_1 = arith.constant 0 : i32
    %c0_i32_2 = arith.constant 0 : i32
    %c0_i32_3 = arith.constant 0 : i32
    return %arg0, %c0_i32, %c0_i32_0, %c0_i32_1, %c0_i32_2 : i32, i32, i32, i32, i32
  }
  func.func @transform_7(%arg0: i32) -> (i32, i32, i32, i32, i32) {
    %c0_i32 = arith.constant 0 : i32
    %c0_i32_0 = arith.constant 0 : i32
    %c0_i32_1 = arith.constant 0 : i32
    %c0_i32_2 = arith.constant 0 : i32
    %c0_i32_3 = arith.constant 0 : i32
    return %arg0, %c0_i32, %c0_i32_0, %c0_i32_1, %c0_i32_2 : i32, i32, i32, i32, i32
  }
}

module attributes {stable_mosaic.version = 11 : i64} {
  func.func @kernel(%arg0: i32, %arg1: memref<1x8x8x64xbf16, #tpu.memory_space<vmem>>, %arg2: memref<1x8x8x64xbf16, #tpu.memory_space<vmem>>, %arg3: memref<3x3x128x32xbf16, #tpu.memory_space<vmem>>, %arg4: memref<1x32xf32, #tpu.memory_space<vmem>>, %arg5: memref<32x1xf32, #tpu.memory_space<vmem>>, %arg6: memref<1x1xf32, #tpu.memory_space<vmem>>, %arg7: memref<1x2x2x64x32xbf16, #tpu.memory_space<vmem>>, %arg8: memref<1x2x2x64x1xf32, #tpu.memory_space<vmem>>, %arg9: memref<1x9x9x128xbf16, #tpu.memory_space<vmem>>) attributes {dimension_semantics = [#tpu.dimension_semantics<parallel>], iteration_bounds = array<i64: 2>, scalar_prefetch = 0 : i64, scratch_operands = 1 : i64, tpu.core_type = #tpu.core_type<tc>, window_params = [{transform_indices = @transform_0, window_bounds = array<i64: 1, 8, 8, 64>}, {transform_indices = @transform_1, window_bounds = array<i64: 1, 8, 8, 64>}, {pipeline_mode = #tpu.pipeline_mode<synchronous>, transform_indices = @transform_2, window_bounds = array<i64: 3, 3, 128, 32>}, {pipeline_mode = #tpu.pipeline_mode<synchronous>, transform_indices = @transform_3, window_bounds = array<i64: 1, 32>}, {pipeline_mode = #tpu.pipeline_mode<synchronous>, transform_indices = @transform_4, window_bounds = array<i64: 32, 1>}, {pipeline_mode = #tpu.pipeline_mode<synchronous>, transform_indices = @transform_5, window_bounds = array<i64: 1, 1>}, {transform_indices = @transform_6, window_bounds = array<i64: 1, 2, 2, 64, 32>}, {transform_indices = @transform_7, window_bounds = array<i64: 1, 2, 2, 64, 1>}]} {
    %cst = arith.constant 0.000000e+00 : bf16
    %0 = vector.broadcast %cst : bf16 to vector<1x9x9x128xbf16>
    %c0 = arith.constant 0 : index
    %c0_0 = arith.constant 0 : index
    %c0_1 = arith.constant 0 : index
    %c0_2 = arith.constant 0 : index
    %1 = vector.load %arg9[%c0, %c0_0, %c0_1, %c0_2] : memref<1x9x9x128xbf16, #tpu.memory_space<vmem>>, vector<1x9x9x128xbf16>
    tpu.vector_store %arg9[%c0, %c0_0, %c0_1, %c0_2], %0 {strides = array<i32>} : memref<1x9x9x128xbf16, #tpu.memory_space<vmem>>, vector<1x9x9x128xbf16>,
    %c0_3 = arith.constant 0 : index
    %c0_4 = arith.constant 0 : index
    %c0_5 = arith.constant 0 : index
    %c0_6 = arith.constant 0 : index
    %2 = vector.load %arg1[%c0_3, %c0_4, %c0_5, %c0_6] : memref<1x8x8x64xbf16, #tpu.memory_space<vmem>>, vector<1x8x8x64xbf16>
    %c0_7 = arith.constant 0 : index
    %c0_8 = arith.constant 0 : index
    %c0_9 = arith.constant 0 : index
    %c0_10 = arith.constant 0 : index
    %3 = vector.load %arg9[%c0_7, %c0_8, %c0_9, %c0_10] : memref<1x9x9x128xbf16, #tpu.memory_space<vmem>>, vector<1x8x8x64xbf16>
    tpu.vector_store %arg9[%c0_7, %c0_8, %c0_9, %c0_10], %2 {strides = array<i32>} : memref<1x9x9x128xbf16, #tpu.memory_space<vmem>>, vector<1x8x8x64xbf16>,
    %c0_11 = arith.constant 0 : index
    %c0_12 = arith.constant 0 : index
    %c0_13 = arith.constant 0 : index
    %c0_14 = arith.constant 0 : index
    %4 = vector.load %arg2[%c0_11, %c0_12, %c0_13, %c0_14] : memref<1x8x8x64xbf16, #tpu.memory_space<vmem>>, vector<1x8x8x64xbf16>
    %c0_15 = arith.constant 0 : index
    %c0_16 = arith.constant 0 : index
    %c0_17 = arith.constant 0 : index
    %c64 = arith.constant 64 : index
    %5 = vector.load %arg9[%c0_15, %c0_16, %c0_17, %c64] : memref<1x9x9x128xbf16, #tpu.memory_space<vmem>>, vector<1x8x8x64xbf16>
    tpu.vector_store %arg9[%c0_15, %c0_16, %c0_17, %c64], %4 {strides = array<i32>} : memref<1x9x9x128xbf16, #tpu.memory_space<vmem>>, vector<1x8x8x64xbf16>,
    %c0_18 = arith.constant 0 : index
    %c0_19 = arith.constant 0 : index
    %6 = vector.load %arg4[%c0_18, %c0_19] : memref<1x32xf32, #tpu.memory_space<vmem>>, vector<1x32xf32>
    %c0_20 = arith.constant 0 : index
    %c0_21 = arith.constant 0 : index
    %7 = vector.load %arg5[%c0_20, %c0_21] : memref<32x1xf32, #tpu.memory_space<vmem>>, vector<32x1xf32>
    %c0_22 = arith.constant 0 : index
    %c0_23 = arith.constant 0 : index
    %8 = vector.load %arg6[%c0_22, %c0_23] : memref<1x1xf32, #tpu.memory_space<vmem>>, vector<1x1xf32>
    %cst_24 = arith.constant 0.000000e+00 : f32
    %9 = vector.broadcast %cst_24 : f32 to vector<64x32xf32>
    %c0_25 = arith.constant 0 : index
    %c0_26 = arith.constant 0 : index
    %c0_27 = arith.constant 0 : index
    %c0_28 = arith.constant 0 : index
    %10 = vector.load %arg9[%c0_25, %c0_26, %c0_27, %c0_28] : memref<1x9x9x128xbf16, #tpu.memory_space<vmem>>, vector<1x8x8x128xbf16>
    %11 = vector.shape_cast %10 : vector<1x8x8x128xbf16> to vector<64x128xbf16>
    %c1 = arith.constant 1 : index
    %c1_29 = arith.constant 1 : index
    %c0_30 = arith.constant 0 : index
    %c0_31 = arith.constant 0 : index
    %12 = vector.load %arg3[%c1, %c1_29, %c0_30, %c0_31] : memref<3x3x128x32xbf16, #tpu.memory_space<vmem>>, vector<1x1x128x32xbf16>
    %13 = vector.shape_cast %12 : vector<1x1x128x32xbf16> to vector<128x32xbf16>
    %cst_32 = arith.constant dense<0.000000e+00> : vector<64x32xf32>
    %14 = tpu.matmul %11, %13, %cst_32 {dimension_numbers = #tpu.dot_dimension_numbers<[1], [0], [0], [1], [0, 0, 1, 1], [], []>} : vector<64x128xbf16>, vector<128x32xbf16>, vector<64x32xf32> -> vector<64x32xf32>
    %15 = arith.addf %9, %14 : vector<64x32xf32>
    %16 = vector.broadcast %6 : vector<1x32xf32> to vector<64x32xf32>
    %17 = arith.addf %15, %16 : vector<64x32xf32>
    %cst_33 = arith.constant 0.000000e+00 : f32
    %18 = vector.broadcast %cst_33 : f32 to vector<64x32xf32>
    %19 = arith.cmpf oge, %17, %18 : vector<64x32xf32>
    %cst_34 = arith.constant 2.000000e-01 : f32
    %20 = vector.broadcast %cst_34 : f32 to vector<64x32xf32>
    %21 = arith.mulf %20, %17 : vector<64x32xf32>
    %22 = arith.select %19, %17, %21 : vector<64x32xi1>, vector<64x32xf32>
    %23 = arith.truncf %22 : vector<64x32xf32> to vector<64x32xbf16>
    %c0_35 = arith.constant 0 : index
    %c0_36 = arith.constant 0 : index
    %c0_37 = arith.constant 0 : index
    %c0_38 = arith.constant 0 : index
    %c0_39 = arith.constant 0 : index
    %24 = vector.load %arg7[%c0_35, %c0_36, %c0_37, %c0_38, %c0_39] : memref<1x2x2x64x32xbf16, #tpu.memory_space<vmem>>, vector<1x1x1x64x32xbf16>
    %25 = vector.shape_cast %24 : vector<1x1x1x64x32xbf16> to vector<64x32xbf16>
    %26 = vector.shape_cast %23 : vector<64x32xbf16> to vector<1x1x1x64x32xbf16>
    tpu.vector_store %arg7[%c0_35, %c0_36, %c0_37, %c0_38, %c0_39], %26 {strides = array<i32>} : memref<1x2x2x64x32xbf16, #tpu.memory_space<vmem>>, vector<1x1x1x64x32xbf16>,
    %cst_40 = arith.constant dense<0.000000e+00> : vector<64x1xf32>
    %27 = tpu.matmul %22, %7, %cst_40 {dimension_numbers = #tpu.dot_dimension_numbers<[1], [0], [0], [1], [0, 0, 1, 1], [], []>} : vector<64x32xf32>, vector<32x1xf32>, vector<64x1xf32> -> vector<64x1xf32>
    %28 = vector.broadcast %8 : vector<1x1xf32> to vector<64x1xf32>
    %29 = arith.addf %27, %28 : vector<64x1xf32>
    %c0_41 = arith.constant 0 : index
    %c0_42 = arith.constant 0 : index
    %c0_43 = arith.constant 0 : index
    %c0_44 = arith.constant 0 : index
    %c0_45 = arith.constant 0 : index
    %30 = vector.load %arg8[%c0_41, %c0_42, %c0_43, %c0_44, %c0_45] : memref<1x2x2x64x1xf32, #tpu.memory_space<vmem>>, vector<1x1x1x64x1xf32>
    %31 = vector.shape_cast %30 : vector<1x1x1x64x1xf32> to vector<64x1xf32>
    %32 = vector.shape_cast %29 : vector<64x1xf32> to vector<1x1x1x64x1xf32>
    tpu.vector_store %arg8[%c0_41, %c0_42, %c0_43, %c0_44, %c0_45], %32 {strides = array<i32>} : memref<1x2x2x64x1xf32, #tpu.memory_space<vmem>>, vector<1x1x1x64x1xf32>,
    %cst_46 = arith.constant 0.000000e+00 : f32
    %33 = vector.broadcast %cst_46 : f32 to vector<64x32xf32>
    %c0_47 = arith.constant 0 : index
    %c0_48 = arith.constant 0 : index
    %c0_49 = arith.constant 0 : index
    %c0_50 = arith.constant 0 : index
    %34 = vector.load %arg9[%c0_47, %c0_48, %c0_49, %c0_50] : memref<1x9x9x128xbf16, #tpu.memory_space<vmem>>, vector<1x8x8x128xbf16>
    %35 = vector.shape_cast %34 : vector<1x8x8x128xbf16> to vector<64x128xbf16>
    %c1_51 = arith.constant 1 : index
    %c2 = arith.constant 2 : index
    %c0_52 = arith.constant 0 : index
    %c0_53 = arith.constant 0 : index
    %36 = vector.load %arg3[%c1_51, %c2, %c0_52, %c0_53] : memref<3x3x128x32xbf16, #tpu.memory_space<vmem>>, vector<1x1x128x32xbf16>
    %37 = vector.shape_cast %36 : vector<1x1x128x32xbf16> to vector<128x32xbf16>
    %cst_54 = arith.constant dense<0.000000e+00> : vector<64x32xf32>
    %38 = tpu.matmul %35, %37, %cst_54 {dimension_numbers = #tpu.dot_dimension_numbers<[1], [0], [0], [1], [0, 0, 1, 1], [], []>} : vector<64x128xbf16>, vector<128x32xbf16>, vector<64x32xf32> -> vector<64x32xf32>
    %39 = arith.addf %33, %38 : vector<64x32xf32>
    %c0_55 = arith.constant 0 : index
    %c0_56 = arith.constant 0 : index
    %c1_57 = arith.constant 1 : index
    %c0_58 = arith.constant 0 : index
    %40 = vector.load %arg9[%c0_55, %c0_56, %c1_57, %c0_58] : memref<1x9x9x128xbf16, #tpu.memory_space<vmem>>, vector<1x8x8x128xbf16>
    %41 = vector.shape_cast %40 : vector<1x8x8x128xbf16> to vector<64x128xbf16>
    %c1_59 = arith.constant 1 : index
    %c0_60 = arith.constant 0 : index
    %c0_61 = arith.constant 0 : index
    %c0_62 = arith.constant 0 : index
    %42 = vector.load %arg3[%c1_59, %c0_60, %c0_61, %c0_62] : memref<3x3x128x32xbf16, #tpu.memory_space<vmem>>, vector<1x1x128x32xbf16>
    %43 = vector.shape_cast %42 : vector<1x1x128x32xbf16> to vector<128x32xbf16>
    %cst_63 = arith.constant dense<0.000000e+00> : vector<64x32xf32>
    %44 = tpu.matmul %41, %43, %cst_63 {dimension_numbers = #tpu.dot_dimension_numbers<[1], [0], [0], [1], [0, 0, 1, 1], [], []>} : vector<64x128xbf16>, vector<128x32xbf16>, vector<64x32xf32> -> vector<64x32xf32>
    %45 = arith.addf %39, %44 : vector<64x32xf32>
    %46 = vector.broadcast %6 : vector<1x32xf32> to vector<64x32xf32>
    %47 = arith.addf %45, %46 : vector<64x32xf32>
    %cst_64 = arith.constant 0.000000e+00 : f32
    %48 = vector.broadcast %cst_64 : f32 to vector<64x32xf32>
    %49 = arith.cmpf oge, %47, %48 : vector<64x32xf32>
    %cst_65 = arith.constant 2.000000e-01 : f32
    %50 = vector.broadcast %cst_65 : f32 to vector<64x32xf32>
    %51 = arith.mulf %50, %47 : vector<64x32xf32>
    %52 = arith.select %49, %47, %51 : vector<64x32xi1>, vector<64x32xf32>
    %53 = arith.truncf %52 : vector<64x32xf32> to vector<64x32xbf16>
    %c0_66 = arith.constant 0 : index
    %c0_67 = arith.constant 0 : index
    %c1_68 = arith.constant 1 : index
    %c0_69 = arith.constant 0 : index
    %c0_70 = arith.constant 0 : index
    %54 = vector.load %arg7[%c0_66, %c0_67, %c1_68, %c0_69, %c0_70] : memref<1x2x2x64x32xbf16, #tpu.memory_space<vmem>>, vector<1x1x1x64x32xbf16>
    %55 = vector.shape_cast %54 : vector<1x1x1x64x32xbf16> to vector<64x32xbf16>
    %56 = vector.shape_cast %53 : vector<64x32xbf16> to vector<1x1x1x64x32xbf16>
    tpu.vector_store %arg7[%c0_66, %c0_67, %c1_68, %c0_69, %c0_70], %56 {strides = array<i32>} : memref<1x2x2x64x32xbf16, #tpu.memory_space<vmem>>, vector<1x1x1x64x32xbf16>,
    %cst_71 = arith.constant dense<0.000000e+00> : vector<64x1xf32>
    %57 = tpu.matmul %52, %7, %cst_71 {dimension_numbers = #tpu.dot_dimension_numbers<[1], [0], [0], [1], [0, 0, 1, 1], [], []>} : vector<64x32xf32>, vector<32x1xf32>, vector<64x1xf32> -> vector<64x1xf32>
    %58 = vector.broadcast %8 : vector<1x1xf32> to vector<64x1xf32>
    %59 = arith.addf %57, %58 : vector<64x1xf32>
    %c0_72 = arith.constant 0 : index
    %c0_73 = arith.constant 0 : index
    %c1_74 = arith.constant 1 : index
    %c0_75 = arith.constant 0 : index
    %c0_76 = arith.constant 0 : index
    %60 = vector.load %arg8[%c0_72, %c0_73, %c1_74, %c0_75, %c0_76] : memref<1x2x2x64x1xf32, #tpu.memory_space<vmem>>, vector<1x1x1x64x1xf32>
    %61 = vector.shape_cast %60 : vector<1x1x1x64x1xf32> to vector<64x1xf32>
    %62 = vector.shape_cast %59 : vector<64x1xf32> to vector<1x1x1x64x1xf32>
    tpu.vector_store %arg8[%c0_72, %c0_73, %c1_74, %c0_75, %c0_76], %62 {strides = array<i32>} : memref<1x2x2x64x1xf32, #tpu.memory_space<vmem>>, vector<1x1x1x64x1xf32>,
    %cst_77 = arith.constant 0.000000e+00 : f32
    %63 = vector.broadcast %cst_77 : f32 to vector<64x32xf32>
    %c0_78 = arith.constant 0 : index
    %c0_79 = arith.constant 0 : index
    %c0_80 = arith.constant 0 : index
    %c0_81 = arith.constant 0 : index
    %64 = vector.load %arg9[%c0_78, %c0_79, %c0_80, %c0_81] : memref<1x9x9x128xbf16, #tpu.memory_space<vmem>>, vector<1x8x8x128xbf16>
    %65 = vector.shape_cast %64 : vector<1x8x8x128xbf16> to vector<64x128xbf16>
    %c2_82 = arith.constant 2 : index
    %c1_83 = arith.constant 1 : index
    %c0_84 = arith.constant 0 : index
    %c0_85 = arith.constant 0 : index
    %66 = vector.load %arg3[%c2_82, %c1_83, %c0_84, %c0_85] : memref<3x3x128x32xbf16, #tpu.memory_space<vmem>>, vector<1x1x128x32xbf16>
    %67 = vector.shape_cast %66 : vector<1x1x128x32xbf16> to vector<128x32xbf16>
    %cst_86 = arith.constant dense<0.000000e+00> : vector<64x32xf32>
    %68 = tpu.matmul %65, %67, %cst_86 {dimension_numbers = #tpu.dot_dimension_numbers<[1], [0], [0], [1], [0, 0, 1, 1], [], []>} : vector<64x128xbf16>, vector<128x32xbf16>, vector<64x32xf32> -> vector<64x32xf32>
    %69 = arith.addf %63, %68 : vector<64x32xf32>
    %c0_87 = arith.constant 0 : index
    %c1_88 = arith.constant 1 : index
    %c0_89 = arith.constant 0 : index
    %c0_90 = arith.constant 0 : index
    %70 = vector.load %arg9[%c0_87, %c1_88, %c0_89, %c0_90] : memref<1x9x9x128xbf16, #tpu.memory_space<vmem>>, vector<1x8x8x128xbf16>
    %71 = vector.shape_cast %70 : vector<1x8x8x128xbf16> to vector<64x128xbf16>
    %c0_91 = arith.constant 0 : index
    %c1_92 = arith.constant 1 : index
    %c0_93 = arith.constant 0 : index
    %c0_94 = arith.constant 0 : index
    %72 = vector.load %arg3[%c0_91, %c1_92, %c0_93, %c0_94] : memref<3x3x128x32xbf16, #tpu.memory_space<vmem>>, vector<1x1x128x32xbf16>
    %73 = vector.shape_cast %72 : vector<1x1x128x32xbf16> to vector<128x32xbf16>
    %cst_95 = arith.constant dense<0.000000e+00> : vector<64x32xf32>
    %74 = tpu.matmul %71, %73, %cst_95 {dimension_numbers = #tpu.dot_dimension_numbers<[1], [0], [0], [1], [0, 0, 1, 1], [], []>} : vector<64x128xbf16>, vector<128x32xbf16>, vector<64x32xf32> -> vector<64x32xf32>
    %75 = arith.addf %69, %74 : vector<64x32xf32>
    %76 = vector.broadcast %6 : vector<1x32xf32> to vector<64x32xf32>
    %77 = arith.addf %75, %76 : vector<64x32xf32>
    %cst_96 = arith.constant 0.000000e+00 : f32
    %78 = vector.broadcast %cst_96 : f32 to vector<64x32xf32>
    %79 = arith.cmpf oge, %77, %78 : vector<64x32xf32>
    %cst_97 = arith.constant 2.000000e-01 : f32
    %80 = vector.broadcast %cst_97 : f32 to vector<64x32xf32>
    %81 = arith.mulf %80, %77 : vector<64x32xf32>
    %82 = arith.select %79, %77, %81 : vector<64x32xi1>, vector<64x32xf32>
    %83 = arith.truncf %82 : vector<64x32xf32> to vector<64x32xbf16>
    %c0_98 = arith.constant 0 : index
    %c1_99 = arith.constant 1 : index
    %c0_100 = arith.constant 0 : index
    %c0_101 = arith.constant 0 : index
    %c0_102 = arith.constant 0 : index
    %84 = vector.load %arg7[%c0_98, %c1_99, %c0_100, %c0_101, %c0_102] : memref<1x2x2x64x32xbf16, #tpu.memory_space<vmem>>, vector<1x1x1x64x32xbf16>
    %85 = vector.shape_cast %84 : vector<1x1x1x64x32xbf16> to vector<64x32xbf16>
    %86 = vector.shape_cast %83 : vector<64x32xbf16> to vector<1x1x1x64x32xbf16>
    tpu.vector_store %arg7[%c0_98, %c1_99, %c0_100, %c0_101, %c0_102], %86 {strides = array<i32>} : memref<1x2x2x64x32xbf16, #tpu.memory_space<vmem>>, vector<1x1x1x64x32xbf16>,
    %cst_103 = arith.constant dense<0.000000e+00> : vector<64x1xf32>
    %87 = tpu.matmul %82, %7, %cst_103 {dimension_numbers = #tpu.dot_dimension_numbers<[1], [0], [0], [1], [0, 0, 1, 1], [], []>} : vector<64x32xf32>, vector<32x1xf32>, vector<64x1xf32> -> vector<64x1xf32>
    %88 = vector.broadcast %8 : vector<1x1xf32> to vector<64x1xf32>
    %89 = arith.addf %87, %88 : vector<64x1xf32>
    %c0_104 = arith.constant 0 : index
    %c1_105 = arith.constant 1 : index
    %c0_106 = arith.constant 0 : index
    %c0_107 = arith.constant 0 : index
    %c0_108 = arith.constant 0 : index
    %90 = vector.load %arg8[%c0_104, %c1_105, %c0_106, %c0_107, %c0_108] : memref<1x2x2x64x1xf32, #tpu.memory_space<vmem>>, vector<1x1x1x64x1xf32>
    %91 = vector.shape_cast %90 : vector<1x1x1x64x1xf32> to vector<64x1xf32>
    %92 = vector.shape_cast %89 : vector<64x1xf32> to vector<1x1x1x64x1xf32>
    tpu.vector_store %arg8[%c0_104, %c1_105, %c0_106, %c0_107, %c0_108], %92 {strides = array<i32>} : memref<1x2x2x64x1xf32, #tpu.memory_space<vmem>>, vector<1x1x1x64x1xf32>,
    %cst_109 = arith.constant 0.000000e+00 : f32
    %93 = vector.broadcast %cst_109 : f32 to vector<64x32xf32>
    %c0_110 = arith.constant 0 : index
    %c0_111 = arith.constant 0 : index
    %c0_112 = arith.constant 0 : index
    %c0_113 = arith.constant 0 : index
    %94 = vector.load %arg9[%c0_110, %c0_111, %c0_112, %c0_113] : memref<1x9x9x128xbf16, #tpu.memory_space<vmem>>, vector<1x8x8x128xbf16>
    %95 = vector.shape_cast %94 : vector<1x8x8x128xbf16> to vector<64x128xbf16>
    %c2_114 = arith.constant 2 : index
    %c2_115 = arith.constant 2 : index
    %c0_116 = arith.constant 0 : index
    %c0_117 = arith.constant 0 : index
    %96 = vector.load %arg3[%c2_114, %c2_115, %c0_116, %c0_117] : memref<3x3x128x32xbf16, #tpu.memory_space<vmem>>, vector<1x1x128x32xbf16>
    %97 = vector.shape_cast %96 : vector<1x1x128x32xbf16> to vector<128x32xbf16>
    %cst_118 = arith.constant dense<0.000000e+00> : vector<64x32xf32>
    %98 = tpu.matmul %95, %97, %cst_118 {dimension_numbers = #tpu.dot_dimension_numbers<[1], [0], [0], [1], [0, 0, 1, 1], [], []>} : vector<64x128xbf16>, vector<128x32xbf16>, vector<64x32xf32> -> vector<64x32xf32>
    %99 = arith.addf %93, %98 : vector<64x32xf32>
    %c0_119 = arith.constant 0 : index
    %c0_120 = arith.constant 0 : index
    %c1_121 = arith.constant 1 : index
    %c0_122 = arith.constant 0 : index
    %100 = vector.load %arg9[%c0_119, %c0_120, %c1_121, %c0_122] : memref<1x9x9x128xbf16, #tpu.memory_space<vmem>>, vector<1x8x8x128xbf16>
    %101 = vector.shape_cast %100 : vector<1x8x8x128xbf16> to vector<64x128xbf16>
    %c2_123 = arith.constant 2 : index
    %c0_124 = arith.constant 0 : index
    %c0_125 = arith.constant 0 : index
    %c0_126 = arith.constant 0 : index
    %102 = vector.load %arg3[%c2_123, %c0_124, %c0_125, %c0_126] : memref<3x3x128x32xbf16, #tpu.memory_space<vmem>>, vector<1x1x128x32xbf16>
    %103 = vector.shape_cast %102 : vector<1x1x128x32xbf16> to vector<128x32xbf16>
    %cst_127 = arith.constant dense<0.000000e+00> : vector<64x32xf32>
    %104 = tpu.matmul %101, %103, %cst_127 {dimension_numbers = #tpu.dot_dimension_numbers<[1], [0], [0], [1], [0, 0, 1, 1], [], []>} : vector<64x128xbf16>, vector<128x32xbf16>, vector<64x32xf32> -> vector<64x32xf32>
    %105 = arith.addf %99, %104 : vector<64x32xf32>
    %c0_128 = arith.constant 0 : index
    %c1_129 = arith.constant 1 : index
    %c0_130 = arith.constant 0 : index
    %c0_131 = arith.constant 0 : index
    %106 = vector.load %arg9[%c0_128, %c1_129, %c0_130, %c0_131] : memref<1x9x9x128xbf16, #tpu.memory_space<vmem>>, vector<1x8x8x128xbf16>
    %107 = vector.shape_cast %106 : vector<1x8x8x128xbf16> to vector<64x128xbf16>
    %c0_132 = arith.constant 0 : index
    %c2_133 = arith.constant 2 : index
    %c0_134 = arith.constant 0 : index
    %c0_135 = arith.constant 0 : index
    %108 = vector.load %arg3[%c0_132, %c2_133, %c0_134, %c0_135] : memref<3x3x128x32xbf16, #tpu.memory_space<vmem>>, vector<1x1x128x32xbf16>
    %109 = vector.shape_cast %108 : vector<1x1x128x32xbf16> to vector<128x32xbf16>
    %cst_136 = arith.constant dense<0.000000e+00> : vector<64x32xf32>
    %110 = tpu.matmul %107, %109, %cst_136 {dimension_numbers = #tpu.dot_dimension_numbers<[1], [0], [0], [1], [0, 0, 1, 1], [], []>} : vector<64x128xbf16>, vector<128x32xbf16>, vector<64x32xf32> -> vector<64x32xf32>
    %111 = arith.addf %105, %110 : vector<64x32xf32>
    %c0_137 = arith.constant 0 : index
    %c1_138 = arith.constant 1 : index
    %c1_139 = arith.constant 1 : index
    %c0_140 = arith.constant 0 : index
    %112 = vector.load %arg9[%c0_137, %c1_138, %c1_139, %c0_140] : memref<1x9x9x128xbf16, #tpu.memory_space<vmem>>, vector<1x8x8x128xbf16>
    %113 = vector.shape_cast %112 : vector<1x8x8x128xbf16> to vector<64x128xbf16>
    %c0_141 = arith.constant 0 : index
    %c0_142 = arith.constant 0 : index
    %c0_143 = arith.constant 0 : index
    %c0_144 = arith.constant 0 : index
    %114 = vector.load %arg3[%c0_141, %c0_142, %c0_143, %c0_144] : memref<3x3x128x32xbf16, #tpu.memory_space<vmem>>, vector<1x1x128x32xbf16>
    %115 = vector.shape_cast %114 : vector<1x1x128x32xbf16> to vector<128x32xbf16>
    %cst_145 = arith.constant dense<0.000000e+00> : vector<64x32xf32>
    %116 = tpu.matmul %113, %115, %cst_145 {dimension_numbers = #tpu.dot_dimension_numbers<[1], [0], [0], [1], [0, 0, 1, 1], [], []>} : vector<64x128xbf16>, vector<128x32xbf16>, vector<64x32xf32> -> vector<64x32xf32>
    %117 = arith.addf %111, %116 : vector<64x32xf32>
    %118 = vector.broadcast %6 : vector<1x32xf32> to vector<64x32xf32>
    %119 = arith.addf %117, %118 : vector<64x32xf32>
    %cst_146 = arith.constant 0.000000e+00 : f32
    %120 = vector.broadcast %cst_146 : f32 to vector<64x32xf32>
    %121 = arith.cmpf oge, %119, %120 : vector<64x32xf32>
    %cst_147 = arith.constant 2.000000e-01 : f32
    %122 = vector.broadcast %cst_147 : f32 to vector<64x32xf32>
    %123 = arith.mulf %122, %119 : vector<64x32xf32>
    %124 = arith.select %121, %119, %123 : vector<64x32xi1>, vector<64x32xf32>
    %125 = arith.truncf %124 : vector<64x32xf32> to vector<64x32xbf16>
    %c0_148 = arith.constant 0 : index
    %c1_149 = arith.constant 1 : index
    %c1_150 = arith.constant 1 : index
    %c0_151 = arith.constant 0 : index
    %c0_152 = arith.constant 0 : index
    %126 = vector.load %arg7[%c0_148, %c1_149, %c1_150, %c0_151, %c0_152] : memref<1x2x2x64x32xbf16, #tpu.memory_space<vmem>>, vector<1x1x1x64x32xbf16>
    %127 = vector.shape_cast %126 : vector<1x1x1x64x32xbf16> to vector<64x32xbf16>
    %128 = vector.shape_cast %125 : vector<64x32xbf16> to vector<1x1x1x64x32xbf16>
    tpu.vector_store %arg7[%c0_148, %c1_149, %c1_150, %c0_151, %c0_152], %128 {strides = array<i32>} : memref<1x2x2x64x32xbf16, #tpu.memory_space<vmem>>, vector<1x1x1x64x32xbf16>,
    %cst_153 = arith.constant dense<0.000000e+00> : vector<64x1xf32>
    %129 = tpu.matmul %124, %7, %cst_153 {dimension_numbers = #tpu.dot_dimension_numbers<[1], [0], [0], [1], [0, 0, 1, 1], [], []>} : vector<64x32xf32>, vector<32x1xf32>, vector<64x1xf32> -> vector<64x1xf32>
    %130 = vector.broadcast %8 : vector<1x1xf32> to vector<64x1xf32>
    %131 = arith.addf %129, %130 : vector<64x1xf32>
    %c0_154 = arith.constant 0 : index
    %c1_155 = arith.constant 1 : index
    %c1_156 = arith.constant 1 : index
    %c0_157 = arith.constant 0 : index
    %c0_158 = arith.constant 0 : index
    %132 = vector.load %arg8[%c0_154, %c1_155, %c1_156, %c0_157, %c0_158] : memref<1x2x2x64x1xf32, #tpu.memory_space<vmem>>, vector<1x1x1x64x1xf32>
    %133 = vector.shape_cast %132 : vector<1x1x1x64x1xf32> to vector<64x1xf32>
    %134 = vector.shape_cast %131 : vector<64x1xf32> to vector<1x1x1x64x1xf32>
    tpu.vector_store %arg8[%c0_154, %c1_155, %c1_156, %c0_157, %c0_158], %134 {strides = array<i32>} : memref<1x2x2x64x1xf32, #tpu.memory_space<vmem>>, vector<1x1x1x64x1xf32>,
    return
  }
  func.func @transform_0(%arg0: i32) -> (i32, i32, i32, i32) {
    %c0_i32 = arith.constant 0 : i32
    %c0_i32_0 = arith.constant 0 : i32
    %c0_i32_1 = arith.constant 0 : i32
    %c0_i32_2 = arith.constant 0 : i32
    return %arg0, %c0_i32, %c0_i32_0, %c0_i32_1 : i32, i32, i32, i32
  }
  func.func @transform_1(%arg0: i32) -> (i32, i32, i32, i32) {
    %c0_i32 = arith.constant 0 : i32
    %c0_i32_0 = arith.constant 0 : i32
    %c0_i32_1 = arith.constant 0 : i32
    %c0_i32_2 = arith.constant 0 : i32
    return %arg0, %c0_i32, %c0_i32_0, %c0_i32_1 : i32, i32, i32, i32
  }
  func.func @transform_2(%arg0: i32) -> (i32, i32, i32, i32) {
    %c0_i32 = arith.constant 0 : i32
    %c0_i32_0 = arith.constant 0 : i32
    %c0_i32_1 = arith.constant 0 : i32
    %c0_i32_2 = arith.constant 0 : i32
    %c0_i32_3 = arith.constant 0 : i32
    return %c0_i32, %c0_i32_0, %c0_i32_1, %c0_i32_2 : i32, i32, i32, i32
  }
  func.func @transform_3(%arg0: i32) -> (i32, i32) {
    %c0_i32 = arith.constant 0 : i32
    %c0_i32_0 = arith.constant 0 : i32
    %c0_i32_1 = arith.constant 0 : i32
    return %c0_i32, %c0_i32_0 : i32, i32
  }
  func.func @transform_4(%arg0: i32) -> (i32, i32) {
    %c0_i32 = arith.constant 0 : i32
    %c0_i32_0 = arith.constant 0 : i32
    %c0_i32_1 = arith.constant 0 : i32
    return %c0_i32, %c0_i32_0 : i32, i32
  }
  func.func @transform_5(%arg0: i32) -> (i32, i32) {
    %c0_i32 = arith.constant 0 : i32
    %c0_i32_0 = arith.constant 0 : i32
    %c0_i32_1 = arith.constant 0 : i32
    return %c0_i32, %c0_i32_0 : i32, i32
  }
  func.func @transform_6(%arg0: i32) -> (i32, i32, i32, i32, i32) {
    %c0_i32 = arith.constant 0 : i32
    %c0_i32_0 = arith.constant 0 : i32
    %c0_i32_1 = arith.constant 0 : i32
    %c0_i32_2 = arith.constant 0 : i32
    %c0_i32_3 = arith.constant 0 : i32
    return %arg0, %c0_i32, %c0_i32_0, %c0_i32_1, %c0_i32_2 : i32, i32, i32, i32, i32
  }
  func.func @transform_7(%arg0: i32) -> (i32, i32, i32, i32, i32) {
    %c0_i32 = arith.constant 0 : i32
    %c0_i32_0 = arith.constant 0 : i32
    %c0_i32_1 = arith.constant 0 : i32
    %c0_i32_2 = arith.constant 0 : i32
    %c0_i32_3 = arith.constant 0 : i32
    return %arg0, %c0_i32, %c0_i32_0, %c0_i32_1, %c0_i32_2 : i32, i32, i32, i32, i32
  }
}

</mosaic_0001>

<llo_original>
// kernel: mul.9
$region0: #{mul.9}
  #allocation4 [shape = 's32[1]{0}', space=sflag, size = 0x4, scoped, tag = 'scoped memory for mul.9']
  %s0 = inlined_call_operand.hbm [shape: f32[3], index: 0, kind: input, shape index: {}]
  %s1 = inlined_call_operand.hbm [shape: f32[3], index: 1, kind: input, shape index: {}]
  %s2 = inlined_call_operand.vmem [shape: f32[3], index: 2, kind: output, shape index: {}]
  $region1: #{mul.9} parent=0
    #allocation0 [shape = 'u8[512]{0}', space=vmem, size = 0x400, scoped, tag = 'operand span for operand 0']
    #allocation1 [shape = 's32[1]{0}', space=sflag, size = 0x4, scoped, tag = 'scoped memory for mul.9']
    #allocation2 [shape = 'u8[512]{0}', space=vmem, size = 0x400, scoped, tag = 'operand span for operand 1']
    #allocation3 [shape = 's32[1]{0}', space=sflag, size = 0x4, scoped, tag = 'scoped memory for mul.9']
    %3 = vsyncpa [#allocation1], 0
    %4 = vsyncpa [#allocation3], 0
    %6 = vsyncadd [#allocation1], 0
    %s8 = sshll.u32 %s0, 4
    %s9 = int_to_ptr.hbm [resolvable:$true] %s8
    %s10 = sshll.u32 [#allocation0], 4
    %s11 = int_to_ptr.vmem [resolvable:$true] %s10
    %13 = dma.hbm_to_vmem [thread:$0]  %s9, 16, %s11, [#allocation1]
    %15 = vsyncadd [#allocation3], 0
    %s17 = sshll.u32 %s1, 4
    %s18 = int_to_ptr.hbm [resolvable:$true] %s17
    %s19 = sshll.u32 [#allocation2], 4
    %s20 = int_to_ptr.vmem [resolvable:$true] %s19
    %22 = dma.hbm_to_vmem [thread:$0]  %s18, 16, %s20, [#allocation3]
    %24 = dma.done [#allocation1], 16
    %26 = dma.done [#allocation3], 16
    %v27 = vld [vmem:[#allocation0] sm:$0x1]
    %v28 = vld [vmem:[#allocation2] sm:$0x1]
    %29 = xla_tuple %v27, %v28
    %30 = xla_tuple %29
    %v31 = vmul.f32 %v27, %v28
    %32 = xla_tuple %v31
    %33 = vst [vmem:[%s2] sm:$0x1] %v31
    %34 = vsyncpa [#allocation1], 1
    %35 = vsyncpa [#allocation3], 1

// kernel: _lambda_.4
$region0: #{_lambda_.4}
  #allocation0 [shape = 'u32[]', space=smem, size = 0x4, offset = 0x4, fixed_abs, tag = 'smem constant byte address 0x4 - core index']
  #allocation1 [shape = 'u32[72,128]{1,0:T(1,128)}', space=vmem, size = 0x9000, scoped, tag = 'internal scratch']
  #allocation2 [shape = 'f32[1,18,18,32]{3,2,1,0:T(8,128)}', space=vmem, size = 0x36000, scoped, tag = 'scratch operand']
  %s0 = inlined_call_operand.vmem [shape: bf16[2,16,16,3], index: 0, kind: input, shape index: {}]
  %s1 = inlined_call_operand.vmem [shape: bf16[3,32], index: 1, kind: input, shape index: {}]
  %s2 = inlined_call_operand.vmem [shape: f32[1,32], index: 2, kind: input, shape index: {}]
  %s3 = inlined_call_operand.vmem [shape: bf16[3,3,32,64], index: 3, kind: input, shape index: {}]
  %s4 = inlined_call_operand.vmem [shape: f32[1,64], index: 4, kind: input, shape index: {}]
  %s5 = inlined_call_operand.vmem [shape: bf16[2,64,64], index: 5, kind: output, shape index: {}]
  %s6 = sld [smem:[#allocation0]]
  $region53: #{_lambda_.4} parent=0
    _
  %s8 = ssub.s32 1, %s6
  %s9 = scalar_select 0, %s8, %s6
  loop: start=0, step=1, limit=4
  $region2: #{_lambda_.4} parent=0 // loop_pre_header
    _
  $region3: #{_lambda_.4} parent=0 // loop_header
    %s11 = sphi 0, %s15
    %p12 = scmp.ge.s32.totalorder %s11, 4
    %s21 = sphi 0, %s23
    %s24 = sphi 0, %s21
    %s25 = sphi 0, %s24
    %s41 = sphi 0, %s25
    %s45 = sphi 0, %s45
    %s47 = sphi 0, %s45
    %s48 = sphi 0, %s47
    %s62 = sphi 0, %s48
    %s66 = sphi 0, %s66
    %s68 = sphi 0, %s66
    %s69 = sphi 0, %s68
    %s83 = sphi 0, %s69
    %s87 = sphi 0, %s87
    %s89 = sphi 0, %s87
    %s90 = sphi 0, %s89
    %s104 = sphi 0, %s90
    %s108 = sphi 0, %s108
    %s110 = sphi 0, %s108
    %s111 = sphi 0, %s110
    %s125 = sphi 0, %s111
    %s131 = sphi 0, %s133
    %s134 = sphi 0, %s131
    %s135 = sphi 0, %s134
    %s151 = sphi 0, %s135
  $region4: #{_lambda_.4} parent=0 // loop_header_branch
    %14 = sbr.rel (%p12) target = $region8
  $region5: #{_lambda_.4} parent=0 // loop_body
    %s16 = ssub.s32 %s11, 1
    %s17 = ssub.s32 %s11, 2
    %s18 = sadd.s32 %s11, 1
    %s19 = ssub.s32 %s11, %s18
    %p20 = scmp.eq.s32.totalorder %s19, 0
    %s22 = sadd.s32 %s21, 1
    %s23 = scalar_select %p20, %s21, %s22
    %p26 = pneg %p20
    %p27 = scmp.eq.s32.totalorder %s11, 1
    %p28 = por %p26, %p27
    %p29 = scmp.ne.s32.totalorder %s21, %s24
    %p30 = scmp.eq.s32.totalorder %s11, 0
    %p31 = por %p29, %p30
    %p32 = scmp.ne.s32.totalorder %s21, %s24
    %p33 = scmp.eq.s32.totalorder %s16, 1
    %p34 = por %p32, %p33
    %p35 = scmp.ne.s32.totalorder %s24, %s25
    %p36 = scmp.eq.s32.totalorder %s16, 0
    %p37 = por %p35, %p36
    %p38 = scmp.ne.s32.totalorder %s24, %s25
    %p39 = scmp.eq.s32.totalorder %s17, 1
    %p40 = por %p38, %p39
    %p42 = scmp.ne.s32.totalorder %s25, %s41
    %p43 = scmp.eq.s32.totalorder %s17, 0
    %p44 = por %p42, %p43
    %s46 = sadd.s32 %s45, 1
    %p49 = scmp.eq.s32.totalorder %s11, 1
    %p50 = scmp.ne.s32.totalorder %s45, %s47
    %p51 = scmp.eq.s32.totalorder %s11, 0
    %p52 = por %p50, %p51
    %p53 = scmp.ne.s32.totalorder %s45, %s47
    %p54 = scmp.eq.s32.totalorder %s16, 1
    %p55 = por %p53, %p54
    %p56 = scmp.ne.s32.totalorder %s47, %s48
    %p57 = scmp.eq.s32.totalorder %s16, 0
    %p58 = por %p56, %p57
    %p59 = scmp.ne.s32.totalorder %s47, %s48
    %p60 = scmp.eq.s32.totalorder %s17, 1
    %p61 = por %p59, %p60
    %p63 = scmp.ne.s32.totalorder %s48, %s62
    %p64 = scmp.eq.s32.totalorder %s17, 0
    %p65 = por %p63, %p64
    %s67 = sadd.s32 %s66, 1
    %p70 = scmp.eq.s32.totalorder %s11, 1
    %p71 = scmp.ne.s32.totalorder %s66, %s68
    %p72 = scmp.eq.s32.totalorder %s11, 0
    %p73 = por %p71, %p72
    %p74 = scmp.ne.s32.totalorder %s66, %s68
    %p75 = scmp.eq.s32.totalorder %s16, 1
    %p76 = por %p74, %p75
    %p77 = scmp.ne.s32.totalorder %s68, %s69
    %p78 = scmp.eq.s32.totalorder %s16, 0
    %p79 = por %p77, %p78
    %p80 = scmp.ne.s32.totalorder %s68, %s69
    %p81 = scmp.eq.s32.totalorder %s17, 1
    %p82 = por %p80, %p81
    %p84 = scmp.ne.s32.totalorder %s69, %s83
    %p85 = scmp.eq.s32.totalorder %s17, 0
    %p86 = por %p84, %p85
    %s88 = sadd.s32 %s87, 1
    %p91 = scmp.eq.s32.totalorder %s11, 1
    %p92 = scmp.ne.s32.totalorder %s87, %s89
    %p93 = scmp.eq.s32.totalorder %s11, 0
    %p94 = por %p92, %p93
    %p95 = scmp.ne.s32.totalorder %s87, %s89
    %p96 = scmp.eq.s32.totalorder %s16, 1
    %p97 = por %p95, %p96
    %p98 = scmp.ne.s32.totalorder %s89, %s90
    %p99 = scmp.eq.s32.totalorder %s16, 0
    %p100 = por %p98, %p99
    %p101 = scmp.ne.s32.totalorder %s89, %s90
    %p102 = scmp.eq.s32.totalorder %s17, 1
    %p103 = por %p101, %p102
    %p105 = scmp.ne.s32.totalorder %s90, %s104
    %p106 = scmp.eq.s32.totalorder %s17, 0
    %p107 = por %p105, %p106
    %s109 = sadd.s32 %s108, 1
    %p112 = scmp.eq.s32.totalorder %s11, 1
    %p113 = scmp.ne.s32.totalorder %s108, %s110
    %p114 = scmp.eq.s32.totalorder %s11, 0
    %p115 = por %p113, %p114
    %p116 = scmp.ne.s32.totalorder %s108, %s110
    %p117 = scmp.eq.s32.totalorder %s16, 1
    %p118 = por %p116, %p117
    %p119 = scmp.ne.s32.totalorder %s110, %s111
    %p120 = scmp.eq.s32.totalorder %s16, 0
    %p121 = por %p119, %p120
    %p122 = scmp.ne.s32.totalorder %s110, %s111
    %p123 = scmp.eq.s32.totalorder %s17, 1
    %p124 = por %p122, %p123
    %p126 = scmp.ne.s32.totalorder %s111, %s125
    %p127 = scmp.eq.s32.totalorder %s17, 0
    %p128 = por %p126, %p127
    %s129 = ssub.s32 %s11, %s18
    %p130 = scmp.eq.s32.totalorder %s129, 0
    %s132 = sadd.s32 %s131, 1
    %s133 = scalar_select %p130, %s131, %s132
    %p136 = pneg %p130
    %p137 = scmp.eq.s32.totalorder %s11, 1
    %p138 = por %p136, %p137
    %p139 = scmp.ne.s32.totalorder %s131, %s134
    %p140 = scmp.eq.s32.totalorder %s11, 0
    %p141 = por %p139, %p140
    %p142 = scmp.ne.s32.totalorder %s131, %s134
    %p143 = scmp.eq.s32.totalorder %s16, 1
    %p144 = por %p142, %p143
    %p145 = scmp.ne.s32.totalorder %s134, %s135
    %p146 = scmp.eq.s32.totalorder %s16, 0
    %p147 = por %p145, %p146
    %p148 = scmp.ne.s32.totalorder %s134, %s135
    %p149 = scmp.eq.s32.totalorder %s17, 1
    %p150 = por %p148, %p149
    %p152 = scmp.ne.s32.totalorder %s135, %s151
    %p153 = scmp.eq.s32.totalorder %s17, 0
    %p154 = por %p152, %p153
    %p155 = scmp.le.s32.totalorder 1, %s11
    %p156 = scmp.lt.s32.totalorder %s11, 3
    %p157 = pnand %p155, %p156
    %p158 = pneg %p157
    // Predicated region
    $region9: #{_lambda_.4} parent=5 // pred_check
      _
    $region10: #{_lambda_.4} parent=5 // pred_check_branch
      %160 = sbr.rel (%p157) target = $region12
    $region11: #{_lambda_.4} parent=5 // pred_region
      %s161 = ssub.s32 %s11, 1
      // Predicated region
      $region13: #{_lambda_.4} parent=11 // pred_check
        %p162 = pneg %p58
      $region14: #{_lambda_.4} parent=11 // pred_check_branch
        %164 = sbr.rel (%p162) target = $region16
      $region15: #{_lambda_.4} parent=11 // pred_region
        _
      $region16: #{_lambda_.4} parent=11 // pred_fallthru
        _
      // Predicated region
      $region17: #{_lambda_.4} parent=11 // pred_check
        %p165 = pneg %p79
      $region18: #{_lambda_.4} parent=11 // pred_check_branch
        %167 = sbr.rel (%p165) target = $region20
      $region19: #{_lambda_.4} parent=11 // pred_region
        _
      $region20: #{_lambda_.4} parent=11 // pred_fallthru
        _
      // Predicated region
      $region21: #{_lambda_.4} parent=11 // pred_check
        %p168 = pneg %p100
      $region22: #{_lambda_.4} parent=11 // pred_check_branch
        %170 = sbr.rel (%p168) target = $region24
      $region23: #{_lambda_.4} parent=11 // pred_region
        _
      $region24: #{_lambda_.4} parent=11 // pred_fallthru
        _
      // Predicated region
      $region25: #{_lambda_.4} parent=11 // pred_check
        %p171 = pneg %p121
      $region26: #{_lambda_.4} parent=11 // pred_check_branch
        %173 = sbr.rel (%p171) target = $region28
      $region27: #{_lambda_.4} parent=11 // pred_region
        _
      $region28: #{_lambda_.4} parent=11 // pred_fallthru
        _
    $region12: #{_lambda_.4} parent=5 // pred_fallthru
      _
    %p174 = scmp.lt.s32.totalorder %s11, 2
    // Predicated region
    $region29: #{_lambda_.4} parent=5 // pred_check
      %p175 = pneg %p174
    $region30: #{_lambda_.4} parent=5 // pred_check_branch
      %177 = sbr.rel (%p175) target = $region32
    $region31: #{_lambda_.4} parent=5 // pred_region
      // Predicated region
      $region33: #{_lambda_.4} parent=31 // pred_check
        %p178 = pneg %p31
      $region34: #{_lambda_.4} parent=31 // pred_check_branch
        %180 = sbr.rel (%p178) target = $region36
      $region35: #{_lambda_.4} parent=31 // pred_region
        %p181 = scmp.lt.s32.totalorder %s11, 1
        %s182 = scalar_select %p181, %s11, 1
        %s183 = smul.addr %s182, 32
        %s184 = smul.addr %s183, 4
        %s185 = scalar_lea.vmem %s0, %s184
      $region36: #{_lambda_.4} parent=31 // pred_fallthru
        _
    $region32: #{_lambda_.4} parent=5 // pred_fallthru
      _
    %p186 = scmp.le.s32.totalorder 1, %s11
    %p187 = scmp.lt.s32.totalorder %s11, 3
    %p188 = pnand %p186, %p187
    %p189 = pneg %p188
    // Predicated region
    $region37: #{_lambda_.4} parent=5 // pred_check
      _
    $region38: #{_lambda_.4} parent=5 // pred_check_branch
      %191 = sbr.rel (%p188) target = $region40
    $region39: #{_lambda_.4} parent=5 // pred_region
      %s192 = ssub.s32 %s11, 1
      %p193 = scmp.lt.s32.totalorder %s16, 1
      %s194 = scalar_select %p193, %s16, 1
      %s195 = smul.addr %s194, 32
      %s196 = smul.addr %s195, 4
      %s197 = scalar_lea.vmem %s0, %s196
      %p198 = pneg %p37
      %p199 = pneg %p34
      %p200 = pneg %p58
      %p201 = pneg %p55
      %p202 = pneg %p79
      %p203 = pneg %p76
      %p204 = pneg %p100
      %p205 = pneg %p97
      %p206 = pneg %p121
      %p207 = pneg %p118
      %p208 = pneg %p147
      %p209 = pneg %p144
      %p210 = scmp.lt.s32.totalorder %s16, 1
      %s211 = scalar_select %p210, %s16, 1
      %s212 = smul.addr %s211, 8
      %s213 = smul.addr %s212, 4
      %s214 = scalar_lea.vmem %s5, %s213
      %p215 = scmp.lt.s32.totalorder %s16, 1
      %s216 = scalar_select %p215, %s16, 1
      %s217 = smul.addr %s216, 32
      %s218 = smul.addr %s217, 4
      %s219 = scalar_lea.vmem %s0, %s218
      %p220 = scmp.lt.s32.totalorder %s16, 1
      %s221 = scalar_select %p220, %s16, 1
      %s222 = smul.addr %s221, 8
      %s223 = smul.addr %s222, 4
      %s224 = scalar_lea.vmem %s5, %s223
      %vm226 = vcmask 261120
      %227 = vst.msk [vmem:[#allocation2] sm:$0xff] %vm226, 0.0
      %228 = vst.msk [vmem:[#allocation2 + $0x8] sm:$0xff] %vm226, 0.0
      %vm229 = vcmask 254976
      %230 = vst.msk [vmem:[#allocation2 + $0x10] sm:$0x3] %vm229, 0.0
      %231 = vst.msk [vmem:[#allocation2 + $0x18] sm:$0xff] %vm226, 0.0
      %232 = vst.msk [vmem:[#allocation2 + $0x20] sm:$0xff] %vm226, 0.0
      %233 = vst.msk [vmem:[#allocation2 + $0x28] sm:$0x3] %vm229, 0.0
      %234 = vst.msk [vmem:[#allocation2 + $0x30] sm:$0xff] %vm226, 0.0
      %235 = vst.msk [vmem:[#allocation2 + $0x38] sm:$0xff] %vm226, 0.0
      %236 = vst.msk [vmem:[#allocation2 + $0x40] sm:$0x3] %vm229, 0.0
      %237 = vst.msk [vmem:[#allocation2 + $0x48] sm:$0xff] %vm226, 0.0
      %238 = vst.msk [vmem:[#allocation2 + $0x50] sm:$0xff] %vm226, 0.0
      %239 = vst.msk [vmem:[#allocation2 + $0x58] sm:$0x3] %vm229, 0.0
      %240 = vst.msk [vmem:[#allocation2 + $0x60] sm:$0xff] %vm226, 0.0
      %241 = vst.msk [vmem:[#allocation2 + $0x68] sm:$0xff] %vm226, 0.0
      %242 = vst.msk [vmem:[#allocation2 + $0x70] sm:$0x3] %vm229, 0.0
      %243 = vst.msk [vmem:[#allocation2 + $0x78] sm:$0xff] %vm226, 0.0
      %244 = vst.msk [vmem:[#allocation2 + $0x80] sm:$0xff] %vm226, 0.0
      %245 = vst.msk [vmem:[#allocation2 + $0x88] sm:$0x3] %vm229, 0.0
      %246 = vst.msk [vmem:[#allocation2 + $0x90] sm:$0xff] %vm226, 0.0
      %247 = vst.msk [vmem:[#allocation2 + $0x98] sm:$0xff] %vm226, 0.0
      %248 = vst.msk [vmem:[#allocation2 + $0xa0] sm:$0x3] %vm229, 0.0
      %249 = vst.msk [vmem:[#allocation2 + $0xa8] sm:$0xff] %vm226, 0.0
      %250 = vst.msk [vmem:[#allocation2 + $0xb0] sm:$0xff] %vm226, 0.0
      %251 = vst.msk [vmem:[#allocation2 + $0xb8] sm:$0x3] %vm229, 0.0
      %252 = vst.msk [vmem:[#allocation2 + $0xc0] sm:$0xff] %vm226, 0.0
      %253 = vst.msk [vmem:[#allocation2 + $0xc8] sm:$0xff] %vm226, 0.0
      %254 = vst.msk [vmem:[#allocation2 + $0xd0] sm:$0x3] %vm229, 0.0
      %255 = vst.msk [vmem:[#allocation2 + $0xd8] sm:$0xff] %vm226, 0.0
      %256 = vst.msk [vmem:[#allocation2 + $0xe0] sm:$0xff] %vm226, 0.0
      %257 = vst.msk [vmem:[#allocation2 + $0xe8] sm:$0x3] %vm229, 0.0
      %258 = vst.msk [vmem:[#allocation2 + $0xf0] sm:$0xff] %vm226, 0.0
      %259 = vst.msk [vmem:[#allocation2 + $0xf8] sm:$0xff] %vm226, 0.0
      %260 = vst.msk [vmem:[#allocation2 + $0x100] sm:$0x3] %vm229, 0.0
      %261 = vst.msk [vmem:[#allocation2 + $0x108] sm:$0xff] %vm226, 0.0
      %262 = vst.msk [vmem:[#allocation2 + $0x110] sm:$0xff] %vm226, 0.0
      %263 = vst.msk [vmem:[#allocation2 + $0x118] sm:$0x3] %vm229, 0.0
      %264 = vst.msk [vmem:[#allocation2 + $0x120] sm:$0xff] %vm226, 0.0
      %265 = vst.msk [vmem:[#allocation2 + $0x128] sm:$0xff] %vm226, 0.0
      %266 = vst.msk [vmem:[#allocation2 + $0x130] sm:$0x3] %vm229, 0.0
      %267 = vst.msk [vmem:[#allocation2 + $0x138] sm:$0xff] %vm226, 0.0
      %268 = vst.msk [vmem:[#allocation2 + $0x140] sm:$0xff] %vm226, 0.0
      %269 = vst.msk [vmem:[#allocation2 + $0x148] sm:$0x3] %vm229, 0.0
      %270 = vst.msk [vmem:[#allocation2 + $0x150] sm:$0xff] %vm226, 0.0
      %271 = vst.msk [vmem:[#allocation2 + $0x158] sm:$0xff] %vm226, 0.0
      %272 = vst.msk [vmem:[#allocation2 + $0x160] sm:$0x3] %vm229, 0.0
      %273 = vst.msk [vmem:[#allocation2 + $0x168] sm:$0xff] %vm226, 0.0
      %274 = vst.msk [vmem:[#allocation2 + $0x170] sm:$0xff] %vm226, 0.0
      %275 = vst.msk [vmem:[#allocation2 + $0x178] sm:$0x3] %vm229, 0.0
      %276 = vst.msk [vmem:[#allocation2 + $0x180] sm:$0xff] %vm226, 0.0
      %277 = vst.msk [vmem:[#allocation2 + $0x188] sm:$0xff] %vm226, 0.0
      %278 = vst.msk [vmem:[#allocation2 + $0x190] sm:$0x3] %vm229, 0.0
      %279 = vst.msk [vmem:[#allocation2 + $0x198] sm:$0xff] %vm226, 0.0
      %280 = vst.msk [vmem:[#allocation2 + $0x1a0] sm:$0xff] %vm226, 0.0
      %281 = vst.msk [vmem:[#allocation2 + $0x1a8] sm:$0x3] %vm229, 0.0
      %v282 = vld [vmem:[%s219] sm:$0xf]
      %v283 = vld [vmem:[%s219 + $0x4] sm:$0xf]
      %v284 = vld [vmem:[%s219 + $0x8] sm:$0xf]
      %v285 = vld [vmem:[%s219 + $0xc] sm:$0xf]
      %v286 = vld [vmem:[%s219 + $0x10] sm:$0xf]
      %v287 = vld [vmem:[%s219 + $0x14] sm:$0xf]
      %v288 = vld [vmem:[%s219 + $0x18] sm:$0xf]
      %v289 = vld [vmem:[%s219 + $0x1c] sm:$0xf]
      %v290 = vld [vmem:[%s219 + $0x20] sm:$0xf]
      %v291 = vld [vmem:[%s219 + $0x24] sm:$0xf]
      %v292 = vld [vmem:[%s219 + $0x28] sm:$0xf]
      %v293 = vld [vmem:[%s219 + $0x2c] sm:$0xf]
      %v294 = vld [vmem:[%s219 + $0x30] sm:$0xf]
      %v295 = vld [vmem:[%s219 + $0x34] sm:$0xf]
      %v296 = vld [vmem:[%s219 + $0x38] sm:$0xf]
      %v297 = vld [vmem:[%s219 + $0x3c] sm:$0xf]
      %v298 = vld [vmem:[%s219 + $0x40] sm:$0xf]
      %v299 = vld [vmem:[%s219 + $0x44] sm:$0xf]
      %v300 = vld [vmem:[%s219 + $0x48] sm:$0xf]
      %v301 = vld [vmem:[%s219 + $0x4c] sm:$0xf]
      %v302 = vld [vmem:[%s219 + $0x50] sm:$0xf]
      %v303 = vld [vmem:[%s219 + $0x54] sm:$0xf]
      %v304 = vld [vmem:[%s219 + $0x58] sm:$0xf]
      %v305 = vld [vmem:[%s219 + $0x5c] sm:$0xf]
      %v306 = vld [vmem:[%s219 + $0x60] sm:$0xf]
      %v307 = vld [vmem:[%s219 + $0x64] sm:$0xf]
      %v308 = vld [vmem:[%s219 + $0x68] sm:$0xf]
      %v309 = vld [vmem:[%s219 + $0x6c] sm:$0xf]
      %v310 = vld [vmem:[%s219 + $0x70] sm:$0xf]
      %v311 = vld [vmem:[%s219 + $0x74] sm:$0xf]
      %v312 = vld [vmem:[%s219 + $0x78] sm:$0xf]
      %v313 = vld [vmem:[%s219 + $0x7c] sm:$0xf]
      %v314 = vld [vmem:[%s1] sm:$0x3]
      %v315 = vld [vmem:[%s2] sm:$0x1]
      %v317 = vperm.slane %v315, 0
      %v351 = vunpack.c.l.b16 %v282
      %v352 = vunpack.c.l.b16 %v283
      %v353 = vunpack.c.l.b16 %v284
      %v354 = vunpack.c.l.b16 %v285
      %v355 = vunpack.c.l.b16 %v286
      %v356 = vunpack.c.l.b16 %v287
      %v357 = vunpack.c.l.b16 %v288
      %v358 = vunpack.c.l.b16 %v289
      %v359 = vunpack.c.l.b16 %v290
      %v360 = vunpack.c.l.b16 %v291
      %v361 = vunpack.c.l.b16 %v292
      %v362 = vunpack.c.l.b16 %v293
      %v363 = vunpack.c.l.b16 %v294
      %v364 = vunpack.c.l.b16 %v295
      %v365 = vunpack.c.l.b16 %v296
      %v366 = vunpack.c.l.b16 %v297
      %v367 = vunpack.c.l.b16 %v298
      %v368 = vunpack.c.l.b16 %v299
      %v369 = vunpack.c.l.b16 %v300
      %v370 = vunpack.c.l.b16 %v301
      %v371 = vunpack.c.l.b16 %v302
      %v372 = vunpack.c.l.b16 %v303
      %v373 = vunpack.c.l.b16 %v304
      %v374 = vunpack.c.l.b16 %v305
      %v375 = vunpack.c.l.b16 %v306
      %v376 = vunpack.c.l.b16 %v307
      %v377 = vunpack.c.l.b16 %v308
      %v378 = vunpack.c.l.b16 %v309
      %v379 = vunpack.c.l.b16 %v310
      %v380 = vunpack.c.l.b16 %v311
      %v381 = vunpack.c.l.b16 %v312
      %v382 = vunpack.c.l.b16 %v313
      %v383 = vpack.c.b16 %v352, %v351
      %v384 = vpack.c.b16 %v354, %v353
      %v385 = vpack.c.b16 %v356, %v355
      %v386 = vpack.c.b16 %v358, %v357
      %v387 = vpack.c.b16 %v360, %v359
      %v388 = vpack.c.b16 %v362, %v361
      %v389 = vpack.c.b16 %v364, %v363
      %v390 = vpack.c.b16 %v366, %v365
      %v391 = vpack.c.b16 %v368, %v367
      %v392 = vpack.c.b16 %v370, %v369
      %v393 = vpack.c.b16 %v372, %v371
      %v394 = vpack.c.b16 %v374, %v373
      %v395 = vpack.c.b16 %v376, %v375
      %v396 = vpack.c.b16 %v378, %v377
      %v397 = vpack.c.b16 %v380, %v379
      %v398 = vpack.c.b16 %v382, %v381
      %vm399 = vcmask 23552
      %v401 = vsel %vm399, %v383, 0
      %v404 = vsel %vm399, %v384, 0
      %v407 = vsel %vm399, %v385, 0
      %v410 = vsel %vm399, %v386, 0
      %v413 = vsel %vm399, %v387, 0
      %v416 = vsel %vm399, %v388, 0
      %v419 = vsel %vm399, %v389, 0
      %v422 = vsel %vm399, %v390, 0
      %v425 = vsel %vm399, %v391, 0
      %v428 = vsel %vm399, %v392, 0
      %v431 = vsel %vm399, %v393, 0
      %v434 = vsel %vm399, %v394, 0
      %v437 = vsel %vm399, %v395, 0
      %v440 = vsel %vm399, %v396, 0
      %v443 = vsel %vm399, %v397, 0
      %v446 = vsel %vm399, %v398, 0
      %vm448 = vcmask 1040384
      %vm449 = vcmask 1041408
      %v450 = vsel %vm448, 4294967295, 65535
      %v451 = vsel %vm449, %v450, 0
      %v453 = vand.u32 %v314, %v451
      %455 = vmatpush.bf16.msra.mxu0 0
      %456 = vmatpush.bf16.msra.mxu0 0
      %457 = vmatpush.bf16.msra.mxu0 0
      %458 = vmatpush.bf16.msra.mxu0 0
      %459 = vmatpush.bf16.msra.mxu0 0
      %460 = vmatpush.bf16.msra.mxu0 0
      %461 = vmatpush.bf16.msra.mxu0 0
      %462 = vmatpush.bf16.msra.mxu0 %v453
      %463 = vmatmul.bf16.gmra.mxu0 %v401
      %v464 = vpop.f32.mrf.mxu0
      %v465 = vadd.f32 %v317, %v464
      %v466 = vpop.f32.mrf.mxu0
      %v467 = vadd.f32 %v317, %v466
      %468 = vmatmul.bf16.gmra.mxu0 %v404
      %v469 = vpop.f32.mrf.mxu0
      %v470 = vadd.f32 %v317, %v469
      %v471 = vpop.f32.mrf.mxu0
      %v472 = vadd.f32 %v317, %v471
      %473 = vmatmul.bf16.gmra.mxu0 %v407
      %v474 = vpop.f32.mrf.mxu0
      %v475 = vadd.f32 %v317, %v474
      %v476 = vpop.f32.mrf.mxu0
      %v477 = vadd.f32 %v317, %v476
      %478 = vmatmul.bf16.gmra.mxu0 %v410
      %v479 = vpop.f32.mrf.mxu0
      %v480 = vadd.f32 %v317, %v479
      %v481 = vpop.f32.mrf.mxu0
      %v482 = vadd.f32 %v317, %v481
      %483 = vmatmul.bf16.gmra.mxu0 %v413
      %v484 = vpop.f32.mrf.mxu0
      %v485 = vadd.f32 %v317, %v484
      %v486 = vpop.f32.mrf.mxu0
      %v487 = vadd.f32 %v317, %v486
      %488 = vmatmul.bf16.gmra.mxu0 %v416
      %v489 = vpop.f32.mrf.mxu0
      %v490 = vadd.f32 %v317, %v489
      %v491 = vpop.f32.mrf.mxu0
      %v492 = vadd.f32 %v317, %v491
      %493 = vmatmul.bf16.gmra.mxu0 %v419
      %v494 = vpop.f32.mrf.mxu0
      %v495 = vadd.f32 %v317, %v494
      %v496 = vpop.f32.mrf.mxu0
      %v497 = vadd.f32 %v317, %v496
      %498 = vmatmul.bf16.gmra.mxu0 %v422
      %v499 = vpop.f32.mrf.mxu0
      %v500 = vadd.f32 %v317, %v499
      %v501 = vpop.f32.mrf.mxu0
      %v502 = vadd.f32 %v317, %v501
      %503 = vmatmul.bf16.gmra.mxu0 %v425
      %v504 = vpop.f32.mrf.mxu0
      %v505 = vadd.f32 %v317, %v504
      %v506 = vpop.f32.mrf.mxu0
      %v507 = vadd.f32 %v317, %v506
      %508 = vmatmul.bf16.gmra.mxu0 %v428
      %v509 = vpop.f32.mrf.mxu0
      %v510 = vadd.f32 %v317, %v509
      %v511 = vpop.f32.mrf.mxu0
      %v512 = vadd.f32 %v317, %v511
      %513 = vmatmul.bf16.gmra.mxu0 %v431
      %v514 = vpop.f32.mrf.mxu0
      %v515 = vadd.f32 %v317, %v514
      %v516 = vpop.f32.mrf.mxu0
      %v517 = vadd.f32 %v317, %v516
      %518 = vmatmul.bf16.gmra.mxu0 %v434
      %v519 = vpop.f32.mrf.mxu0
      %v520 = vadd.f32 %v317, %v519
      %v521 = vpop.f32.mrf.mxu0
      %v522 = vadd.f32 %v317, %v521
      %523 = vmatmul.bf16.gmra.mxu0 %v437
      %v524 = vpop.f32.mrf.mxu0
      %v525 = vadd.f32 %v317, %v524
      %v526 = vpop.f32.mrf.mxu0
      %v527 = vadd.f32 %v317, %v526
      %528 = vmatmul.bf16.gmra.mxu0 %v440
      %v529 = vpop.f32.mrf.mxu0
      %v530 = vadd.f32 %v317, %v529
      %v531 = vpop.f32.mrf.mxu0
      %v532 = vadd.f32 %v317, %v531
      %533 = vmatmul.bf16.gmra.mxu0 %v443
      %v534 = vpop.f32.mrf.mxu0
      %v535 = vadd.f32 %v317, %v534
      %v536 = vpop.f32.mrf.mxu0
      %v537 = vadd.f32 %v317, %v536
      %538 = vmatmul.bf16.gmra.mxu0 %v446
      %v539 = vpop.f32.mrf.mxu0
      %v540 = vadd.f32 %v317, %v539
      %v541 = vpop.f32.mrf.mxu0
      %v542 = vadd.f32 %v317, %v541
      %543 = vdwg.mxu0
      %s544 = scalar_lea.vmem [#allocation2], 24
      %545 = vst.msk [vmem:[%s544 + $0x1] sm:$0xff] %vm226, %v465
      %546 = vst.msk [vmem:[%s544 + $0x9] sm:$0xff] %vm226, %v467
      %547 = vst.msk [vmem:[%s544 + $0x19] sm:$0xff] %vm226, %v470
      %548 = vst.msk [vmem:[%s544 + $0x21] sm:$0xff] %vm226, %v472
      %549 = vst.msk [vmem:[%s544 + $0x31] sm:$0xff] %vm226, %v475
      %550 = vst.msk [vmem:[%s544 + $0x39] sm:$0xff] %vm226, %v477
      %551 = vst.msk [vmem:[%s544 + $0x49] sm:$0xff] %vm226, %v480
      %552 = vst.msk [vmem:[%s544 + $0x51] sm:$0xff] %vm226, %v482
      %553 = vst.msk [vmem:[%s544 + $0x61] sm:$0xff] %vm226, %v485
      %554 = vst.msk [vmem:[%s544 + $0x69] sm:$0xff] %vm226, %v487
      %555 = vst.msk [vmem:[%s544 + $0x79] sm:$0xff] %vm226, %v490
      %556 = vst.msk [vmem:[%s544 + $0x81] sm:$0xff] %vm226, %v492
      %557 = vst.msk [vmem:[%s544 + $0x91] sm:$0xff] %vm226, %v495
      %558 = vst.msk [vmem:[%s544 + $0x99] sm:$0xff] %vm226, %v497
      %559 = vst.msk [vmem:[%s544 + $0xa9] sm:$0xff] %vm226, %v500
      %560 = vst.msk [vmem:[%s544 + $0xb1] sm:$0xff] %vm226, %v502
      %561 = vst.msk [vmem:[%s544 + $0xc1] sm:$0xff] %vm226, %v505
      %562 = vst.msk [vmem:[%s544 + $0xc9] sm:$0xff] %vm226, %v507
      %563 = vst.msk [vmem:[%s544 + $0xd9] sm:$0xff] %vm226, %v510
      %564 = vst.msk [vmem:[%s544 + $0xe1] sm:$0xff] %vm226, %v512
      %565 = vst.msk [vmem:[%s544 + $0xf1] sm:$0xff] %vm226, %v515
      %566 = vst.msk [vmem:[%s544 + $0xf9] sm:$0xff] %vm226, %v517
      %567 = vst.msk [vmem:[%s544 + $0x109] sm:$0xff] %vm226, %v520
      %568 = vst.msk [vmem:[%s544 + $0x111] sm:$0xff] %vm226, %v522
      %569 = vst.msk [vmem:[%s544 + $0x121] sm:$0xff] %vm226, %v525
      %570 = vst.msk [vmem:[%s544 + $0x129] sm:$0xff] %vm226, %v527
      %571 = vst.msk [vmem:[%s544 + $0x139] sm:$0xff] %vm226, %v530
      %572 = vst.msk [vmem:[%s544 + $0x141] sm:$0xff] %vm226, %v532
      %573 = vst.msk [vmem:[%s544 + $0x151] sm:$0xff] %vm226, %v535
      %574 = vst.msk [vmem:[%s544 + $0x159] sm:$0xff] %vm226, %v537
      %575 = vst.msk [vmem:[%s544 + $0x169] sm:$0xff] %vm226, %v540
      %576 = vst.msk [vmem:[%s544 + $0x171] sm:$0xff] %vm226, %v542
      %v577 = vld [vmem:[#allocation2] ss:$2 sm:$0xff]
      %s578 = scalar_lea.vmem [#allocation2], 48
      %v579 = vld [vmem:[%s578] ss:$2 sm:$0xff]
      %s580 = scalar_lea.vmem [#allocation2], 96
      %v581 = vld [vmem:[%s580] ss:$2 sm:$0xff]
      %s582 = scalar_lea.vmem [#allocation2], 144
      %v583 = vld [vmem:[%s582] ss:$2 sm:$0xff]
      %s584 = scalar_lea.vmem [#allocation2], 192
      %v585 = vld [vmem:[%s584] ss:$2 sm:$0xff]
      %s586 = scalar_lea.vmem [#allocation2], 240
      %v587 = vld [vmem:[%s586] ss:$2 sm:$0xff]
      %s588 = scalar_lea.vmem [#allocation2], 288
      %v589 = vld [vmem:[%s588] ss:$2 sm:$0xff]
      %s590 = scalar_lea.vmem [#allocation2], 336
      %v591 = vld [vmem:[%s590] ss:$2 sm:$0xff]
      %v592 = vpack.c.bf16 %v579, %v577
      %v593 = vpack.c.bf16 %v583, %v581
      %v594 = vpack.c.bf16 %v587, %v585
      %v595 = vpack.c.bf16 %v591, %v589
      %v596 = vld [vmem:[%s3] sm:$0xf]
      %v597 = vld [vmem:[%s3 + $0x4] sm:$0xf]
      %v598 = vld [vmem:[%s3 + $0x8] sm:$0xf]
      %v599 = vld [vmem:[%s3 + $0xc] sm:$0xf]
      %s600 = scalar_lea.vmem [#allocation2], 1
      %v601 = vld [vmem:[%s600] ss:$2 sm:$0xff]
      %s602 = scalar_lea.vmem [#allocation2], 49
      %v603 = vld [vmem:[%s602] ss:$2 sm:$0xff]
      %s604 = scalar_lea.vmem [#allocation2], 97
      %v605 = vld [vmem:[%s604] ss:$2 sm:$0xff]
      %s606 = scalar_lea.vmem [#allocation2], 145
      %v607 = vld [vmem:[%s606] ss:$2 sm:$0xff]
      %s608 = scalar_lea.vmem [#allocation2], 193
      %v609 = vld [vmem:[%s608] ss:$2 sm:$0xff]
      %s610 = scalar_lea.vmem [#allocation2], 241
      %v611 = vld [vmem:[%s610] ss:$2 sm:$0xff]
      %s612 = scalar_lea.vmem [#allocation2], 289
      %v613 = vld [vmem:[%s612] ss:$2 sm:$0xff]
      %s614 = scalar_lea.vmem [#allocation2], 337
      %v615 = vld [vmem:[%s614] ss:$2 sm:$0xff]
      %v616 = vpack.c.bf16 %v603, %v601
      %v617 = vpack.c.bf16 %v607, %v605
      %v618 = vpack.c.bf16 %v611, %v609
      %v619 = vpack.c.bf16 %v615, %v613
      %s620 = scalar_lea.vmem %s3, 16
      %v621 = vld [vmem:[%s620] sm:$0xf]
      %v622 = vld [vmem:[%s620 + $0x4] sm:$0xf]
      %v623 = vld [vmem:[%s620 + $0x8] sm:$0xf]
      %v624 = vld [vmem:[%s620 + $0xc] sm:$0xf]
      %v629 = vunpack.c.l.b16 %v621
      %v630 = vunpack.c.l.b16 %v622
      %v631 = vunpack.c.l.b16 %v623
      %v632 = vunpack.c.l.b16 %v624
      %v633 = vpack.c.b16 %v630, %v629
      %v634 = vpack.c.b16 %v632, %v631
      %v638 = vsel %vm226, %v616, 0
      %v641 = vsel %vm226, %v617, 0
      %v644 = vsel %vm226, %v618, 0
      %v647 = vsel %vm226, %v619, 0
      %649 = vmatpush.bf16.msra.mxu0 0
      %650 = vmatpush.bf16.msra.mxu0 0
      %651 = vmatpush.bf16.msra.mxu0 0
      %652 = vmatpush.bf16.msra.mxu0 0
      %653 = vmatpush.bf16.msra.mxu0 0
      %654 = vmatpush.bf16.msra.mxu0 0
      %655 = vmatpush.bf16.msra.mxu0 %v634
      %656 = vmatpush.bf16.msra.mxu0 %v633
      %657 = vmatmul.bf16.gmra.mxu0 %v638
      %v658 = vpop.f32.mrf.mxu0
      %v659 = vadd.f32 0.0, %v658
      %v660 = vpop.f32.mrf.mxu0
      %v661 = vadd.f32 0.0, %v660
      %662 = vmatmul.bf16.gmra.mxu0 %v641
      %v663 = vpop.f32.mrf.mxu0
      %v664 = vadd.f32 0.0, %v663
      %v665 = vpop.f32.mrf.mxu0
      %v666 = vadd.f32 0.0, %v665
      %667 = vmatmul.bf16.gmra.mxu0 %v644
      %v668 = vpop.f32.mrf.mxu0
      %v669 = vadd.f32 0.0, %v668
      %v670 = vpop.f32.mrf.mxu0
      %v671 = vadd.f32 0.0, %v670
      %672 = vmatmul.bf16.gmra.mxu0 %v647
      %v673 = vpop.f32.mrf.mxu0
      %v674 = vadd.f32 0.0, %v673
      %v675 = vpop.f32.mrf.mxu0
      %v676 = vadd.f32 0.0, %v675
      %677 = vdwg.mxu0
      %v682 = vunpack.c.l.b16 %v596
      %v683 = vunpack.c.l.b16 %v597
      %v684 = vunpack.c.l.b16 %v598
      %v685 = vunpack.c.l.b16 %v599
      %v686 = vpack.c.b16 %v683, %v682
      %v687 = vpack.c.b16 %v685, %v684
      %v691 = vsel %vm226, %v592, 0
      %v694 = vsel %vm226, %v593, 0
      %v697 = vsel %vm226, %v594, 0
      %v700 = vsel %vm226, %v595, 0
      %702 = vmatpush.bf16.msra.mxu0 0
      %703 = vmatpush.bf16.msra.mxu0 0
      %704 = vmatpush.bf16.msra.mxu0 0
      %705 = vmatpush.bf16.msra.mxu0 0
      %706 = vmatpush.bf16.msra.mxu0 0
      %707 = vmatpush.bf16.msra.mxu0 0
      %708 = vmatpush.bf16.msra.mxu0 %v687
      %709 = vmatpush.bf16.msra.mxu0 %v686
      %710 = vmatmul.bf16.gmra.mxu0 %v691
      %v711 = vpop.f32.mrf.mxu0
      %v712 = vadd.f32 %v659, %v711
      %v713 = vpop.f32.mrf.mxu0
      %v714 = vadd.f32 %v661, %v713
      %715 = vmatmul.bf16.gmra.mxu0 %v694
      %v716 = vpop.f32.mrf.mxu0
      %v717 = vadd.f32 %v664, %v716
      %v718 = vpop.f32.mrf.mxu0
      %v719 = vadd.f32 %v666, %v718
      %720 = vmatmul.bf16.gmra.mxu0 %v697
      %v721 = vpop.f32.mrf.mxu0
      %v722 = vadd.f32 %v669, %v721
      %v723 = vpop.f32.mrf.mxu0
      %v724 = vadd.f32 %v671, %v723
      %725 = vmatmul.bf16.gmra.mxu0 %v700
      %v726 = vpop.f32.mrf.mxu0
      %v727 = vadd.f32 %v674, %v726
      %v728 = vpop.f32.mrf.mxu0
      %v729 = vadd.f32 %v676, %v728
      %730 = vdwg.mxu0
      %s731 = scalar_lea.vmem [#allocation2], 2
      %v732 = vld [vmem:[%s731] ss:$2 sm:$0xff]
      %s733 = scalar_lea.vmem [#allocation2], 50
      %v734 = vld [vmem:[%s733] ss:$2 sm:$0xff]
      %s735 = scalar_lea.vmem [#allocation2], 98
      %v736 = vld [vmem:[%s735] ss:$2 sm:$0xff]
      %s737 = scalar_lea.vmem [#allocation2], 146
      %v738 = vld [vmem:[%s737] ss:$2 sm:$0xff]
      %s739 = scalar_lea.vmem [#allocation2], 194
      %v740 = vld [vmem:[%s739] ss:$2 sm:$0xff]
      %s741 = scalar_lea.vmem [#allocation2], 242
      %v742 = vld [vmem:[%s741] ss:$2 sm:$0xff]
      %s743 = scalar_lea.vmem [#allocation2], 290
      %v744 = vld [vmem:[%s743] ss:$2 sm:$0xff]
      %s745 = scalar_lea.vmem [#allocation2], 338
      %v746 = vld [vmem:[%s745] ss:$2 sm:$0xff]
      %v747 = vpack.c.bf16 %v734, %v732
      %v748 = vpack.c.bf16 %v738, %v736
      %v749 = vpack.c.bf16 %v742, %v740
      %v750 = vpack.c.bf16 %v746, %v744
      %s751 = scalar_lea.vmem %s3, 32
      %v752 = vld [vmem:[%s751] sm:$0xf]
      %v753 = vld [vmem:[%s751 + $0x4] sm:$0xf]
      %v754 = vld [vmem:[%s751 + $0x8] sm:$0xf]
      %v755 = vld [vmem:[%s751 + $0xc] sm:$0xf]
      %v760 = vunpack.c.l.b16 %v752
      %v761 = vunpack.c.l.b16 %v753
      %v762 = vunpack.c.l.b16 %v754
      %v763 = vunpack.c.l.b16 %v755
      %v764 = vpack.c.b16 %v761, %v760
      %v765 = vpack.c.b16 %v763, %v762
      %v769 = vsel %vm226, %v747, 0
      %v772 = vsel %vm226, %v748, 0
      %v775 = vsel %vm226, %v749, 0
      %v778 = vsel %vm226, %v750, 0
      %780 = vmatpush.bf16.msra.mxu0 0
      %781 = vmatpush.bf16.msra.mxu0 0
      %782 = vmatpush.bf16.msra.mxu0 0
      %783 = vmatpush.bf16.msra.mxu0 0
      %784 = vmatpush.bf16.msra.mxu0 0
      %785 = vmatpush.bf16.msra.mxu0 0
      %786 = vmatpush.bf16.msra.mxu0 %v765
      %787 = vmatpush.bf16.msra.mxu0 %v764
      %788 = vmatmul.bf16.gmra.mxu0 %v769
      %v789 = vpop.f32.mrf.mxu0
      %v790 = vadd.f32 0.0, %v789
      %v791 = vpop.f32.mrf.mxu0
      %v792 = vadd.f32 0.0, %v791
      %793 = vmatmul.bf16.gmra.mxu0 %v772
      %v794 = vpop.f32.mrf.mxu0
      %v795 = vadd.f32 0.0, %v794
      %v796 = vpop.f32.mrf.mxu0
      %v797 = vadd.f32 0.0, %v796
      %798 = vmatmul.bf16.gmra.mxu0 %v775
      %v799 = vpop.f32.mrf.mxu0
      %v800 = vadd.f32 0.0, %v799
      %v801 = vpop.f32.mrf.mxu0
      %v802 = vadd.f32 0.0, %v801
      %803 = vmatmul.bf16.gmra.mxu0 %v778
      %v804 = vpop.f32.mrf.mxu0
      %v805 = vadd.f32 0.0, %v804
      %v806 = vpop.f32.mrf.mxu0
      %v807 = vadd.f32 0.0, %v806
      %808 = vdwg.mxu0
      %v809 = vadd.f32 %v712, %v790
      %v810 = vadd.f32 %v714, %v792
      %v811 = vadd.f32 %v717, %v795
      %v812 = vadd.f32 %v719, %v797
      %v813 = vadd.f32 %v722, %v800
      %v814 = vadd.f32 %v724, %v802
      %v815 = vadd.f32 %v727, %v805
      %v816 = vadd.f32 %v729, %v807
      %v817 = vld [vmem:[%s544] ss:$2 sm:$0xff]
      %s818 = scalar_lea.vmem %s544, 48 [#allocation2]
      %v819 = vld [vmem:[%s818] ss:$2 sm:$0xff]
      %s820 = scalar_lea.vmem %s544, 96 [#allocation2]
      %v821 = vld [vmem:[%s820] ss:$2 sm:$0xff]
      %s822 = scalar_lea.vmem %s544, 144 [#allocation2]
      %v823 = vld [vmem:[%s822] ss:$2 sm:$0xff]
      %s824 = scalar_lea.vmem %s544, 192 [#allocation2]
      %v825 = vld [vmem:[%s824] ss:$2 sm:$0xff]
      %s826 = scalar_lea.vmem %s544, 240 [#allocation2]
      %v827 = vld [vmem:[%s826] ss:$2 sm:$0xff]
      %s828 = scalar_lea.vmem %s544, 288 [#allocation2]
      %v829 = vld [vmem:[%s828] ss:$2 sm:$0xff]
      %s830 = scalar_lea.vmem %s544, 336 [#allocation2]
      %v831 = vld [vmem:[%s830] ss:$2 sm:$0xff]
      %v832 = vpack.c.bf16 %v819, %v817
      %v833 = vpack.c.bf16 %v823, %v821
      %v834 = vpack.c.bf16 %v827, %v825
      %v835 = vpack.c.bf16 %v831, %v829
      %s836 = scalar_lea.vmem %s3, 48
      %v837 = vld [vmem:[%s836] sm:$0xf]
      %v838 = vld [vmem:[%s836 + $0x4] sm:$0xf]
      %v839 = vld [vmem:[%s836 + $0x8] sm:$0xf]
      %v840 = vld [vmem:[%s836 + $0xc] sm:$0xf]
      %v845 = vunpack.c.l.b16 %v837
      %v846 = vunpack.c.l.b16 %v838
      %v847 = vunpack.c.l.b16 %v839
      %v848 = vunpack.c.l.b16 %v840
      %v849 = vpack.c.b16 %v846, %v845
      %v850 = vpack.c.b16 %v848, %v847
      %v854 = vsel %vm226, %v832, 0
      %v857 = vsel %vm226, %v833, 0
      %v860 = vsel %vm226, %v834, 0
      %v863 = vsel %vm226, %v835, 0
      %865 = vmatpush.bf16.msra.mxu0 0
      %866 = vmatpush.bf16.msra.mxu0 0
      %867 = vmatpush.bf16.msra.mxu0 0
      %868 = vmatpush.bf16.msra.mxu0 0
      %869 = vmatpush.bf16.msra.mxu0 0
      %870 = vmatpush.bf16.msra.mxu0 0
      %871 = vmatpush.bf16.msra.mxu0 %v850
      %872 = vmatpush.bf16.msra.mxu0 %v849
      %873 = vmatmul.bf16.gmra.mxu0 %v854
      %v874 = vpop.f32.mrf.mxu0
      %v875 = vadd.f32 0.0, %v874
      %v876 = vpop.f32.mrf.mxu0
      %v877 = vadd.f32 0.0, %v876
      %878 = vmatmul.bf16.gmra.mxu0 %v857
      %v879 = vpop.f32.mrf.mxu0
      %v880 = vadd.f32 0.0, %v879
      %v881 = vpop.f32.mrf.mxu0
      %v882 = vadd.f32 0.0, %v881
      %883 = vmatmul.bf16.gmra.mxu0 %v860
      %v884 = vpop.f32.mrf.mxu0
      %v885 = vadd.f32 0.0, %v884
      %v886 = vpop.f32.mrf.mxu0
      %v887 = vadd.f32 0.0, %v886
      %888 = vmatmul.bf16.gmra.mxu0 %v863
      %v889 = vpop.f32.mrf.mxu0
      %v890 = vadd.f32 0.0, %v889
      %v891 = vpop.f32.mrf.mxu0
      %v892 = vadd.f32 0.0, %v891
      %893 = vdwg.mxu0
      %v894 = vadd.f32 %v809, %v875
      %v895 = vadd.f32 %v810, %v877
      %v896 = vadd.f32 %v811, %v880
      %v897 = vadd.f32 %v812, %v882
      %v898 = vadd.f32 %v813, %v885
      %v899 = vadd.f32 %v814, %v887
      %v900 = vadd.f32 %v815, %v890
      %v901 = vadd.f32 %v816, %v892
      %s902 = scalar_lea.vmem %s544, 1 [#allocation2]
      %v903 = vld [vmem:[%s902] ss:$2 sm:$0xff]
      %s904 = scalar_lea.vmem %s544, 49 [#allocation2]
      %v905 = vld [vmem:[%s904] ss:$2 sm:$0xff]
      %s906 = scalar_lea.vmem %s544, 97 [#allocation2]
      %v907 = vld [vmem:[%s906] ss:$2 sm:$0xff]
      %s908 = scalar_lea.vmem %s544, 145 [#allocation2]
      %v909 = vld [vmem:[%s908] ss:$2 sm:$0xff]
      %s910 = scalar_lea.vmem %s544, 193 [#allocation2]
      %v911 = vld [vmem:[%s910] ss:$2 sm:$0xff]
      %s912 = scalar_lea.vmem %s544, 241 [#allocation2]
      %v913 = vld [vmem:[%s912] ss:$2 sm:$0xff]
      %s914 = scalar_lea.vmem %s544, 289 [#allocation2]
      %v915 = vld [vmem:[%s914] ss:$2 sm:$0xff]
      %s916 = scalar_lea.vmem %s544, 337 [#allocation2]
      %v917 = vld [vmem:[%s916] ss:$2 sm:$0xff]
      %v918 = vpack.c.bf16 %v905, %v903
      %v919 = vpack.c.bf16 %v909, %v907
      %v920 = vpack.c.bf16 %v913, %v911
      %v921 = vpack.c.bf16 %v917, %v915
      %s922 = scalar_lea.vmem %s3, 64
      %v923 = vld [vmem:[%s922] sm:$0xf]
      %v924 = vld [vmem:[%s922 + $0x4] sm:$0xf]
      %v925 = vld [vmem:[%s922 + $0x8] sm:$0xf]
      %v926 = vld [vmem:[%s922 + $0xc] sm:$0xf]
      %v931 = vunpack.c.l.b16 %v923
      %v932 = vunpack.c.l.b16 %v924
      %v933 = vunpack.c.l.b16 %v925
      %v934 = vunpack.c.l.b16 %v926
      %v935 = vpack.c.b16 %v932, %v931
      %v936 = vpack.c.b16 %v934, %v933
      %v940 = vsel %vm226, %v918, 0
      %v943 = vsel %vm226, %v919, 0
      %v946 = vsel %vm226, %v920, 0
      %v949 = vsel %vm226, %v921, 0
      %951 = vmatpush.bf16.msra.mxu0 0
      %952 = vmatpush.bf16.msra.mxu0 0
      %953 = vmatpush.bf16.msra.mxu0 0
      %954 = vmatpush.bf16.msra.mxu0 0
      %955 = vmatpush.bf16.msra.mxu0 0
      %956 = vmatpush.bf16.msra.mxu0 0
      %957 = vmatpush.bf16.msra.mxu0 %v936
      %958 = vmatpush.bf16.msra.mxu0 %v935
      %959 = vmatmul.bf16.gmra.mxu0 %v940
      %v960 = vpop.f32.mrf.mxu0
      %v961 = vadd.f32 0.0, %v960
      %v962 = vpop.f32.mrf.mxu0
      %v963 = vadd.f32 0.0, %v962
      %964 = vmatmul.bf16.gmra.mxu0 %v943
      %v965 = vpop.f32.mrf.mxu0
      %v966 = vadd.f32 0.0, %v965
      %v967 = vpop.f32.mrf.mxu0
      %v968 = vadd.f32 0.0, %v967
      %969 = vmatmul.bf16.gmra.mxu0 %v946
      %v970 = vpop.f32.mrf.mxu0
      %v971 = vadd.f32 0.0, %v970
      %v972 = vpop.f32.mrf.mxu0
      %v973 = vadd.f32 0.0, %v972
      %974 = vmatmul.bf16.gmra.mxu0 %v949
      %v975 = vpop.f32.mrf.mxu0
      %v976 = vadd.f32 0.0, %v975
      %v977 = vpop.f32.mrf.mxu0
      %v978 = vadd.f32 0.0, %v977
      %979 = vdwg.mxu0
      %v980 = vadd.f32 %v894, %v961
      %v981 = vadd.f32 %v895, %v963
      %v982 = vadd.f32 %v896, %v966
      %v983 = vadd.f32 %v897, %v968
      %v984 = vadd.f32 %v898, %v971
      %v985 = vadd.f32 %v899, %v973
      %v986 = vadd.f32 %v900, %v976
      %v987 = vadd.f32 %v901, %v978
      %s988 = scalar_lea.vmem %s544, 2 [#allocation2]
      %v989 = vld [vmem:[%s988] ss:$2 sm:$0xff]
      %s990 = scalar_lea.vmem %s544, 50 [#allocation2]
      %v991 = vld [vmem:[%s990] ss:$2 sm:$0xff]
      %s992 = scalar_lea.vmem %s544, 98 [#allocation2]
      %v993 = vld [vmem:[%s992] ss:$2 sm:$0xff]
      %s994 = scalar_lea.vmem %s544, 146 [#allocation2]
      %v995 = vld [vmem:[%s994] ss:$2 sm:$0xff]
      %s996 = scalar_lea.vmem %s544, 194 [#allocation2]
      %v997 = vld [vmem:[%s996] ss:$2 sm:$0xff]
      %s998 = scalar_lea.vmem %s544, 242 [#allocation2]
      %v999 = vld [vmem:[%s998] ss:$2 sm:$0xff]
      %s1000 = scalar_lea.vmem %s544, 290 [#allocation2]
      %v1001 = vld [vmem:[%s1000] ss:$2 sm:$0xff]
      %s1002 = scalar_lea.vmem %s544, 338 [#allocation2]
      %v1003 = vld [vmem:[%s1002] ss:$2 sm:$0xff]
      %v1004 = vpack.c.bf16 %v991, %v989
      %v1005 = vpack.c.bf16 %v995, %v993
      %v1006 = vpack.c.bf16 %v999, %v997
      %v1007 = vpack.c.bf16 %v1003, %v1001
      %s1008 = scalar_lea.vmem %s3, 80
      %v1009 = vld [vmem:[%s1008] sm:$0xf]
      %v1010 = vld [vmem:[%s1008 + $0x4] sm:$0xf]
      %v1011 = vld [vmem:[%s1008 + $0x8] sm:$0xf]
      %v1012 = vld [vmem:[%s1008 + $0xc] sm:$0xf]
      %v1017 = vunpack.c.l.b16 %v1009
      %v1018 = vunpack.c.l.b16 %v1010
      %v1019 = vunpack.c.l.b16 %v1011
      %v1020 = vunpack.c.l.b16 %v1012
      %v1021 = vpack.c.b16 %v1018, %v1017
      %v1022 = vpack.c.b16 %v1020, %v1019
      %v1026 = vsel %vm226, %v1004, 0
      %v1029 = vsel %vm226, %v1005, 0
      %v1032 = vsel %vm226, %v1006, 0
      %v1035 = vsel %vm226, %v1007, 0
      %1037 = vmatpush.bf16.msra.mxu0 0
      %1038 = vmatpush.bf16.msra.mxu0 0
      %1039 = vmatpush.bf16.msra.mxu0 0
      %1040 = vmatpush.bf16.msra.mxu0 0
      %1041 = vmatpush.bf16.msra.mxu0 0
      %1042 = vmatpush.bf16.msra.mxu0 0
      %1043 = vmatpush.bf16.msra.mxu0 %v1022
      %1044 = vmatpush.bf16.msra.mxu0 %v1021
      %1045 = vmatmul.bf16.gmra.mxu0 %v1026
      %v1046 = vpop.f32.mrf.mxu0
      %v1047 = vadd.f32 0.0, %v1046
      %v1048 = vpop.f32.mrf.mxu0
      %v1049 = vadd.f32 0.0, %v1048
      %1050 = vmatmul.bf16.gmra.mxu0 %v1029
      %v1051 = vpop.f32.mrf.mxu0
      %v1052 = vadd.f32 0.0, %v1051
      %v1053 = vpop.f32.mrf.mxu0
      %v1054 = vadd.f32 0.0, %v1053
      %1055 = vmatmul.bf16.gmra.mxu0 %v1032
      %v1056 = vpop.f32.mrf.mxu0
      %v1057 = vadd.f32 0.0, %v1056
      %v1058 = vpop.f32.mrf.mxu0
      %v1059 = vadd.f32 0.0, %v1058
      %1060 = vmatmul.bf16.gmra.mxu0 %v1035
      %v1061 = vpop.f32.mrf.mxu0
      %v1062 = vadd.f32 0.0, %v1061
      %v1063 = vpop.f32.mrf.mxu0
      %v1064 = vadd.f32 0.0, %v1063
      %1065 = vdwg.mxu0
      %v1066 = vadd.f32 %v980, %v1047
      %v1067 = vadd.f32 %v981, %v1049
      %v1068 = vadd.f32 %v982, %v1052
      %v1069 = vadd.f32 %v983, %v1054
      %v1070 = vadd.f32 %v984, %v1057
      %v1071 = vadd.f32 %v985, %v1059
      %v1072 = vadd.f32 %v986, %v1062
      %v1073 = vadd.f32 %v987, %v1064
      %s1074 = scalar_lea.vmem [#allocation2], 48
      %v1075 = vld [vmem:[%s1074] ss:$2 sm:$0xff]
      %s1076 = scalar_lea.vmem %s1074, 48 [#allocation2]
      %v1077 = vld [vmem:[%s1076] ss:$2 sm:$0xff]
      %s1078 = scalar_lea.vmem %s1074, 96 [#allocation2]
      %v1079 = vld [vmem:[%s1078] ss:$2 sm:$0xff]
      %s1080 = scalar_lea.vmem %s1074, 144 [#allocation2]
      %v1081 = vld [vmem:[%s1080] ss:$2 sm:$0xff]
      %s1082 = scalar_lea.vmem %s1074, 192 [#allocation2]
      %v1083 = vld [vmem:[%s1082] ss:$2 sm:$0xff]
      %s1084 = scalar_lea.vmem %s1074, 240 [#allocation2]
      %v1085 = vld [vmem:[%s1084] ss:$2 sm:$0xff]
      %s1086 = scalar_lea.vmem %s1074, 288 [#allocation2]
      %v1087 = vld [vmem:[%s1086] ss:$2 sm:$0xff]
      %s1088 = scalar_lea.vmem %s1074, 336 [#allocation2]
      %v1089 = vld [vmem:[%s1088] ss:$2 sm:$0xff]
      %v1090 = vpack.c.bf16 %v1077, %v1075
      %v1091 = vpack.c.bf16 %v1081, %v1079
      %v1092 = vpack.c.bf16 %v1085, %v1083
      %v1093 = vpack.c.bf16 %v1089, %v1087
      %s1094 = scalar_lea.vmem %s3, 96
      %v1095 = vld [vmem:[%s1094] sm:$0xf]
      %v1096 = vld [vmem:[%s1094 + $0x4] sm:$0xf]
      %v1097 = vld [vmem:[%s1094 + $0x8] sm:$0xf]
      %v1098 = vld [vmem:[%s1094 + $0xc] sm:$0xf]
      %v1103 = vunpack.c.l.b16 %v1095
      %v1104 = vunpack.c.l.b16 %v1096
      %v1105 = vunpack.c.l.b16 %v1097
      %v1106 = vunpack.c.l.b16 %v1098
      %v1107 = vpack.c.b16 %v1104, %v1103
      %v1108 = vpack.c.b16 %v1106, %v1105
      %v1112 = vsel %vm226, %v1090, 0
      %v1115 = vsel %vm226, %v1091, 0
      %v1118 = vsel %vm226, %v1092, 0
      %v1121 = vsel %vm226, %v1093, 0
      %1123 = vmatpush.bf16.msra.mxu0 0
      %1124 = vmatpush.bf16.msra.mxu0 0
      %1125 = vmatpush.bf16.msra.mxu0 0
      %1126 = vmatpush.bf16.msra.mxu0 0
      %1127 = vmatpush.bf16.msra.mxu0 0
      %1128 = vmatpush.bf16.msra.mxu0 0
      %1129 = vmatpush.bf16.msra.mxu0 %v1108
      %1130 = vmatpush.bf16.msra.mxu0 %v1107
      %1131 = vmatmul.bf16.gmra.mxu0 %v1112
      %v1132 = vpop.f32.mrf.mxu0
      %v1133 = vadd.f32 0.0, %v1132
      %v1134 = vpop.f32.mrf.mxu0
      %v1135 = vadd.f32 0.0, %v1134
      %1136 = vmatmul.bf16.gmra.mxu0 %v1115
      %v1137 = vpop.f32.mrf.mxu0
      %v1138 = vadd.f32 0.0, %v1137
      %v1139 = vpop.f32.mrf.mxu0
      %v1140 = vadd.f32 0.0, %v1139
      %1141 = vmatmul.bf16.gmra.mxu0 %v1118
      %v1142 = vpop.f32.mrf.mxu0
      %v1143 = vadd.f32 0.0, %v1142
      %v1144 = vpop.f32.mrf.mxu0
      %v1145 = vadd.f32 0.0, %v1144
      %1146 = vmatmul.bf16.gmra.mxu0 %v1121
      %v1147 = vpop.f32.mrf.mxu0
      %v1148 = vadd.f32 0.0, %v1147
      %v1149 = vpop.f32.mrf.mxu0
      %v1150 = vadd.f32 0.0, %v1149
      %1151 = vdwg.mxu0
      %v1152 = vadd.f32 %v1066, %v1133
      %v1153 = vadd.f32 %v1067, %v1135
      %v1154 = vadd.f32 %v1068, %v1138
      %v1155 = vadd.f32 %v1069, %v1140
      %v1156 = vadd.f32 %v1070, %v1143
      %v1157 = vadd.f32 %v1071, %v1145
      %v1158 = vadd.f32 %v1072, %v1148
      %v1159 = vadd.f32 %v1073, %v1150
      %s1160 = scalar_lea.vmem %s1074, 1 [#allocation2]
      %v1161 = vld [vmem:[%s1160] ss:$2 sm:$0xff]
      %s1162 = scalar_lea.vmem %s1074, 49 [#allocation2]
      %v1163 = vld [vmem:[%s1162] ss:$2 sm:$0xff]
      %s1164 = scalar_lea.vmem %s1074, 97 [#allocation2]
      %v1165 = vld [vmem:[%s1164] ss:$2 sm:$0xff]
      %s1166 = scalar_lea.vmem %s1074, 145 [#allocation2]
      %v1167 = vld [vmem:[%s1166] ss:$2 sm:$0xff]
      %s1168 = scalar_lea.vmem %s1074, 193 [#allocation2]
      %v1169 = vld [vmem:[%s1168] ss:$2 sm:$0xff]
      %s1170 = scalar_lea.vmem %s1074, 241 [#allocation2]
      %v1171 = vld [vmem:[%s1170] ss:$2 sm:$0xff]
      %s1172 = scalar_lea.vmem %s1074, 289 [#allocation2]
      %v1173 = vld [vmem:[%s1172] ss:$2 sm:$0xff]
      %s1174 = scalar_lea.vmem %s1074, 337 [#allocation2]
      %v1175 = vld [vmem:[%s1174] ss:$2 sm:$0xff]
      %v1176 = vpack.c.bf16 %v1163, %v1161
      %v1177 = vpack.c.bf16 %v1167, %v1165
      %v1178 = vpack.c.bf16 %v1171, %v1169
      %v1179 = vpack.c.bf16 %v1175, %v1173
      %s1180 = scalar_lea.vmem %s3, 112
      %v1181 = vld [vmem:[%s1180] sm:$0xf]
      %v1182 = vld [vmem:[%s1180 + $0x4] sm:$0xf]
      %v1183 = vld [vmem:[%s1180 + $0x8] sm:$0xf]
      %v1184 = vld [vmem:[%s1180 + $0xc] sm:$0xf]
      %v1189 = vunpack.c.l.b16 %v1181
      %v1190 = vunpack.c.l.b16 %v1182
      %v1191 = vunpack.c.l.b16 %v1183
      %v1192 = vunpack.c.l.b16 %v1184
      %v1193 = vpack.c.b16 %v1190, %v1189
      %v1194 = vpack.c.b16 %v1192, %v1191
      %v1198 = vsel %vm226, %v1176, 0
      %v1201 = vsel %vm226, %v1177, 0
      %v1204 = vsel %vm226, %v1178, 0
      %v1207 = vsel %vm226, %v1179, 0
      %1209 = vmatpush.bf16.msra.mxu0 0
      %1210 = vmatpush.bf16.msra.mxu0 0
      %1211 = vmatpush.bf16.msra.mxu0 0
      %1212 = vmatpush.bf16.msra.mxu0 0
      %1213 = vmatpush.bf16.msra.mxu0 0
      %1214 = vmatpush.bf16.msra.mxu0 0
      %1215 = vmatpush.bf16.msra.mxu0 %v1194
      %1216 = vmatpush.bf16.msra.mxu0 %v1193
      %1217 = vmatmul.bf16.gmra.mxu0 %v1198
      %v1218 = vpop.f32.mrf.mxu0
      %v1219 = vadd.f32 0.0, %v1218
      %v1220 = vpop.f32.mrf.mxu0
      %v1221 = vadd.f32 0.0, %v1220
      %1222 = vmatmul.bf16.gmra.mxu0 %v1201
      %v1223 = vpop.f32.mrf.mxu0
      %v1224 = vadd.f32 0.0, %v1223
      %v1225 = vpop.f32.mrf.mxu0
      %v1226 = vadd.f32 0.0, %v1225
      %1227 = vmatmul.bf16.gmra.mxu0 %v1204
      %v1228 = vpop.f32.mrf.mxu0
      %v1229 = vadd.f32 0.0, %v1228
      %v1230 = vpop.f32.mrf.mxu0
      %v1231 = vadd.f32 0.0, %v1230
      %1232 = vmatmul.bf16.gmra.mxu0 %v1207
      %v1233 = vpop.f32.mrf.mxu0
      %v1234 = vadd.f32 0.0, %v1233
      %v1235 = vpop.f32.mrf.mxu0
      %v1236 = vadd.f32 0.0, %v1235
      %1237 = vdwg.mxu0
      %v1238 = vadd.f32 %v1152, %v1219
      %v1239 = vadd.f32 %v1153, %v1221
      %v1240 = vadd.f32 %v1154, %v1224
      %v1241 = vadd.f32 %v1155, %v1226
      %v1242 = vadd.f32 %v1156, %v1229
      %v1243 = vadd.f32 %v1157, %v1231
      %v1244 = vadd.f32 %v1158, %v1234
      %v1245 = vadd.f32 %v1159, %v1236
      %s1246 = scalar_lea.vmem %s1074, 2 [#allocation2]
      %v1247 = vld [vmem:[%s1246] ss:$2 sm:$0xff]
      %s1248 = scalar_lea.vmem %s1074, 50 [#allocation2]
      %v1249 = vld [vmem:[%s1248] ss:$2 sm:$0xff]
      %s1250 = scalar_lea.vmem %s1074, 98 [#allocation2]
      %v1251 = vld [vmem:[%s1250] ss:$2 sm:$0xff]
      %s1252 = scalar_lea.vmem %s1074, 146 [#allocation2]
      %v1253 = vld [vmem:[%s1252] ss:$2 sm:$0xff]
      %s1254 = scalar_lea.vmem %s1074, 194 [#allocation2]
      %v1255 = vld [vmem:[%s1254] ss:$2 sm:$0xff]
      %s1256 = scalar_lea.vmem %s1074, 242 [#allocation2]
      %v1257 = vld [vmem:[%s1256] ss:$2 sm:$0xff]
      %s1258 = scalar_lea.vmem %s1074, 290 [#allocation2]
      %v1259 = vld [vmem:[%s1258] ss:$2 sm:$0xff]
      %s1260 = scalar_lea.vmem %s1074, 338 [#allocation2]
      %v1261 = vld [vmem:[%s1260] ss:$2 sm:$0xff]
      %v1262 = vpack.c.bf16 %v1249, %v1247
      %v1263 = vpack.c.bf16 %v1253, %v1251
      %v1264 = vpack.c.bf16 %v1257, %v1255
      %v1265 = vpack.c.bf16 %v1261, %v1259
      %s1266 = scalar_lea.vmem %s3, 128
      %v1267 = vld [vmem:[%s1266] sm:$0xf]
      %v1268 = vld [vmem:[%s1266 + $0x4] sm:$0xf]
      %v1269 = vld [vmem:[%s1266 + $0x8] sm:$0xf]
      %v1270 = vld [vmem:[%s1266 + $0xc] sm:$0xf]
      %v1275 = vunpack.c.l.b16 %v1267
      %v1276 = vunpack.c.l.b16 %v1268
      %v1277 = vunpack.c.l.b16 %v1269
      %v1278 = vunpack.c.l.b16 %v1270
      %v1279 = vpack.c.b16 %v1276, %v1275
      %v1280 = vpack.c.b16 %v1278, %v1277
      %v1284 = vsel %vm226, %v1262, 0
      %v1287 = vsel %vm226, %v1263, 0
      %v1290 = vsel %vm226, %v1264, 0
      %v1293 = vsel %vm226, %v1265, 0
      %1295 = vmatpush.bf16.msra.mxu0 0
      %1296 = vmatpush.bf16.msra.mxu0 0
      %1297 = vmatpush.bf16.msra.mxu0 0
      %1298 = vmatpush.bf16.msra.mxu0 0
      %1299 = vmatpush.bf16.msra.mxu0 0
      %1300 = vmatpush.bf16.msra.mxu0 0
      %1301 = vmatpush.bf16.msra.mxu0 %v1280
      %1302 = vmatpush.bf16.msra.mxu0 %v1279
      %1303 = vmatmul.bf16.gmra.mxu0 %v1284
      %v1304 = vpop.f32.mrf.mxu0
      %v1305 = vadd.f32 0.0, %v1304
      %v1306 = vpop.f32.mrf.mxu0
      %v1307 = vadd.f32 0.0, %v1306
      %1308 = vmatmul.bf16.gmra.mxu0 %v1287
      %v1309 = vpop.f32.mrf.mxu0
      %v1310 = vadd.f32 0.0, %v1309
      %v1311 = vpop.f32.mrf.mxu0
      %v1312 = vadd.f32 0.0, %v1311
      %1313 = vmatmul.bf16.gmra.mxu0 %v1290
      %v1314 = vpop.f32.mrf.mxu0
      %v1315 = vadd.f32 0.0, %v1314
      %v1316 = vpop.f32.mrf.mxu0
      %v1317 = vadd.f32 0.0, %v1316
      %1318 = vmatmul.bf16.gmra.mxu0 %v1293
      %v1319 = vpop.f32.mrf.mxu0
      %v1320 = vadd.f32 0.0, %v1319
      %v1321 = vpop.f32.mrf.mxu0
      %v1322 = vadd.f32 0.0, %v1321
      %1323 = vdwg.mxu0
      %v1324 = vadd.f32 %v1238, %v1305
      %v1325 = vadd.f32 %v1239, %v1307
      %v1326 = vadd.f32 %v1240, %v1310
      %v1327 = vadd.f32 %v1241, %v1312
      %v1328 = vadd.f32 %v1242, %v1315
      %v1329 = vadd.f32 %v1243, %v1317
      %v1330 = vadd.f32 %v1244, %v1320
      %v1331 = vadd.f32 %v1245, %v1322
      %v1332 = vld [vmem:[%s4] sm:$0x1]
      %v1334 = vperm.slane %v1332, 0
      %v1336 = vadd.f32 %v1324, %v1334
      %v1337 = vadd.f32 %v1325, %v1334
      %v1338 = vadd.f32 %v1326, %v1334
      %v1339 = vadd.f32 %v1327, %v1334
      %v1340 = vadd.f32 %v1328, %v1334
      %v1341 = vadd.f32 %v1329, %v1334
      %v1342 = vadd.f32 %v1330, %v1334
      %v1343 = vadd.f32 %v1331, %v1334
      %vm1344 = vcmp.ge.f32.partialorder %v1336, 0.0
      %vm1345 = vcmp.ge.f32.partialorder %v1337, 0.0
      %vm1346 = vcmp.ge.f32.partialorder %v1338, 0.0
      %vm1347 = vcmp.ge.f32.partialorder %v1339, 0.0
      %vm1348 = vcmp.ge.f32.partialorder %v1340, 0.0
      %vm1349 = vcmp.ge.f32.partialorder %v1341, 0.0
      %vm1350 = vcmp.ge.f32.partialorder %v1342, 0.0
      %vm1351 = vcmp.ge.f32.partialorder %v1343, 0.0
      %v1352 = vmul.f32 %v1336, 0.2
      %v1353 = vmul.f32 %v1337, 0.2
      %v1354 = vmul.f32 %v1338, 0.2
      %v1355 = vmul.f32 %v1339, 0.2
      %v1356 = vmul.f32 %v1340, 0.2
      %v1357 = vmul.f32 %v1341, 0.2
      %v1358 = vmul.f32 %v1342, 0.2
      %v1359 = vmul.f32 %v1343, 0.2
      %v1360 = vsel %vm1344, %v1336, %v1352
      %v1361 = vsel %vm1345, %v1337, %v1353
      %v1362 = vsel %vm1346, %v1338, %v1354
      %v1363 = vsel %vm1347, %v1339, %v1355
      %v1364 = vsel %vm1348, %v1340, %v1356
      %v1365 = vsel %vm1349, %v1341, %v1357
      %v1366 = vsel %vm1350, %v1342, %v1358
      %v1367 = vsel %vm1351, %v1343, %v1359
      %v1368 = vpack.c.bf16 %v1360, %v1360
      %v1369 = vpack.c.bf16 %v1361, %v1361
      %v1370 = vpack.c.bf16 %v1362, %v1362
      %v1371 = vpack.c.bf16 %v1363, %v1363
      %v1372 = vpack.c.bf16 %v1364, %v1364
      %v1373 = vpack.c.bf16 %v1365, %v1365
      %v1374 = vpack.c.bf16 %v1366, %v1366
      %v1375 = vpack.c.bf16 %v1367, %v1367
      %vm1376 = vcmask 519168
      %1377 = vst.msk [vmem:[%s224] sm:$0xf] %vm1376, %v1368
      %1378 = vst.msk [vmem:[%s224 + $0x4] sm:$0xf] %vm1376, %v1369
      %1379 = vst.msk [vmem:[%s224 + $0x8] sm:$0xf] %vm1376, %v1370
      %1380 = vst.msk [vmem:[%s224 + $0xc] sm:$0xf] %vm1376, %v1371
      %1381 = vst.msk [vmem:[%s224 + $0x10] sm:$0xf] %vm1376, %v1372
      %1382 = vst.msk [vmem:[%s224 + $0x14] sm:$0xf] %vm1376, %v1373
      %1383 = vst.msk [vmem:[%s224 + $0x18] sm:$0xf] %vm1376, %v1374
      %1384 = vst.msk [vmem:[%s224 + $0x1c] sm:$0xf] %vm1376, %v1375
      %p1385 = scmp.lt.s32.totalorder %s16, 1
      %s1386 = scalar_select %p1385, %s16, 1
      %s1387 = smul.addr %s1386, 8
      %s1388 = smul.addr %s1387, 4
      %s1389 = scalar_lea.vmem %s5, %s1388
      // Predicated region
      $region41: #{_lambda_.4} parent=39 // pred_check
        %p1390 = pneg %p144
      $region42: #{_lambda_.4} parent=39 // pred_check_branch
        %1392 = sbr.rel (%p1390) target = $region44
      $region43: #{_lambda_.4} parent=39 // pred_region
        _
      $region44: #{_lambda_.4} parent=39 // pred_fallthru
        _
    $region40: #{_lambda_.4} parent=5 // pred_fallthru
      _
    %p1393 = scmp.le.s32.totalorder 2, %s11
    // Predicated region
    $region45: #{_lambda_.4} parent=5 // pred_check
      %p1394 = pneg %p1393
    $region46: #{_lambda_.4} parent=5 // pred_check_branch
      %1396 = sbr.rel (%p1394) target = $region48
    $region47: #{_lambda_.4} parent=5 // pred_region
      %s1397 = ssub.s32 %s11, 2
      // Predicated region
      $region49: #{_lambda_.4} parent=47 // pred_check
        %p1398 = pneg %p150
      $region50: #{_lambda_.4} parent=47 // pred_check_branch
        %1400 = sbr.rel (%p1398) target = $region52
      $region51: #{_lambda_.4} parent=47 // pred_region
        %p1401 = scmp.lt.s32.totalorder %s17, 1
        %s1402 = scalar_select %p1401, %s17, 1
        %s1403 = smul.addr %s1402, 8
        %s1404 = smul.addr %s1403, 4
        %s1405 = scalar_lea.vmem %s5, %s1404
      $region52: #{_lambda_.4} parent=47 // pred_fallthru
        _
    $region48: #{_lambda_.4} parent=5 // pred_fallthru
      _
  $region6: #{_lambda_.4} parent=0 // loop_footer
    %s15 = sadd.s32 1, %s11
  $region7: #{_lambda_.4} parent=0 // loop_footer_branch
    %10 = sbr.rel target = $region3
  $region8: #{_lambda_.4} parent=0 // loop_exit
    _

// kernel: _lambda_.5
$region0: #{_lambda_.5}
  #allocation0 [shape = 'u32[]', space=smem, size = 0x4, offset = 0x4, fixed_abs, tag = 'smem constant byte address 0x4 - core index']
  #allocation1 [shape = 'u32[72,128]{1,0:T(1,128)}', space=vmem, size = 0x9000, scoped, tag = 'internal scratch']
  #allocation2 [shape = 'f32[1,10,10,64]{3,2,1,0:T(8,128)}', space=vmem, size = 0x14000, scoped, tag = 'scratch operand']
  #allocation3 [shape = 'f32[1,1]{1,0:T(1,128)S(1)}', space=vmem, size = 0x200, scoped, tag = 'scoped memory for _lambda_.5']
  %s0 = inlined_call_operand.vmem [shape: bf16[2,8,8,64], index: 0, kind: input, shape index: {}]
  %s1 = inlined_call_operand.vmem [shape: bf16[3,3,64,128], index: 1, kind: input, shape index: {}]
  %s2 = inlined_call_operand.vmem [shape: f32[1,128], index: 2, kind: input, shape index: {}]
  %s3 = inlined_call_operand.vmem [shape: f32[128,1], index: 3, kind: input, shape index: {}]
  %s4 = inlined_call_operand.<no memory space> [shape: f32[1,1], index: 4, kind: input, shape index: {}]
  %s5 = inlined_call_operand.vmem [shape: bf16[2,16,128], index: 5, kind: output, shape index: {0}]
  %s6 = inlined_call_operand.vmem [shape: f32[2,16,1], index: 6, kind: output, shape index: {1}]
  %7 = xla_tuple %s5, %s6
  %s8 = sld [smem:[#allocation0]]
  $region61: #{_lambda_.5} parent=0
    _
  %s10 = ssub.s32 1, %s8
  %s11 = scalar_select 0, %s10, %s8
  %v12 = vstv %s4
  %13 = vst [vmem:[#allocation3] sm:$0x1] %v12
  loop: start=0, step=1, limit=4
  $region2: #{_lambda_.5} parent=0 // loop_pre_header
    _
  $region3: #{_lambda_.5} parent=0 // loop_header
    %s15 = sphi 0, %s19
    %p16 = scmp.ge.s32.totalorder %s15, 4
    %s25 = sphi 0, %s27
    %s28 = sphi 0, %s25
    %s29 = sphi 0, %s28
    %s45 = sphi 0, %s29
    %s49 = sphi 0, %s49
    %s51 = sphi 0, %s49
    %s52 = sphi 0, %s51
    %s66 = sphi 0, %s52
    %s70 = sphi 0, %s70
    %s72 = sphi 0, %s70
    %s73 = sphi 0, %s72
    %s87 = sphi 0, %s73
    %s91 = sphi 0, %s91
    %s93 = sphi 0, %s91
    %s94 = sphi 0, %s93
    %s108 = sphi 0, %s94
    %s112 = sphi 0, %s112
    %s114 = sphi 0, %s112
    %s115 = sphi 0, %s114
    %s129 = sphi 0, %s115
    %s135 = sphi 0, %s137
    %s138 = sphi 0, %s135
    %s139 = sphi 0, %s138
    %s155 = sphi 0, %s139
    %s161 = sphi 0, %s163
    %s164 = sphi 0, %s161
    %s165 = sphi 0, %s164
    %s181 = sphi 0, %s165
  $region4: #{_lambda_.5} parent=0 // loop_header_branch
    %18 = sbr.rel (%p16) target = $region8
  $region5: #{_lambda_.5} parent=0 // loop_body
    %s20 = ssub.s32 %s15, 1
    %s21 = ssub.s32 %s15, 2
    %s22 = sadd.s32 %s15, 1
    %s23 = ssub.s32 %s15, %s22
    %p24 = scmp.eq.s32.totalorder %s23, 0
    %s26 = sadd.s32 %s25, 1
    %s27 = scalar_select %p24, %s25, %s26
    %p30 = pneg %p24
    %p31 = scmp.eq.s32.totalorder %s15, 1
    %p32 = por %p30, %p31
    %p33 = scmp.ne.s32.totalorder %s25, %s28
    %p34 = scmp.eq.s32.totalorder %s15, 0
    %p35 = por %p33, %p34
    %p36 = scmp.ne.s32.totalorder %s25, %s28
    %p37 = scmp.eq.s32.totalorder %s20, 1
    %p38 = por %p36, %p37
    %p39 = scmp.ne.s32.totalorder %s28, %s29
    %p40 = scmp.eq.s32.totalorder %s20, 0
    %p41 = por %p39, %p40
    %p42 = scmp.ne.s32.totalorder %s28, %s29
    %p43 = scmp.eq.s32.totalorder %s21, 1
    %p44 = por %p42, %p43
    %p46 = scmp.ne.s32.totalorder %s29, %s45
    %p47 = scmp.eq.s32.totalorder %s21, 0
    %p48 = por %p46, %p47
    %s50 = sadd.s32 %s49, 1
    %p53 = scmp.eq.s32.totalorder %s15, 1
    %p54 = scmp.ne.s32.totalorder %s49, %s51
    %p55 = scmp.eq.s32.totalorder %s15, 0
    %p56 = por %p54, %p55
    %p57 = scmp.ne.s32.totalorder %s49, %s51
    %p58 = scmp.eq.s32.totalorder %s20, 1
    %p59 = por %p57, %p58
    %p60 = scmp.ne.s32.totalorder %s51, %s52
    %p61 = scmp.eq.s32.totalorder %s20, 0
    %p62 = por %p60, %p61
    %p63 = scmp.ne.s32.totalorder %s51, %s52
    %p64 = scmp.eq.s32.totalorder %s21, 1
    %p65 = por %p63, %p64
    %p67 = scmp.ne.s32.totalorder %s52, %s66
    %p68 = scmp.eq.s32.totalorder %s21, 0
    %p69 = por %p67, %p68
    %s71 = sadd.s32 %s70, 1
    %p74 = scmp.eq.s32.totalorder %s15, 1
    %p75 = scmp.ne.s32.totalorder %s70, %s72
    %p76 = scmp.eq.s32.totalorder %s15, 0
    %p77 = por %p75, %p76
    %p78 = scmp.ne.s32.totalorder %s70, %s72
    %p79 = scmp.eq.s32.totalorder %s20, 1
    %p80 = por %p78, %p79
    %p81 = scmp.ne.s32.totalorder %s72, %s73
    %p82 = scmp.eq.s32.totalorder %s20, 0
    %p83 = por %p81, %p82
    %p84 = scmp.ne.s32.totalorder %s72, %s73
    %p85 = scmp.eq.s32.totalorder %s21, 1
    %p86 = por %p84, %p85
    %p88 = scmp.ne.s32.totalorder %s73, %s87
    %p89 = scmp.eq.s32.totalorder %s21, 0
    %p90 = por %p88, %p89
    %s92 = sadd.s32 %s91, 1
    %p95 = scmp.eq.s32.totalorder %s15, 1
    %p96 = scmp.ne.s32.totalorder %s91, %s93
    %p97 = scmp.eq.s32.totalorder %s15, 0
    %p98 = por %p96, %p97
    %p99 = scmp.ne.s32.totalorder %s91, %s93
    %p100 = scmp.eq.s32.totalorder %s20, 1
    %p101 = por %p99, %p100
    %p102 = scmp.ne.s32.totalorder %s93, %s94
    %p103 = scmp.eq.s32.totalorder %s20, 0
    %p104 = por %p102, %p103
    %p105 = scmp.ne.s32.totalorder %s93, %s94
    %p106 = scmp.eq.s32.totalorder %s21, 1
    %p107 = por %p105, %p106
    %p109 = scmp.ne.s32.totalorder %s94, %s108
    %p110 = scmp.eq.s32.totalorder %s21, 0
    %p111 = por %p109, %p110
    %s113 = sadd.s32 %s112, 1
    %p116 = scmp.eq.s32.totalorder %s15, 1
    %p117 = scmp.ne.s32.totalorder %s112, %s114
    %p118 = scmp.eq.s32.totalorder %s15, 0
    %p119 = por %p117, %p118
    %p120 = scmp.ne.s32.totalorder %s112, %s114
    %p121 = scmp.eq.s32.totalorder %s20, 1
    %p122 = por %p120, %p121
    %p123 = scmp.ne.s32.totalorder %s114, %s115
    %p124 = scmp.eq.s32.totalorder %s20, 0
    %p125 = por %p123, %p124
    %p126 = scmp.ne.s32.totalorder %s114, %s115
    %p127 = scmp.eq.s32.totalorder %s21, 1
    %p128 = por %p126, %p127
    %p130 = scmp.ne.s32.totalorder %s115, %s129
    %p131 = scmp.eq.s32.totalorder %s21, 0
    %p132 = por %p130, %p131
    %s133 = ssub.s32 %s15, %s22
    %p134 = scmp.eq.s32.totalorder %s133, 0
    %s136 = sadd.s32 %s135, 1
    %s137 = scalar_select %p134, %s135, %s136
    %p140 = pneg %p134
    %p141 = scmp.eq.s32.totalorder %s15, 1
    %p142 = por %p140, %p141
    %p143 = scmp.ne.s32.totalorder %s135, %s138
    %p144 = scmp.eq.s32.totalorder %s15, 0
    %p145 = por %p143, %p144
    %p146 = scmp.ne.s32.totalorder %s135, %s138
    %p147 = scmp.eq.s32.totalorder %s20, 1
    %p148 = por %p146, %p147
    %p149 = scmp.ne.s32.totalorder %s138, %s139
    %p150 = scmp.eq.s32.totalorder %s20, 0
    %p151 = por %p149, %p150
    %p152 = scmp.ne.s32.totalorder %s138, %s139
    %p153 = scmp.eq.s32.totalorder %s21, 1
    %p154 = por %p152, %p153
    %p156 = scmp.ne.s32.totalorder %s139, %s155
    %p157 = scmp.eq.s32.totalorder %s21, 0
    %p158 = por %p156, %p157
    %s159 = ssub.s32 %s15, %s22
    %p160 = scmp.eq.s32.totalorder %s159, 0
    %s162 = sadd.s32 %s161, 1
    %s163 = scalar_select %p160, %s161, %s162
    %p166 = pneg %p160
    %p167 = scmp.eq.s32.totalorder %s15, 1
    %p168 = por %p166, %p167
    %p169 = scmp.ne.s32.totalorder %s161, %s164
    %p170 = scmp.eq.s32.totalorder %s15, 0
    %p171 = por %p169, %p170
    %p172 = scmp.ne.s32.totalorder %s161, %s164
    %p173 = scmp.eq.s32.totalorder %s20, 1
    %p174 = por %p172, %p173
    %p175 = scmp.ne.s32.totalorder %s164, %s165
    %p176 = scmp.eq.s32.totalorder %s20, 0
    %p177 = por %p175, %p176
    %p178 = scmp.ne.s32.totalorder %s164, %s165
    %p179 = scmp.eq.s32.totalorder %s21, 1
    %p180 = por %p178, %p179
    %p182 = scmp.ne.s32.totalorder %s165, %s181
    %p183 = scmp.eq.s32.totalorder %s21, 0
    %p184 = por %p182, %p183
    %p185 = scmp.le.s32.totalorder 1, %s15
    %p186 = scmp.lt.s32.totalorder %s15, 3
    %p187 = pnand %p185, %p186
    %p188 = pneg %p187
    // Predicated region
    $region9: #{_lambda_.5} parent=5 // pred_check
      _
    $region10: #{_lambda_.5} parent=5 // pred_check_branch
      %190 = sbr.rel (%p187) target = $region12
    $region11: #{_lambda_.5} parent=5 // pred_region
      %s191 = ssub.s32 %s15, 1
      // Predicated region
      $region13: #{_lambda_.5} parent=11 // pred_check
        %p192 = pneg %p62
      $region14: #{_lambda_.5} parent=11 // pred_check_branch
        %194 = sbr.rel (%p192) target = $region16
      $region15: #{_lambda_.5} parent=11 // pred_region
        _
      $region16: #{_lambda_.5} parent=11 // pred_fallthru
        _
      // Predicated region
      $region17: #{_lambda_.5} parent=11 // pred_check
        %p195 = pneg %p83
      $region18: #{_lambda_.5} parent=11 // pred_check_branch
        %197 = sbr.rel (%p195) target = $region20
      $region19: #{_lambda_.5} parent=11 // pred_region
        _
      $region20: #{_lambda_.5} parent=11 // pred_fallthru
        _
      // Predicated region
      $region21: #{_lambda_.5} parent=11 // pred_check
        %p198 = pneg %p104
      $region22: #{_lambda_.5} parent=11 // pred_check_branch
        %200 = sbr.rel (%p198) target = $region24
      $region23: #{_lambda_.5} parent=11 // pred_region
        _
      $region24: #{_lambda_.5} parent=11 // pred_fallthru
        _
      // Predicated region
      $region25: #{_lambda_.5} parent=11 // pred_check
        %p201 = pneg %p125
      $region26: #{_lambda_.5} parent=11 // pred_check_branch
        %203 = sbr.rel (%p201) target = $region28
      $region27: #{_lambda_.5} parent=11 // pred_region
        _
      $region28: #{_lambda_.5} parent=11 // pred_fallthru
        _
    $region12: #{_lambda_.5} parent=5 // pred_fallthru
      _
    %p204 = scmp.lt.s32.totalorder %s15, 2
    // Predicated region
    $region29: #{_lambda_.5} parent=5 // pred_check
      %p205 = pneg %p204
    $region30: #{_lambda_.5} parent=5 // pred_check_branch
      %207 = sbr.rel (%p205) target = $region32
    $region31: #{_lambda_.5} parent=5 // pred_region
      // Predicated region
      $region33: #{_lambda_.5} parent=31 // pred_check
        %p208 = pneg %p35
      $region34: #{_lambda_.5} parent=31 // pred_check_branch
        %210 = sbr.rel (%p208) target = $region36
      $region35: #{_lambda_.5} parent=31 // pred_region
        %p211 = scmp.lt.s32.totalorder %s15, 1
        %s212 = scalar_select %p211, %s15, 1
        %s213 = smul.addr %s212, 8
        %s214 = smul.addr %s213, 4
        %s215 = scalar_lea.vmem %s0, %s214
      $region36: #{_lambda_.5} parent=31 // pred_fallthru
        _
    $region32: #{_lambda_.5} parent=5 // pred_fallthru
      _
    %p216 = scmp.le.s32.totalorder 1, %s15
    %p217 = scmp.lt.s32.totalorder %s15, 3
    %p218 = pnand %p216, %p217
    %p219 = pneg %p218
    // Predicated region
    $region37: #{_lambda_.5} parent=5 // pred_check
      _
    $region38: #{_lambda_.5} parent=5 // pred_check_branch
      %221 = sbr.rel (%p218) target = $region40
    $region39: #{_lambda_.5} parent=5 // pred_region
      %s222 = ssub.s32 %s15, 1
      %p223 = scmp.lt.s32.totalorder %s20, 1
      %s224 = scalar_select %p223, %s20, 1
      %s225 = smul.addr %s224, 8
      %s226 = smul.addr %s225, 4
      %s227 = scalar_lea.vmem %s0, %s226
      %p228 = pneg %p41
      %p229 = pneg %p38
      %p230 = pneg %p62
      %p231 = pneg %p59
      %p232 = pneg %p83
      %p233 = pneg %p80
      %p234 = pneg %p104
      %p235 = pneg %p101
      %p236 = pneg %p125
      %p237 = pneg %p122
      %p238 = pneg %p151
      %p239 = pneg %p148
      %p240 = scmp.lt.s32.totalorder %s20, 1
      %s241 = scalar_select %p240, %s20, 1
      %s242 = smul.addr %s241, 2
      %s243 = smul.addr %s242, 4
      %s244 = scalar_lea.vmem %s5, %s243
      %p245 = pneg %p177
      %p246 = pneg %p174
      %p247 = scmp.lt.s32.totalorder %s20, 1
      %s248 = scalar_select %p247, %s20, 1
      %s249 = smul.addr %s248, 2
      %s250 = smul.addr %s249, 8
      %s251 = scalar_lea.vmem %s6, %s250
      %p252 = scmp.lt.s32.totalorder %s20, 1
      %s253 = scalar_select %p252, %s20, 1
      %s254 = smul.addr %s253, 8
      %s255 = smul.addr %s254, 4
      %s256 = scalar_lea.vmem %s0, %s255
      %p257 = scmp.lt.s32.totalorder %s20, 1
      %s258 = scalar_select %p257, %s20, 1
      %s259 = smul.addr %s258, 2
      %s260 = smul.addr %s259, 4
      %s261 = scalar_lea.vmem %s5, %s260
      %p262 = scmp.lt.s32.totalorder %s20, 1
      %s263 = scalar_select %p262, %s20, 1
      %s264 = smul.addr %s263, 2
      %s265 = smul.addr %s264, 8
      %s266 = scalar_lea.vmem %s6, %s265
      %vm268 = vcmask 523264
      %269 = vst.msk [vmem:[#allocation2] sm:$0xff] %vm268, 0.0
      %vm270 = vcmask 517120
      %271 = vst.msk [vmem:[#allocation2 + $0x8] sm:$0x3] %vm270, 0.0
      %272 = vst.msk [vmem:[#allocation2 + $0x10] sm:$0xff] %vm268, 0.0
      %273 = vst.msk [vmem:[#allocation2 + $0x18] sm:$0x3] %vm270, 0.0
      %274 = vst.msk [vmem:[#allocation2 + $0x20] sm:$0xff] %vm268, 0.0
      %275 = vst.msk [vmem:[#allocation2 + $0x28] sm:$0x3] %vm270, 0.0
      %276 = vst.msk [vmem:[#allocation2 + $0x30] sm:$0xff] %vm268, 0.0
      %277 = vst.msk [vmem:[#allocation2 + $0x38] sm:$0x3] %vm270, 0.0
      %278 = vst.msk [vmem:[#allocation2 + $0x40] sm:$0xff] %vm268, 0.0
      %279 = vst.msk [vmem:[#allocation2 + $0x48] sm:$0x3] %vm270, 0.0
      %280 = vst.msk [vmem:[#allocation2 + $0x50] sm:$0xff] %vm268, 0.0
      %281 = vst.msk [vmem:[#allocation2 + $0x58] sm:$0x3] %vm270, 0.0
      %282 = vst.msk [vmem:[#allocation2 + $0x60] sm:$0xff] %vm268, 0.0
      %283 = vst.msk [vmem:[#allocation2 + $0x68] sm:$0x3] %vm270, 0.0
      %284 = vst.msk [vmem:[#allocation2 + $0x70] sm:$0xff] %vm268, 0.0
      %285 = vst.msk [vmem:[#allocation2 + $0x78] sm:$0x3] %vm270, 0.0
      %286 = vst.msk [vmem:[#allocation2 + $0x80] sm:$0xff] %vm268, 0.0
      %287 = vst.msk [vmem:[#allocation2 + $0x88] sm:$0x3] %vm270, 0.0
      %288 = vst.msk [vmem:[#allocation2 + $0x90] sm:$0xff] %vm268, 0.0
      %289 = vst.msk [vmem:[#allocation2 + $0x98] sm:$0x3] %vm270, 0.0
      %v290 = vld [vmem:[%s256] sm:$0xf]
      %v291 = vld [vmem:[%s256 + $0x4] sm:$0xf]
      %v292 = vld [vmem:[%s256 + $0x8] sm:$0xf]
      %v293 = vld [vmem:[%s256 + $0xc] sm:$0xf]
      %v294 = vld [vmem:[%s256 + $0x10] sm:$0xf]
      %v295 = vld [vmem:[%s256 + $0x14] sm:$0xf]
      %v296 = vld [vmem:[%s256 + $0x18] sm:$0xf]
      %v297 = vld [vmem:[%s256 + $0x1c] sm:$0xf]
      %v298 = vunpack.c.l.bf16 %v290
      %v299 = vunpack.c.l.bf16 %v291
      %v300 = vunpack.c.l.bf16 %v292
      %v301 = vunpack.c.l.bf16 %v293
      %v302 = vunpack.c.l.bf16 %v294
      %v303 = vunpack.c.l.bf16 %v295
      %v304 = vunpack.c.l.bf16 %v296
      %v305 = vunpack.c.l.bf16 %v297
      %s306 = scalar_lea.vmem [#allocation2], 16
      %307 = vst.msk [vmem:[%s306 + $0x1] sm:$0xff] %vm268, %v298
      %308 = vst.msk [vmem:[%s306 + $0x11] sm:$0xff] %vm268, %v299
      %309 = vst.msk [vmem:[%s306 + $0x21] sm:$0xff] %vm268, %v300
      %310 = vst.msk [vmem:[%s306 + $0x31] sm:$0xff] %vm268, %v301
      %311 = vst.msk [vmem:[%s306 + $0x41] sm:$0xff] %vm268, %v302
      %312 = vst.msk [vmem:[%s306 + $0x51] sm:$0xff] %vm268, %v303
      %313 = vst.msk [vmem:[%s306 + $0x61] sm:$0xff] %vm268, %v304
      %314 = vst.msk [vmem:[%s306 + $0x71] sm:$0xff] %vm268, %v305
      %v315 = vld [vmem:[#allocation2] ss:$2 sm:$0xf]
      %s316 = scalar_lea.vmem [#allocation2], 32
      %v317 = vld [vmem:[%s316] ss:$2 sm:$0xf]
      %s318 = scalar_lea.vmem [#allocation2], 64
      %v319 = vld [vmem:[%s318] ss:$2 sm:$0xf]
      %s320 = scalar_lea.vmem [#allocation2], 96
      %v321 = vld [vmem:[%s320] ss:$2 sm:$0xf]
      %326 = vst [vmem:[#allocation1] ss:$2 sm:$0xff] %v315
      %s327 = scalar_lea.vmem [#allocation1], 1
      %328 = vst [vmem:[%s327] ss:$2 sm:$0xff] %v317
      %s329 = scalar_lea.vmem [#allocation1], 16
      %330 = vst [vmem:[%s329] ss:$2 sm:$0xff] %v319
      %s331 = scalar_lea.vmem [#allocation1], 17
      %332 = vst [vmem:[%s331] ss:$2 sm:$0xff] %v321
      %v333 = vld.sshfl [vmem:[#allocation1] sm:$0xff pattern:$0x75316420]
      %v334 = vld.sshfl [vmem:[#allocation1 + $0x10] sm:$0xff pattern:$0x75316420]
      %v337 = vpack.c.bf16 %v334, %v333
      %v338 = vld [vmem:[%s1] sm:$0xf]
      %v339 = vld [vmem:[%s1 + $0x4] sm:$0xf]
      %v340 = vld [vmem:[%s1 + $0x8] sm:$0xf]
      %v341 = vld [vmem:[%s1 + $0xc] sm:$0xf]
      %v342 = vld [vmem:[%s1 + $0x10] sm:$0xf]
      %v343 = vld [vmem:[%s1 + $0x14] sm:$0xf]
      %v344 = vld [vmem:[%s1 + $0x18] sm:$0xf]
      %v345 = vld [vmem:[%s1 + $0x1c] sm:$0xf]
      %s346 = scalar_lea.vmem [#allocation2], 1
      %v347 = vld [vmem:[%s346] ss:$2 sm:$0xf]
      %s348 = scalar_lea.vmem [#allocation2], 33
      %v349 = vld [vmem:[%s348] ss:$2 sm:$0xf]
      %s350 = scalar_lea.vmem [#allocation2], 65
      %v351 = vld [vmem:[%s350] ss:$2 sm:$0xf]
      %s352 = scalar_lea.vmem [#allocation2], 97
      %v353 = vld [vmem:[%s352] ss:$2 sm:$0xf]
      %358 = vst [vmem:[#allocation1] ss:$2 sm:$0xff] %v347
      %s359 = scalar_lea.vmem [#allocation1], 1
      %360 = vst [vmem:[%s359] ss:$2 sm:$0xff] %v349
      %s361 = scalar_lea.vmem [#allocation1], 16
      %362 = vst [vmem:[%s361] ss:$2 sm:$0xff] %v351
      %s363 = scalar_lea.vmem [#allocation1], 17
      %364 = vst [vmem:[%s363] ss:$2 sm:$0xff] %v353
      %v365 = vld.sshfl [vmem:[#allocation1] sm:$0xff pattern:$0x75316420]
      %v366 = vld.sshfl [vmem:[#allocation1 + $0x10] sm:$0xff pattern:$0x75316420]
      %v369 = vpack.c.bf16 %v366, %v365
      %s370 = scalar_lea.vmem %s1, 32
      %v371 = vld [vmem:[%s370] sm:$0xf]
      %v372 = vld [vmem:[%s370 + $0x4] sm:$0xf]
      %v373 = vld [vmem:[%s370 + $0x8] sm:$0xf]
      %v374 = vld [vmem:[%s370 + $0xc] sm:$0xf]
      %v375 = vld [vmem:[%s370 + $0x10] sm:$0xf]
      %v376 = vld [vmem:[%s370 + $0x14] sm:$0xf]
      %v377 = vld [vmem:[%s370 + $0x18] sm:$0xf]
      %v378 = vld [vmem:[%s370 + $0x1c] sm:$0xf]
      %v387 = vunpack.c.l.b16 %v371
      %v388 = vunpack.c.l.b16 %v372
      %v389 = vunpack.c.l.b16 %v373
      %v390 = vunpack.c.l.b16 %v374
      %v391 = vunpack.c.l.b16 %v375
      %v392 = vunpack.c.l.b16 %v376
      %v393 = vunpack.c.l.b16 %v377
      %v394 = vunpack.c.l.b16 %v378
      %v395 = vpack.c.b16 %v388, %v387
      %v396 = vpack.c.b16 %v390, %v389
      %v397 = vpack.c.b16 %v392, %v391
      %v398 = vpack.c.b16 %v394, %v393
      %v404 = vsel %vm268, %v369, 0
      %406 = vmatpush.bf16.msra.mxu0 0
      %407 = vmatpush.bf16.msra.mxu0 0
      %408 = vmatpush.bf16.msra.mxu0 0
      %409 = vmatpush.bf16.msra.mxu0 0
      %410 = vmatpush.bf16.msra.mxu0 %v398
      %411 = vmatpush.bf16.msra.mxu0 %v397
      %412 = vmatpush.bf16.msra.mxu0 %v396
      %413 = vmatpush.bf16.msra.mxu0 %v395
      %414 = vmatmul.bf16.gmra.mxu0 %v404
      %v415 = vpop.f32.mrf.mxu0
      %v416 = vadd.f32 0.0, %v415
      %v417 = vpop.f32.mrf.mxu0
      %v418 = vadd.f32 0.0, %v417
      %419 = vdwg.mxu0
      %v428 = vunpack.c.l.b16 %v338
      %v429 = vunpack.c.l.b16 %v339
      %v430 = vunpack.c.l.b16 %v340
      %v431 = vunpack.c.l.b16 %v341
      %v432 = vunpack.c.l.b16 %v342
      %v433 = vunpack.c.l.b16 %v343
      %v434 = vunpack.c.l.b16 %v344
      %v435 = vunpack.c.l.b16 %v345
      %v436 = vpack.c.b16 %v429, %v428
      %v437 = vpack.c.b16 %v431, %v430
      %v438 = vpack.c.b16 %v433, %v432
      %v439 = vpack.c.b16 %v435, %v434
      %v445 = vsel %vm268, %v337, 0
      %447 = vmatpush.bf16.msra.mxu0 0
      %448 = vmatpush.bf16.msra.mxu0 0
      %449 = vmatpush.bf16.msra.mxu0 0
      %450 = vmatpush.bf16.msra.mxu0 0
      %451 = vmatpush.bf16.msra.mxu0 %v439
      %452 = vmatpush.bf16.msra.mxu0 %v438
      %453 = vmatpush.bf16.msra.mxu0 %v437
      %454 = vmatpush.bf16.msra.mxu0 %v436
      %455 = vmatmul.bf16.gmra.mxu0 %v445
      %v456 = vpop.f32.mrf.mxu0
      %v457 = vadd.f32 %v416, %v456
      %v458 = vpop.f32.mrf.mxu0
      %v459 = vadd.f32 %v418, %v458
      %460 = vdwg.mxu0
      %s461 = scalar_lea.vmem [#allocation2], 2
      %v462 = vld [vmem:[%s461] ss:$2 sm:$0xf]
      %s463 = scalar_lea.vmem [#allocation2], 34
      %v464 = vld [vmem:[%s463] ss:$2 sm:$0xf]
      %s465 = scalar_lea.vmem [#allocation2], 66
      %v466 = vld [vmem:[%s465] ss:$2 sm:$0xf]
      %s467 = scalar_lea.vmem [#allocation2], 98
      %v468 = vld [vmem:[%s467] ss:$2 sm:$0xf]
      %473 = vst [vmem:[#allocation1] ss:$2 sm:$0xff] %v462
      %s474 = scalar_lea.vmem [#allocation1], 1
      %475 = vst [vmem:[%s474] ss:$2 sm:$0xff] %v464
      %s476 = scalar_lea.vmem [#allocation1], 16
      %477 = vst [vmem:[%s476] ss:$2 sm:$0xff] %v466
      %s478 = scalar_lea.vmem [#allocation1], 17
      %479 = vst [vmem:[%s478] ss:$2 sm:$0xff] %v468
      %v480 = vld.sshfl [vmem:[#allocation1] sm:$0xff pattern:$0x75316420]
      %v481 = vld.sshfl [vmem:[#allocation1 + $0x10] sm:$0xff pattern:$0x75316420]
      %v484 = vpack.c.bf16 %v481, %v480
      %s485 = scalar_lea.vmem %s1, 64
      %v486 = vld [vmem:[%s485] sm:$0xf]
      %v487 = vld [vmem:[%s485 + $0x4] sm:$0xf]
      %v488 = vld [vmem:[%s485 + $0x8] sm:$0xf]
      %v489 = vld [vmem:[%s485 + $0xc] sm:$0xf]
      %v490 = vld [vmem:[%s485 + $0x10] sm:$0xf]
      %v491 = vld [vmem:[%s485 + $0x14] sm:$0xf]
      %v492 = vld [vmem:[%s485 + $0x18] sm:$0xf]
      %v493 = vld [vmem:[%s485 + $0x1c] sm:$0xf]
      %v502 = vunpack.c.l.b16 %v486
      %v503 = vunpack.c.l.b16 %v487
      %v504 = vunpack.c.l.b16 %v488
      %v505 = vunpack.c.l.b16 %v489
      %v506 = vunpack.c.l.b16 %v490
      %v507 = vunpack.c.l.b16 %v491
      %v508 = vunpack.c.l.b16 %v492
      %v509 = vunpack.c.l.b16 %v493
      %v510 = vpack.c.b16 %v503, %v502
      %v511 = vpack.c.b16 %v505, %v504
      %v512 = vpack.c.b16 %v507, %v506
      %v513 = vpack.c.b16 %v509, %v508
      %v519 = vsel %vm268, %v484, 0
      %521 = vmatpush.bf16.msra.mxu0 0
      %522 = vmatpush.bf16.msra.mxu0 0
      %523 = vmatpush.bf16.msra.mxu0 0
      %524 = vmatpush.bf16.msra.mxu0 0
      %525 = vmatpush.bf16.msra.mxu0 %v513
      %526 = vmatpush.bf16.msra.mxu0 %v512
      %527 = vmatpush.bf16.msra.mxu0 %v511
      %528 = vmatpush.bf16.msra.mxu0 %v510
      %529 = vmatmul.bf16.gmra.mxu0 %v519
      %v530 = vpop.f32.mrf.mxu0
      %v531 = vadd.f32 0.0, %v530
      %v532 = vpop.f32.mrf.mxu0
      %v533 = vadd.f32 0.0, %v532
      %534 = vdwg.mxu0
      %v535 = vadd.f32 %v457, %v531
      %v536 = vadd.f32 %v459, %v533
      %v537 = vld [vmem:[%s306] ss:$2 sm:$0xf]
      %s538 = scalar_lea.vmem %s306, 32 [#allocation2]
      %v539 = vld [vmem:[%s538] ss:$2 sm:$0xf]
      %s540 = scalar_lea.vmem %s306, 64 [#allocation2]
      %v541 = vld [vmem:[%s540] ss:$2 sm:$0xf]
      %s542 = scalar_lea.vmem %s306, 96 [#allocation2]
      %v543 = vld [vmem:[%s542] ss:$2 sm:$0xf]
      %548 = vst [vmem:[#allocation1] ss:$2 sm:$0xff] %v537
      %s549 = scalar_lea.vmem [#allocation1], 1
      %550 = vst [vmem:[%s549] ss:$2 sm:$0xff] %v539
      %s551 = scalar_lea.vmem [#allocation1], 16
      %552 = vst [vmem:[%s551] ss:$2 sm:$0xff] %v541
      %s553 = scalar_lea.vmem [#allocation1], 17
      %554 = vst [vmem:[%s553] ss:$2 sm:$0xff] %v543
      %v555 = vld.sshfl [vmem:[#allocation1] sm:$0xff pattern:$0x75316420]
      %v556 = vld.sshfl [vmem:[#allocation1 + $0x10] sm:$0xff pattern:$0x75316420]
      %v559 = vpack.c.bf16 %v556, %v555
      %s560 = scalar_lea.vmem %s1, 96
      %v561 = vld [vmem:[%s560] sm:$0xf]
      %v562 = vld [vmem:[%s560 + $0x4] sm:$0xf]
      %v563 = vld [vmem:[%s560 + $0x8] sm:$0xf]
      %v564 = vld [vmem:[%s560 + $0xc] sm:$0xf]
      %v565 = vld [vmem:[%s560 + $0x10] sm:$0xf]
      %v566 = vld [vmem:[%s560 + $0x14] sm:$0xf]
      %v567 = vld [vmem:[%s560 + $0x18] sm:$0xf]
      %v568 = vld [vmem:[%s560 + $0x1c] sm:$0xf]
      %v577 = vunpack.c.l.b16 %v561
      %v578 = vunpack.c.l.b16 %v562
      %v579 = vunpack.c.l.b16 %v563
      %v580 = vunpack.c.l.b16 %v564
      %v581 = vunpack.c.l.b16 %v565
      %v582 = vunpack.c.l.b16 %v566
      %v583 = vunpack.c.l.b16 %v567
      %v584 = vunpack.c.l.b16 %v568
      %v585 = vpack.c.b16 %v578, %v577
      %v586 = vpack.c.b16 %v580, %v579
      %v587 = vpack.c.b16 %v582, %v581
      %v588 = vpack.c.b16 %v584, %v583
      %v594 = vsel %vm268, %v559, 0
      %596 = vmatpush.bf16.msra.mxu0 0
      %597 = vmatpush.bf16.msra.mxu0 0
      %598 = vmatpush.bf16.msra.mxu0 0
      %599 = vmatpush.bf16.msra.mxu0 0
      %600 = vmatpush.bf16.msra.mxu0 %v588
      %601 = vmatpush.bf16.msra.mxu0 %v587
      %602 = vmatpush.bf16.msra.mxu0 %v586
      %603 = vmatpush.bf16.msra.mxu0 %v585
      %604 = vmatmul.bf16.gmra.mxu0 %v594
      %v605 = vpop.f32.mrf.mxu0
      %v606 = vadd.f32 0.0, %v605
      %v607 = vpop.f32.mrf.mxu0
      %v608 = vadd.f32 0.0, %v607
      %609 = vdwg.mxu0
      %v610 = vadd.f32 %v535, %v606
      %v611 = vadd.f32 %v536, %v608
      %s612 = scalar_lea.vmem %s306, 1 [#allocation2]
      %v613 = vld [vmem:[%s612] ss:$2 sm:$0xf]
      %s614 = scalar_lea.vmem %s306, 33 [#allocation2]
      %v615 = vld [vmem:[%s614] ss:$2 sm:$0xf]
      %s616 = scalar_lea.vmem %s306, 65 [#allocation2]
      %v617 = vld [vmem:[%s616] ss:$2 sm:$0xf]
      %s618 = scalar_lea.vmem %s306, 97 [#allocation2]
      %v619 = vld [vmem:[%s618] ss:$2 sm:$0xf]
      %624 = vst [vmem:[#allocation1] ss:$2 sm:$0xff] %v613
      %s625 = scalar_lea.vmem [#allocation1], 1
      %626 = vst [vmem:[%s625] ss:$2 sm:$0xff] %v615
      %s627 = scalar_lea.vmem [#allocation1], 16
      %628 = vst [vmem:[%s627] ss:$2 sm:$0xff] %v617
      %s629 = scalar_lea.vmem [#allocation1], 17
      %630 = vst [vmem:[%s629] ss:$2 sm:$0xff] %v619
      %v631 = vld.sshfl [vmem:[#allocation1] sm:$0xff pattern:$0x75316420]
      %v632 = vld.sshfl [vmem:[#allocation1 + $0x10] sm:$0xff pattern:$0x75316420]
      %v635 = vpack.c.bf16 %v632, %v631
      %s636 = scalar_lea.vmem %s1, 128
      %v637 = vld [vmem:[%s636] sm:$0xf]
      %v638 = vld [vmem:[%s636 + $0x4] sm:$0xf]
      %v639 = vld [vmem:[%s636 + $0x8] sm:$0xf]
      %v640 = vld [vmem:[%s636 + $0xc] sm:$0xf]
      %v641 = vld [vmem:[%s636 + $0x10] sm:$0xf]
      %v642 = vld [vmem:[%s636 + $0x14] sm:$0xf]
      %v643 = vld [vmem:[%s636 + $0x18] sm:$0xf]
      %v644 = vld [vmem:[%s636 + $0x1c] sm:$0xf]
      %v653 = vunpack.c.l.b16 %v637
      %v654 = vunpack.c.l.b16 %v638
      %v655 = vunpack.c.l.b16 %v639
      %v656 = vunpack.c.l.b16 %v640
      %v657 = vunpack.c.l.b16 %v641
      %v658 = vunpack.c.l.b16 %v642
      %v659 = vunpack.c.l.b16 %v643
      %v660 = vunpack.c.l.b16 %v644
      %v661 = vpack.c.b16 %v654, %v653
      %v662 = vpack.c.b16 %v656, %v655
      %v663 = vpack.c.b16 %v658, %v657
      %v664 = vpack.c.b16 %v660, %v659
      %v670 = vsel %vm268, %v635, 0
      %672 = vmatpush.bf16.msra.mxu0 0
      %673 = vmatpush.bf16.msra.mxu0 0
      %674 = vmatpush.bf16.msra.mxu0 0
      %675 = vmatpush.bf16.msra.mxu0 0
      %676 = vmatpush.bf16.msra.mxu0 %v664
      %677 = vmatpush.bf16.msra.mxu0 %v663
      %678 = vmatpush.bf16.msra.mxu0 %v662
      %679 = vmatpush.bf16.msra.mxu0 %v661
      %680 = vmatmul.bf16.gmra.mxu0 %v670
      %v681 = vpop.f32.mrf.mxu0
      %v682 = vadd.f32 0.0, %v681
      %v683 = vpop.f32.mrf.mxu0
      %v684 = vadd.f32 0.0, %v683
      %685 = vdwg.mxu0
      %v686 = vadd.f32 %v610, %v682
      %v687 = vadd.f32 %v611, %v684
      %s688 = scalar_lea.vmem %s306, 2 [#allocation2]
      %v689 = vld [vmem:[%s688] ss:$2 sm:$0xf]
      %s690 = scalar_lea.vmem %s306, 34 [#allocation2]
      %v691 = vld [vmem:[%s690] ss:$2 sm:$0xf]
      %s692 = scalar_lea.vmem %s306, 66 [#allocation2]
      %v693 = vld [vmem:[%s692] ss:$2 sm:$0xf]
      %s694 = scalar_lea.vmem %s306, 98 [#allocation2]
      %v695 = vld [vmem:[%s694] ss:$2 sm:$0xf]
      %700 = vst [vmem:[#allocation1] ss:$2 sm:$0xff] %v689
      %s701 = scalar_lea.vmem [#allocation1], 1
      %702 = vst [vmem:[%s701] ss:$2 sm:$0xff] %v691
      %s703 = scalar_lea.vmem [#allocation1], 16
      %704 = vst [vmem:[%s703] ss:$2 sm:$0xff] %v693
      %s705 = scalar_lea.vmem [#allocation1], 17
      %706 = vst [vmem:[%s705] ss:$2 sm:$0xff] %v695
      %v707 = vld.sshfl [vmem:[#allocation1] sm:$0xff pattern:$0x75316420]
      %v708 = vld.sshfl [vmem:[#allocation1 + $0x10] sm:$0xff pattern:$0x75316420]
      %v711 = vpack.c.bf16 %v708, %v707
      %s712 = scalar_lea.vmem %s1, 160
      %v713 = vld [vmem:[%s712] sm:$0xf]
      %v714 = vld [vmem:[%s712 + $0x4] sm:$0xf]
      %v715 = vld [vmem:[%s712 + $0x8] sm:$0xf]
      %v716 = vld [vmem:[%s712 + $0xc] sm:$0xf]
      %v717 = vld [vmem:[%s712 + $0x10] sm:$0xf]
      %v718 = vld [vmem:[%s712 + $0x14] sm:$0xf]
      %v719 = vld [vmem:[%s712 + $0x18] sm:$0xf]
      %v720 = vld [vmem:[%s712 + $0x1c] sm:$0xf]
      %v729 = vunpack.c.l.b16 %v713
      %v730 = vunpack.c.l.b16 %v714
      %v731 = vunpack.c.l.b16 %v715
      %v732 = vunpack.c.l.b16 %v716
      %v733 = vunpack.c.l.b16 %v717
      %v734 = vunpack.c.l.b16 %v718
      %v735 = vunpack.c.l.b16 %v719
      %v736 = vunpack.c.l.b16 %v720
      %v737 = vpack.c.b16 %v730, %v729
      %v738 = vpack.c.b16 %v732, %v731
      %v739 = vpack.c.b16 %v734, %v733
      %v740 = vpack.c.b16 %v736, %v735
      %v746 = vsel %vm268, %v711, 0
      %748 = vmatpush.bf16.msra.mxu0 0
      %749 = vmatpush.bf16.msra.mxu0 0
      %750 = vmatpush.bf16.msra.mxu0 0
      %751 = vmatpush.bf16.msra.mxu0 0
      %752 = vmatpush.bf16.msra.mxu0 %v740
      %753 = vmatpush.bf16.msra.mxu0 %v739
      %754 = vmatpush.bf16.msra.mxu0 %v738
      %755 = vmatpush.bf16.msra.mxu0 %v737
      %756 = vmatmul.bf16.gmra.mxu0 %v746
      %v757 = vpop.f32.mrf.mxu0
      %v758 = vadd.f32 0.0, %v757
      %v759 = vpop.f32.mrf.mxu0
      %v760 = vadd.f32 0.0, %v759
      %761 = vdwg.mxu0
      %v762 = vadd.f32 %v686, %v758
      %v763 = vadd.f32 %v687, %v760
      %s764 = scalar_lea.vmem [#allocation2], 32
      %v765 = vld [vmem:[%s764] ss:$2 sm:$0xf]
      %s766 = scalar_lea.vmem %s764, 32 [#allocation2]
      %v767 = vld [vmem:[%s766] ss:$2 sm:$0xf]
      %s768 = scalar_lea.vmem %s764, 64 [#allocation2]
      %v769 = vld [vmem:[%s768] ss:$2 sm:$0xf]
      %s770 = scalar_lea.vmem %s764, 96 [#allocation2]
      %v771 = vld [vmem:[%s770] ss:$2 sm:$0xf]
      %776 = vst [vmem:[#allocation1] ss:$2 sm:$0xff] %v765
      %s777 = scalar_lea.vmem [#allocation1], 1
      %778 = vst [vmem:[%s777] ss:$2 sm:$0xff] %v767
      %s779 = scalar_lea.vmem [#allocation1], 16
      %780 = vst [vmem:[%s779] ss:$2 sm:$0xff] %v769
      %s781 = scalar_lea.vmem [#allocation1], 17
      %782 = vst [vmem:[%s781] ss:$2 sm:$0xff] %v771
      %v783 = vld.sshfl [vmem:[#allocation1] sm:$0xff pattern:$0x75316420]
      %v784 = vld.sshfl [vmem:[#allocation1 + $0x10] sm:$0xff pattern:$0x75316420]
      %v787 = vpack.c.bf16 %v784, %v783
      %s788 = scalar_lea.vmem %s1, 192
      %v789 = vld [vmem:[%s788] sm:$0xf]
      %v790 = vld [vmem:[%s788 + $0x4] sm:$0xf]
      %v791 = vld [vmem:[%s788 + $0x8] sm:$0xf]
      %v792 = vld [vmem:[%s788 + $0xc] sm:$0xf]
      %v793 = vld [vmem:[%s788 + $0x10] sm:$0xf]
      %v794 = vld [vmem:[%s788 + $0x14] sm:$0xf]
      %v795 = vld [vmem:[%s788 + $0x18] sm:$0xf]
      %v796 = vld [vmem:[%s788 + $0x1c] sm:$0xf]
      %v805 = vunpack.c.l.b16 %v789
      %v806 = vunpack.c.l.b16 %v790
      %v807 = vunpack.c.l.b16 %v791
      %v808 = vunpack.c.l.b16 %v792
      %v809 = vunpack.c.l.b16 %v793
      %v810 = vunpack.c.l.b16 %v794
      %v811 = vunpack.c.l.b16 %v795
      %v812 = vunpack.c.l.b16 %v796
      %v813 = vpack.c.b16 %v806, %v805
      %v814 = vpack.c.b16 %v808, %v807
      %v815 = vpack.c.b16 %v810, %v809
      %v816 = vpack.c.b16 %v812, %v811
      %v822 = vsel %vm268, %v787, 0
      %824 = vmatpush.bf16.msra.mxu0 0
      %825 = vmatpush.bf16.msra.mxu0 0
      %826 = vmatpush.bf16.msra.mxu0 0
      %827 = vmatpush.bf16.msra.mxu0 0
      %828 = vmatpush.bf16.msra.mxu0 %v816
      %829 = vmatpush.bf16.msra.mxu0 %v815
      %830 = vmatpush.bf16.msra.mxu0 %v814
      %831 = vmatpush.bf16.msra.mxu0 %v813
      %832 = vmatmul.bf16.gmra.mxu0 %v822
      %v833 = vpop.f32.mrf.mxu0
      %v834 = vadd.f32 0.0, %v833
      %v835 = vpop.f32.mrf.mxu0
      %v836 = vadd.f32 0.0, %v835
      %837 = vdwg.mxu0
      %v838 = vadd.f32 %v762, %v834
      %v839 = vadd.f32 %v763, %v836
      %s840 = scalar_lea.vmem %s764, 1 [#allocation2]
      %v841 = vld [vmem:[%s840] ss:$2 sm:$0xf]
      %s842 = scalar_lea.vmem %s764, 33 [#allocation2]
      %v843 = vld [vmem:[%s842] ss:$2 sm:$0xf]
      %s844 = scalar_lea.vmem %s764, 65 [#allocation2]
      %v845 = vld [vmem:[%s844] ss:$2 sm:$0xf]
      %s846 = scalar_lea.vmem %s764, 97 [#allocation2]
      %v847 = vld [vmem:[%s846] ss:$2 sm:$0xf]
      %852 = vst [vmem:[#allocation1] ss:$2 sm:$0xff] %v841
      %s853 = scalar_lea.vmem [#allocation1], 1
      %854 = vst [vmem:[%s853] ss:$2 sm:$0xff] %v843
      %s855 = scalar_lea.vmem [#allocation1], 16
      %856 = vst [vmem:[%s855] ss:$2 sm:$0xff] %v845
      %s857 = scalar_lea.vmem [#allocation1], 17
      %858 = vst [vmem:[%s857] ss:$2 sm:$0xff] %v847
      %v859 = vld.sshfl [vmem:[#allocation1] sm:$0xff pattern:$0x75316420]
      %v860 = vld.sshfl [vmem:[#allocation1 + $0x10] sm:$0xff pattern:$0x75316420]
      %v863 = vpack.c.bf16 %v860, %v859
      %s864 = scalar_lea.vmem %s1, 224
      %v865 = vld [vmem:[%s864] sm:$0xf]
      %v866 = vld [vmem:[%s864 + $0x4] sm:$0xf]
      %v867 = vld [vmem:[%s864 + $0x8] sm:$0xf]
      %v868 = vld [vmem:[%s864 + $0xc] sm:$0xf]
      %v869 = vld [vmem:[%s864 + $0x10] sm:$0xf]
      %v870 = vld [vmem:[%s864 + $0x14] sm:$0xf]
      %v871 = vld [vmem:[%s864 + $0x18] sm:$0xf]
      %v872 = vld [vmem:[%s864 + $0x1c] sm:$0xf]
      %v881 = vunpack.c.l.b16 %v865
      %v882 = vunpack.c.l.b16 %v866
      %v883 = vunpack.c.l.b16 %v867
      %v884 = vunpack.c.l.b16 %v868
      %v885 = vunpack.c.l.b16 %v869
      %v886 = vunpack.c.l.b16 %v870
      %v887 = vunpack.c.l.b16 %v871
      %v888 = vunpack.c.l.b16 %v872
      %v889 = vpack.c.b16 %v882, %v881
      %v890 = vpack.c.b16 %v884, %v883
      %v891 = vpack.c.b16 %v886, %v885
      %v892 = vpack.c.b16 %v888, %v887
      %v898 = vsel %vm268, %v863, 0
      %900 = vmatpush.bf16.msra.mxu0 0
      %901 = vmatpush.bf16.msra.mxu0 0
      %902 = vmatpush.bf16.msra.mxu0 0
      %903 = vmatpush.bf16.msra.mxu0 0
      %904 = vmatpush.bf16.msra.mxu0 %v892
      %905 = vmatpush.bf16.msra.mxu0 %v891
      %906 = vmatpush.bf16.msra.mxu0 %v890
      %907 = vmatpush.bf16.msra.mxu0 %v889
      %908 = vmatmul.bf16.gmra.mxu0 %v898
      %v909 = vpop.f32.mrf.mxu0
      %v910 = vadd.f32 0.0, %v909
      %v911 = vpop.f32.mrf.mxu0
      %v912 = vadd.f32 0.0, %v911
      %913 = vdwg.mxu0
      %v914 = vadd.f32 %v838, %v910
      %v915 = vadd.f32 %v839, %v912
      %s916 = scalar_lea.vmem %s764, 2 [#allocation2]
      %v917 = vld [vmem:[%s916] ss:$2 sm:$0xf]
      %s918 = scalar_lea.vmem %s764, 34 [#allocation2]
      %v919 = vld [vmem:[%s918] ss:$2 sm:$0xf]
      %s920 = scalar_lea.vmem %s764, 66 [#allocation2]
      %v921 = vld [vmem:[%s920] ss:$2 sm:$0xf]
      %s922 = scalar_lea.vmem %s764, 98 [#allocation2]
      %v923 = vld [vmem:[%s922] ss:$2 sm:$0xf]
      %928 = vst [vmem:[#allocation1] ss:$2 sm:$0xff] %v917
      %s929 = scalar_lea.vmem [#allocation1], 1
      %930 = vst [vmem:[%s929] ss:$2 sm:$0xff] %v919
      %s931 = scalar_lea.vmem [#allocation1], 16
      %932 = vst [vmem:[%s931] ss:$2 sm:$0xff] %v921
      %s933 = scalar_lea.vmem [#allocation1], 17
      %934 = vst [vmem:[%s933] ss:$2 sm:$0xff] %v923
      %v935 = vld.sshfl [vmem:[#allocation1] sm:$0xff pattern:$0x75316420]
      %v936 = vld.sshfl [vmem:[#allocation1 + $0x10] sm:$0xff pattern:$0x75316420]
      %v939 = vpack.c.bf16 %v936, %v935
      %s940 = scalar_lea.vmem %s1, 256
      %v941 = vld [vmem:[%s940] sm:$0xf]
      %v942 = vld [vmem:[%s940 + $0x4] sm:$0xf]
      %v943 = vld [vmem:[%s940 + $0x8] sm:$0xf]
      %v944 = vld [vmem:[%s940 + $0xc] sm:$0xf]
      %v945 = vld [vmem:[%s940 + $0x10] sm:$0xf]
      %v946 = vld [vmem:[%s940 + $0x14] sm:$0xf]
      %v947 = vld [vmem:[%s940 + $0x18] sm:$0xf]
      %v948 = vld [vmem:[%s940 + $0x1c] sm:$0xf]
      %v957 = vunpack.c.l.b16 %v941
      %v958 = vunpack.c.l.b16 %v942
      %v959 = vunpack.c.l.b16 %v943
      %v960 = vunpack.c.l.b16 %v944
      %v961 = vunpack.c.l.b16 %v945
      %v962 = vunpack.c.l.b16 %v946
      %v963 = vunpack.c.l.b16 %v947
      %v964 = vunpack.c.l.b16 %v948
      %v965 = vpack.c.b16 %v958, %v957
      %v966 = vpack.c.b16 %v960, %v959
      %v967 = vpack.c.b16 %v962, %v961
      %v968 = vpack.c.b16 %v964, %v963
      %v974 = vsel %vm268, %v939, 0
      %976 = vmatpush.bf16.msra.mxu0 0
      %977 = vmatpush.bf16.msra.mxu0 0
      %978 = vmatpush.bf16.msra.mxu0 0
      %979 = vmatpush.bf16.msra.mxu0 0
      %980 = vmatpush.bf16.msra.mxu0 %v968
      %981 = vmatpush.bf16.msra.mxu0 %v967
      %982 = vmatpush.bf16.msra.mxu0 %v966
      %983 = vmatpush.bf16.msra.mxu0 %v965
      %984 = vmatmul.bf16.gmra.mxu0 %v974
      %v985 = vpop.f32.mrf.mxu0
      %v986 = vadd.f32 0.0, %v985
      %v987 = vpop.f32.mrf.mxu0
      %v988 = vadd.f32 0.0, %v987
      %989 = vdwg.mxu0
      %v990 = vadd.f32 %v914, %v986
      %v991 = vadd.f32 %v915, %v988
      %v992 = vld [vmem:[%s2] sm:$0x1]
      %v994 = vperm.slane %v992, 0
      %v996 = vadd.f32 %v990, %v994
      %v997 = vadd.f32 %v991, %v994
      %vm998 = vcmp.ge.f32.partialorder %v996, 0.0
      %vm999 = vcmp.ge.f32.partialorder %v997, 0.0
      %v1000 = vmul.f32 %v996, 0.2
      %v1001 = vmul.f32 %v997, 0.2
      %v1002 = vsel %vm998, %v996, %v1000
      %v1003 = vsel %vm999, %v997, %v1001
      %v1004 = vpack.c.bf16 %v1002, %v1002
      %v1005 = vpack.c.bf16 %v1003, %v1003
      %1006 = vst [vmem:[%s261] sm:$0xf] %v1004
      %1007 = vst [vmem:[%s261 + $0x4] sm:$0xf] %v1005
      %v1008 = vld [vmem:[%s3] sm:$0xff]
      %v1009 = vld [vmem:[%s3 + $0x8] sm:$0xff]
      %v1010 = vld [vmem:[%s3 + $0x10] sm:$0xff]
      %v1011 = vld [vmem:[%s3 + $0x18] sm:$0xff]
      %v1012 = vld [vmem:[%s3 + $0x20] sm:$0xff]
      %v1013 = vld [vmem:[%s3 + $0x28] sm:$0xff]
      %v1014 = vld [vmem:[%s3 + $0x30] sm:$0xff]
      %v1015 = vld [vmem:[%s3 + $0x38] sm:$0xff]
      %v1016 = vld [vmem:[%s3 + $0x40] sm:$0xff]
      %v1017 = vld [vmem:[%s3 + $0x48] sm:$0xff]
      %v1018 = vld [vmem:[%s3 + $0x50] sm:$0xff]
      %v1019 = vld [vmem:[%s3 + $0x58] sm:$0xff]
      %v1020 = vld [vmem:[%s3 + $0x60] sm:$0xff]
      %v1021 = vld [vmem:[%s3 + $0x68] sm:$0xff]
      %v1022 = vld [vmem:[%s3 + $0x70] sm:$0xff]
      %v1023 = vld [vmem:[%s3 + $0x78] sm:$0xff]
      %v1024 = vld [vmem:[#allocation3] sm:$0x1]
      %v1026 = vperm.slane %v1024, 0
      %1028 = vmatpush.msra.mxu0 %v1023
      %1029 = vmatpush.msra.mxu0 %v1022
      %1030 = vmatpush.msra.mxu0 %v1021
      %1031 = vmatpush.msra.mxu0 %v1020
      %1032 = vmatpush.msra.mxu0 %v1019
      %1033 = vmatpush.msra.mxu0 %v1018
      %1034 = vmatpush.msra.mxu0 %v1017
      %1035 = vmatpush.msra.mxu0 %v1016
      %1036 = vmatpush.msra.mxu0 %v1015
      %1037 = vmatpush.msra.mxu0 %v1014
      %1038 = vmatpush.msra.mxu0 %v1013
      %1039 = vmatpush.msra.mxu0 %v1012
      %1040 = vmatpush.msra.mxu0 %v1011
      %1041 = vmatpush.msra.mxu0 %v1010
      %1042 = vmatpush.msra.mxu0 %v1009
      %1043 = vmatpush.msra.mxu0 %v1008
      %1044 = vmatmul.f32.gmra.mxu0 %v1002
      %v1045 = vpop.f32.mrf.mxu0
      %v1046 = vadd.f32 %v1026, %v1045
      %1047 = vmatmul.f32.gmra.mxu0 %v1003
      %v1048 = vpop.f32.mrf.mxu0
      %v1049 = vadd.f32 %v1026, %v1048
      %1050 = vdwg.mxu0
      %vm1051 = vcmask 7168
      %1052 = vst.msk [vmem:[%s266] sm:$0xff] %vm1051, %v1046
      %1053 = vst.msk [vmem:[%s266 + $0x8] sm:$0xff] %vm1051, %v1049
      %p1054 = scmp.lt.s32.totalorder %s20, 1
      %s1055 = scalar_select %p1054, %s20, 1
      %s1056 = smul.addr %s1055, 2
      %s1057 = smul.addr %s1056, 4
      %s1058 = scalar_lea.vmem %s5, %s1057
      %p1059 = scmp.lt.s32.totalorder %s20, 1
      %s1060 = scalar_select %p1059, %s20, 1
      %s1061 = smul.addr %s1060, 2
      %s1062 = smul.addr %s1061, 8
      %s1063 = scalar_lea.vmem %s6, %s1062
      // Predicated region
      $region41: #{_lambda_.5} parent=39 // pred_check
        %p1064 = pneg %p148
      $region42: #{_lambda_.5} parent=39 // pred_check_branch
        %1066 = sbr.rel (%p1064) target = $region44
      $region43: #{_lambda_.5} parent=39 // pred_region
        _
      $region44: #{_lambda_.5} parent=39 // pred_fallthru
        _
      // Predicated region
      $region45: #{_lambda_.5} parent=39 // pred_check
        %p1067 = pneg %p174
      $region46: #{_lambda_.5} parent=39 // pred_check_branch
        %1069 = sbr.rel (%p1067) target = $region48
      $region47: #{_lambda_.5} parent=39 // pred_region
        _
      $region48: #{_lambda_.5} parent=39 // pred_fallthru
        _
    $region40: #{_lambda_.5} parent=5 // pred_fallthru
      _
    %p1070 = scmp.le.s32.totalorder 2, %s15
    // Predicated region
    $region49: #{_lambda_.5} parent=5 // pred_check
      %p1071 = pneg %p1070
    $region50: #{_lambda_.5} parent=5 // pred_check_branch
      %1073 = sbr.rel (%p1071) target = $region52
    $region51: #{_lambda_.5} parent=5 // pred_region
      %s1074 = ssub.s32 %s15, 2
      // Predicated region
      $region53: #{_lambda_.5} parent=51 // pred_check
        %p1075 = pneg %p154
      $region54: #{_lambda_.5} parent=51 // pred_check_branch
        %1077 = sbr.rel (%p1075) target = $region56
      $region55: #{_lambda_.5} parent=51 // pred_region
        %p1078 = scmp.lt.s32.totalorder %s21, 1
        %s1079 = scalar_select %p1078, %s21, 1
        %s1080 = smul.addr %s1079, 2
        %s1081 = smul.addr %s1080, 4
        %s1082 = scalar_lea.vmem %s5, %s1081
      $region56: #{_lambda_.5} parent=51 // pred_fallthru
        _
      // Predicated region
      $region57: #{_lambda_.5} parent=51 // pred_check
        %p1083 = pneg %p180
      $region58: #{_lambda_.5} parent=51 // pred_check_branch
        %1085 = sbr.rel (%p1083) target = $region60
      $region59: #{_lambda_.5} parent=51 // pred_region
        %p1086 = scmp.lt.s32.totalorder %s21, 1
        %s1087 = scalar_select %p1086, %s21, 1
        %s1088 = smul.addr %s1087, 2
        %s1089 = smul.addr %s1088, 8
        %s1090 = scalar_lea.vmem %s6, %s1089
      $region60: #{_lambda_.5} parent=51 // pred_fallthru
        _
    $region52: #{_lambda_.5} parent=5 // pred_fallthru
      _
  $region6: #{_lambda_.5} parent=0 // loop_footer
    %s19 = sadd.s32 1, %s15
  $region7: #{_lambda_.5} parent=0 // loop_footer_branch
    %14 = sbr.rel target = $region3
  $region8: #{_lambda_.5} parent=0 // loop_exit
    _

// kernel: _lambda_.6
$region0: #{_lambda_.6}
  #allocation0 [shape = 'u32[]', space=smem, size = 0x4, offset = 0x4, fixed_abs, tag = 'smem constant byte address 0x4 - core index']
  #allocation1 [shape = 'u32[72,128]{1,0:T(1,128)}', space=vmem, size = 0x9000, scoped, tag = 'internal scratch']
  #allocation2 [shape = 'bf16[1,5,5,256]{3,2,1,0:T(8,128)(2,1)}', space=vmem, size = 0x5000, scoped, tag = 'scratch operand']
  #allocation3 [shape = 'f32[1,1]{1,0:T(1,128)S(1)}', space=vmem, size = 0x200, scoped, tag = 'scoped memory for _lambda_.6']
  %s0 = inlined_call_operand.vmem [shape: bf16[2,4,4,128], index: 0, kind: input, shape index: {}, may-alias: {0,1}]
  %s1 = inlined_call_operand.vmem [shape: bf16[2,4,4,128], index: 1, kind: input, shape index: {}, may-alias: {0,1}]
  %s2 = inlined_call_operand.vmem [shape: bf16[3,3,256,64], index: 2, kind: input, shape index: {}]
  %s3 = inlined_call_operand.vmem [shape: f32[1,64], index: 3, kind: input, shape index: {}]
  %s4 = inlined_call_operand.vmem [shape: f32[64,1], index: 4, kind: input, shape index: {}]
  %s5 = inlined_call_operand.<no memory space> [shape: f32[1,1], index: 5, kind: input, shape index: {}]
  %s6 = inlined_call_operand.vmem [shape: bf16[2,2,2,16,64], index: 6, kind: output, shape index: {0}]
  %s7 = inlined_call_operand.vmem [shape: f32[2,2,2,16,1], index: 7, kind: output, shape index: {1}]
  %8 = xla_tuple %s6, %s7
  %s9 = sld [smem:[#allocation0]]
  $region65: #{_lambda_.6} parent=0
    _
  %s11 = ssub.s32 1, %s9
  %s12 = scalar_select 0, %s11, %s9
  %v13 = vstv %s5
  %14 = vst [vmem:[#allocation3] sm:$0x1] %v13
  loop: start=0, step=1, limit=4
  $region2: #{_lambda_.6} parent=0 // loop_pre_header
    _
  $region3: #{_lambda_.6} parent=0 // loop_header
    %s16 = sphi 0, %s20
    %p17 = scmp.ge.s32.totalorder %s16, 4
    %s26 = sphi 0, %s28
    %s29 = sphi 0, %s26
    %s30 = sphi 0, %s29
    %s46 = sphi 0, %s30
    %s52 = sphi 0, %s54
    %s55 = sphi 0, %s52
    %s56 = sphi 0, %s55
    %s72 = sphi 0, %s56
    %s76 = sphi 0, %s76
    %s78 = sphi 0, %s76
    %s79 = sphi 0, %s78
    %s93 = sphi 0, %s79
    %s97 = sphi 0, %s97
    %s99 = sphi 0, %s97
    %s100 = sphi 0, %s99
    %s114 = sphi 0, %s100
    %s118 = sphi 0, %s118
    %s120 = sphi 0, %s118
    %s121 = sphi 0, %s120
    %s135 = sphi 0, %s121
    %s139 = sphi 0, %s139
    %s141 = sphi 0, %s139
    %s142 = sphi 0, %s141
    %s156 = sphi 0, %s142
    %s162 = sphi 0, %s164
    %s165 = sphi 0, %s162
    %s166 = sphi 0, %s165
    %s182 = sphi 0, %s166
    %s188 = sphi 0, %s190
    %s191 = sphi 0, %s188
    %s192 = sphi 0, %s191
    %s208 = sphi 0, %s192
  $region4: #{_lambda_.6} parent=0 // loop_header_branch
    %19 = sbr.rel (%p17) target = $region8
  $region5: #{_lambda_.6} parent=0 // loop_body
    %s21 = ssub.s32 %s16, 1
    %s22 = ssub.s32 %s16, 2
    %s23 = sadd.s32 %s16, 1
    %s24 = ssub.s32 %s16, %s23
    %p25 = scmp.eq.s32.totalorder %s24, 0
    %s27 = sadd.s32 %s26, 1
    %s28 = scalar_select %p25, %s26, %s27
    %p31 = pneg %p25
    %p32 = scmp.eq.s32.totalorder %s16, 1
    %p33 = por %p31, %p32
    %p34 = scmp.ne.s32.totalorder %s26, %s29
    %p35 = scmp.eq.s32.totalorder %s16, 0
    %p36 = por %p34, %p35
    %p37 = scmp.ne.s32.totalorder %s26, %s29
    %p38 = scmp.eq.s32.totalorder %s21, 1
    %p39 = por %p37, %p38
    %p40 = scmp.ne.s32.totalorder %s29, %s30
    %p41 = scmp.eq.s32.totalorder %s21, 0
    %p42 = por %p40, %p41
    %p43 = scmp.ne.s32.totalorder %s29, %s30
    %p44 = scmp.eq.s32.totalorder %s22, 1
    %p45 = por %p43, %p44
    %p47 = scmp.ne.s32.totalorder %s30, %s46
    %p48 = scmp.eq.s32.totalorder %s22, 0
    %p49 = por %p47, %p48
    %s50 = ssub.s32 %s16, %s23
    %p51 = scmp.eq.s32.totalorder %s50, 0
    %s53 = sadd.s32 %s52, 1
    %s54 = scalar_select %p51, %s52, %s53
    %p57 = pneg %p51
    %p58 = scmp.eq.s32.totalorder %s16, 1
    %p59 = por %p57, %p58
    %p60 = scmp.ne.s32.totalorder %s52, %s55
    %p61 = scmp.eq.s32.totalorder %s16, 0
    %p62 = por %p60, %p61
    %p63 = scmp.ne.s32.totalorder %s52, %s55
    %p64 = scmp.eq.s32.totalorder %s21, 1
    %p65 = por %p63, %p64
    %p66 = scmp.ne.s32.totalorder %s55, %s56
    %p67 = scmp.eq.s32.totalorder %s21, 0
    %p68 = por %p66, %p67
    %p69 = scmp.ne.s32.totalorder %s55, %s56
    %p70 = scmp.eq.s32.totalorder %s22, 1
    %p71 = por %p69, %p70
    %p73 = scmp.ne.s32.totalorder %s56, %s72
    %p74 = scmp.eq.s32.totalorder %s22, 0
    %p75 = por %p73, %p74
    %s77 = sadd.s32 %s76, 1
    %p80 = scmp.eq.s32.totalorder %s16, 1
    %p81 = scmp.ne.s32.totalorder %s76, %s78
    %p82 = scmp.eq.s32.totalorder %s16, 0
    %p83 = por %p81, %p82
    %p84 = scmp.ne.s32.totalorder %s76, %s78
    %p85 = scmp.eq.s32.totalorder %s21, 1
    %p86 = por %p84, %p85
    %p87 = scmp.ne.s32.totalorder %s78, %s79
    %p88 = scmp.eq.s32.totalorder %s21, 0
    %p89 = por %p87, %p88
    %p90 = scmp.ne.s32.totalorder %s78, %s79
    %p91 = scmp.eq.s32.totalorder %s22, 1
    %p92 = por %p90, %p91
    %p94 = scmp.ne.s32.totalorder %s79, %s93
    %p95 = scmp.eq.s32.totalorder %s22, 0
    %p96 = por %p94, %p95
    %s98 = sadd.s32 %s97, 1
    %p101 = scmp.eq.s32.totalorder %s16, 1
    %p102 = scmp.ne.s32.totalorder %s97, %s99
    %p103 = scmp.eq.s32.totalorder %s16, 0
    %p104 = por %p102, %p103
    %p105 = scmp.ne.s32.totalorder %s97, %s99
    %p106 = scmp.eq.s32.totalorder %s21, 1
    %p107 = por %p105, %p106
    %p108 = scmp.ne.s32.totalorder %s99, %s100
    %p109 = scmp.eq.s32.totalorder %s21, 0
    %p110 = por %p108, %p109
    %p111 = scmp.ne.s32.totalorder %s99, %s100
    %p112 = scmp.eq.s32.totalorder %s22, 1
    %p113 = por %p111, %p112
    %p115 = scmp.ne.s32.totalorder %s100, %s114
    %p116 = scmp.eq.s32.totalorder %s22, 0
    %p117 = por %p115, %p116
    %s119 = sadd.s32 %s118, 1
    %p122 = scmp.eq.s32.totalorder %s16, 1
    %p123 = scmp.ne.s32.totalorder %s118, %s120
    %p124 = scmp.eq.s32.totalorder %s16, 0
    %p125 = por %p123, %p124
    %p126 = scmp.ne.s32.totalorder %s118, %s120
    %p127 = scmp.eq.s32.totalorder %s21, 1
    %p128 = por %p126, %p127
    %p129 = scmp.ne.s32.totalorder %s120, %s121
    %p130 = scmp.eq.s32.totalorder %s21, 0
    %p131 = por %p129, %p130
    %p132 = scmp.ne.s32.totalorder %s120, %s121
    %p133 = scmp.eq.s32.totalorder %s22, 1
    %p134 = por %p132, %p133
    %p136 = scmp.ne.s32.totalorder %s121, %s135
    %p137 = scmp.eq.s32.totalorder %s22, 0
    %p138 = por %p136, %p137
    %s140 = sadd.s32 %s139, 1
    %p143 = scmp.eq.s32.totalorder %s16, 1
    %p144 = scmp.ne.s32.totalorder %s139, %s141
    %p145 = scmp.eq.s32.totalorder %s16, 0
    %p146 = por %p144, %p145
    %p147 = scmp.ne.s32.totalorder %s139, %s141
    %p148 = scmp.eq.s32.totalorder %s21, 1
    %p149 = por %p147, %p148
    %p150 = scmp.ne.s32.totalorder %s141, %s142
    %p151 = scmp.eq.s32.totalorder %s21, 0
    %p152 = por %p150, %p151
    %p153 = scmp.ne.s32.totalorder %s141, %s142
    %p154 = scmp.eq.s32.totalorder %s22, 1
    %p155 = por %p153, %p154
    %p157 = scmp.ne.s32.totalorder %s142, %s156
    %p158 = scmp.eq.s32.totalorder %s22, 0
    %p159 = por %p157, %p158
    %s160 = ssub.s32 %s16, %s23
    %p161 = scmp.eq.s32.totalorder %s160, 0
    %s163 = sadd.s32 %s162, 1
    %s164 = scalar_select %p161, %s162, %s163
    %p167 = pneg %p161
    %p168 = scmp.eq.s32.totalorder %s16, 1
    %p169 = por %p167, %p168
    %p170 = scmp.ne.s32.totalorder %s162, %s165
    %p171 = scmp.eq.s32.totalorder %s16, 0
    %p172 = por %p170, %p171
    %p173 = scmp.ne.s32.totalorder %s162, %s165
    %p174 = scmp.eq.s32.totalorder %s21, 1
    %p175 = por %p173, %p174
    %p176 = scmp.ne.s32.totalorder %s165, %s166
    %p177 = scmp.eq.s32.totalorder %s21, 0
    %p178 = por %p176, %p177
    %p179 = scmp.ne.s32.totalorder %s165, %s166
    %p180 = scmp.eq.s32.totalorder %s22, 1
    %p181 = por %p179, %p180
    %p183 = scmp.ne.s32.totalorder %s166, %s182
    %p184 = scmp.eq.s32.totalorder %s22, 0
    %p185 = por %p183, %p184
    %s186 = ssub.s32 %s16, %s23
    %p187 = scmp.eq.s32.totalorder %s186, 0
    %s189 = sadd.s32 %s188, 1
    %s190 = scalar_select %p187, %s188, %s189
    %p193 = pneg %p187
    %p194 = scmp.eq.s32.totalorder %s16, 1
    %p195 = por %p193, %p194
    %p196 = scmp.ne.s32.totalorder %s188, %s191
    %p197 = scmp.eq.s32.totalorder %s16, 0
    %p198 = por %p196, %p197
    %p199 = scmp.ne.s32.totalorder %s188, %s191
    %p200 = scmp.eq.s32.totalorder %s21, 1
    %p201 = por %p199, %p200
    %p202 = scmp.ne.s32.totalorder %s191, %s192
    %p203 = scmp.eq.s32.totalorder %s21, 0
    %p204 = por %p202, %p203
    %p205 = scmp.ne.s32.totalorder %s191, %s192
    %p206 = scmp.eq.s32.totalorder %s22, 1
    %p207 = por %p205, %p206
    %p209 = scmp.ne.s32.totalorder %s192, %s208
    %p210 = scmp.eq.s32.totalorder %s22, 0
    %p211 = por %p209, %p210
    %p212 = scmp.le.s32.totalorder 1, %s16
    %p213 = scmp.lt.s32.totalorder %s16, 3
    %p214 = pnand %p212, %p213
    %p215 = pneg %p214
    // Predicated region
    $region9: #{_lambda_.6} parent=5 // pred_check
      _
    $region10: #{_lambda_.6} parent=5 // pred_check_branch
      %217 = sbr.rel (%p214) target = $region12
    $region11: #{_lambda_.6} parent=5 // pred_region
      %s218 = ssub.s32 %s16, 1
      // Predicated region
      $region13: #{_lambda_.6} parent=11 // pred_check
        %p219 = pneg %p89
      $region14: #{_lambda_.6} parent=11 // pred_check_branch
        %221 = sbr.rel (%p219) target = $region16
      $region15: #{_lambda_.6} parent=11 // pred_region
        _
      $region16: #{_lambda_.6} parent=11 // pred_fallthru
        _
      // Predicated region
      $region17: #{_lambda_.6} parent=11 // pred_check
        %p222 = pneg %p110
      $region18: #{_lambda_.6} parent=11 // pred_check_branch
        %224 = sbr.rel (%p222) target = $region20
      $region19: #{_lambda_.6} parent=11 // pred_region
        _
      $region20: #{_lambda_.6} parent=11 // pred_fallthru
        _
      // Predicated region
      $region21: #{_lambda_.6} parent=11 // pred_check
        %p225 = pneg %p131
      $region22: #{_lambda_.6} parent=11 // pred_check_branch
        %227 = sbr.rel (%p225) target = $region24
      $region23: #{_lambda_.6} parent=11 // pred_region
        _
      $region24: #{_lambda_.6} parent=11 // pred_fallthru
        _
      // Predicated region
      $region25: #{_lambda_.6} parent=11 // pred_check
        %p228 = pneg %p152
      $region26: #{_lambda_.6} parent=11 // pred_check_branch
        %230 = sbr.rel (%p228) target = $region28
      $region27: #{_lambda_.6} parent=11 // pred_region
        _
      $region28: #{_lambda_.6} parent=11 // pred_fallthru
        _
    $region12: #{_lambda_.6} parent=5 // pred_fallthru
      _
    %p231 = scmp.lt.s32.totalorder %s16, 2
    // Predicated region
    $region29: #{_lambda_.6} parent=5 // pred_check
      %p232 = pneg %p231
    $region30: #{_lambda_.6} parent=5 // pred_check_branch
      %234 = sbr.rel (%p232) target = $region32
    $region31: #{_lambda_.6} parent=5 // pred_region
      // Predicated region
      $region33: #{_lambda_.6} parent=31 // pred_check
        %p235 = pneg %p36
      $region34: #{_lambda_.6} parent=31 // pred_check_branch
        %237 = sbr.rel (%p235) target = $region36
      $region35: #{_lambda_.6} parent=31 // pred_region
        %p238 = scmp.lt.s32.totalorder %s16, 1
        %s239 = scalar_select %p238, %s16, 1
        %s240 = smul.addr %s239, 4
        %s241 = smul.addr %s240, 2
        %s242 = scalar_lea.vmem %s0, %s241
      $region36: #{_lambda_.6} parent=31 // pred_fallthru
        _
      // Predicated region
      $region37: #{_lambda_.6} parent=31 // pred_check
        %p243 = pneg %p62
      $region38: #{_lambda_.6} parent=31 // pred_check_branch
        %245 = sbr.rel (%p243) target = $region40
      $region39: #{_lambda_.6} parent=31 // pred_region
        %p246 = scmp.lt.s32.totalorder %s16, 1
        %s247 = scalar_select %p246, %s16, 1
        %s248 = smul.addr %s247, 4
        %s249 = smul.addr %s248, 2
        %s250 = scalar_lea.vmem %s1, %s249
      $region40: #{_lambda_.6} parent=31 // pred_fallthru
        _
    $region32: #{_lambda_.6} parent=5 // pred_fallthru
      _
    %p251 = scmp.le.s32.totalorder 1, %s16
    %p252 = scmp.lt.s32.totalorder %s16, 3
    %p253 = pnand %p251, %p252
    %p254 = pneg %p253
    // Predicated region
    $region41: #{_lambda_.6} parent=5 // pred_check
      _
    $region42: #{_lambda_.6} parent=5 // pred_check_branch
      %256 = sbr.rel (%p253) target = $region44
    $region43: #{_lambda_.6} parent=5 // pred_region
      %s257 = ssub.s32 %s16, 1
      %p258 = scmp.lt.s32.totalorder %s21, 1
      %s259 = scalar_select %p258, %s21, 1
      %s260 = smul.addr %s259, 4
      %s261 = smul.addr %s260, 2
      %s262 = scalar_lea.vmem %s0, %s261
      %p263 = pneg %p42
      %p264 = pneg %p39
      %p265 = scmp.lt.s32.totalorder %s21, 1
      %s266 = scalar_select %p265, %s21, 1
      %s267 = smul.addr %s266, 4
      %s268 = smul.addr %s267, 2
      %s269 = scalar_lea.vmem %s1, %s268
      %p270 = pneg %p68
      %p271 = pneg %p65
      %p272 = pneg %p89
      %p273 = pneg %p86
      %p274 = pneg %p110
      %p275 = pneg %p107
      %p276 = pneg %p131
      %p277 = pneg %p128
      %p278 = pneg %p152
      %p279 = pneg %p149
      %p280 = pneg %p178
      %p281 = pneg %p175
      %p282 = scmp.lt.s32.totalorder %s21, 1
      %s283 = scalar_select %p282, %s21, 1
      %s284 = smul.addr %s283, 8
      %s285 = smul.addr %s284, 4
      %s286 = scalar_lea.vmem %s6, %s285
      %p287 = pneg %p204
      %p288 = pneg %p201
      %p289 = scmp.lt.s32.totalorder %s21, 1
      %s290 = scalar_select %p289, %s21, 1
      %s291 = smul.addr %s290, 8
      %s292 = smul.addr %s291, 8
      %s293 = scalar_lea.vmem %s7, %s292
      %p294 = scmp.lt.s32.totalorder %s21, 1
      %s295 = scalar_select %p294, %s21, 1
      %s296 = smul.addr %s295, 4
      %s297 = smul.addr %s296, 2
      %s298 = scalar_lea.vmem %s0, %s297
      %p299 = scmp.lt.s32.totalorder %s21, 1
      %s300 = scalar_select %p299, %s21, 1
      %s301 = smul.addr %s300, 4
      %s302 = smul.addr %s301, 2
      %s303 = scalar_lea.vmem %s1, %s302
      %p304 = scmp.lt.s32.totalorder %s21, 1
      %s305 = scalar_select %p304, %s21, 1
      %s306 = smul.addr %s305, 8
      %s307 = smul.addr %s306, 4
      %s308 = scalar_lea.vmem %s6, %s307
      %p309 = scmp.lt.s32.totalorder %s21, 1
      %s310 = scalar_select %p309, %s21, 1
      %s311 = smul.addr %s310, 8
      %s312 = smul.addr %s311, 8
      %s313 = scalar_lea.vmem %s7, %s312
      %vm315 = vcmask 1042432
      %vm316 = vsmask.f32 2304
      %vm317 = vmand %vm315, %vm316
      %vm318 = vcmask 1046532
      %vm319 = vsmask.f32 6400
      %vm320 = vmand %vm318, %vm319
      %vm321 = vmor %vm320, %vm317
      %v322 = vld [vmem:[#allocation2] sm:$0x77]
      %v323 = vsel %vm321, 0, %v322
      %324 = vst [vmem:[#allocation2] sm:$0x77] %v323
      %v325 = vld [vmem:[#allocation2 + $0x8] sm:$0x77]
      %v326 = vsel %vm321, 0, %v325
      %327 = vst [vmem:[#allocation2 + $0x8] sm:$0x77] %v326
      %v328 = vld [vmem:[#allocation2 + $0x10] sm:$0x77]
      %v329 = vsel %vm321, 0, %v328
      %330 = vst [vmem:[#allocation2 + $0x10] sm:$0x77] %v329
      %v331 = vld [vmem:[#allocation2 + $0x18] sm:$0x77]
      %v332 = vsel %vm321, 0, %v331
      %333 = vst [vmem:[#allocation2 + $0x18] sm:$0x77] %v332
      %v334 = vld [vmem:[#allocation2 + $0x20] sm:$0x77]
      %v335 = vsel %vm321, 0, %v334
      %336 = vst [vmem:[#allocation2 + $0x20] sm:$0x77] %v335
      %v337 = vld [vmem:[%s298] sm:$0x3]
      %v338 = vld [vmem:[%s298 + $0x2] sm:$0x3]
      %v339 = vld [vmem:[%s298 + $0x4] sm:$0x3]
      %v340 = vld [vmem:[%s298 + $0x6] sm:$0x3]
      %341 = vst [vmem:[#allocation2] sm:$0x3] %v337
      %342 = vst [vmem:[#allocation2 + $0x8] sm:$0x3] %v338
      %343 = vst [vmem:[#allocation2 + $0x10] sm:$0x3] %v339
      %344 = vst [vmem:[#allocation2 + $0x18] sm:$0x3] %v340
      %v345 = vld [vmem:[%s303] sm:$0x3]
      %v346 = vld [vmem:[%s303 + $0x2] sm:$0x3]
      %v347 = vld [vmem:[%s303 + $0x4] sm:$0x3]
      %v348 = vld [vmem:[%s303 + $0x6] sm:$0x3]
      %349 = vst [vmem:[#allocation2 + $0x4] sm:$0x3] %v345
      %350 = vst [vmem:[#allocation2 + $0xc] sm:$0x3] %v346
      %351 = vst [vmem:[#allocation2 + $0x14] sm:$0x3] %v347
      %352 = vst [vmem:[#allocation2 + $0x1c] sm:$0x3] %v348
      %v353 = vld [vmem:[%s3] sm:$0x1]
      %v354 = vld [vmem:[%s4] sm:$0xff]
      %v355 = vld [vmem:[%s4 + $0x8] sm:$0xff]
      %v356 = vld [vmem:[%s4 + $0x10] sm:$0xff]
      %v357 = vld [vmem:[%s4 + $0x18] sm:$0xff]
      %v358 = vld [vmem:[%s4 + $0x20] sm:$0xff]
      %v359 = vld [vmem:[%s4 + $0x28] sm:$0xff]
      %v360 = vld [vmem:[%s4 + $0x30] sm:$0xff]
      %v361 = vld [vmem:[%s4 + $0x38] sm:$0xff]
      %v362 = vld [vmem:[#allocation3] sm:$0x1]
      %v363 = vld [vmem:[#allocation2] sm:$0x33]
      %v364 = vld [vmem:[#allocation2 + $0x8] sm:$0x33]
      %v365 = vld [vmem:[#allocation2 + $0x10] sm:$0x33]
      %v366 = vld [vmem:[#allocation2 + $0x18] sm:$0x33]
      %v371 = vrot.slane %v363, 2
      %v372 = vrot.slane %v364, 2
      %v373 = vrot.slane %v365, 2
      %v374 = vrot.slane %v366, 2
      %vm375 = vcmask 1041408
      %v378 = vsel %vm375, %v363, %v371
      %v381 = vsel %vm375, %v364, %v372
      %v384 = vsel %vm375, %v365, %v373
      %v387 = vsel %vm375, %v366, %v374
      %s388 = scalar_lea.vmem %s2, 512
      %v389 = vld [vmem:[%s388] sm:$0xf]
      %v390 = vld [vmem:[%s388 + $0x4] sm:$0xf]
      %v391 = vld [vmem:[%s388 + $0x8] sm:$0xf]
      %v392 = vld [vmem:[%s388 + $0xc] sm:$0xf]
      %v393 = vld [vmem:[%s388 + $0x10] sm:$0xf]
      %v394 = vld [vmem:[%s388 + $0x14] sm:$0xf]
      %v395 = vld [vmem:[%s388 + $0x18] sm:$0xf]
      %v396 = vld [vmem:[%s388 + $0x1c] sm:$0xf]
      %v397 = vld [vmem:[%s388 + $0x20] sm:$0xf]
      %v398 = vld [vmem:[%s388 + $0x24] sm:$0xf]
      %v399 = vld [vmem:[%s388 + $0x28] sm:$0xf]
      %v400 = vld [vmem:[%s388 + $0x2c] sm:$0xf]
      %v401 = vld [vmem:[%s388 + $0x30] sm:$0xf]
      %v402 = vld [vmem:[%s388 + $0x34] sm:$0xf]
      %v403 = vld [vmem:[%s388 + $0x38] sm:$0xf]
      %v404 = vld [vmem:[%s388 + $0x3c] sm:$0xf]
      %v405 = vld [vmem:[%s388 + $0x40] sm:$0xf]
      %v406 = vld [vmem:[%s388 + $0x44] sm:$0xf]
      %v407 = vld [vmem:[%s388 + $0x48] sm:$0xf]
      %v408 = vld [vmem:[%s388 + $0x4c] sm:$0xf]
      %v409 = vld [vmem:[%s388 + $0x50] sm:$0xf]
      %v410 = vld [vmem:[%s388 + $0x54] sm:$0xf]
      %v411 = vld [vmem:[%s388 + $0x58] sm:$0xf]
      %v412 = vld [vmem:[%s388 + $0x5c] sm:$0xf]
      %v413 = vld [vmem:[%s388 + $0x60] sm:$0xf]
      %v414 = vld [vmem:[%s388 + $0x64] sm:$0xf]
      %v415 = vld [vmem:[%s388 + $0x68] sm:$0xf]
      %v416 = vld [vmem:[%s388 + $0x6c] sm:$0xf]
      %v417 = vld [vmem:[%s388 + $0x70] sm:$0xf]
      %v418 = vld [vmem:[%s388 + $0x74] sm:$0xf]
      %v419 = vld [vmem:[%s388 + $0x78] sm:$0xf]
      %v420 = vld [vmem:[%s388 + $0x7c] sm:$0xf]
      %v422 = vperm.slane %v353, 0
      %424 = vst [vmem:[#allocation1] ss:$4 sm:$0xff] %v378
      %s425 = scalar_lea.vmem [#allocation1], 1
      %426 = vst [vmem:[%s425] ss:$4 sm:$0xff] %v381
      %s427 = scalar_lea.vmem [#allocation1], 2
      %428 = vst [vmem:[%s427] ss:$4 sm:$0xff] %v384
      %s429 = scalar_lea.vmem [#allocation1], 3
      %430 = vst [vmem:[%s429] ss:$4 sm:$0xff] %v387
      %v431 = vld.sshfl [vmem:[#allocation1] sm:$0xff pattern:$0x73625140]
      %v432 = vld.sshfl [vmem:[#allocation1 + $0x8] sm:$0xff pattern:$0x73625140]
      %v467 = vunpack.c.l.b16 %v389
      %v468 = vunpack.c.l.b16 %v390
      %v469 = vunpack.c.l.b16 %v391
      %v470 = vunpack.c.l.b16 %v392
      %v471 = vunpack.c.l.b16 %v393
      %v472 = vunpack.c.l.b16 %v394
      %v473 = vunpack.c.l.b16 %v395
      %v474 = vunpack.c.l.b16 %v396
      %v475 = vunpack.c.l.b16 %v397
      %v476 = vunpack.c.l.b16 %v398
      %v477 = vunpack.c.l.b16 %v399
      %v478 = vunpack.c.l.b16 %v400
      %v479 = vunpack.c.l.b16 %v401
      %v480 = vunpack.c.l.b16 %v402
      %v481 = vunpack.c.l.b16 %v403
      %v482 = vunpack.c.l.b16 %v404
      %v483 = vunpack.c.l.b16 %v405
      %v484 = vunpack.c.l.b16 %v406
      %v485 = vunpack.c.l.b16 %v407
      %v486 = vunpack.c.l.b16 %v408
      %v487 = vunpack.c.l.b16 %v409
      %v488 = vunpack.c.l.b16 %v410
      %v489 = vunpack.c.l.b16 %v411
      %v490 = vunpack.c.l.b16 %v412
      %v491 = vunpack.c.l.b16 %v413
      %v492 = vunpack.c.l.b16 %v414
      %v493 = vunpack.c.l.b16 %v415
      %v494 = vunpack.c.l.b16 %v416
      %v495 = vunpack.c.l.b16 %v417
      %v496 = vunpack.c.l.b16 %v418
      %v497 = vunpack.c.l.b16 %v419
      %v498 = vunpack.c.l.b16 %v420
      %v499 = vpack.c.b16 %v468, %v467
      %v500 = vpack.c.b16 %v470, %v469
      %v501 = vpack.c.b16 %v472, %v471
      %v502 = vpack.c.b16 %v474, %v473
      %v503 = vpack.c.b16 %v476, %v475
      %v504 = vpack.c.b16 %v478, %v477
      %v505 = vpack.c.b16 %v480, %v479
      %v506 = vpack.c.b16 %v482, %v481
      %v507 = vpack.c.b16 %v484, %v483
      %v508 = vpack.c.b16 %v486, %v485
      %v509 = vpack.c.b16 %v488, %v487
      %v510 = vpack.c.b16 %v490, %v489
      %v511 = vpack.c.b16 %v492, %v491
      %v512 = vpack.c.b16 %v494, %v493
      %v513 = vpack.c.b16 %v496, %v495
      %v514 = vpack.c.b16 %v498, %v497
      %531 = vmatpush.bf16.msra.mxu0 %v506
      %532 = vmatpush.bf16.msra.mxu0 %v505
      %533 = vmatpush.bf16.msra.mxu0 %v504
      %534 = vmatpush.bf16.msra.mxu0 %v503
      %535 = vmatpush.bf16.msra.mxu0 %v502
      %536 = vmatpush.bf16.msra.mxu0 %v501
      %537 = vmatpush.bf16.msra.mxu0 %v500
      %538 = vmatpush.bf16.msra.mxu0 %v499
      %539 = vmatmul.bf16.gmra.mxu0 %v431
      %v540 = vpop.f32.mrf.mxu0
      %v541 = vadd.f32 %v422, %v540
      %v542 = vpop.f32.mrf.mxu0
      %v543 = vadd.f32 %v422, %v542
      %544 = vdwg.mxu0
      %545 = vmatpush.bf16.msra.mxu0 %v514
      %546 = vmatpush.bf16.msra.mxu0 %v513
      %547 = vmatpush.bf16.msra.mxu0 %v512
      %548 = vmatpush.bf16.msra.mxu0 %v511
      %549 = vmatpush.bf16.msra.mxu0 %v510
      %550 = vmatpush.bf16.msra.mxu0 %v509
      %551 = vmatpush.bf16.msra.mxu0 %v508
      %552 = vmatpush.bf16.msra.mxu0 %v507
      %553 = vmatmul.bf16.gmra.mxu0 %v432
      %v554 = vpop.f32.mrf.mxu0
      %v555 = vadd.f32 %v541, %v554
      %v556 = vpop.f32.mrf.mxu0
      %v557 = vadd.f32 %v543, %v556
      %558 = vdwg.mxu0
      %vm559 = vcmp.ge.f32.partialorder %v555, 0.0
      %vm560 = vcmp.ge.f32.partialorder %v557, 0.0
      %v561 = vmul.f32 %v555, 0.2
      %v562 = vmul.f32 %v557, 0.2
      %v563 = vsel %vm559, %v555, %v561
      %v564 = vsel %vm560, %v557, %v562
      %v565 = vpack.c.bf16 %v563, %v563
      %v566 = vpack.c.bf16 %v564, %v564
      %vm567 = vcmask 519168
      %568 = vst.msk [vmem:[%s308] sm:$0xf] %vm567, %v565
      %569 = vst.msk [vmem:[%s308 + $0x4] sm:$0xf] %vm567, %v566
      %v571 = vperm.slane %v362, 0
      %vm573 = vcmask 523264
      %v575 = vsel %vm573, %v563, 0
      %v578 = vsel %vm573, %v564, 0
      %580 = vmatpush.msra.mxu0 0.0
      %581 = vmatpush.msra.mxu0 0.0
      %582 = vmatpush.msra.mxu0 0.0
      %583 = vmatpush.msra.mxu0 0.0
      %584 = vmatpush.msra.mxu0 0.0
      %585 = vmatpush.msra.mxu0 0.0
      %586 = vmatpush.msra.mxu0 0.0
      %587 = vmatpush.msra.mxu0 0.0
      %588 = vmatpush.msra.mxu0 %v361
      %589 = vmatpush.msra.mxu0 %v360
      %590 = vmatpush.msra.mxu0 %v359
      %591 = vmatpush.msra.mxu0 %v358
      %592 = vmatpush.msra.mxu0 %v357
      %593 = vmatpush.msra.mxu0 %v356
      %594 = vmatpush.msra.mxu0 %v355
      %595 = vmatpush.msra.mxu0 %v354
      %596 = vmatmul.f32.gmra.mxu0 %v575
      %v597 = vpop.f32.mrf.mxu0
      %v598 = vadd.f32 %v571, %v597
      %599 = vmatmul.f32.gmra.mxu0 %v578
      %v600 = vpop.f32.mrf.mxu0
      %v601 = vadd.f32 %v571, %v600
      %602 = vdwg.mxu0
      %vm603 = vcmask 7168
      %604 = vst.msk [vmem:[%s313] sm:$0xff] %vm603, %v598
      %605 = vst.msk [vmem:[%s313 + $0x8] sm:$0xff] %vm603, %v601
      %v606 = vld [vmem:[#allocation2] sm:$0x33]
      %v607 = vld [vmem:[#allocation2 + $0x8] sm:$0x33]
      %v608 = vld [vmem:[#allocation2 + $0x10] sm:$0x33]
      %v609 = vld [vmem:[#allocation2 + $0x18] sm:$0x33]
      %v614 = vrot.slane %v606, 2
      %v615 = vrot.slane %v607, 2
      %v616 = vrot.slane %v608, 2
      %v617 = vrot.slane %v609, 2
      %v620 = vsel %vm375, %v606, %v614
      %v623 = vsel %vm375, %v607, %v615
      %v626 = vsel %vm375, %v608, %v616
      %v629 = vsel %vm375, %v609, %v617
      %s630 = scalar_lea.vmem %s2, 640
      %v631 = vld [vmem:[%s630] sm:$0xf]
      %v632 = vld [vmem:[%s630 + $0x4] sm:$0xf]
      %v633 = vld [vmem:[%s630 + $0x8] sm:$0xf]
      %v634 = vld [vmem:[%s630 + $0xc] sm:$0xf]
      %v635 = vld [vmem:[%s630 + $0x10] sm:$0xf]
      %v636 = vld [vmem:[%s630 + $0x14] sm:$0xf]
      %v637 = vld [vmem:[%s630 + $0x18] sm:$0xf]
      %v638 = vld [vmem:[%s630 + $0x1c] sm:$0xf]
      %v639 = vld [vmem:[%s630 + $0x20] sm:$0xf]
      %v640 = vld [vmem:[%s630 + $0x24] sm:$0xf]
      %v641 = vld [vmem:[%s630 + $0x28] sm:$0xf]
      %v642 = vld [vmem:[%s630 + $0x2c] sm:$0xf]
      %v643 = vld [vmem:[%s630 + $0x30] sm:$0xf]
      %v644 = vld [vmem:[%s630 + $0x34] sm:$0xf]
      %v645 = vld [vmem:[%s630 + $0x38] sm:$0xf]
      %v646 = vld [vmem:[%s630 + $0x3c] sm:$0xf]
      %v647 = vld [vmem:[%s630 + $0x40] sm:$0xf]
      %v648 = vld [vmem:[%s630 + $0x44] sm:$0xf]
      %v649 = vld [vmem:[%s630 + $0x48] sm:$0xf]
      %v650 = vld [vmem:[%s630 + $0x4c] sm:$0xf]
      %v651 = vld [vmem:[%s630 + $0x50] sm:$0xf]
      %v652 = vld [vmem:[%s630 + $0x54] sm:$0xf]
      %v653 = vld [vmem:[%s630 + $0x58] sm:$0xf]
      %v654 = vld [vmem:[%s630 + $0x5c] sm:$0xf]
      %v655 = vld [vmem:[%s630 + $0x60] sm:$0xf]
      %v656 = vld [vmem:[%s630 + $0x64] sm:$0xf]
      %v657 = vld [vmem:[%s630 + $0x68] sm:$0xf]
      %v658 = vld [vmem:[%s630 + $0x6c] sm:$0xf]
      %v659 = vld [vmem:[%s630 + $0x70] sm:$0xf]
      %v660 = vld [vmem:[%s630 + $0x74] sm:$0xf]
      %v661 = vld [vmem:[%s630 + $0x78] sm:$0xf]
      %v662 = vld [vmem:[%s630 + $0x7c] sm:$0xf]
      %v663 = vld [vmem:[#allocation2] sm:$0x77]
      %v664 = vld [vmem:[#allocation2 + $0x8] sm:$0x77]
      %v665 = vld [vmem:[#allocation2 + $0x10] sm:$0x77]
      %v666 = vld [vmem:[#allocation2 + $0x18] sm:$0x77]
      %v671 = vrot.slane %v663, 2
      %v672 = vrot.slane %v664, 2
      %v673 = vrot.slane %v665, 2
      %v674 = vrot.slane %v666, 2
      %v677 = vsel %vm375, %v663, %v671
      %vm678 = vcmask 1043458
      %v679 = vsel %vm678, %v663, %v671
      %v681 = vrot.slane %v679, 2
      %v684 = vsel %vm375, %v664, %v672
      %v685 = vsel %vm678, %v664, %v672
      %v687 = vrot.slane %v685, 2
      %v690 = vsel %vm375, %v665, %v673
      %v691 = vsel %vm678, %v665, %v673
      %v693 = vrot.slane %v691, 2
      %v696 = vsel %vm375, %v666, %v674
      %v697 = vsel %vm678, %v666, %v674
      %v699 = vrot.slane %v697, 2
      %vm700 = vsmask.f32 1280
      %vm701 = vsmask.f32 3336
      %vm702 = vmor %vm700, %vm701
      %vm703 = vsmask.f32 5392
      %vm704 = vmor %vm702, %vm703
      %vm705 = vsmask.f32 7448
      %vm706 = vmor %vm704, %vm705
      %v707 = vshrl.u32 %v677, 16
      %v709 = vrot.slane %v707, 6
      %v710 = vshll.u32 %v677, 16
      %v712 = vrot.slane %v710, 7
      %v713 = vor.u32 %v709, %v712
      %v714 = vrot.slane %v713, 2
      %v716 = vshll.u32 %v681, 16
      %v718 = vrot.slane %v716, 7
      %v719 = vsel %vm706, %v714, %v718
      %v720 = vshrl.u32 %v684, 16
      %v722 = vrot.slane %v720, 6
      %v723 = vshll.u32 %v684, 16
      %v725 = vrot.slane %v723, 7
      %v726 = vor.u32 %v722, %v725
      %v727 = vrot.slane %v726, 2
      %v729 = vshll.u32 %v687, 16
      %v731 = vrot.slane %v729, 7
      %v732 = vsel %vm706, %v727, %v731
      %v733 = vshrl.u32 %v690, 16
      %v735 = vrot.slane %v733, 6
      %v736 = vshll.u32 %v690, 16
      %v738 = vrot.slane %v736, 7
      %v739 = vor.u32 %v735, %v738
      %v740 = vrot.slane %v739, 2
      %v742 = vshll.u32 %v693, 16
      %v744 = vrot.slane %v742, 7
      %v745 = vsel %vm706, %v740, %v744
      %v746 = vshrl.u32 %v696, 16
      %v748 = vrot.slane %v746, 6
      %v749 = vshll.u32 %v696, 16
      %v751 = vrot.slane %v749, 7
      %v752 = vor.u32 %v748, %v751
      %v753 = vrot.slane %v752, 2
      %v755 = vshll.u32 %v699, 16
      %v757 = vrot.slane %v755, 7
      %v758 = vsel %vm706, %v753, %v757
      %s759 = scalar_lea.vmem %s2, 384
      %v760 = vld [vmem:[%s759] sm:$0xf]
      %v761 = vld [vmem:[%s759 + $0x4] sm:$0xf]
      %v762 = vld [vmem:[%s759 + $0x8] sm:$0xf]
      %v763 = vld [vmem:[%s759 + $0xc] sm:$0xf]
      %v764 = vld [vmem:[%s759 + $0x10] sm:$0xf]
      %v765 = vld [vmem:[%s759 + $0x14] sm:$0xf]
      %v766 = vld [vmem:[%s759 + $0x18] sm:$0xf]
      %v767 = vld [vmem:[%s759 + $0x1c] sm:$0xf]
      %v768 = vld [vmem:[%s759 + $0x20] sm:$0xf]
      %v769 = vld [vmem:[%s759 + $0x24] sm:$0xf]
      %v770 = vld [vmem:[%s759 + $0x28] sm:$0xf]
      %v771 = vld [vmem:[%s759 + $0x2c] sm:$0xf]
      %v772 = vld [vmem:[%s759 + $0x30] sm:$0xf]
      %v773 = vld [vmem:[%s759 + $0x34] sm:$0xf]
      %v774 = vld [vmem:[%s759 + $0x38] sm:$0xf]
      %v775 = vld [vmem:[%s759 + $0x3c] sm:$0xf]
      %v776 = vld [vmem:[%s759 + $0x40] sm:$0xf]
      %v777 = vld [vmem:[%s759 + $0x44] sm:$0xf]
      %v778 = vld [vmem:[%s759 + $0x48] sm:$0xf]
      %v779 = vld [vmem:[%s759 + $0x4c] sm:$0xf]
      %v780 = vld [vmem:[%s759 + $0x50] sm:$0xf]
      %v781 = vld [vmem:[%s759 + $0x54] sm:$0xf]
      %v782 = vld [vmem:[%s759 + $0x58] sm:$0xf]
      %v783 = vld [vmem:[%s759 + $0x5c] sm:$0xf]
      %v784 = vld [vmem:[%s759 + $0x60] sm:$0xf]
      %v785 = vld [vmem:[%s759 + $0x64] sm:$0xf]
      %v786 = vld [vmem:[%s759 + $0x68] sm:$0xf]
      %v787 = vld [vmem:[%s759 + $0x6c] sm:$0xf]
      %v788 = vld [vmem:[%s759 + $0x70] sm:$0xf]
      %v789 = vld [vmem:[%s759 + $0x74] sm:$0xf]
      %v790 = vld [vmem:[%s759 + $0x78] sm:$0xf]
      %v791 = vld [vmem:[%s759 + $0x7c] sm:$0xf]
      %793 = vst [vmem:[#allocation1] ss:$4 sm:$0xff] %v719
      %s795 = scalar_lea.vmem [#allocation1], 1
      %796 = vst [vmem:[%s795] ss:$4 sm:$0xff] %v732
      %s798 = scalar_lea.vmem [#allocation1], 2
      %799 = vst [vmem:[%s798] ss:$4 sm:$0xff] %v745
      %s801 = scalar_lea.vmem [#allocation1], 3
      %802 = vst [vmem:[%s801] ss:$4 sm:$0xff] %v758
      %v803 = vld.sshfl [vmem:[#allocation1] sm:$0xff pattern:$0x73625140]
      %v804 = vld.sshfl [vmem:[#allocation1 + $0x8] sm:$0xff pattern:$0x73625140]
      %v839 = vunpack.c.l.b16 %v760
      %v840 = vunpack.c.l.b16 %v761
      %v841 = vunpack.c.l.b16 %v762
      %v842 = vunpack.c.l.b16 %v763
      %v843 = vunpack.c.l.b16 %v764
      %v844 = vunpack.c.l.b16 %v765
      %v845 = vunpack.c.l.b16 %v766
      %v846 = vunpack.c.l.b16 %v767
      %v847 = vunpack.c.l.b16 %v768
      %v848 = vunpack.c.l.b16 %v769
      %v849 = vunpack.c.l.b16 %v770
      %v850 = vunpack.c.l.b16 %v771
      %v851 = vunpack.c.l.b16 %v772
      %v852 = vunpack.c.l.b16 %v773
      %v853 = vunpack.c.l.b16 %v774
      %v854 = vunpack.c.l.b16 %v775
      %v855 = vunpack.c.l.b16 %v776
      %v856 = vunpack.c.l.b16 %v777
      %v857 = vunpack.c.l.b16 %v778
      %v858 = vunpack.c.l.b16 %v779
      %v859 = vunpack.c.l.b16 %v780
      %v860 = vunpack.c.l.b16 %v781
      %v861 = vunpack.c.l.b16 %v782
      %v862 = vunpack.c.l.b16 %v783
      %v863 = vunpack.c.l.b16 %v784
      %v864 = vunpack.c.l.b16 %v785
      %v865 = vunpack.c.l.b16 %v786
      %v866 = vunpack.c.l.b16 %v787
      %v867 = vunpack.c.l.b16 %v788
      %v868 = vunpack.c.l.b16 %v789
      %v869 = vunpack.c.l.b16 %v790
      %v870 = vunpack.c.l.b16 %v791
      %v871 = vpack.c.b16 %v840, %v839
      %v872 = vpack.c.b16 %v842, %v841
      %v873 = vpack.c.b16 %v844, %v843
      %v874 = vpack.c.b16 %v846, %v845
      %v875 = vpack.c.b16 %v848, %v847
      %v876 = vpack.c.b16 %v850, %v849
      %v877 = vpack.c.b16 %v852, %v851
      %v878 = vpack.c.b16 %v854, %v853
      %v879 = vpack.c.b16 %v856, %v855
      %v880 = vpack.c.b16 %v858, %v857
      %v881 = vpack.c.b16 %v860, %v859
      %v882 = vpack.c.b16 %v862, %v861
      %v883 = vpack.c.b16 %v864, %v863
      %v884 = vpack.c.b16 %v866, %v865
      %v885 = vpack.c.b16 %v868, %v867
      %v886 = vpack.c.b16 %v870, %v869
      %903 = vmatpush.bf16.msra.mxu0 %v878
      %904 = vmatpush.bf16.msra.mxu0 %v877
      %905 = vmatpush.bf16.msra.mxu0 %v876
      %906 = vmatpush.bf16.msra.mxu0 %v875
      %907 = vmatpush.bf16.msra.mxu0 %v874
      %908 = vmatpush.bf16.msra.mxu0 %v873
      %909 = vmatpush.bf16.msra.mxu0 %v872
      %910 = vmatpush.bf16.msra.mxu0 %v871
      %911 = vmatmul.bf16.gmra.mxu0 %v803
      %v912 = vpop.f32.mrf.mxu0
      %v913 = vadd.f32 0.0, %v912
      %v914 = vpop.f32.mrf.mxu0
      %v915 = vadd.f32 0.0, %v914
      %916 = vdwg.mxu0
      %917 = vmatpush.bf16.msra.mxu0 %v886
      %918 = vmatpush.bf16.msra.mxu0 %v885
      %919 = vmatpush.bf16.msra.mxu0 %v884
      %920 = vmatpush.bf16.msra.mxu0 %v883
      %921 = vmatpush.bf16.msra.mxu0 %v882
      %922 = vmatpush.bf16.msra.mxu0 %v881
      %923 = vmatpush.bf16.msra.mxu0 %v880
      %924 = vmatpush.bf16.msra.mxu0 %v879
      %925 = vmatmul.bf16.gmra.mxu0 %v804
      %v926 = vpop.f32.mrf.mxu0
      %v927 = vadd.f32 %v913, %v926
      %v928 = vpop.f32.mrf.mxu0
      %v929 = vadd.f32 %v915, %v928
      %930 = vdwg.mxu0
      %931 = vst [vmem:[#allocation1] ss:$4 sm:$0xff] %v620
      %s932 = scalar_lea.vmem [#allocation1], 1
      %933 = vst [vmem:[%s932] ss:$4 sm:$0xff] %v623
      %s934 = scalar_lea.vmem [#allocation1], 2
      %935 = vst [vmem:[%s934] ss:$4 sm:$0xff] %v626
      %s936 = scalar_lea.vmem [#allocation1], 3
      %937 = vst [vmem:[%s936] ss:$4 sm:$0xff] %v629
      %v938 = vld.sshfl [vmem:[#allocation1] sm:$0xff pattern:$0x73625140]
      %v939 = vld.sshfl [vmem:[#allocation1 + $0x8] sm:$0xff pattern:$0x73625140]
      %v974 = vunpack.c.l.b16 %v631
      %v975 = vunpack.c.l.b16 %v632
      %v976 = vunpack.c.l.b16 %v633
      %v977 = vunpack.c.l.b16 %v634
      %v978 = vunpack.c.l.b16 %v635
      %v979 = vunpack.c.l.b16 %v636
      %v980 = vunpack.c.l.b16 %v637
      %v981 = vunpack.c.l.b16 %v638
      %v982 = vunpack.c.l.b16 %v639
      %v983 = vunpack.c.l.b16 %v640
      %v984 = vunpack.c.l.b16 %v641
      %v985 = vunpack.c.l.b16 %v642
      %v986 = vunpack.c.l.b16 %v643
      %v987 = vunpack.c.l.b16 %v644
      %v988 = vunpack.c.l.b16 %v645
      %v989 = vunpack.c.l.b16 %v646
      %v990 = vunpack.c.l.b16 %v647
      %v991 = vunpack.c.l.b16 %v648
      %v992 = vunpack.c.l.b16 %v649
      %v993 = vunpack.c.l.b16 %v650
      %v994 = vunpack.c.l.b16 %v651
      %v995 = vunpack.c.l.b16 %v652
      %v996 = vunpack.c.l.b16 %v653
      %v997 = vunpack.c.l.b16 %v654
      %v998 = vunpack.c.l.b16 %v655
      %v999 = vunpack.c.l.b16 %v656
      %v1000 = vunpack.c.l.b16 %v657
      %v1001 = vunpack.c.l.b16 %v658
      %v1002 = vunpack.c.l.b16 %v659
      %v1003 = vunpack.c.l.b16 %v660
      %v1004 = vunpack.c.l.b16 %v661
      %v1005 = vunpack.c.l.b16 %v662
      %v1006 = vpack.c.b16 %v975, %v974
      %v1007 = vpack.c.b16 %v977, %v976
      %v1008 = vpack.c.b16 %v979, %v978
      %v1009 = vpack.c.b16 %v981, %v980
      %v1010 = vpack.c.b16 %v983, %v982
      %v1011 = vpack.c.b16 %v985, %v984
      %v1012 = vpack.c.b16 %v987, %v986
      %v1013 = vpack.c.b16 %v989, %v988
      %v1014 = vpack.c.b16 %v991, %v990
      %v1015 = vpack.c.b16 %v993, %v992
      %v1016 = vpack.c.b16 %v995, %v994
      %v1017 = vpack.c.b16 %v997, %v996
      %v1018 = vpack.c.b16 %v999, %v998
      %v1019 = vpack.c.b16 %v1001, %v1000
      %v1020 = vpack.c.b16 %v1003, %v1002
      %v1021 = vpack.c.b16 %v1005, %v1004
      %1038 = vmatpush.bf16.msra.mxu0 %v1013
      %1039 = vmatpush.bf16.msra.mxu0 %v1012
      %1040 = vmatpush.bf16.msra.mxu0 %v1011
      %1041 = vmatpush.bf16.msra.mxu0 %v1010
      %1042 = vmatpush.bf16.msra.mxu0 %v1009
      %1043 = vmatpush.bf16.msra.mxu0 %v1008
      %1044 = vmatpush.bf16.msra.mxu0 %v1007
      %1045 = vmatpush.bf16.msra.mxu0 %v1006
      %1046 = vmatmul.bf16.gmra.mxu0 %v938
      %v1047 = vpop.f32.mrf.mxu0
      %v1048 = vadd.f32 %v927, %v1047
      %v1049 = vpop.f32.mrf.mxu0
      %v1050 = vadd.f32 %v929, %v1049
      %1051 = vdwg.mxu0
      %1052 = vmatpush.bf16.msra.mxu0 %v1021
      %1053 = vmatpush.bf16.msra.mxu0 %v1020
      %1054 = vmatpush.bf16.msra.mxu0 %v1019
      %1055 = vmatpush.bf16.msra.mxu0 %v1018
      %1056 = vmatpush.bf16.msra.mxu0 %v1017
      %1057 = vmatpush.bf16.msra.mxu0 %v1016
      %1058 = vmatpush.bf16.msra.mxu0 %v1015
      %1059 = vmatpush.bf16.msra.mxu0 %v1014
      %1060 = vmatmul.bf16.gmra.mxu0 %v939
      %v1061 = vpop.f32.mrf.mxu0
      %v1062 = vadd.f32 %v1048, %v1061
      %v1063 = vpop.f32.mrf.mxu0
      %v1064 = vadd.f32 %v1050, %v1063
      %1065 = vdwg.mxu0
      %v1066 = vadd.f32 %v1062, %v422
      %v1067 = vadd.f32 %v1064, %v422
      %vm1068 = vcmp.ge.f32.partialorder %v1066, 0.0
      %vm1069 = vcmp.ge.f32.partialorder %v1067, 0.0
      %v1070 = vmul.f32 %v1066, 0.2
      %v1071 = vmul.f32 %v1067, 0.2
      %v1072 = vsel %vm1068, %v1066, %v1070
      %v1073 = vsel %vm1069, %v1067, %v1071
      %v1074 = vpack.c.bf16 %v1072, %v1072
      %v1075 = vpack.c.bf16 %v1073, %v1073
      %s1076 = scalar_lea.vmem %s308, 8
      %1077 = vst.msk [vmem:[%s1076] sm:$0xf] %vm567, %v1074
      %1078 = vst.msk [vmem:[%s1076 + $0x4] sm:$0xf] %vm567, %v1075
      %v1080 = vsel %vm573, %v1072, 0
      %v1083 = vsel %vm573, %v1073, 0
      %1085 = vmatpush.msra.mxu0 0.0
      %1086 = vmatpush.msra.mxu0 0.0
      %1087 = vmatpush.msra.mxu0 0.0
      %1088 = vmatpush.msra.mxu0 0.0
      %1089 = vmatpush.msra.mxu0 0.0
      %1090 = vmatpush.msra.mxu0 0.0
      %1091 = vmatpush.msra.mxu0 0.0
      %1092 = vmatpush.msra.mxu0 0.0
      %1093 = vmatpush.msra.mxu0 %v361
      %1094 = vmatpush.msra.mxu0 %v360
      %1095 = vmatpush.msra.mxu0 %v359
      %1096 = vmatpush.msra.mxu0 %v358
      %1097 = vmatpush.msra.mxu0 %v357
      %1098 = vmatpush.msra.mxu0 %v356
      %1099 = vmatpush.msra.mxu0 %v355
      %1100 = vmatpush.msra.mxu0 %v354
      %1101 = vmatmul.f32.gmra.mxu0 %v1080
      %v1102 = vpop.f32.mrf.mxu0
      %v1103 = vadd.f32 %v571, %v1102
      %1104 = vmatmul.f32.gmra.mxu0 %v1083
      %v1105 = vpop.f32.mrf.mxu0
      %v1106 = vadd.f32 %v571, %v1105
      %1107 = vdwg.mxu0
      %s1108 = scalar_lea.vmem %s313, 16
      %1109 = vst.msk [vmem:[%s1108] sm:$0xff] %vm603, %v1103
      %1110 = vst.msk [vmem:[%s1108 + $0x8] sm:$0xff] %vm603, %v1106
      %v1111 = vld [vmem:[#allocation2] sm:$0x33]
      %v1112 = vld [vmem:[#allocation2 + $0x8] sm:$0x33]
      %v1113 = vld [vmem:[#allocation2 + $0x10] sm:$0x33]
      %v1114 = vld [vmem:[#allocation2 + $0x18] sm:$0x33]
      %v1119 = vrot.slane %v1111, 2
      %v1120 = vrot.slane %v1112, 2
      %v1121 = vrot.slane %v1113, 2
      %v1122 = vrot.slane %v1114, 2
      %v1125 = vsel %vm375, %v1111, %v1119
      %v1128 = vsel %vm375, %v1112, %v1120
      %v1131 = vsel %vm375, %v1113, %v1121
      %v1134 = vsel %vm375, %v1114, %v1122
      %s1135 = scalar_lea.vmem %s2, 896
      %v1136 = vld [vmem:[%s1135] sm:$0xf]
      %v1137 = vld [vmem:[%s1135 + $0x4] sm:$0xf]
      %v1138 = vld [vmem:[%s1135 + $0x8] sm:$0xf]
      %v1139 = vld [vmem:[%s1135 + $0xc] sm:$0xf]
      %v1140 = vld [vmem:[%s1135 + $0x10] sm:$0xf]
      %v1141 = vld [vmem:[%s1135 + $0x14] sm:$0xf]
      %v1142 = vld [vmem:[%s1135 + $0x18] sm:$0xf]
      %v1143 = vld [vmem:[%s1135 + $0x1c] sm:$0xf]
      %v1144 = vld [vmem:[%s1135 + $0x20] sm:$0xf]
      %v1145 = vld [vmem:[%s1135 + $0x24] sm:$0xf]
      %v1146 = vld [vmem:[%s1135 + $0x28] sm:$0xf]
      %v1147 = vld [vmem:[%s1135 + $0x2c] sm:$0xf]
      %v1148 = vld [vmem:[%s1135 + $0x30] sm:$0xf]
      %v1149 = vld [vmem:[%s1135 + $0x34] sm:$0xf]
      %v1150 = vld [vmem:[%s1135 + $0x38] sm:$0xf]
      %v1151 = vld [vmem:[%s1135 + $0x3c] sm:$0xf]
      %v1152 = vld [vmem:[%s1135 + $0x40] sm:$0xf]
      %v1153 = vld [vmem:[%s1135 + $0x44] sm:$0xf]
      %v1154 = vld [vmem:[%s1135 + $0x48] sm:$0xf]
      %v1155 = vld [vmem:[%s1135 + $0x4c] sm:$0xf]
      %v1156 = vld [vmem:[%s1135 + $0x50] sm:$0xf]
      %v1157 = vld [vmem:[%s1135 + $0x54] sm:$0xf]
      %v1158 = vld [vmem:[%s1135 + $0x58] sm:$0xf]
      %v1159 = vld [vmem:[%s1135 + $0x5c] sm:$0xf]
      %v1160 = vld [vmem:[%s1135 + $0x60] sm:$0xf]
      %v1161 = vld [vmem:[%s1135 + $0x64] sm:$0xf]
      %v1162 = vld [vmem:[%s1135 + $0x68] sm:$0xf]
      %v1163 = vld [vmem:[%s1135 + $0x6c] sm:$0xf]
      %v1164 = vld [vmem:[%s1135 + $0x70] sm:$0xf]
      %v1165 = vld [vmem:[%s1135 + $0x74] sm:$0xf]
      %v1166 = vld [vmem:[%s1135 + $0x78] sm:$0xf]
      %v1167 = vld [vmem:[%s1135 + $0x7c] sm:$0xf]
      %s1168 = scalar_lea.vmem [#allocation2], 8
      %v1169 = vld [vmem:[%s1168] sm:$0x33]
      %v1170 = vld [vmem:[%s1168 + $0x8] sm:$0x33]
      %v1171 = vld [vmem:[%s1168 + $0x10] sm:$0x33]
      %v1172 = vld [vmem:[%s1168 + $0x18] sm:$0x33]
      %v1177 = vrot.slane %v1169, 2
      %v1178 = vrot.slane %v1170, 2
      %v1179 = vrot.slane %v1171, 2
      %v1180 = vrot.slane %v1172, 2
      %v1183 = vsel %vm375, %v1169, %v1177
      %v1186 = vsel %vm375, %v1170, %v1178
      %v1189 = vsel %vm375, %v1171, %v1179
      %v1192 = vsel %vm375, %v1172, %v1180
      %s1193 = scalar_lea.vmem %s2, 128
      %v1194 = vld [vmem:[%s1193] sm:$0xf]
      %v1195 = vld [vmem:[%s1193 + $0x4] sm:$0xf]
      %v1196 = vld [vmem:[%s1193 + $0x8] sm:$0xf]
      %v1197 = vld [vmem:[%s1193 + $0xc] sm:$0xf]
      %v1198 = vld [vmem:[%s1193 + $0x10] sm:$0xf]
      %v1199 = vld [vmem:[%s1193 + $0x14] sm:$0xf]
      %v1200 = vld [vmem:[%s1193 + $0x18] sm:$0xf]
      %v1201 = vld [vmem:[%s1193 + $0x1c] sm:$0xf]
      %v1202 = vld [vmem:[%s1193 + $0x20] sm:$0xf]
      %v1203 = vld [vmem:[%s1193 + $0x24] sm:$0xf]
      %v1204 = vld [vmem:[%s1193 + $0x28] sm:$0xf]
      %v1205 = vld [vmem:[%s1193 + $0x2c] sm:$0xf]
      %v1206 = vld [vmem:[%s1193 + $0x30] sm:$0xf]
      %v1207 = vld [vmem:[%s1193 + $0x34] sm:$0xf]
      %v1208 = vld [vmem:[%s1193 + $0x38] sm:$0xf]
      %v1209 = vld [vmem:[%s1193 + $0x3c] sm:$0xf]
      %v1210 = vld [vmem:[%s1193 + $0x40] sm:$0xf]
      %v1211 = vld [vmem:[%s1193 + $0x44] sm:$0xf]
      %v1212 = vld [vmem:[%s1193 + $0x48] sm:$0xf]
      %v1213 = vld [vmem:[%s1193 + $0x4c] sm:$0xf]
      %v1214 = vld [vmem:[%s1193 + $0x50] sm:$0xf]
      %v1215 = vld [vmem:[%s1193 + $0x54] sm:$0xf]
      %v1216 = vld [vmem:[%s1193 + $0x58] sm:$0xf]
      %v1217 = vld [vmem:[%s1193 + $0x5c] sm:$0xf]
      %v1218 = vld [vmem:[%s1193 + $0x60] sm:$0xf]
      %v1219 = vld [vmem:[%s1193 + $0x64] sm:$0xf]
      %v1220 = vld [vmem:[%s1193 + $0x68] sm:$0xf]
      %v1221 = vld [vmem:[%s1193 + $0x6c] sm:$0xf]
      %v1222 = vld [vmem:[%s1193 + $0x70] sm:$0xf]
      %v1223 = vld [vmem:[%s1193 + $0x74] sm:$0xf]
      %v1224 = vld [vmem:[%s1193 + $0x78] sm:$0xf]
      %v1225 = vld [vmem:[%s1193 + $0x7c] sm:$0xf]
      %1226 = vst [vmem:[#allocation1] ss:$4 sm:$0xff] %v1183
      %s1227 = scalar_lea.vmem [#allocation1], 1
      %1228 = vst [vmem:[%s1227] ss:$4 sm:$0xff] %v1186
      %s1229 = scalar_lea.vmem [#allocation1], 2
      %1230 = vst [vmem:[%s1229] ss:$4 sm:$0xff] %v1189
      %s1231 = scalar_lea.vmem [#allocation1], 3
      %1232 = vst [vmem:[%s1231] ss:$4 sm:$0xff] %v1192
      %v1233 = vld.sshfl [vmem:[#allocation1] sm:$0xff pattern:$0x73625140]
      %v1234 = vld.sshfl [vmem:[#allocation1 + $0x8] sm:$0xff pattern:$0x73625140]
      %v1269 = vunpack.c.l.b16 %v1194
      %v1270 = vunpack.c.l.b16 %v1195
      %v1271 = vunpack.c.l.b16 %v1196
      %v1272 = vunpack.c.l.b16 %v1197
      %v1273 = vunpack.c.l.b16 %v1198
      %v1274 = vunpack.c.l.b16 %v1199
      %v1275 = vunpack.c.l.b16 %v1200
      %v1276 = vunpack.c.l.b16 %v1201
      %v1277 = vunpack.c.l.b16 %v1202
      %v1278 = vunpack.c.l.b16 %v1203
      %v1279 = vunpack.c.l.b16 %v1204
      %v1280 = vunpack.c.l.b16 %v1205
      %v1281 = vunpack.c.l.b16 %v1206
      %v1282 = vunpack.c.l.b16 %v1207
      %v1283 = vunpack.c.l.b16 %v1208
      %v1284 = vunpack.c.l.b16 %v1209
      %v1285 = vunpack.c.l.b16 %v1210
      %v1286 = vunpack.c.l.b16 %v1211
      %v1287 = vunpack.c.l.b16 %v1212
      %v1288 = vunpack.c.l.b16 %v1213
      %v1289 = vunpack.c.l.b16 %v1214
      %v1290 = vunpack.c.l.b16 %v1215
      %v1291 = vunpack.c.l.b16 %v1216
      %v1292 = vunpack.c.l.b16 %v1217
      %v1293 = vunpack.c.l.b16 %v1218
      %v1294 = vunpack.c.l.b16 %v1219
      %v1295 = vunpack.c.l.b16 %v1220
      %v1296 = vunpack.c.l.b16 %v1221
      %v1297 = vunpack.c.l.b16 %v1222
      %v1298 = vunpack.c.l.b16 %v1223
      %v1299 = vunpack.c.l.b16 %v1224
      %v1300 = vunpack.c.l.b16 %v1225
      %v1301 = vpack.c.b16 %v1270, %v1269
      %v1302 = vpack.c.b16 %v1272, %v1271
      %v1303 = vpack.c.b16 %v1274, %v1273
      %v1304 = vpack.c.b16 %v1276, %v1275
      %v1305 = vpack.c.b16 %v1278, %v1277
      %v1306 = vpack.c.b16 %v1280, %v1279
      %v1307 = vpack.c.b16 %v1282, %v1281
      %v1308 = vpack.c.b16 %v1284, %v1283
      %v1309 = vpack.c.b16 %v1286, %v1285
      %v1310 = vpack.c.b16 %v1288, %v1287
      %v1311 = vpack.c.b16 %v1290, %v1289
      %v1312 = vpack.c.b16 %v1292, %v1291
      %v1313 = vpack.c.b16 %v1294, %v1293
      %v1314 = vpack.c.b16 %v1296, %v1295
      %v1315 = vpack.c.b16 %v1298, %v1297
      %v1316 = vpack.c.b16 %v1300, %v1299
      %1333 = vmatpush.bf16.msra.mxu0 %v1308
      %1334 = vmatpush.bf16.msra.mxu0 %v1307
      %1335 = vmatpush.bf16.msra.mxu0 %v1306
      %1336 = vmatpush.bf16.msra.mxu0 %v1305
      %1337 = vmatpush.bf16.msra.mxu0 %v1304
      %1338 = vmatpush.bf16.msra.mxu0 %v1303
      %1339 = vmatpush.bf16.msra.mxu0 %v1302
      %1340 = vmatpush.bf16.msra.mxu0 %v1301
      %1341 = vmatmul.bf16.gmra.mxu0 %v1233
      %v1342 = vpop.f32.mrf.mxu0
      %v1343 = vadd.f32 0.0, %v1342
      %v1344 = vpop.f32.mrf.mxu0
      %v1345 = vadd.f32 0.0, %v1344
      %1346 = vdwg.mxu0
      %1347 = vmatpush.bf16.msra.mxu0 %v1316
      %1348 = vmatpush.bf16.msra.mxu0 %v1315
      %1349 = vmatpush.bf16.msra.mxu0 %v1314
      %1350 = vmatpush.bf16.msra.mxu0 %v1313
      %1351 = vmatpush.bf16.msra.mxu0 %v1312
      %1352 = vmatpush.bf16.msra.mxu0 %v1311
      %1353 = vmatpush.bf16.msra.mxu0 %v1310
      %1354 = vmatpush.bf16.msra.mxu0 %v1309
      %1355 = vmatmul.bf16.gmra.mxu0 %v1234
      %v1356 = vpop.f32.mrf.mxu0
      %v1357 = vadd.f32 %v1343, %v1356
      %v1358 = vpop.f32.mrf.mxu0
      %v1359 = vadd.f32 %v1345, %v1358
      %1360 = vdwg.mxu0
      %1361 = vst [vmem:[#allocation1] ss:$4 sm:$0xff] %v1125
      %s1362 = scalar_lea.vmem [#allocation1], 1
      %1363 = vst [vmem:[%s1362] ss:$4 sm:$0xff] %v1128
      %s1364 = scalar_lea.vmem [#allocation1], 2
      %1365 = vst [vmem:[%s1364] ss:$4 sm:$0xff] %v1131
      %s1366 = scalar_lea.vmem [#allocation1], 3
      %1367 = vst [vmem:[%s1366] ss:$4 sm:$0xff] %v1134
      %v1368 = vld.sshfl [vmem:[#allocation1] sm:$0xff pattern:$0x73625140]
      %v1369 = vld.sshfl [vmem:[#allocation1 + $0x8] sm:$0xff pattern:$0x73625140]
      %v1404 = vunpack.c.l.b16 %v1136
      %v1405 = vunpack.c.l.b16 %v1137
      %v1406 = vunpack.c.l.b16 %v1138
      %v1407 = vunpack.c.l.b16 %v1139
      %v1408 = vunpack.c.l.b16 %v1140
      %v1409 = vunpack.c.l.b16 %v1141
      %v1410 = vunpack.c.l.b16 %v1142
      %v1411 = vunpack.c.l.b16 %v1143
      %v1412 = vunpack.c.l.b16 %v1144
      %v1413 = vunpack.c.l.b16 %v1145
      %v1414 = vunpack.c.l.b16 %v1146
      %v1415 = vunpack.c.l.b16 %v1147
      %v1416 = vunpack.c.l.b16 %v1148
      %v1417 = vunpack.c.l.b16 %v1149
      %v1418 = vunpack.c.l.b16 %v1150
      %v1419 = vunpack.c.l.b16 %v1151
      %v1420 = vunpack.c.l.b16 %v1152
      %v1421 = vunpack.c.l.b16 %v1153
      %v1422 = vunpack.c.l.b16 %v1154
      %v1423 = vunpack.c.l.b16 %v1155
      %v1424 = vunpack.c.l.b16 %v1156
      %v1425 = vunpack.c.l.b16 %v1157
      %v1426 = vunpack.c.l.b16 %v1158
      %v1427 = vunpack.c.l.b16 %v1159
      %v1428 = vunpack.c.l.b16 %v1160
      %v1429 = vunpack.c.l.b16 %v1161
      %v1430 = vunpack.c.l.b16 %v1162
      %v1431 = vunpack.c.l.b16 %v1163
      %v1432 = vunpack.c.l.b16 %v1164
      %v1433 = vunpack.c.l.b16 %v1165
      %v1434 = vunpack.c.l.b16 %v1166
      %v1435 = vunpack.c.l.b16 %v1167
      %v1436 = vpack.c.b16 %v1405, %v1404
      %v1437 = vpack.c.b16 %v1407, %v1406
      %v1438 = vpack.c.b16 %v1409, %v1408
      %v1439 = vpack.c.b16 %v1411, %v1410
      %v1440 = vpack.c.b16 %v1413, %v1412
      %v1441 = vpack.c.b16 %v1415, %v1414
      %v1442 = vpack.c.b16 %v1417, %v1416
      %v1443 = vpack.c.b16 %v1419, %v1418
      %v1444 = vpack.c.b16 %v1421, %v1420
      %v1445 = vpack.c.b16 %v1423, %v1422
      %v1446 = vpack.c.b16 %v1425, %v1424
      %v1447 = vpack.c.b16 %v1427, %v1426
      %v1448 = vpack.c.b16 %v1429, %v1428
      %v1449 = vpack.c.b16 %v1431, %v1430
      %v1450 = vpack.c.b16 %v1433, %v1432
      %v1451 = vpack.c.b16 %v1435, %v1434
      %1468 = vmatpush.bf16.msra.mxu0 %v1443
      %1469 = vmatpush.bf16.msra.mxu0 %v1442
      %1470 = vmatpush.bf16.msra.mxu0 %v1441
      %1471 = vmatpush.bf16.msra.mxu0 %v1440
      %1472 = vmatpush.bf16.msra.mxu0 %v1439
      %1473 = vmatpush.bf16.msra.mxu0 %v1438
      %1474 = vmatpush.bf16.msra.mxu0 %v1437
      %1475 = vmatpush.bf16.msra.mxu0 %v1436
      %1476 = vmatmul.bf16.gmra.mxu0 %v1368
      %v1477 = vpop.f32.mrf.mxu0
      %v1478 = vadd.f32 %v1357, %v1477
      %v1479 = vpop.f32.mrf.mxu0
      %v1480 = vadd.f32 %v1359, %v1479
      %1481 = vdwg.mxu0
      %1482 = vmatpush.bf16.msra.mxu0 %v1451
      %1483 = vmatpush.bf16.msra.mxu0 %v1450
      %1484 = vmatpush.bf16.msra.mxu0 %v1449
      %1485 = vmatpush.bf16.msra.mxu0 %v1448
      %1486 = vmatpush.bf16.msra.mxu0 %v1447
      %1487 = vmatpush.bf16.msra.mxu0 %v1446
      %1488 = vmatpush.bf16.msra.mxu0 %v1445
      %1489 = vmatpush.bf16.msra.mxu0 %v1444
      %1490 = vmatmul.bf16.gmra.mxu0 %v1369
      %v1491 = vpop.f32.mrf.mxu0
      %v1492 = vadd.f32 %v1478, %v1491
      %v1493 = vpop.f32.mrf.mxu0
      %v1494 = vadd.f32 %v1480, %v1493
      %1495 = vdwg.mxu0
      %v1496 = vadd.f32 %v1492, %v422
      %v1497 = vadd.f32 %v1494, %v422
      %vm1498 = vcmp.ge.f32.partialorder %v1496, 0.0
      %vm1499 = vcmp.ge.f32.partialorder %v1497, 0.0
      %v1500 = vmul.f32 %v1496, 0.2
      %v1501 = vmul.f32 %v1497, 0.2
      %v1502 = vsel %vm1498, %v1496, %v1500
      %v1503 = vsel %vm1499, %v1497, %v1501
      %v1504 = vpack.c.bf16 %v1502, %v1502
      %v1505 = vpack.c.bf16 %v1503, %v1503
      %s1506 = scalar_lea.vmem %s308, 16
      %1507 = vst.msk [vmem:[%s1506] sm:$0xf] %vm567, %v1504
      %1508 = vst.msk [vmem:[%s1506 + $0x4] sm:$0xf] %vm567, %v1505
      %v1510 = vsel %vm573, %v1502, 0
      %v1513 = vsel %vm573, %v1503, 0
      %1515 = vmatpush.msra.mxu0 0.0
      %1516 = vmatpush.msra.mxu0 0.0
      %1517 = vmatpush.msra.mxu0 0.0
      %1518 = vmatpush.msra.mxu0 0.0
      %1519 = vmatpush.msra.mxu0 0.0
      %1520 = vmatpush.msra.mxu0 0.0
      %1521 = vmatpush.msra.mxu0 0.0
      %1522 = vmatpush.msra.mxu0 0.0
      %1523 = vmatpush.msra.mxu0 %v361
      %1524 = vmatpush.msra.mxu0 %v360
      %1525 = vmatpush.msra.mxu0 %v359
      %1526 = vmatpush.msra.mxu0 %v358
      %1527 = vmatpush.msra.mxu0 %v357
      %1528 = vmatpush.msra.mxu0 %v356
      %1529 = vmatpush.msra.mxu0 %v355
      %1530 = vmatpush.msra.mxu0 %v354
      %1531 = vmatmul.f32.gmra.mxu0 %v1510
      %v1532 = vpop.f32.mrf.mxu0
      %v1533 = vadd.f32 %v571, %v1532
      %1534 = vmatmul.f32.gmra.mxu0 %v1513
      %v1535 = vpop.f32.mrf.mxu0
      %v1536 = vadd.f32 %v571, %v1535
      %1537 = vdwg.mxu0
      %s1538 = scalar_lea.vmem %s313, 32
      %1539 = vst.msk [vmem:[%s1538] sm:$0xff] %vm603, %v1533
      %1540 = vst.msk [vmem:[%s1538 + $0x8] sm:$0xff] %vm603, %v1536
      %v1541 = vld [vmem:[#allocation2] sm:$0x33]
      %v1542 = vld [vmem:[#allocation2 + $0x8] sm:$0x33]
      %v1543 = vld [vmem:[#allocation2 + $0x10] sm:$0x33]
      %v1544 = vld [vmem:[#allocation2 + $0x18] sm:$0x33]
      %v1549 = vrot.slane %v1541, 2
      %v1550 = vrot.slane %v1542, 2
      %v1551 = vrot.slane %v1543, 2
      %v1552 = vrot.slane %v1544, 2
      %v1555 = vsel %vm375, %v1541, %v1549
      %v1558 = vsel %vm375, %v1542, %v1550
      %v1561 = vsel %vm375, %v1543, %v1551
      %v1564 = vsel %vm375, %v1544, %v1552
      %s1565 = scalar_lea.vmem %s2, 1024
      %v1566 = vld [vmem:[%s1565] sm:$0xf]
      %v1567 = vld [vmem:[%s1565 + $0x4] sm:$0xf]
      %v1568 = vld [vmem:[%s1565 + $0x8] sm:$0xf]
      %v1569 = vld [vmem:[%s1565 + $0xc] sm:$0xf]
      %v1570 = vld [vmem:[%s1565 + $0x10] sm:$0xf]
      %v1571 = vld [vmem:[%s1565 + $0x14] sm:$0xf]
      %v1572 = vld [vmem:[%s1565 + $0x18] sm:$0xf]
      %v1573 = vld [vmem:[%s1565 + $0x1c] sm:$0xf]
      %v1574 = vld [vmem:[%s1565 + $0x20] sm:$0xf]
      %v1575 = vld [vmem:[%s1565 + $0x24] sm:$0xf]
      %v1576 = vld [vmem:[%s1565 + $0x28] sm:$0xf]
      %v1577 = vld [vmem:[%s1565 + $0x2c] sm:$0xf]
      %v1578 = vld [vmem:[%s1565 + $0x30] sm:$0xf]
      %v1579 = vld [vmem:[%s1565 + $0x34] sm:$0xf]
      %v1580 = vld [vmem:[%s1565 + $0x38] sm:$0xf]
      %v1581 = vld [vmem:[%s1565 + $0x3c] sm:$0xf]
      %v1582 = vld [vmem:[%s1565 + $0x40] sm:$0xf]
      %v1583 = vld [vmem:[%s1565 + $0x44] sm:$0xf]
      %v1584 = vld [vmem:[%s1565 + $0x48] sm:$0xf]
      %v1585 = vld [vmem:[%s1565 + $0x4c] sm:$0xf]
      %v1586 = vld [vmem:[%s1565 + $0x50] sm:$0xf]
      %v1587 = vld [vmem:[%s1565 + $0x54] sm:$0xf]
      %v1588 = vld [vmem:[%s1565 + $0x58] sm:$0xf]
      %v1589 = vld [vmem:[%s1565 + $0x5c] sm:$0xf]
      %v1590 = vld [vmem:[%s1565 + $0x60] sm:$0xf]
      %v1591 = vld [vmem:[%s1565 + $0x64] sm:$0xf]
      %v1592 = vld [vmem:[%s1565 + $0x68] sm:$0xf]
      %v1593 = vld [vmem:[%s1565 + $0x6c] sm:$0xf]
      %v1594 = vld [vmem:[%s1565 + $0x70] sm:$0xf]
      %v1595 = vld [vmem:[%s1565 + $0x74] sm:$0xf]
      %v1596 = vld [vmem:[%s1565 + $0x78] sm:$0xf]
      %v1597 = vld [vmem:[%s1565 + $0x7c] sm:$0xf]
      %v1598 = vld [vmem:[#allocation2] sm:$0x77]
      %v1599 = vld [vmem:[#allocation2 + $0x8] sm:$0x77]
      %v1600 = vld [vmem:[#allocation2 + $0x10] sm:$0x77]
      %v1601 = vld [vmem:[#allocation2 + $0x18] sm:$0x77]
      %v1606 = vrot.slane %v1598, 2
      %v1607 = vrot.slane %v1599, 2
      %v1608 = vrot.slane %v1600, 2
      %v1609 = vrot.slane %v1601, 2
      %v1612 = vsel %vm375, %v1598, %v1606
      %v1613 = vsel %vm678, %v1598, %v1606
      %v1615 = vrot.slane %v1613, 2
      %v1618 = vsel %vm375, %v1599, %v1607
      %v1619 = vsel %vm678, %v1599, %v1607
      %v1621 = vrot.slane %v1619, 2
      %v1624 = vsel %vm375, %v1600, %v1608
      %v1625 = vsel %vm678, %v1600, %v1608
      %v1627 = vrot.slane %v1625, 2
      %v1630 = vsel %vm375, %v1601, %v1609
      %v1631 = vsel %vm678, %v1601, %v1609
      %v1633 = vrot.slane %v1631, 2
      %v1634 = vshrl.u32 %v1612, 16
      %v1636 = vrot.slane %v1634, 6
      %v1637 = vshll.u32 %v1612, 16
      %v1639 = vrot.slane %v1637, 7
      %v1640 = vor.u32 %v1636, %v1639
      %v1641 = vrot.slane %v1640, 2
      %v1643 = vshll.u32 %v1615, 16
      %v1645 = vrot.slane %v1643, 7
      %v1646 = vsel %vm706, %v1641, %v1645
      %v1647 = vshrl.u32 %v1618, 16
      %v1649 = vrot.slane %v1647, 6
      %v1650 = vshll.u32 %v1618, 16
      %v1652 = vrot.slane %v1650, 7
      %v1653 = vor.u32 %v1649, %v1652
      %v1654 = vrot.slane %v1653, 2
      %v1656 = vshll.u32 %v1621, 16
      %v1658 = vrot.slane %v1656, 7
      %v1659 = vsel %vm706, %v1654, %v1658
      %v1660 = vshrl.u32 %v1624, 16
      %v1662 = vrot.slane %v1660, 6
      %v1663 = vshll.u32 %v1624, 16
      %v1665 = vrot.slane %v1663, 7
      %v1666 = vor.u32 %v1662, %v1665
      %v1667 = vrot.slane %v1666, 2
      %v1669 = vshll.u32 %v1627, 16
      %v1671 = vrot.slane %v1669, 7
      %v1672 = vsel %vm706, %v1667, %v1671
      %v1673 = vshrl.u32 %v1630, 16
      %v1675 = vrot.slane %v1673, 6
      %v1676 = vshll.u32 %v1630, 16
      %v1678 = vrot.slane %v1676, 7
      %v1679 = vor.u32 %v1675, %v1678
      %v1680 = vrot.slane %v1679, 2
      %v1682 = vshll.u32 %v1633, 16
      %v1684 = vrot.slane %v1682, 7
      %v1685 = vsel %vm706, %v1680, %v1684
      %s1686 = scalar_lea.vmem %s2, 768
      %v1687 = vld [vmem:[%s1686] sm:$0xf]
      %v1688 = vld [vmem:[%s1686 + $0x4] sm:$0xf]
      %v1689 = vld [vmem:[%s1686 + $0x8] sm:$0xf]
      %v1690 = vld [vmem:[%s1686 + $0xc] sm:$0xf]
      %v1691 = vld [vmem:[%s1686 + $0x10] sm:$0xf]
      %v1692 = vld [vmem:[%s1686 + $0x14] sm:$0xf]
      %v1693 = vld [vmem:[%s1686 + $0x18] sm:$0xf]
      %v1694 = vld [vmem:[%s1686 + $0x1c] sm:$0xf]
      %v1695 = vld [vmem:[%s1686 + $0x20] sm:$0xf]
      %v1696 = vld [vmem:[%s1686 + $0x24] sm:$0xf]
      %v1697 = vld [vmem:[%s1686 + $0x28] sm:$0xf]
      %v1698 = vld [vmem:[%s1686 + $0x2c] sm:$0xf]
      %v1699 = vld [vmem:[%s1686 + $0x30] sm:$0xf]
      %v1700 = vld [vmem:[%s1686 + $0x34] sm:$0xf]
      %v1701 = vld [vmem:[%s1686 + $0x38] sm:$0xf]
      %v1702 = vld [vmem:[%s1686 + $0x3c] sm:$0xf]
      %v1703 = vld [vmem:[%s1686 + $0x40] sm:$0xf]
      %v1704 = vld [vmem:[%s1686 + $0x44] sm:$0xf]
      %v1705 = vld [vmem:[%s1686 + $0x48] sm:$0xf]
      %v1706 = vld [vmem:[%s1686 + $0x4c] sm:$0xf]
      %v1707 = vld [vmem:[%s1686 + $0x50] sm:$0xf]
      %v1708 = vld [vmem:[%s1686 + $0x54] sm:$0xf]
      %v1709 = vld [vmem:[%s1686 + $0x58] sm:$0xf]
      %v1710 = vld [vmem:[%s1686 + $0x5c] sm:$0xf]
      %v1711 = vld [vmem:[%s1686 + $0x60] sm:$0xf]
      %v1712 = vld [vmem:[%s1686 + $0x64] sm:$0xf]
      %v1713 = vld [vmem:[%s1686 + $0x68] sm:$0xf]
      %v1714 = vld [vmem:[%s1686 + $0x6c] sm:$0xf]
      %v1715 = vld [vmem:[%s1686 + $0x70] sm:$0xf]
      %v1716 = vld [vmem:[%s1686 + $0x74] sm:$0xf]
      %v1717 = vld [vmem:[%s1686 + $0x78] sm:$0xf]
      %v1718 = vld [vmem:[%s1686 + $0x7c] sm:$0xf]
      %1720 = vst [vmem:[#allocation1] ss:$4 sm:$0xff] %v1646
      %s1722 = scalar_lea.vmem [#allocation1], 1
      %1723 = vst [vmem:[%s1722] ss:$4 sm:$0xff] %v1659
      %s1725 = scalar_lea.vmem [#allocation1], 2
      %1726 = vst [vmem:[%s1725] ss:$4 sm:$0xff] %v1672
      %s1728 = scalar_lea.vmem [#allocation1], 3
      %1729 = vst [vmem:[%s1728] ss:$4 sm:$0xff] %v1685
      %v1730 = vld.sshfl [vmem:[#allocation1] sm:$0xff pattern:$0x73625140]
      %v1731 = vld.sshfl [vmem:[#allocation1 + $0x8] sm:$0xff pattern:$0x73625140]
      %v1766 = vunpack.c.l.b16 %v1687
      %v1767 = vunpack.c.l.b16 %v1688
      %v1768 = vunpack.c.l.b16 %v1689
      %v1769 = vunpack.c.l.b16 %v1690
      %v1770 = vunpack.c.l.b16 %v1691
      %v1771 = vunpack.c.l.b16 %v1692
      %v1772 = vunpack.c.l.b16 %v1693
      %v1773 = vunpack.c.l.b16 %v1694
      %v1774 = vunpack.c.l.b16 %v1695
      %v1775 = vunpack.c.l.b16 %v1696
      %v1776 = vunpack.c.l.b16 %v1697
      %v1777 = vunpack.c.l.b16 %v1698
      %v1778 = vunpack.c.l.b16 %v1699
      %v1779 = vunpack.c.l.b16 %v1700
      %v1780 = vunpack.c.l.b16 %v1701
      %v1781 = vunpack.c.l.b16 %v1702
      %v1782 = vunpack.c.l.b16 %v1703
      %v1783 = vunpack.c.l.b16 %v1704
      %v1784 = vunpack.c.l.b16 %v1705
      %v1785 = vunpack.c.l.b16 %v1706
      %v1786 = vunpack.c.l.b16 %v1707
      %v1787 = vunpack.c.l.b16 %v1708
      %v1788 = vunpack.c.l.b16 %v1709
      %v1789 = vunpack.c.l.b16 %v1710
      %v1790 = vunpack.c.l.b16 %v1711
      %v1791 = vunpack.c.l.b16 %v1712
      %v1792 = vunpack.c.l.b16 %v1713
      %v1793 = vunpack.c.l.b16 %v1714
      %v1794 = vunpack.c.l.b16 %v1715
      %v1795 = vunpack.c.l.b16 %v1716
      %v1796 = vunpack.c.l.b16 %v1717
      %v1797 = vunpack.c.l.b16 %v1718
      %v1798 = vpack.c.b16 %v1767, %v1766
      %v1799 = vpack.c.b16 %v1769, %v1768
      %v1800 = vpack.c.b16 %v1771, %v1770
      %v1801 = vpack.c.b16 %v1773, %v1772
      %v1802 = vpack.c.b16 %v1775, %v1774
      %v1803 = vpack.c.b16 %v1777, %v1776
      %v1804 = vpack.c.b16 %v1779, %v1778
      %v1805 = vpack.c.b16 %v1781, %v1780
      %v1806 = vpack.c.b16 %v1783, %v1782
      %v1807 = vpack.c.b16 %v1785, %v1784
      %v1808 = vpack.c.b16 %v1787, %v1786
      %v1809 = vpack.c.b16 %v1789, %v1788
      %v1810 = vpack.c.b16 %v1791, %v1790
      %v1811 = vpack.c.b16 %v1793, %v1792
      %v1812 = vpack.c.b16 %v1795, %v1794
      %v1813 = vpack.c.b16 %v1797, %v1796
      %1830 = vmatpush.bf16.msra.mxu0 %v1805
      %1831 = vmatpush.bf16.msra.mxu0 %v1804
      %1832 = vmatpush.bf16.msra.mxu0 %v1803
      %1833 = vmatpush.bf16.msra.mxu0 %v1802
      %1834 = vmatpush.bf16.msra.mxu0 %v1801
      %1835 = vmatpush.bf16.msra.mxu0 %v1800
      %1836 = vmatpush.bf16.msra.mxu0 %v1799
      %1837 = vmatpush.bf16.msra.mxu0 %v1798
      %1838 = vmatmul.bf16.gmra.mxu0 %v1730
      %v1839 = vpop.f32.mrf.mxu0
      %v1840 = vadd.f32 0.0, %v1839
      %v1841 = vpop.f32.mrf.mxu0
      %v1842 = vadd.f32 0.0, %v1841
      %1843 = vdwg.mxu0
      %1844 = vmatpush.bf16.msra.mxu0 %v1813
      %1845 = vmatpush.bf16.msra.mxu0 %v1812
      %1846 = vmatpush.bf16.msra.mxu0 %v1811
      %1847 = vmatpush.bf16.msra.mxu0 %v1810
      %1848 = vmatpush.bf16.msra.mxu0 %v1809
      %1849 = vmatpush.bf16.msra.mxu0 %v1808
      %1850 = vmatpush.bf16.msra.mxu0 %v1807
      %1851 = vmatpush.bf16.msra.mxu0 %v1806
      %1852 = vmatmul.bf16.gmra.mxu0 %v1731
      %v1853 = vpop.f32.mrf.mxu0
      %v1854 = vadd.f32 %v1840, %v1853
      %v1855 = vpop.f32.mrf.mxu0
      %v1856 = vadd.f32 %v1842, %v1855
      %1857 = vdwg.mxu0
      %1858 = vst [vmem:[#allocation1] ss:$4 sm:$0xff] %v1555
      %s1859 = scalar_lea.vmem [#allocation1], 1
      %1860 = vst [vmem:[%s1859] ss:$4 sm:$0xff] %v1558
      %s1861 = scalar_lea.vmem [#allocation1], 2
      %1862 = vst [vmem:[%s1861] ss:$4 sm:$0xff] %v1561
      %s1863 = scalar_lea.vmem [#allocation1], 3
      %1864 = vst [vmem:[%s1863] ss:$4 sm:$0xff] %v1564
      %v1865 = vld.sshfl [vmem:[#allocation1] sm:$0xff pattern:$0x73625140]
      %v1866 = vld.sshfl [vmem:[#allocation1 + $0x8] sm:$0xff pattern:$0x73625140]
      %v1901 = vunpack.c.l.b16 %v1566
      %v1902 = vunpack.c.l.b16 %v1567
      %v1903 = vunpack.c.l.b16 %v1568
      %v1904 = vunpack.c.l.b16 %v1569
      %v1905 = vunpack.c.l.b16 %v1570
      %v1906 = vunpack.c.l.b16 %v1571
      %v1907 = vunpack.c.l.b16 %v1572
      %v1908 = vunpack.c.l.b16 %v1573
      %v1909 = vunpack.c.l.b16 %v1574
      %v1910 = vunpack.c.l.b16 %v1575
      %v1911 = vunpack.c.l.b16 %v1576
      %v1912 = vunpack.c.l.b16 %v1577
      %v1913 = vunpack.c.l.b16 %v1578
      %v1914 = vunpack.c.l.b16 %v1579
      %v1915 = vunpack.c.l.b16 %v1580
      %v1916 = vunpack.c.l.b16 %v1581
      %v1917 = vunpack.c.l.b16 %v1582
      %v1918 = vunpack.c.l.b16 %v1583
      %v1919 = vunpack.c.l.b16 %v1584
      %v1920 = vunpack.c.l.b16 %v1585
      %v1921 = vunpack.c.l.b16 %v1586
      %v1922 = vunpack.c.l.b16 %v1587
      %v1923 = vunpack.c.l.b16 %v1588
      %v1924 = vunpack.c.l.b16 %v1589
      %v1925 = vunpack.c.l.b16 %v1590
      %v1926 = vunpack.c.l.b16 %v1591
      %v1927 = vunpack.c.l.b16 %v1592
      %v1928 = vunpack.c.l.b16 %v1593
      %v1929 = vunpack.c.l.b16 %v1594
      %v1930 = vunpack.c.l.b16 %v1595
      %v1931 = vunpack.c.l.b16 %v1596
      %v1932 = vunpack.c.l.b16 %v1597
      %v1933 = vpack.c.b16 %v1902, %v1901
      %v1934 = vpack.c.b16 %v1904, %v1903
      %v1935 = vpack.c.b16 %v1906, %v1905
      %v1936 = vpack.c.b16 %v1908, %v1907
      %v1937 = vpack.c.b16 %v1910, %v1909
      %v1938 = vpack.c.b16 %v1912, %v1911
      %v1939 = vpack.c.b16 %v1914, %v1913
      %v1940 = vpack.c.b16 %v1916, %v1915
      %v1941 = vpack.c.b16 %v1918, %v1917
      %v1942 = vpack.c.b16 %v1920, %v1919
      %v1943 = vpack.c.b16 %v1922, %v1921
      %v1944 = vpack.c.b16 %v1924, %v1923
      %v1945 = vpack.c.b16 %v1926, %v1925
      %v1946 = vpack.c.b16 %v1928, %v1927
      %v1947 = vpack.c.b16 %v1930, %v1929
      %v1948 = vpack.c.b16 %v1932, %v1931
      %1965 = vmatpush.bf16.msra.mxu0 %v1940
      %1966 = vmatpush.bf16.msra.mxu0 %v1939
      %1967 = vmatpush.bf16.msra.mxu0 %v1938
      %1968 = vmatpush.bf16.msra.mxu0 %v1937
      %1969 = vmatpush.bf16.msra.mxu0 %v1936
      %1970 = vmatpush.bf16.msra.mxu0 %v1935
      %1971 = vmatpush.bf16.msra.mxu0 %v1934
      %1972 = vmatpush.bf16.msra.mxu0 %v1933
      %1973 = vmatmul.bf16.gmra.mxu0 %v1865
      %v1974 = vpop.f32.mrf.mxu0
      %v1975 = vadd.f32 %v1854, %v1974
      %v1976 = vpop.f32.mrf.mxu0
      %v1977 = vadd.f32 %v1856, %v1976
      %1978 = vdwg.mxu0
      %1979 = vmatpush.bf16.msra.mxu0 %v1948
      %1980 = vmatpush.bf16.msra.mxu0 %v1947
      %1981 = vmatpush.bf16.msra.mxu0 %v1946
      %1982 = vmatpush.bf16.msra.mxu0 %v1945
      %1983 = vmatpush.bf16.msra.mxu0 %v1944
      %1984 = vmatpush.bf16.msra.mxu0 %v1943
      %1985 = vmatpush.bf16.msra.mxu0 %v1942
      %1986 = vmatpush.bf16.msra.mxu0 %v1941
      %1987 = vmatmul.bf16.gmra.mxu0 %v1866
      %v1988 = vpop.f32.mrf.mxu0
      %v1989 = vadd.f32 %v1975, %v1988
      %v1990 = vpop.f32.mrf.mxu0
      %v1991 = vadd.f32 %v1977, %v1990
      %1992 = vdwg.mxu0
      %v1993 = vld [vmem:[%s1168] sm:$0x33]
      %v1994 = vld [vmem:[%s1168 + $0x8] sm:$0x33]
      %v1995 = vld [vmem:[%s1168 + $0x10] sm:$0x33]
      %v1996 = vld [vmem:[%s1168 + $0x18] sm:$0x33]
      %v2001 = vrot.slane %v1993, 2
      %v2002 = vrot.slane %v1994, 2
      %v2003 = vrot.slane %v1995, 2
      %v2004 = vrot.slane %v1996, 2
      %v2007 = vsel %vm375, %v1993, %v2001
      %v2010 = vsel %vm375, %v1994, %v2002
      %v2013 = vsel %vm375, %v1995, %v2003
      %v2016 = vsel %vm375, %v1996, %v2004
      %s2017 = scalar_lea.vmem %s2, 256
      %v2018 = vld [vmem:[%s2017] sm:$0xf]
      %v2019 = vld [vmem:[%s2017 + $0x4] sm:$0xf]
      %v2020 = vld [vmem:[%s2017 + $0x8] sm:$0xf]
      %v2021 = vld [vmem:[%s2017 + $0xc] sm:$0xf]
      %v2022 = vld [vmem:[%s2017 + $0x10] sm:$0xf]
      %v2023 = vld [vmem:[%s2017 + $0x14] sm:$0xf]
      %v2024 = vld [vmem:[%s2017 + $0x18] sm:$0xf]
      %v2025 = vld [vmem:[%s2017 + $0x1c] sm:$0xf]
      %v2026 = vld [vmem:[%s2017 + $0x20] sm:$0xf]
      %v2027 = vld [vmem:[%s2017 + $0x24] sm:$0xf]
      %v2028 = vld [vmem:[%s2017 + $0x28] sm:$0xf]
      %v2029 = vld [vmem:[%s2017 + $0x2c] sm:$0xf]
      %v2030 = vld [vmem:[%s2017 + $0x30] sm:$0xf]
      %v2031 = vld [vmem:[%s2017 + $0x34] sm:$0xf]
      %v2032 = vld [vmem:[%s2017 + $0x38] sm:$0xf]
      %v2033 = vld [vmem:[%s2017 + $0x3c] sm:$0xf]
      %v2034 = vld [vmem:[%s2017 + $0x40] sm:$0xf]
      %v2035 = vld [vmem:[%s2017 + $0x44] sm:$0xf]
      %v2036 = vld [vmem:[%s2017 + $0x48] sm:$0xf]
      %v2037 = vld [vmem:[%s2017 + $0x4c] sm:$0xf]
      %v2038 = vld [vmem:[%s2017 + $0x50] sm:$0xf]
      %v2039 = vld [vmem:[%s2017 + $0x54] sm:$0xf]
      %v2040 = vld [vmem:[%s2017 + $0x58] sm:$0xf]
      %v2041 = vld [vmem:[%s2017 + $0x5c] sm:$0xf]
      %v2042 = vld [vmem:[%s2017 + $0x60] sm:$0xf]
      %v2043 = vld [vmem:[%s2017 + $0x64] sm:$0xf]
      %v2044 = vld [vmem:[%s2017 + $0x68] sm:$0xf]
      %v2045 = vld [vmem:[%s2017 + $0x6c] sm:$0xf]
      %v2046 = vld [vmem:[%s2017 + $0x70] sm:$0xf]
      %v2047 = vld [vmem:[%s2017 + $0x74] sm:$0xf]
      %v2048 = vld [vmem:[%s2017 + $0x78] sm:$0xf]
      %v2049 = vld [vmem:[%s2017 + $0x7c] sm:$0xf]
      %2050 = vst [vmem:[#allocation1] ss:$4 sm:$0xff] %v2007
      %s2051 = scalar_lea.vmem [#allocation1], 1
      %2052 = vst [vmem:[%s2051] ss:$4 sm:$0xff] %v2010
      %s2053 = scalar_lea.vmem [#allocation1], 2
      %2054 = vst [vmem:[%s2053] ss:$4 sm:$0xff] %v2013
      %s2055 = scalar_lea.vmem [#allocation1], 3
      %2056 = vst [vmem:[%s2055] ss:$4 sm:$0xff] %v2016
      %v2057 = vld.sshfl [vmem:[#allocation1] sm:$0xff pattern:$0x73625140]
      %v2058 = vld.sshfl [vmem:[#allocation1 + $0x8] sm:$0xff pattern:$0x73625140]
      %v2093 = vunpack.c.l.b16 %v2018
      %v2094 = vunpack.c.l.b16 %v2019
      %v2095 = vunpack.c.l.b16 %v2020
      %v2096 = vunpack.c.l.b16 %v2021
      %v2097 = vunpack.c.l.b16 %v2022
      %v2098 = vunpack.c.l.b16 %v2023
      %v2099 = vunpack.c.l.b16 %v2024
      %v2100 = vunpack.c.l.b16 %v2025
      %v2101 = vunpack.c.l.b16 %v2026
      %v2102 = vunpack.c.l.b16 %v2027
      %v2103 = vunpack.c.l.b16 %v2028
      %v2104 = vunpack.c.l.b16 %v2029
      %v2105 = vunpack.c.l.b16 %v2030
      %v2106 = vunpack.c.l.b16 %v2031
      %v2107 = vunpack.c.l.b16 %v2032
      %v2108 = vunpack.c.l.b16 %v2033
      %v2109 = vunpack.c.l.b16 %v2034
      %v2110 = vunpack.c.l.b16 %v2035
      %v2111 = vunpack.c.l.b16 %v2036
      %v2112 = vunpack.c.l.b16 %v2037
      %v2113 = vunpack.c.l.b16 %v2038
      %v2114 = vunpack.c.l.b16 %v2039
      %v2115 = vunpack.c.l.b16 %v2040
      %v2116 = vunpack.c.l.b16 %v2041
      %v2117 = vunpack.c.l.b16 %v2042
      %v2118 = vunpack.c.l.b16 %v2043
      %v2119 = vunpack.c.l.b16 %v2044
      %v2120 = vunpack.c.l.b16 %v2045
      %v2121 = vunpack.c.l.b16 %v2046
      %v2122 = vunpack.c.l.b16 %v2047
      %v2123 = vunpack.c.l.b16 %v2048
      %v2124 = vunpack.c.l.b16 %v2049
      %v2125 = vpack.c.b16 %v2094, %v2093
      %v2126 = vpack.c.b16 %v2096, %v2095
      %v2127 = vpack.c.b16 %v2098, %v2097
      %v2128 = vpack.c.b16 %v2100, %v2099
      %v2129 = vpack.c.b16 %v2102, %v2101
      %v2130 = vpack.c.b16 %v2104, %v2103
      %v2131 = vpack.c.b16 %v2106, %v2105
      %v2132 = vpack.c.b16 %v2108, %v2107
      %v2133 = vpack.c.b16 %v2110, %v2109
      %v2134 = vpack.c.b16 %v2112, %v2111
      %v2135 = vpack.c.b16 %v2114, %v2113
      %v2136 = vpack.c.b16 %v2116, %v2115
      %v2137 = vpack.c.b16 %v2118, %v2117
      %v2138 = vpack.c.b16 %v2120, %v2119
      %v2139 = vpack.c.b16 %v2122, %v2121
      %v2140 = vpack.c.b16 %v2124, %v2123
      %2157 = vmatpush.bf16.msra.mxu0 %v2132
      %2158 = vmatpush.bf16.msra.mxu0 %v2131
      %2159 = vmatpush.bf16.msra.mxu0 %v2130
      %2160 = vmatpush.bf16.msra.mxu0 %v2129
      %2161 = vmatpush.bf16.msra.mxu0 %v2128
      %2162 = vmatpush.bf16.msra.mxu0 %v2127
      %2163 = vmatpush.bf16.msra.mxu0 %v2126
      %2164 = vmatpush.bf16.msra.mxu0 %v2125
      %2165 = vmatmul.bf16.gmra.mxu0 %v2057
      %v2166 = vpop.f32.mrf.mxu0
      %v2167 = vadd.f32 0.0, %v2166
      %v2168 = vpop.f32.mrf.mxu0
      %v2169 = vadd.f32 0.0, %v2168
      %2170 = vdwg.mxu0
      %2171 = vmatpush.bf16.msra.mxu0 %v2140
      %2172 = vmatpush.bf16.msra.mxu0 %v2139
      %2173 = vmatpush.bf16.msra.mxu0 %v2138
      %2174 = vmatpush.bf16.msra.mxu0 %v2137
      %2175 = vmatpush.bf16.msra.mxu0 %v2136
      %2176 = vmatpush.bf16.msra.mxu0 %v2135
      %2177 = vmatpush.bf16.msra.mxu0 %v2134
      %2178 = vmatpush.bf16.msra.mxu0 %v2133
      %2179 = vmatmul.bf16.gmra.mxu0 %v2058
      %v2180 = vpop.f32.mrf.mxu0
      %v2181 = vadd.f32 %v2167, %v2180
      %v2182 = vpop.f32.mrf.mxu0
      %v2183 = vadd.f32 %v2169, %v2182
      %2184 = vdwg.mxu0
      %v2185 = vadd.f32 %v1989, %v2181
      %v2186 = vadd.f32 %v1991, %v2183
      %v2187 = vld [vmem:[%s1168] sm:$0x77]
      %v2188 = vld [vmem:[%s1168 + $0x8] sm:$0x77]
      %v2189 = vld [vmem:[%s1168 + $0x10] sm:$0x77]
      %v2190 = vld [vmem:[%s1168 + $0x18] sm:$0x77]
      %v2195 = vrot.slane %v2187, 2
      %v2196 = vrot.slane %v2188, 2
      %v2197 = vrot.slane %v2189, 2
      %v2198 = vrot.slane %v2190, 2
      %v2201 = vsel %vm375, %v2187, %v2195
      %v2202 = vsel %vm678, %v2187, %v2195
      %v2204 = vrot.slane %v2202, 2
      %v2207 = vsel %vm375, %v2188, %v2196
      %v2208 = vsel %vm678, %v2188, %v2196
      %v2210 = vrot.slane %v2208, 2
      %v2213 = vsel %vm375, %v2189, %v2197
      %v2214 = vsel %vm678, %v2189, %v2197
      %v2216 = vrot.slane %v2214, 2
      %v2219 = vsel %vm375, %v2190, %v2198
      %v2220 = vsel %vm678, %v2190, %v2198
      %v2222 = vrot.slane %v2220, 2
      %v2223 = vshrl.u32 %v2201, 16
      %v2225 = vrot.slane %v2223, 6
      %v2226 = vshll.u32 %v2201, 16
      %v2228 = vrot.slane %v2226, 7
      %v2229 = vor.u32 %v2225, %v2228
      %v2230 = vrot.slane %v2229, 2
      %v2232 = vshll.u32 %v2204, 16
      %v2234 = vrot.slane %v2232, 7
      %v2235 = vsel %vm706, %v2230, %v2234
      %v2236 = vshrl.u32 %v2207, 16
      %v2238 = vrot.slane %v2236, 6
      %v2239 = vshll.u32 %v2207, 16
      %v2241 = vrot.slane %v2239, 7
      %v2242 = vor.u32 %v2238, %v2241
      %v2243 = vrot.slane %v2242, 2
      %v2245 = vshll.u32 %v2210, 16
      %v2247 = vrot.slane %v2245, 7
      %v2248 = vsel %vm706, %v2243, %v2247
      %v2249 = vshrl.u32 %v2213, 16
      %v2251 = vrot.slane %v2249, 6
      %v2252 = vshll.u32 %v2213, 16
      %v2254 = vrot.slane %v2252, 7
      %v2255 = vor.u32 %v2251, %v2254
      %v2256 = vrot.slane %v2255, 2
      %v2258 = vshll.u32 %v2216, 16
      %v2260 = vrot.slane %v2258, 7
      %v2261 = vsel %vm706, %v2256, %v2260
      %v2262 = vshrl.u32 %v2219, 16
      %v2264 = vrot.slane %v2262, 6
      %v2265 = vshll.u32 %v2219, 16
      %v2267 = vrot.slane %v2265, 7
      %v2268 = vor.u32 %v2264, %v2267
      %v2269 = vrot.slane %v2268, 2
      %v2271 = vshll.u32 %v2222, 16
      %v2273 = vrot.slane %v2271, 7
      %v2274 = vsel %vm706, %v2269, %v2273
      %v2275 = vld [vmem:[%s2] sm:$0xf]
      %v2276 = vld [vmem:[%s2 + $0x4] sm:$0xf]
      %v2277 = vld [vmem:[%s2 + $0x8] sm:$0xf]
      %v2278 = vld [vmem:[%s2 + $0xc] sm:$0xf]
      %v2279 = vld [vmem:[%s2 + $0x10] sm:$0xf]
      %v2280 = vld [vmem:[%s2 + $0x14] sm:$0xf]
      %v2281 = vld [vmem:[%s2 + $0x18] sm:$0xf]
      %v2282 = vld [vmem:[%s2 + $0x1c] sm:$0xf]
      %v2283 = vld [vmem:[%s2 + $0x20] sm:$0xf]
      %v2284 = vld [vmem:[%s2 + $0x24] sm:$0xf]
      %v2285 = vld [vmem:[%s2 + $0x28] sm:$0xf]
      %v2286 = vld [vmem:[%s2 + $0x2c] sm:$0xf]
      %v2287 = vld [vmem:[%s2 + $0x30] sm:$0xf]
      %v2288 = vld [vmem:[%s2 + $0x34] sm:$0xf]
      %v2289 = vld [vmem:[%s2 + $0x38] sm:$0xf]
      %v2290 = vld [vmem:[%s2 + $0x3c] sm:$0xf]
      %v2291 = vld [vmem:[%s2 + $0x40] sm:$0xf]
      %v2292 = vld [vmem:[%s2 + $0x44] sm:$0xf]
      %v2293 = vld [vmem:[%s2 + $0x48] sm:$0xf]
      %v2294 = vld [vmem:[%s2 + $0x4c] sm:$0xf]
      %v2295 = vld [vmem:[%s2 + $0x50] sm:$0xf]
      %v2296 = vld [vmem:[%s2 + $0x54] sm:$0xf]
      %v2297 = vld [vmem:[%s2 + $0x58] sm:$0xf]
      %v2298 = vld [vmem:[%s2 + $0x5c] sm:$0xf]
      %v2299 = vld [vmem:[%s2 + $0x60] sm:$0xf]
      %v2300 = vld [vmem:[%s2 + $0x64] sm:$0xf]
      %v2301 = vld [vmem:[%s2 + $0x68] sm:$0xf]
      %v2302 = vld [vmem:[%s2 + $0x6c] sm:$0xf]
      %v2303 = vld [vmem:[%s2 + $0x70] sm:$0xf]
      %v2304 = vld [vmem:[%s2 + $0x74] sm:$0xf]
      %v2305 = vld [vmem:[%s2 + $0x78] sm:$0xf]
      %v2306 = vld [vmem:[%s2 + $0x7c] sm:$0xf]
      %2308 = vst [vmem:[#allocation1] ss:$4 sm:$0xff] %v2235
      %s2310 = scalar_lea.vmem [#allocation1], 1
      %2311 = vst [vmem:[%s2310] ss:$4 sm:$0xff] %v2248
      %s2313 = scalar_lea.vmem [#allocation1], 2
      %2314 = vst [vmem:[%s2313] ss:$4 sm:$0xff] %v2261
      %s2316 = scalar_lea.vmem [#allocation1], 3
      %2317 = vst [vmem:[%s2316] ss:$4 sm:$0xff] %v2274
      %v2318 = vld.sshfl [vmem:[#allocation1] sm:$0xff pattern:$0x73625140]
      %v2319 = vld.sshfl [vmem:[#allocation1 + $0x8] sm:$0xff pattern:$0x73625140]
      %v2354 = vunpack.c.l.b16 %v2275
      %v2355 = vunpack.c.l.b16 %v2276
      %v2356 = vunpack.c.l.b16 %v2277
      %v2357 = vunpack.c.l.b16 %v2278
      %v2358 = vunpack.c.l.b16 %v2279
      %v2359 = vunpack.c.l.b16 %v2280
      %v2360 = vunpack.c.l.b16 %v2281
      %v2361 = vunpack.c.l.b16 %v2282
      %v2362 = vunpack.c.l.b16 %v2283
      %v2363 = vunpack.c.l.b16 %v2284
      %v2364 = vunpack.c.l.b16 %v2285
      %v2365 = vunpack.c.l.b16 %v2286
      %v2366 = vunpack.c.l.b16 %v2287
      %v2367 = vunpack.c.l.b16 %v2288
      %v2368 = vunpack.c.l.b16 %v2289
      %v2369 = vunpack.c.l.b16 %v2290
      %v2370 = vunpack.c.l.b16 %v2291
      %v2371 = vunpack.c.l.b16 %v2292
      %v2372 = vunpack.c.l.b16 %v2293
      %v2373 = vunpack.c.l.b16 %v2294
      %v2374 = vunpack.c.l.b16 %v2295
      %v2375 = vunpack.c.l.b16 %v2296
      %v2376 = vunpack.c.l.b16 %v2297
      %v2377 = vunpack.c.l.b16 %v2298
      %v2378 = vunpack.c.l.b16 %v2299
      %v2379 = vunpack.c.l.b16 %v2300
      %v2380 = vunpack.c.l.b16 %v2301
      %v2381 = vunpack.c.l.b16 %v2302
      %v2382 = vunpack.c.l.b16 %v2303
      %v2383 = vunpack.c.l.b16 %v2304
      %v2384 = vunpack.c.l.b16 %v2305
      %v2385 = vunpack.c.l.b16 %v2306
      %v2386 = vpack.c.b16 %v2355, %v2354
      %v2387 = vpack.c.b16 %v2357, %v2356
      %v2388 = vpack.c.b16 %v2359, %v2358
      %v2389 = vpack.c.b16 %v2361, %v2360
      %v2390 = vpack.c.b16 %v2363, %v2362
      %v2391 = vpack.c.b16 %v2365, %v2364
      %v2392 = vpack.c.b16 %v2367, %v2366
      %v2393 = vpack.c.b16 %v2369, %v2368
      %v2394 = vpack.c.b16 %v2371, %v2370
      %v2395 = vpack.c.b16 %v2373, %v2372
      %v2396 = vpack.c.b16 %v2375, %v2374
      %v2397 = vpack.c.b16 %v2377, %v2376
      %v2398 = vpack.c.b16 %v2379, %v2378
      %v2399 = vpack.c.b16 %v2381, %v2380
      %v2400 = vpack.c.b16 %v2383, %v2382
      %v2401 = vpack.c.b16 %v2385, %v2384
      %2418 = vmatpush.bf16.msra.mxu0 %v2393
      %2419 = vmatpush.bf16.msra.mxu0 %v2392
      %2420 = vmatpush.bf16.msra.mxu0 %v2391
      %2421 = vmatpush.bf16.msra.mxu0 %v2390
      %2422 = vmatpush.bf16.msra.mxu0 %v2389
      %2423 = vmatpush.bf16.msra.mxu0 %v2388
      %2424 = vmatpush.bf16.msra.mxu0 %v2387
      %2425 = vmatpush.bf16.msra.mxu0 %v2386
      %2426 = vmatmul.bf16.gmra.mxu0 %v2318
      %v2427 = vpop.f32.mrf.mxu0
      %v2428 = vadd.f32 0.0, %v2427
      %v2429 = vpop.f32.mrf.mxu0
      %v2430 = vadd.f32 0.0, %v2429
      %2431 = vdwg.mxu0
      %2432 = vmatpush.bf16.msra.mxu0 %v2401
      %2433 = vmatpush.bf16.msra.mxu0 %v2400
      %2434 = vmatpush.bf16.msra.mxu0 %v2399
      %2435 = vmatpush.bf16.msra.mxu0 %v2398
      %2436 = vmatpush.bf16.msra.mxu0 %v2397
      %2437 = vmatpush.bf16.msra.mxu0 %v2396
      %2438 = vmatpush.bf16.msra.mxu0 %v2395
      %2439 = vmatpush.bf16.msra.mxu0 %v2394
      %2440 = vmatmul.bf16.gmra.mxu0 %v2319
      %v2441 = vpop.f32.mrf.mxu0
      %v2442 = vadd.f32 %v2428, %v2441
      %v2443 = vpop.f32.mrf.mxu0
      %v2444 = vadd.f32 %v2430, %v2443
      %2445 = vdwg.mxu0
      %v2446 = vadd.f32 %v2185, %v2442
      %v2447 = vadd.f32 %v2186, %v2444
      %v2448 = vadd.f32 %v2446, %v422
      %v2449 = vadd.f32 %v2447, %v422
      %vm2450 = vcmp.ge.f32.partialorder %v2448, 0.0
      %vm2451 = vcmp.ge.f32.partialorder %v2449, 0.0
      %v2452 = vmul.f32 %v2448, 0.2
      %v2453 = vmul.f32 %v2449, 0.2
      %v2454 = vsel %vm2450, %v2448, %v2452
      %v2455 = vsel %vm2451, %v2449, %v2453
      %v2456 = vpack.c.bf16 %v2454, %v2454
      %v2457 = vpack.c.bf16 %v2455, %v2455
      %s2458 = scalar_lea.vmem %s308, 24
      %2459 = vst.msk [vmem:[%s2458] sm:$0xf] %vm567, %v2456
      %2460 = vst.msk [vmem:[%s2458 + $0x4] sm:$0xf] %vm567, %v2457
      %v2462 = vsel %vm573, %v2454, 0
      %v2465 = vsel %vm573, %v2455, 0
      %2467 = vmatpush.msra.mxu0 0.0
      %2468 = vmatpush.msra.mxu0 0.0
      %2469 = vmatpush.msra.mxu0 0.0
      %2470 = vmatpush.msra.mxu0 0.0
      %2471 = vmatpush.msra.mxu0 0.0
      %2472 = vmatpush.msra.mxu0 0.0
      %2473 = vmatpush.msra.mxu0 0.0
      %2474 = vmatpush.msra.mxu0 0.0
      %2475 = vmatpush.msra.mxu0 %v361
      %2476 = vmatpush.msra.mxu0 %v360
      %2477 = vmatpush.msra.mxu0 %v359
      %2478 = vmatpush.msra.mxu0 %v358
      %2479 = vmatpush.msra.mxu0 %v357
      %2480 = vmatpush.msra.mxu0 %v356
      %2481 = vmatpush.msra.mxu0 %v355
      %2482 = vmatpush.msra.mxu0 %v354
      %2483 = vmatmul.f32.gmra.mxu0 %v2462
      %v2484 = vpop.f32.mrf.mxu0
      %v2485 = vadd.f32 %v571, %v2484
      %2486 = vmatmul.f32.gmra.mxu0 %v2465
      %v2487 = vpop.f32.mrf.mxu0
      %v2488 = vadd.f32 %v571, %v2487
      %2489 = vdwg.mxu0
      %s2490 = scalar_lea.vmem %s313, 48
      %2491 = vst.msk [vmem:[%s2490] sm:$0xff] %vm603, %v2485
      %2492 = vst.msk [vmem:[%s2490 + $0x8] sm:$0xff] %vm603, %v2488
      %p2493 = scmp.lt.s32.totalorder %s21, 1
      %s2494 = scalar_select %p2493, %s21, 1
      %s2495 = smul.addr %s2494, 8
      %s2496 = smul.addr %s2495, 4
      %s2497 = scalar_lea.vmem %s6, %s2496
      %p2498 = scmp.lt.s32.totalorder %s21, 1
      %s2499 = scalar_select %p2498, %s21, 1
      %s2500 = smul.addr %s2499, 8
      %s2501 = smul.addr %s2500, 8
      %s2502 = scalar_lea.vmem %s7, %s2501
      // Predicated region
      $region45: #{_lambda_.6} parent=43 // pred_check
        %p2503 = pneg %p175
      $region46: #{_lambda_.6} parent=43 // pred_check_branch
        %2505 = sbr.rel (%p2503) target = $region48
      $region47: #{_lambda_.6} parent=43 // pred_region
        _
      $region48: #{_lambda_.6} parent=43 // pred_fallthru
        _
      // Predicated region
      $region49: #{_lambda_.6} parent=43 // pred_check
        %p2506 = pneg %p201
      $region50: #{_lambda_.6} parent=43 // pred_check_branch
        %2508 = sbr.rel (%p2506) target = $region52
      $region51: #{_lambda_.6} parent=43 // pred_region
        _
      $region52: #{_lambda_.6} parent=43 // pred_fallthru
        _
    $region44: #{_lambda_.6} parent=5 // pred_fallthru
      _
    %p2509 = scmp.le.s32.totalorder 2, %s16
    // Predicated region
    $region53: #{_lambda_.6} parent=5 // pred_check
      %p2510 = pneg %p2509
    $region54: #{_lambda_.6} parent=5 // pred_check_branch
      %2512 = sbr.rel (%p2510) target = $region56
    $region55: #{_lambda_.6} parent=5 // pred_region
      %s2513 = ssub.s32 %s16, 2
      // Predicated region
      $region57: #{_lambda_.6} parent=55 // pred_check
        %p2514 = pneg %p181
      $region58: #{_lambda_.6} parent=55 // pred_check_branch
        %2516 = sbr.rel (%p2514) target = $region60
      $region59: #{_lambda_.6} parent=55 // pred_region
        %p2517 = scmp.lt.s32.totalorder %s22, 1
        %s2518 = scalar_select %p2517, %s22, 1
        %s2519 = smul.addr %s2518, 8
        %s2520 = smul.addr %s2519, 4
        %s2521 = scalar_lea.vmem %s6, %s2520
      $region60: #{_lambda_.6} parent=55 // pred_fallthru
        _
      // Predicated region
      $region61: #{_lambda_.6} parent=55 // pred_check
        %p2522 = pneg %p207
      $region62: #{_lambda_.6} parent=55 // pred_check_branch
        %2524 = sbr.rel (%p2522) target = $region64
      $region63: #{_lambda_.6} parent=55 // pred_region
        %p2525 = scmp.lt.s32.totalorder %s22, 1
        %s2526 = scalar_select %p2525, %s22, 1
        %s2527 = smul.addr %s2526, 8
        %s2528 = smul.addr %s2527, 8
        %s2529 = scalar_lea.vmem %s7, %s2528
      $region64: #{_lambda_.6} parent=55 // pred_fallthru
        _
    $region56: #{_lambda_.6} parent=5 // pred_fallthru
      _
  $region6: #{_lambda_.6} parent=0 // loop_footer
    %s20 = sadd.s32 1, %s16
  $region7: #{_lambda_.6} parent=0 // loop_footer_branch
    %15 = sbr.rel target = $region3
  $region8: #{_lambda_.6} parent=0 // loop_exit
    _

// kernel: _lambda_.7
$region0: #{_lambda_.7}
  #allocation0 [shape = 'u32[]', space=smem, size = 0x4, offset = 0x4, fixed_abs, tag = 'smem constant byte address 0x4 - core index']
  #allocation1 [shape = 'u32[72,128]{1,0:T(1,128)}', space=vmem, size = 0x9000, scoped, tag = 'internal scratch']
  #allocation2 [shape = 'bf16[1,9,9,128]{3,2,1,0:T(8,128)(2,1)}', space=vmem, size = 0x9000, scoped, tag = 'scratch operand']
  #allocation3 [shape = 'f32[1,1]{1,0:T(1,128)S(1)}', space=vmem, size = 0x200, scoped, tag = 'scoped memory for _lambda_.7']
  %s0 = inlined_call_operand.vmem [shape: bf16[2,8,8,64], index: 0, kind: input, shape index: {}]
  %s1 = inlined_call_operand.vmem [shape: bf16[2,8,8,64], index: 1, kind: input, shape index: {}]
  %s2 = inlined_call_operand.vmem [shape: bf16[3,3,128,32], index: 2, kind: input, shape index: {}]
  %s3 = inlined_call_operand.vmem [shape: f32[1,32], index: 3, kind: input, shape index: {}]
  %s4 = inlined_call_operand.vmem [shape: f32[32,1], index: 4, kind: input, shape index: {}]
  %s5 = inlined_call_operand.<no memory space> [shape: f32[1,1], index: 5, kind: input, shape index: {}]
  %s6 = inlined_call_operand.hbm [shape: bf16[2,2,2,64,32], index: 6, kind: output, shape index: {0}]
  %s7 = inlined_call_operand.vmem [shape: f32[2,2,2,64,1], index: 7, kind: output, shape index: {1}]
  %8 = xla_tuple %s6, %s7
  %s9 = sld [smem:[#allocation0]]
  $region65: #{_lambda_.7} parent=0
    _
  %s11 = ssub.s32 1, %s9
  %s12 = scalar_select 0, %s11, %s9
  %v13 = vstv %s5
  %14 = vst [vmem:[#allocation3] sm:$0x1] %v13
  $region1: #{_lambda_.7} parent=0
    #allocation4 [shape = 'u8[131072]{0}', space=vmem, size = 0x20000, scoped, tag = 'output window, operand 0']
    #allocation5 [shape = 's32[2]{0}', space=sflag, size = 0x8, scoped, tag = 'scoped memory for _lambda_.7']
    %15 = vsyncpa [#allocation5], 0
    %s16 = scalar_lea.sflag [#allocation5], 1
    %17 = vsyncpa %s16, 0
    loop: start=0, step=1, limit=4
    $region2: #{_lambda_.7} parent=1 // loop_pre_header
      _
    $region3: #{_lambda_.7} parent=1 // loop_header
      %s19 = sphi 0, %s23
      %p20 = scmp.ge.s32.totalorder %s19, 4
      %s29 = sphi 0, %s31
      %s32 = sphi 0, %s29
      %s33 = sphi 0, %s32
      %s49 = sphi 0, %s33
      %s55 = sphi 0, %s57
      %s58 = sphi 0, %s55
      %s59 = sphi 0, %s58
      %s75 = sphi 0, %s59
      %s79 = sphi 0, %s79
      %s81 = sphi 0, %s79
      %s82 = sphi 0, %s81
      %s96 = sphi 0, %s82
      %s100 = sphi 0, %s100
      %s102 = sphi 0, %s100
      %s103 = sphi 0, %s102
      %s117 = sphi 0, %s103
      %s121 = sphi 0, %s121
      %s123 = sphi 0, %s121
      %s124 = sphi 0, %s123
      %s138 = sphi 0, %s124
      %s142 = sphi 0, %s142
      %s144 = sphi 0, %s142
      %s145 = sphi 0, %s144
      %s159 = sphi 0, %s145
      %s165 = sphi 0, %s167
      %s168 = sphi 0, %s165
      %s169 = sphi 0, %s168
      %s185 = sphi 0, %s169
      %s191 = sphi 0, %s193
      %s194 = sphi 0, %s191
      %s195 = sphi 0, %s194
      %s211 = sphi 0, %s195
    $region4: #{_lambda_.7} parent=1 // loop_header_branch
      %22 = sbr.rel (%p20) target = $region8
    $region5: #{_lambda_.7} parent=1 // loop_body
      %s24 = ssub.s32 %s19, 1
      %s25 = ssub.s32 %s19, 2
      %s26 = sadd.s32 %s19, 1
      %s27 = ssub.s32 %s19, %s26
      %p28 = scmp.eq.s32.totalorder %s27, 0
      %s30 = sadd.s32 %s29, 1
      %s31 = scalar_select %p28, %s29, %s30
      %p34 = pneg %p28
      %p35 = scmp.eq.s32.totalorder %s19, 1
      %p36 = por %p34, %p35
      %p37 = scmp.ne.s32.totalorder %s29, %s32
      %p38 = scmp.eq.s32.totalorder %s19, 0
      %p39 = por %p37, %p38
      %p40 = scmp.ne.s32.totalorder %s29, %s32
      %p41 = scmp.eq.s32.totalorder %s24, 1
      %p42 = por %p40, %p41
      %p43 = scmp.ne.s32.totalorder %s32, %s33
      %p44 = scmp.eq.s32.totalorder %s24, 0
      %p45 = por %p43, %p44
      %p46 = scmp.ne.s32.totalorder %s32, %s33
      %p47 = scmp.eq.s32.totalorder %s25, 1
      %p48 = por %p46, %p47
      %p50 = scmp.ne.s32.totalorder %s33, %s49
      %p51 = scmp.eq.s32.totalorder %s25, 0
      %p52 = por %p50, %p51
      %s53 = ssub.s32 %s19, %s26
      %p54 = scmp.eq.s32.totalorder %s53, 0
      %s56 = sadd.s32 %s55, 1
      %s57 = scalar_select %p54, %s55, %s56
      %p60 = pneg %p54
      %p61 = scmp.eq.s32.totalorder %s19, 1
      %p62 = por %p60, %p61
      %p63 = scmp.ne.s32.totalorder %s55, %s58
      %p64 = scmp.eq.s32.totalorder %s19, 0
      %p65 = por %p63, %p64
      %p66 = scmp.ne.s32.totalorder %s55, %s58
      %p67 = scmp.eq.s32.totalorder %s24, 1
      %p68 = por %p66, %p67
      %p69 = scmp.ne.s32.totalorder %s58, %s59
      %p70 = scmp.eq.s32.totalorder %s24, 0
      %p71 = por %p69, %p70
      %p72 = scmp.ne.s32.totalorder %s58, %s59
      %p73 = scmp.eq.s32.totalorder %s25, 1
      %p74 = por %p72, %p73
      %p76 = scmp.ne.s32.totalorder %s59, %s75
      %p77 = scmp.eq.s32.totalorder %s25, 0
      %p78 = por %p76, %p77
      %s80 = sadd.s32 %s79, 1
      %p83 = scmp.eq.s32.totalorder %s19, 1
      %p84 = scmp.ne.s32.totalorder %s79, %s81
      %p85 = scmp.eq.s32.totalorder %s19, 0
      %p86 = por %p84, %p85
      %p87 = scmp.ne.s32.totalorder %s79, %s81
      %p88 = scmp.eq.s32.totalorder %s24, 1
      %p89 = por %p87, %p88
      %p90 = scmp.ne.s32.totalorder %s81, %s82
      %p91 = scmp.eq.s32.totalorder %s24, 0
      %p92 = por %p90, %p91
      %p93 = scmp.ne.s32.totalorder %s81, %s82
      %p94 = scmp.eq.s32.totalorder %s25, 1
      %p95 = por %p93, %p94
      %p97 = scmp.ne.s32.totalorder %s82, %s96
      %p98 = scmp.eq.s32.totalorder %s25, 0
      %p99 = por %p97, %p98
      %s101 = sadd.s32 %s100, 1
      %p104 = scmp.eq.s32.totalorder %s19, 1
      %p105 = scmp.ne.s32.totalorder %s100, %s102
      %p106 = scmp.eq.s32.totalorder %s19, 0
      %p107 = por %p105, %p106
      %p108 = scmp.ne.s32.totalorder %s100, %s102
      %p109 = scmp.eq.s32.totalorder %s24, 1
      %p110 = por %p108, %p109
      %p111 = scmp.ne.s32.totalorder %s102, %s103
      %p112 = scmp.eq.s32.totalorder %s24, 0
      %p113 = por %p111, %p112
      %p114 = scmp.ne.s32.totalorder %s102, %s103
      %p115 = scmp.eq.s32.totalorder %s25, 1
      %p116 = por %p114, %p115
      %p118 = scmp.ne.s32.totalorder %s103, %s117
      %p119 = scmp.eq.s32.totalorder %s25, 0
      %p120 = por %p118, %p119
      %s122 = sadd.s32 %s121, 1
      %p125 = scmp.eq.s32.totalorder %s19, 1
      %p126 = scmp.ne.s32.totalorder %s121, %s123
      %p127 = scmp.eq.s32.totalorder %s19, 0
      %p128 = por %p126, %p127
      %p129 = scmp.ne.s32.totalorder %s121, %s123
      %p130 = scmp.eq.s32.totalorder %s24, 1
      %p131 = por %p129, %p130
      %p132 = scmp.ne.s32.totalorder %s123, %s124
      %p133 = scmp.eq.s32.totalorder %s24, 0
      %p134 = por %p132, %p133
      %p135 = scmp.ne.s32.totalorder %s123, %s124
      %p136 = scmp.eq.s32.totalorder %s25, 1
      %p137 = por %p135, %p136
      %p139 = scmp.ne.s32.totalorder %s124, %s138
      %p140 = scmp.eq.s32.totalorder %s25, 0
      %p141 = por %p139, %p140
      %s143 = sadd.s32 %s142, 1
      %p146 = scmp.eq.s32.totalorder %s19, 1
      %p147 = scmp.ne.s32.totalorder %s142, %s144
      %p148 = scmp.eq.s32.totalorder %s19, 0
      %p149 = por %p147, %p148
      %p150 = scmp.ne.s32.totalorder %s142, %s144
      %p151 = scmp.eq.s32.totalorder %s24, 1
      %p152 = por %p150, %p151
      %p153 = scmp.ne.s32.totalorder %s144, %s145
      %p154 = scmp.eq.s32.totalorder %s24, 0
      %p155 = por %p153, %p154
      %p156 = scmp.ne.s32.totalorder %s144, %s145
      %p157 = scmp.eq.s32.totalorder %s25, 1
      %p158 = por %p156, %p157
      %p160 = scmp.ne.s32.totalorder %s145, %s159
      %p161 = scmp.eq.s32.totalorder %s25, 0
      %p162 = por %p160, %p161
      %s163 = ssub.s32 %s19, %s26
      %p164 = scmp.eq.s32.totalorder %s163, 0
      %s166 = sadd.s32 %s165, 1
      %s167 = scalar_select %p164, %s165, %s166
      %p170 = pneg %p164
      %p171 = scmp.eq.s32.totalorder %s19, 1
      %p172 = por %p170, %p171
      %p173 = scmp.ne.s32.totalorder %s165, %s168
      %p174 = scmp.eq.s32.totalorder %s19, 0
      %p175 = por %p173, %p174
      %p176 = scmp.ne.s32.totalorder %s165, %s168
      %p177 = scmp.eq.s32.totalorder %s24, 1
      %p178 = por %p176, %p177
      %p179 = scmp.ne.s32.totalorder %s168, %s169
      %p180 = scmp.eq.s32.totalorder %s24, 0
      %p181 = por %p179, %p180
      %p182 = scmp.ne.s32.totalorder %s168, %s169
      %p183 = scmp.eq.s32.totalorder %s25, 1
      %p184 = por %p182, %p183
      %p186 = scmp.ne.s32.totalorder %s169, %s185
      %p187 = scmp.eq.s32.totalorder %s25, 0
      %p188 = por %p186, %p187
      %s189 = ssub.s32 %s19, %s26
      %p190 = scmp.eq.s32.totalorder %s189, 0
      %s192 = sadd.s32 %s191, 1
      %s193 = scalar_select %p190, %s191, %s192
      %p196 = pneg %p190
      %p197 = scmp.eq.s32.totalorder %s19, 1
      %p198 = por %p196, %p197
      %p199 = scmp.ne.s32.totalorder %s191, %s194
      %p200 = scmp.eq.s32.totalorder %s19, 0
      %p201 = por %p199, %p200
      %p202 = scmp.ne.s32.totalorder %s191, %s194
      %p203 = scmp.eq.s32.totalorder %s24, 1
      %p204 = por %p202, %p203
      %p205 = scmp.ne.s32.totalorder %s194, %s195
      %p206 = scmp.eq.s32.totalorder %s24, 0
      %p207 = por %p205, %p206
      %p208 = scmp.ne.s32.totalorder %s194, %s195
      %p209 = scmp.eq.s32.totalorder %s25, 1
      %p210 = por %p208, %p209
      %p212 = scmp.ne.s32.totalorder %s195, %s211
      %p213 = scmp.eq.s32.totalorder %s25, 0
      %p214 = por %p212, %p213
      %p215 = scmp.le.s32.totalorder 1, %s19
      %p216 = scmp.lt.s32.totalorder %s19, 3
      %p217 = pnand %p215, %p216
      %p218 = pneg %p217
      // Predicated region
      $region9: #{_lambda_.7} parent=5 // pred_check
        _
      $region10: #{_lambda_.7} parent=5 // pred_check_branch
        %220 = sbr.rel (%p217) target = $region12
      $region11: #{_lambda_.7} parent=5 // pred_region
        %s221 = ssub.s32 %s19, 1
        // Predicated region
        $region13: #{_lambda_.7} parent=11 // pred_check
          %p222 = pneg %p92
        $region14: #{_lambda_.7} parent=11 // pred_check_branch
          %224 = sbr.rel (%p222) target = $region16
        $region15: #{_lambda_.7} parent=11 // pred_region
          _
        $region16: #{_lambda_.7} parent=11 // pred_fallthru
          _
        // Predicated region
        $region17: #{_lambda_.7} parent=11 // pred_check
          %p225 = pneg %p113
        $region18: #{_lambda_.7} parent=11 // pred_check_branch
          %227 = sbr.rel (%p225) target = $region20
        $region19: #{_lambda_.7} parent=11 // pred_region
          _
        $region20: #{_lambda_.7} parent=11 // pred_fallthru
          _
        // Predicated region
        $region21: #{_lambda_.7} parent=11 // pred_check
          %p228 = pneg %p134
        $region22: #{_lambda_.7} parent=11 // pred_check_branch
          %230 = sbr.rel (%p228) target = $region24
        $region23: #{_lambda_.7} parent=11 // pred_region
          _
        $region24: #{_lambda_.7} parent=11 // pred_fallthru
          _
        // Predicated region
        $region25: #{_lambda_.7} parent=11 // pred_check
          %p231 = pneg %p155
        $region26: #{_lambda_.7} parent=11 // pred_check_branch
          %233 = sbr.rel (%p231) target = $region28
        $region27: #{_lambda_.7} parent=11 // pred_region
          _
        $region28: #{_lambda_.7} parent=11 // pred_fallthru
          _
      $region12: #{_lambda_.7} parent=5 // pred_fallthru
        _
      %p234 = scmp.lt.s32.totalorder %s19, 2
      // Predicated region
      $region29: #{_lambda_.7} parent=5 // pred_check
        %p235 = pneg %p234
      $region30: #{_lambda_.7} parent=5 // pred_check_branch
        %237 = sbr.rel (%p235) target = $region32
      $region31: #{_lambda_.7} parent=5 // pred_region
        // Predicated region
        $region33: #{_lambda_.7} parent=31 // pred_check
          %p238 = pneg %p39
        $region34: #{_lambda_.7} parent=31 // pred_check_branch
          %240 = sbr.rel (%p238) target = $region36
        $region35: #{_lambda_.7} parent=31 // pred_region
          %p241 = scmp.lt.s32.totalorder %s19, 1
          %s242 = scalar_select %p241, %s19, 1
          %s243 = smul.addr %s242, 8
          %s244 = smul.addr %s243, 4
          %s245 = scalar_lea.vmem %s0, %s244
        $region36: #{_lambda_.7} parent=31 // pred_fallthru
          _
        // Predicated region
        $region37: #{_lambda_.7} parent=31 // pred_check
          %p246 = pneg %p65
        $region38: #{_lambda_.7} parent=31 // pred_check_branch
          %248 = sbr.rel (%p246) target = $region40
        $region39: #{_lambda_.7} parent=31 // pred_region
          %p249 = scmp.lt.s32.totalorder %s19, 1
          %s250 = scalar_select %p249, %s19, 1
          %s251 = smul.addr %s250, 8
          %s252 = smul.addr %s251, 4
          %s253 = scalar_lea.vmem %s1, %s252
        $region40: #{_lambda_.7} parent=31 // pred_fallthru
          _
      $region32: #{_lambda_.7} parent=5 // pred_fallthru
        _
      %p254 = scmp.le.s32.totalorder 1, %s19
      %p255 = scmp.lt.s32.totalorder %s19, 3
      %p256 = pnand %p254, %p255
      %p257 = pneg %p256
      // Predicated region
      $region41: #{_lambda_.7} parent=5 // pred_check
        _
      $region42: #{_lambda_.7} parent=5 // pred_check_branch
        %259 = sbr.rel (%p256) target = $region44
      $region43: #{_lambda_.7} parent=5 // pred_region
        %s260 = ssub.s32 %s19, 1
        %p261 = scmp.lt.s32.totalorder %s24, 1
        %s262 = scalar_select %p261, %s24, 1
        %s263 = smul.addr %s262, 8
        %s264 = smul.addr %s263, 4
        %s265 = scalar_lea.vmem %s0, %s264
        %p266 = pneg %p45
        %p267 = pneg %p42
        %p268 = scmp.lt.s32.totalorder %s24, 1
        %s269 = scalar_select %p268, %s24, 1
        %s270 = smul.addr %s269, 8
        %s271 = smul.addr %s270, 4
        %s272 = scalar_lea.vmem %s1, %s271
        %p273 = pneg %p71
        %p274 = pneg %p68
        %p275 = pneg %p92
        %p276 = pneg %p89
        %p277 = pneg %p113
        %p278 = pneg %p110
        %p279 = pneg %p134
        %p280 = pneg %p131
        %p281 = pneg %p155
        %p282 = pneg %p152
        %p283 = pneg %p181
        %p284 = pneg %p178
        %s285 = sand.u32 %s168, 1
        %s286 = scalar_lea.sflag [#allocation5], %s285
        %s287 = sand.u32 %s168, 1
        %s288 = smul.addr %s287, 128
        %s289 = scalar_lea.vmem [#allocation4], %s288
        %p290 = pneg %p207
        %p291 = pneg %p204
        %p292 = scmp.lt.s32.totalorder %s24, 1
        %s293 = scalar_select %p292, %s24, 1
        %s294 = smul.addr %s293, 32
        %s295 = smul.addr %s294, 8
        %s296 = scalar_lea.vmem %s7, %s295
        %p297 = scmp.lt.s32.totalorder %s24, 1
        %s298 = scalar_select %p297, %s24, 1
        %s299 = smul.addr %s298, 8
        %s300 = smul.addr %s299, 4
        %s301 = scalar_lea.vmem %s0, %s300
        %p302 = scmp.lt.s32.totalorder %s24, 1
        %s303 = scalar_select %p302, %s24, 1
        %s304 = smul.addr %s303, 8
        %s305 = smul.addr %s304, 4
        %s306 = scalar_lea.vmem %s1, %s305
        %p307 = scmp.lt.s32.totalorder %s24, 1
        %s308 = scalar_select %p307, %s24, 1
        %s309 = smul.addr %s308, 32
        %s310 = smul.addr %s309, 8
        %s311 = scalar_lea.vmem %s7, %s310
        %313 = vst [vmem:[#allocation2] sm:$0xf] 0
        %vm314 = vcmask 1040384
        %vm315 = vsmask.f32 256
        %vm316 = vmand %vm314, %vm315
        %v317 = vld [vmem:[#allocation2 + $0x4] sm:$0x1]
        %v318 = vsel %vm316, 0, %v317
        %319 = vst [vmem:[#allocation2 + $0x4] sm:$0x1] %v318
        %320 = vst [vmem:[#allocation2 + $0x8] sm:$0xf] 0
        %v321 = vld [vmem:[#allocation2 + $0xc] sm:$0x1]
        %v322 = vsel %vm316, 0, %v321
        %323 = vst [vmem:[#allocation2 + $0xc] sm:$0x1] %v322
        %324 = vst [vmem:[#allocation2 + $0x10] sm:$0xf] 0
        %v325 = vld [vmem:[#allocation2 + $0x14] sm:$0x1]
        %v326 = vsel %vm316, 0, %v325
        %327 = vst [vmem:[#allocation2 + $0x14] sm:$0x1] %v326
        %328 = vst [vmem:[#allocation2 + $0x18] sm:$0xf] 0
        %v329 = vld [vmem:[#allocation2 + $0x1c] sm:$0x1]
        %v330 = vsel %vm316, 0, %v329
        %331 = vst [vmem:[#allocation2 + $0x1c] sm:$0x1] %v330
        %332 = vst [vmem:[#allocation2 + $0x20] sm:$0xf] 0
        %v333 = vld [vmem:[#allocation2 + $0x24] sm:$0x1]
        %v334 = vsel %vm316, 0, %v333
        %335 = vst [vmem:[#allocation2 + $0x24] sm:$0x1] %v334
        %336 = vst [vmem:[#allocation2 + $0x28] sm:$0xf] 0
        %v337 = vld [vmem:[#allocation2 + $0x2c] sm:$0x1]
        %v338 = vsel %vm316, 0, %v337
        %339 = vst [vmem:[#allocation2 + $0x2c] sm:$0x1] %v338
        %340 = vst [vmem:[#allocation2 + $0x30] sm:$0xf] 0
        %v341 = vld [vmem:[#allocation2 + $0x34] sm:$0x1]
        %v342 = vsel %vm316, 0, %v341
        %343 = vst [vmem:[#allocation2 + $0x34] sm:$0x1] %v342
        %344 = vst [vmem:[#allocation2 + $0x38] sm:$0xf] 0
        %v345 = vld [vmem:[#allocation2 + $0x3c] sm:$0x1]
        %v346 = vsel %vm316, 0, %v345
        %347 = vst [vmem:[#allocation2 + $0x3c] sm:$0x1] %v346
        %348 = vst [vmem:[#allocation2 + $0x40] sm:$0xf] 0
        %v349 = vld [vmem:[#allocation2 + $0x44] sm:$0x1]
        %v350 = vsel %vm316, 0, %v349
        %351 = vst [vmem:[#allocation2 + $0x44] sm:$0x1] %v350
        %v352 = vld [vmem:[%s301] sm:$0xf]
        %v353 = vld [vmem:[%s301 + $0x4] sm:$0xf]
        %v354 = vld [vmem:[%s301 + $0x8] sm:$0xf]
        %v355 = vld [vmem:[%s301 + $0xc] sm:$0xf]
        %v356 = vld [vmem:[%s301 + $0x10] sm:$0xf]
        %v357 = vld [vmem:[%s301 + $0x14] sm:$0xf]
        %v358 = vld [vmem:[%s301 + $0x18] sm:$0xf]
        %v359 = vld [vmem:[%s301 + $0x1c] sm:$0xf]
        %vm360 = vcmask 519168
        %361 = vst.msk [vmem:[#allocation2] sm:$0xf] %vm360, %v352
        %362 = vst.msk [vmem:[#allocation2 + $0x8] sm:$0xf] %vm360, %v353
        %363 = vst.msk [vmem:[#allocation2 + $0x10] sm:$0xf] %vm360, %v354
        %364 = vst.msk [vmem:[#allocation2 + $0x18] sm:$0xf] %vm360, %v355
        %365 = vst.msk [vmem:[#allocation2 + $0x20] sm:$0xf] %vm360, %v356
        %366 = vst.msk [vmem:[#allocation2 + $0x28] sm:$0xf] %vm360, %v357
        %367 = vst.msk [vmem:[#allocation2 + $0x30] sm:$0xf] %vm360, %v358
        %368 = vst.msk [vmem:[#allocation2 + $0x38] sm:$0xf] %vm360, %v359
        %v369 = vld [vmem:[%s306] sm:$0xf]
        %v370 = vld [vmem:[%s306 + $0x4] sm:$0xf]
        %v371 = vld [vmem:[%s306 + $0x8] sm:$0xf]
        %v372 = vld [vmem:[%s306 + $0xc] sm:$0xf]
        %v373 = vld [vmem:[%s306 + $0x10] sm:$0xf]
        %v374 = vld [vmem:[%s306 + $0x14] sm:$0xf]
        %v375 = vld [vmem:[%s306 + $0x18] sm:$0xf]
        %v376 = vld [vmem:[%s306 + $0x1c] sm:$0xf]
        %385 = vrot.lane.b32.xlu0 %v369, 64
        %v386 = vpop.permute.xlu0 %385
        %387 = vrot.lane.b32.xlu0 %v370, 64
        %v388 = vpop.permute.xlu0 %387
        %389 = vrot.lane.b32.xlu0 %v371, 64
        %v390 = vpop.permute.xlu0 %389
        %391 = vrot.lane.b32.xlu0 %v372, 64
        %v392 = vpop.permute.xlu0 %391
        %393 = vrot.lane.b32.xlu0 %v373, 64
        %v394 = vpop.permute.xlu0 %393
        %395 = vrot.lane.b32.xlu0 %v374, 64
        %v396 = vpop.permute.xlu0 %395
        %397 = vrot.lane.b32.xlu0 %v375, 64
        %v398 = vpop.permute.xlu0 %397
        %399 = vrot.lane.b32.xlu0 %v376, 64
        %v400 = vpop.permute.xlu0 %399
        %vm409 = vcmask 1043968
        %410 = vst.msk [vmem:[#allocation2] sm:$0xf] %vm409, %v386
        %411 = vst.msk [vmem:[#allocation2 + $0x8] sm:$0xf] %vm409, %v388
        %412 = vst.msk [vmem:[#allocation2 + $0x10] sm:$0xf] %vm409, %v390
        %413 = vst.msk [vmem:[#allocation2 + $0x18] sm:$0xf] %vm409, %v392
        %414 = vst.msk [vmem:[#allocation2 + $0x20] sm:$0xf] %vm409, %v394
        %415 = vst.msk [vmem:[#allocation2 + $0x28] sm:$0xf] %vm409, %v396
        %416 = vst.msk [vmem:[#allocation2 + $0x30] sm:$0xf] %vm409, %v398
        %417 = vst.msk [vmem:[#allocation2 + $0x38] sm:$0xf] %vm409, %v400
        %v418 = vld [vmem:[%s3] sm:$0x1]
        %v419 = vld [vmem:[%s4] sm:$0xff]
        %v420 = vld [vmem:[%s4 + $0x8] sm:$0xff]
        %v421 = vld [vmem:[%s4 + $0x10] sm:$0xff]
        %v422 = vld [vmem:[%s4 + $0x18] sm:$0xff]
        %v423 = vld [vmem:[#allocation3] sm:$0x1]
        %v424 = vld [vmem:[#allocation2] sm:$0xf]
        %v425 = vld [vmem:[#allocation2 + $0x8] sm:$0xf]
        %v426 = vld [vmem:[#allocation2 + $0x10] sm:$0xf]
        %v427 = vld [vmem:[#allocation2 + $0x18] sm:$0xf]
        %v428 = vld [vmem:[#allocation2 + $0x20] sm:$0xf]
        %v429 = vld [vmem:[#allocation2 + $0x28] sm:$0xf]
        %v430 = vld [vmem:[#allocation2 + $0x30] sm:$0xf]
        %v431 = vld [vmem:[#allocation2 + $0x38] sm:$0xf]
        %s432 = scalar_lea.vmem %s2, 256
        %v433 = vld [vmem:[%s432] sm:$0xf]
        %v434 = vld [vmem:[%s432 + $0x4] sm:$0xf]
        %v435 = vld [vmem:[%s432 + $0x8] sm:$0xf]
        %v436 = vld [vmem:[%s432 + $0xc] sm:$0xf]
        %v437 = vld [vmem:[%s432 + $0x10] sm:$0xf]
        %v438 = vld [vmem:[%s432 + $0x14] sm:$0xf]
        %v439 = vld [vmem:[%s432 + $0x18] sm:$0xf]
        %v440 = vld [vmem:[%s432 + $0x1c] sm:$0xf]
        %v441 = vld [vmem:[%s432 + $0x20] sm:$0xf]
        %v442 = vld [vmem:[%s432 + $0x24] sm:$0xf]
        %v443 = vld [vmem:[%s432 + $0x28] sm:$0xf]
        %v444 = vld [vmem:[%s432 + $0x2c] sm:$0xf]
        %v445 = vld [vmem:[%s432 + $0x30] sm:$0xf]
        %v446 = vld [vmem:[%s432 + $0x34] sm:$0xf]
        %v447 = vld [vmem:[%s432 + $0x38] sm:$0xf]
        %v448 = vld [vmem:[%s432 + $0x3c] sm:$0xf]
        %v450 = vperm.slane %v418, 0
        %v460 = vunpack.c.l.b16 %v424
        %v461 = vunpack.c.l.b16 %v425
        %v462 = vunpack.c.l.b16 %v426
        %v463 = vunpack.c.l.b16 %v427
        %v464 = vunpack.c.l.b16 %v428
        %v465 = vunpack.c.l.b16 %v429
        %v466 = vunpack.c.l.b16 %v430
        %v467 = vunpack.c.l.b16 %v431
        %v468 = vpack.c.b16 %v461, %v460
        %v469 = vpack.c.b16 %v463, %v462
        %v470 = vpack.c.b16 %v465, %v464
        %v471 = vpack.c.b16 %v467, %v466
        %v492 = vunpack.c.l.b16 %v433
        %v493 = vunpack.c.l.b16 %v434
        %v494 = vunpack.c.l.b16 %v435
        %v495 = vunpack.c.l.b16 %v436
        %v496 = vunpack.c.l.b16 %v437
        %v497 = vunpack.c.l.b16 %v438
        %v498 = vunpack.c.l.b16 %v439
        %v499 = vunpack.c.l.b16 %v440
        %v500 = vunpack.c.l.b16 %v441
        %v501 = vunpack.c.l.b16 %v442
        %v502 = vunpack.c.l.b16 %v443
        %v503 = vunpack.c.l.b16 %v444
        %v504 = vunpack.c.l.b16 %v445
        %v505 = vunpack.c.l.b16 %v446
        %v506 = vunpack.c.l.b16 %v447
        %v507 = vunpack.c.l.b16 %v448
        %v508 = vpack.c.b16 %v493, %v492
        %v509 = vpack.c.b16 %v495, %v494
        %v510 = vpack.c.b16 %v497, %v496
        %v511 = vpack.c.b16 %v499, %v498
        %v512 = vpack.c.b16 %v501, %v500
        %v513 = vpack.c.b16 %v503, %v502
        %v514 = vpack.c.b16 %v505, %v504
        %v515 = vpack.c.b16 %v507, %v506
        %524 = vmatpush.bf16.msra.mxu0 %v515
        %525 = vmatpush.bf16.msra.mxu0 %v514
        %526 = vmatpush.bf16.msra.mxu0 %v513
        %527 = vmatpush.bf16.msra.mxu0 %v512
        %528 = vmatpush.bf16.msra.mxu0 %v511
        %529 = vmatpush.bf16.msra.mxu0 %v510
        %530 = vmatpush.bf16.msra.mxu0 %v509
        %531 = vmatpush.bf16.msra.mxu0 %v508
        %532 = vmatmul.bf16.gmra.mxu0 %v468
        %v533 = vpop.f32.mrf.mxu0
        %v534 = vadd.f32 %v450, %v533
        %v535 = vpop.f32.mrf.mxu0
        %v536 = vadd.f32 %v450, %v535
        %537 = vmatmul.bf16.gmra.mxu0 %v469
        %v538 = vpop.f32.mrf.mxu0
        %v539 = vadd.f32 %v450, %v538
        %v540 = vpop.f32.mrf.mxu0
        %v541 = vadd.f32 %v450, %v540
        %542 = vmatmul.bf16.gmra.mxu0 %v470
        %v543 = vpop.f32.mrf.mxu0
        %v544 = vadd.f32 %v450, %v543
        %v545 = vpop.f32.mrf.mxu0
        %v546 = vadd.f32 %v450, %v545
        %547 = vmatmul.bf16.gmra.mxu0 %v471
        %v548 = vpop.f32.mrf.mxu0
        %v549 = vadd.f32 %v450, %v548
        %v550 = vpop.f32.mrf.mxu0
        %v551 = vadd.f32 %v450, %v550
        %552 = vdwg.mxu0
        %vm553 = vcmp.ge.f32.partialorder %v534, 0.0
        %vm554 = vcmp.ge.f32.partialorder %v536, 0.0
        %vm555 = vcmp.ge.f32.partialorder %v539, 0.0
        %vm556 = vcmp.ge.f32.partialorder %v541, 0.0
        %vm557 = vcmp.ge.f32.partialorder %v544, 0.0
        %vm558 = vcmp.ge.f32.partialorder %v546, 0.0
        %vm559 = vcmp.ge.f32.partialorder %v549, 0.0
        %vm560 = vcmp.ge.f32.partialorder %v551, 0.0
        %v561 = vmul.f32 %v534, 0.2
        %v562 = vmul.f32 %v536, 0.2
        %v563 = vmul.f32 %v539, 0.2
        %v564 = vmul.f32 %v541, 0.2
        %v565 = vmul.f32 %v544, 0.2
        %v566 = vmul.f32 %v546, 0.2
        %v567 = vmul.f32 %v549, 0.2
        %v568 = vmul.f32 %v551, 0.2
        %v569 = vsel %vm553, %v534, %v561
        %v570 = vsel %vm554, %v536, %v562
        %v571 = vsel %vm555, %v539, %v563
        %v572 = vsel %vm556, %v541, %v564
        %v573 = vsel %vm557, %v544, %v565
        %v574 = vsel %vm558, %v546, %v566
        %v575 = vsel %vm559, %v549, %v567
        %v576 = vsel %vm560, %v551, %v568
        %v577 = vpack.c.bf16 %v569, %v569
        %v578 = vpack.c.bf16 %v570, %v570
        %v579 = vpack.c.bf16 %v571, %v571
        %v580 = vpack.c.bf16 %v572, %v572
        %v581 = vpack.c.bf16 %v573, %v573
        %v582 = vpack.c.bf16 %v574, %v574
        %v583 = vpack.c.bf16 %v575, %v575
        %v584 = vpack.c.bf16 %v576, %v576
        %vm585 = vcmask 257024
        %586 = vst.msk [vmem:[%s289] sm:$0xf] %vm585, %v577
        %587 = vst.msk [vmem:[%s289 + $0x4] sm:$0xf] %vm585, %v578
        %588 = vst.msk [vmem:[%s289 + $0x8] sm:$0xf] %vm585, %v579
        %589 = vst.msk [vmem:[%s289 + $0xc] sm:$0xf] %vm585, %v580
        %590 = vst.msk [vmem:[%s289 + $0x10] sm:$0xf] %vm585, %v581
        %591 = vst.msk [vmem:[%s289 + $0x14] sm:$0xf] %vm585, %v582
        %592 = vst.msk [vmem:[%s289 + $0x18] sm:$0xf] %vm585, %v583
        %593 = vst.msk [vmem:[%s289 + $0x1c] sm:$0xf] %vm585, %v584
        %v595 = vperm.slane %v423, 0
        %vm597 = vcmask 261120
        %v599 = vsel %vm597, %v569, 0
        %v602 = vsel %vm597, %v570, 0
        %v605 = vsel %vm597, %v571, 0
        %v608 = vsel %vm597, %v572, 0
        %v611 = vsel %vm597, %v573, 0
        %v614 = vsel %vm597, %v574, 0
        %v617 = vsel %vm597, %v575, 0
        %v620 = vsel %vm597, %v576, 0
        %622 = vmatpush.msra.mxu0 0.0
        %623 = vmatpush.msra.mxu0 0.0
        %624 = vmatpush.msra.mxu0 0.0
        %625 = vmatpush.msra.mxu0 0.0
        %626 = vmatpush.msra.mxu0 0.0
        %627 = vmatpush.msra.mxu0 0.0
        %628 = vmatpush.msra.mxu0 0.0
        %629 = vmatpush.msra.mxu0 0.0
        %630 = vmatpush.msra.mxu0 0.0
        %631 = vmatpush.msra.mxu0 0.0
        %632 = vmatpush.msra.mxu0 0.0
        %633 = vmatpush.msra.mxu0 0.0
        %634 = vmatpush.msra.mxu0 %v422
        %635 = vmatpush.msra.mxu0 %v421
        %636 = vmatpush.msra.mxu0 %v420
        %637 = vmatpush.msra.mxu0 %v419
        %638 = vmatmul.f32.gmra.mxu0 %v599
        %v639 = vpop.f32.mrf.mxu0
        %v640 = vadd.f32 %v595, %v639
        %641 = vmatmul.f32.gmra.mxu0 %v602
        %v642 = vpop.f32.mrf.mxu0
        %v643 = vadd.f32 %v595, %v642
        %644 = vmatmul.f32.gmra.mxu0 %v605
        %v645 = vpop.f32.mrf.mxu0
        %v646 = vadd.f32 %v595, %v645
        %647 = vmatmul.f32.gmra.mxu0 %v608
        %v648 = vpop.f32.mrf.mxu0
        %v649 = vadd.f32 %v595, %v648
        %650 = vmatmul.f32.gmra.mxu0 %v611
        %v651 = vpop.f32.mrf.mxu0
        %v652 = vadd.f32 %v595, %v651
        %653 = vmatmul.f32.gmra.mxu0 %v614
        %v654 = vpop.f32.mrf.mxu0
        %v655 = vadd.f32 %v595, %v654
        %656 = vmatmul.f32.gmra.mxu0 %v617
        %v657 = vpop.f32.mrf.mxu0
        %v658 = vadd.f32 %v595, %v657
        %659 = vmatmul.f32.gmra.mxu0 %v620
        %v660 = vpop.f32.mrf.mxu0
        %v661 = vadd.f32 %v595, %v660
        %662 = vdwg.mxu0
        %vm663 = vcmask 7168
        %664 = vst.msk [vmem:[%s311] sm:$0xff] %vm663, %v640
        %665 = vst.msk [vmem:[%s311 + $0x8] sm:$0xff] %vm663, %v643
        %666 = vst.msk [vmem:[%s311 + $0x10] sm:$0xff] %vm663, %v646
        %667 = vst.msk [vmem:[%s311 + $0x18] sm:$0xff] %vm663, %v649
        %668 = vst.msk [vmem:[%s311 + $0x20] sm:$0xff] %vm663, %v652
        %669 = vst.msk [vmem:[%s311 + $0x28] sm:$0xff] %vm663, %v655
        %670 = vst.msk [vmem:[%s311 + $0x30] sm:$0xff] %vm663, %v658
        %671 = vst.msk [vmem:[%s311 + $0x38] sm:$0xff] %vm663, %v661
        %v672 = vld [vmem:[#allocation2] sm:$0xf]
        %v673 = vld [vmem:[#allocation2 + $0x8] sm:$0xf]
        %v674 = vld [vmem:[#allocation2 + $0x10] sm:$0xf]
        %v675 = vld [vmem:[#allocation2 + $0x18] sm:$0xf]
        %v676 = vld [vmem:[#allocation2 + $0x20] sm:$0xf]
        %v677 = vld [vmem:[#allocation2 + $0x28] sm:$0xf]
        %v678 = vld [vmem:[#allocation2 + $0x30] sm:$0xf]
        %v679 = vld [vmem:[#allocation2 + $0x38] sm:$0xf]
        %s680 = scalar_lea.vmem %s2, 320
        %v681 = vld [vmem:[%s680] sm:$0xf]
        %v682 = vld [vmem:[%s680 + $0x4] sm:$0xf]
        %v683 = vld [vmem:[%s680 + $0x8] sm:$0xf]
        %v684 = vld [vmem:[%s680 + $0xc] sm:$0xf]
        %v685 = vld [vmem:[%s680 + $0x10] sm:$0xf]
        %v686 = vld [vmem:[%s680 + $0x14] sm:$0xf]
        %v687 = vld [vmem:[%s680 + $0x18] sm:$0xf]
        %v688 = vld [vmem:[%s680 + $0x1c] sm:$0xf]
        %v689 = vld [vmem:[%s680 + $0x20] sm:$0xf]
        %v690 = vld [vmem:[%s680 + $0x24] sm:$0xf]
        %v691 = vld [vmem:[%s680 + $0x28] sm:$0xf]
        %v692 = vld [vmem:[%s680 + $0x2c] sm:$0xf]
        %v693 = vld [vmem:[%s680 + $0x30] sm:$0xf]
        %v694 = vld [vmem:[%s680 + $0x34] sm:$0xf]
        %v695 = vld [vmem:[%s680 + $0x38] sm:$0xf]
        %v696 = vld [vmem:[%s680 + $0x3c] sm:$0xf]
        %v697 = vld [vmem:[#allocation2 + $0x4] sm:$0x1]
        %v698 = vld [vmem:[#allocation2 + $0xc] sm:$0x1]
        %v699 = vld [vmem:[#allocation2 + $0x14] sm:$0x1]
        %v700 = vld [vmem:[#allocation2 + $0x1c] sm:$0x1]
        %v701 = vld [vmem:[#allocation2 + $0x24] sm:$0x1]
        %v702 = vld [vmem:[#allocation2 + $0x2c] sm:$0x1]
        %v703 = vld [vmem:[#allocation2 + $0x34] sm:$0x1]
        %v704 = vld [vmem:[#allocation2 + $0x3c] sm:$0x1]
        %vm705 = vsmask.f32 3328
        %vm706 = vsmask.f32 7440
        %vm707 = vmor %vm705, %vm706
        %v709 = vshrl.u32 %v672, 16
        %v711 = vrot.slane %v709, 4
        %v712 = vshll.u32 %v672, 16
        %v714 = vrot.slane %v712, 5
        %v715 = vor.u32 %v711, %v714
        %v716 = vrot.slane %v715, 4
        %v718 = vshll.u32 %v697, 16
        %v720 = vrot.slane %v718, 5
        %v721 = vsel %vm707, %v716, %v720
        %v723 = vshrl.u32 %v673, 16
        %v725 = vrot.slane %v723, 4
        %v726 = vshll.u32 %v673, 16
        %v728 = vrot.slane %v726, 5
        %v729 = vor.u32 %v725, %v728
        %v730 = vrot.slane %v729, 4
        %v732 = vshll.u32 %v698, 16
        %v734 = vrot.slane %v732, 5
        %v735 = vsel %vm707, %v730, %v734
        %v737 = vshrl.u32 %v674, 16
        %v739 = vrot.slane %v737, 4
        %v740 = vshll.u32 %v674, 16
        %v742 = vrot.slane %v740, 5
        %v743 = vor.u32 %v739, %v742
        %v744 = vrot.slane %v743, 4
        %v746 = vshll.u32 %v699, 16
        %v748 = vrot.slane %v746, 5
        %v749 = vsel %vm707, %v744, %v748
        %v751 = vshrl.u32 %v675, 16
        %v753 = vrot.slane %v751, 4
        %v754 = vshll.u32 %v675, 16
        %v756 = vrot.slane %v754, 5
        %v757 = vor.u32 %v753, %v756
        %v758 = vrot.slane %v757, 4
        %v760 = vshll.u32 %v700, 16
        %v762 = vrot.slane %v760, 5
        %v763 = vsel %vm707, %v758, %v762
        %v765 = vshrl.u32 %v676, 16
        %v767 = vrot.slane %v765, 4
        %v768 = vshll.u32 %v676, 16
        %v770 = vrot.slane %v768, 5
        %v771 = vor.u32 %v767, %v770
        %v772 = vrot.slane %v771, 4
        %v774 = vshll.u32 %v701, 16
        %v776 = vrot.slane %v774, 5
        %v777 = vsel %vm707, %v772, %v776
        %v779 = vshrl.u32 %v677, 16
        %v781 = vrot.slane %v779, 4
        %v782 = vshll.u32 %v677, 16
        %v784 = vrot.slane %v782, 5
        %v785 = vor.u32 %v781, %v784
        %v786 = vrot.slane %v785, 4
        %v788 = vshll.u32 %v702, 16
        %v790 = vrot.slane %v788, 5
        %v791 = vsel %vm707, %v786, %v790
        %v793 = vshrl.u32 %v678, 16
        %v795 = vrot.slane %v793, 4
        %v796 = vshll.u32 %v678, 16
        %v798 = vrot.slane %v796, 5
        %v799 = vor.u32 %v795, %v798
        %v800 = vrot.slane %v799, 4
        %v802 = vshll.u32 %v703, 16
        %v804 = vrot.slane %v802, 5
        %v805 = vsel %vm707, %v800, %v804
        %v807 = vshrl.u32 %v679, 16
        %v809 = vrot.slane %v807, 4
        %v810 = vshll.u32 %v679, 16
        %v812 = vrot.slane %v810, 5
        %v813 = vor.u32 %v809, %v812
        %v814 = vrot.slane %v813, 4
        %v816 = vshll.u32 %v704, 16
        %v818 = vrot.slane %v816, 5
        %v819 = vsel %vm707, %v814, %v818
        %s820 = scalar_lea.vmem %s2, 192
        %v821 = vld [vmem:[%s820] sm:$0xf]
        %v822 = vld [vmem:[%s820 + $0x4] sm:$0xf]
        %v823 = vld [vmem:[%s820 + $0x8] sm:$0xf]
        %v824 = vld [vmem:[%s820 + $0xc] sm:$0xf]
        %v825 = vld [vmem:[%s820 + $0x10] sm:$0xf]
        %v826 = vld [vmem:[%s820 + $0x14] sm:$0xf]
        %v827 = vld [vmem:[%s820 + $0x18] sm:$0xf]
        %v828 = vld [vmem:[%s820 + $0x1c] sm:$0xf]
        %v829 = vld [vmem:[%s820 + $0x20] sm:$0xf]
        %v830 = vld [vmem:[%s820 + $0x24] sm:$0xf]
        %v831 = vld [vmem:[%s820 + $0x28] sm:$0xf]
        %v832 = vld [vmem:[%s820 + $0x2c] sm:$0xf]
        %v833 = vld [vmem:[%s820 + $0x30] sm:$0xf]
        %v834 = vld [vmem:[%s820 + $0x34] sm:$0xf]
        %v835 = vld [vmem:[%s820 + $0x38] sm:$0xf]
        %v836 = vld [vmem:[%s820 + $0x3c] sm:$0xf]
        %v837 = vunpack.c.l.b16 %v721
        %v838 = vunpack.c.l.b16 %v735
        %v839 = vunpack.c.l.b16 %v749
        %v840 = vunpack.c.l.b16 %v763
        %v841 = vunpack.c.l.b16 %v777
        %v842 = vunpack.c.l.b16 %v791
        %v843 = vunpack.c.l.b16 %v805
        %v844 = vunpack.c.l.b16 %v819
        %v845 = vpack.c.b16 %v838, %v837
        %v846 = vpack.c.b16 %v840, %v839
        %v847 = vpack.c.b16 %v842, %v841
        %v848 = vpack.c.b16 %v844, %v843
        %v869 = vunpack.c.l.b16 %v821
        %v870 = vunpack.c.l.b16 %v822
        %v871 = vunpack.c.l.b16 %v823
        %v872 = vunpack.c.l.b16 %v824
        %v873 = vunpack.c.l.b16 %v825
        %v874 = vunpack.c.l.b16 %v826
        %v875 = vunpack.c.l.b16 %v827
        %v876 = vunpack.c.l.b16 %v828
        %v877 = vunpack.c.l.b16 %v829
        %v878 = vunpack.c.l.b16 %v830
        %v879 = vunpack.c.l.b16 %v831
        %v880 = vunpack.c.l.b16 %v832
        %v881 = vunpack.c.l.b16 %v833
        %v882 = vunpack.c.l.b16 %v834
        %v883 = vunpack.c.l.b16 %v835
        %v884 = vunpack.c.l.b16 %v836
        %v885 = vpack.c.b16 %v870, %v869
        %v886 = vpack.c.b16 %v872, %v871
        %v887 = vpack.c.b16 %v874, %v873
        %v888 = vpack.c.b16 %v876, %v875
        %v889 = vpack.c.b16 %v878, %v877
        %v890 = vpack.c.b16 %v880, %v879
        %v891 = vpack.c.b16 %v882, %v881
        %v892 = vpack.c.b16 %v884, %v883
        %901 = vmatpush.bf16.msra.mxu0 %v892
        %902 = vmatpush.bf16.msra.mxu0 %v891
        %903 = vmatpush.bf16.msra.mxu0 %v890
        %904 = vmatpush.bf16.msra.mxu0 %v889
        %905 = vmatpush.bf16.msra.mxu0 %v888
        %906 = vmatpush.bf16.msra.mxu0 %v887
        %907 = vmatpush.bf16.msra.mxu0 %v886
        %908 = vmatpush.bf16.msra.mxu0 %v885
        %909 = vmatmul.bf16.gmra.mxu0 %v845
        %v910 = vpop.f32.mrf.mxu0
        %v911 = vadd.f32 0.0, %v910
        %v912 = vpop.f32.mrf.mxu0
        %v913 = vadd.f32 0.0, %v912
        %914 = vmatmul.bf16.gmra.mxu0 %v846
        %v915 = vpop.f32.mrf.mxu0
        %v916 = vadd.f32 0.0, %v915
        %v917 = vpop.f32.mrf.mxu0
        %v918 = vadd.f32 0.0, %v917
        %919 = vmatmul.bf16.gmra.mxu0 %v847
        %v920 = vpop.f32.mrf.mxu0
        %v921 = vadd.f32 0.0, %v920
        %v922 = vpop.f32.mrf.mxu0
        %v923 = vadd.f32 0.0, %v922
        %924 = vmatmul.bf16.gmra.mxu0 %v848
        %v925 = vpop.f32.mrf.mxu0
        %v926 = vadd.f32 0.0, %v925
        %v927 = vpop.f32.mrf.mxu0
        %v928 = vadd.f32 0.0, %v927
        %929 = vdwg.mxu0
        %v938 = vunpack.c.l.b16 %v672
        %v939 = vunpack.c.l.b16 %v673
        %v940 = vunpack.c.l.b16 %v674
        %v941 = vunpack.c.l.b16 %v675
        %v942 = vunpack.c.l.b16 %v676
        %v943 = vunpack.c.l.b16 %v677
        %v944 = vunpack.c.l.b16 %v678
        %v945 = vunpack.c.l.b16 %v679
        %v946 = vpack.c.b16 %v939, %v938
        %v947 = vpack.c.b16 %v941, %v940
        %v948 = vpack.c.b16 %v943, %v942
        %v949 = vpack.c.b16 %v945, %v944
        %v970 = vunpack.c.l.b16 %v681
        %v971 = vunpack.c.l.b16 %v682
        %v972 = vunpack.c.l.b16 %v683
        %v973 = vunpack.c.l.b16 %v684
        %v974 = vunpack.c.l.b16 %v685
        %v975 = vunpack.c.l.b16 %v686
        %v976 = vunpack.c.l.b16 %v687
        %v977 = vunpack.c.l.b16 %v688
        %v978 = vunpack.c.l.b16 %v689
        %v979 = vunpack.c.l.b16 %v690
        %v980 = vunpack.c.l.b16 %v691
        %v981 = vunpack.c.l.b16 %v692
        %v982 = vunpack.c.l.b16 %v693
        %v983 = vunpack.c.l.b16 %v694
        %v984 = vunpack.c.l.b16 %v695
        %v985 = vunpack.c.l.b16 %v696
        %v986 = vpack.c.b16 %v971, %v970
        %v987 = vpack.c.b16 %v973, %v972
        %v988 = vpack.c.b16 %v975, %v974
        %v989 = vpack.c.b16 %v977, %v976
        %v990 = vpack.c.b16 %v979, %v978
        %v991 = vpack.c.b16 %v981, %v980
        %v992 = vpack.c.b16 %v983, %v982
        %v993 = vpack.c.b16 %v985, %v984
        %1002 = vmatpush.bf16.msra.mxu0 %v993
        %1003 = vmatpush.bf16.msra.mxu0 %v992
        %1004 = vmatpush.bf16.msra.mxu0 %v991
        %1005 = vmatpush.bf16.msra.mxu0 %v990
        %1006 = vmatpush.bf16.msra.mxu0 %v989
        %1007 = vmatpush.bf16.msra.mxu0 %v988
        %1008 = vmatpush.bf16.msra.mxu0 %v987
        %1009 = vmatpush.bf16.msra.mxu0 %v986
        %1010 = vmatmul.bf16.gmra.mxu0 %v946
        %v1011 = vpop.f32.mrf.mxu0
        %v1012 = vadd.f32 %v911, %v1011
        %v1013 = vpop.f32.mrf.mxu0
        %v1014 = vadd.f32 %v913, %v1013
        %1015 = vmatmul.bf16.gmra.mxu0 %v947
        %v1016 = vpop.f32.mrf.mxu0
        %v1017 = vadd.f32 %v916, %v1016
        %v1018 = vpop.f32.mrf.mxu0
        %v1019 = vadd.f32 %v918, %v1018
        %1020 = vmatmul.bf16.gmra.mxu0 %v948
        %v1021 = vpop.f32.mrf.mxu0
        %v1022 = vadd.f32 %v921, %v1021
        %v1023 = vpop.f32.mrf.mxu0
        %v1024 = vadd.f32 %v923, %v1023
        %1025 = vmatmul.bf16.gmra.mxu0 %v949
        %v1026 = vpop.f32.mrf.mxu0
        %v1027 = vadd.f32 %v926, %v1026
        %v1028 = vpop.f32.mrf.mxu0
        %v1029 = vadd.f32 %v928, %v1028
        %1030 = vdwg.mxu0
        %v1031 = vadd.f32 %v1012, %v450
        %v1032 = vadd.f32 %v1014, %v450
        %v1033 = vadd.f32 %v1017, %v450
        %v1034 = vadd.f32 %v1019, %v450
        %v1035 = vadd.f32 %v1022, %v450
        %v1036 = vadd.f32 %v1024, %v450
        %v1037 = vadd.f32 %v1027, %v450
        %v1038 = vadd.f32 %v1029, %v450
        %vm1039 = vcmp.ge.f32.partialorder %v1031, 0.0
        %vm1040 = vcmp.ge.f32.partialorder %v1032, 0.0
        %vm1041 = vcmp.ge.f32.partialorder %v1033, 0.0
        %vm1042 = vcmp.ge.f32.partialorder %v1034, 0.0
        %vm1043 = vcmp.ge.f32.partialorder %v1035, 0.0
        %vm1044 = vcmp.ge.f32.partialorder %v1036, 0.0
        %vm1045 = vcmp.ge.f32.partialorder %v1037, 0.0
        %vm1046 = vcmp.ge.f32.partialorder %v1038, 0.0
        %v1047 = vmul.f32 %v1031, 0.2
        %v1048 = vmul.f32 %v1032, 0.2
        %v1049 = vmul.f32 %v1033, 0.2
        %v1050 = vmul.f32 %v1034, 0.2
        %v1051 = vmul.f32 %v1035, 0.2
        %v1052 = vmul.f32 %v1036, 0.2
        %v1053 = vmul.f32 %v1037, 0.2
        %v1054 = vmul.f32 %v1038, 0.2
        %v1055 = vsel %vm1039, %v1031, %v1047
        %v1056 = vsel %vm1040, %v1032, %v1048
        %v1057 = vsel %vm1041, %v1033, %v1049
        %v1058 = vsel %vm1042, %v1034, %v1050
        %v1059 = vsel %vm1043, %v1035, %v1051
        %v1060 = vsel %vm1044, %v1036, %v1052
        %v1061 = vsel %vm1045, %v1037, %v1053
        %v1062 = vsel %vm1046, %v1038, %v1054
        %v1063 = vpack.c.bf16 %v1055, %v1055
        %v1064 = vpack.c.bf16 %v1056, %v1056
        %v1065 = vpack.c.bf16 %v1057, %v1057
        %v1066 = vpack.c.bf16 %v1058, %v1058
        %v1067 = vpack.c.bf16 %v1059, %v1059
        %v1068 = vpack.c.bf16 %v1060, %v1060
        %v1069 = vpack.c.bf16 %v1061, %v1061
        %v1070 = vpack.c.bf16 %v1062, %v1062
        %s1071 = scalar_lea.vmem %s289, 32 [#allocation4]
        %1072 = vst.msk [vmem:[%s1071] sm:$0xf] %vm585, %v1063
        %1073 = vst.msk [vmem:[%s1071 + $0x4] sm:$0xf] %vm585, %v1064
        %1074 = vst.msk [vmem:[%s1071 + $0x8] sm:$0xf] %vm585, %v1065
        %1075 = vst.msk [vmem:[%s1071 + $0xc] sm:$0xf] %vm585, %v1066
        %1076 = vst.msk [vmem:[%s1071 + $0x10] sm:$0xf] %vm585, %v1067
        %1077 = vst.msk [vmem:[%s1071 + $0x14] sm:$0xf] %vm585, %v1068
        %1078 = vst.msk [vmem:[%s1071 + $0x18] sm:$0xf] %vm585, %v1069
        %1079 = vst.msk [vmem:[%s1071 + $0x1c] sm:$0xf] %vm585, %v1070
        %v1081 = vsel %vm597, %v1055, 0
        %v1084 = vsel %vm597, %v1056, 0
        %v1087 = vsel %vm597, %v1057, 0
        %v1090 = vsel %vm597, %v1058, 0
        %v1093 = vsel %vm597, %v1059, 0
        %v1096 = vsel %vm597, %v1060, 0
        %v1099 = vsel %vm597, %v1061, 0
        %v1102 = vsel %vm597, %v1062, 0
        %1104 = vmatpush.msra.mxu0 0.0
        %1105 = vmatpush.msra.mxu0 0.0
        %1106 = vmatpush.msra.mxu0 0.0
        %1107 = vmatpush.msra.mxu0 0.0
        %1108 = vmatpush.msra.mxu0 0.0
        %1109 = vmatpush.msra.mxu0 0.0
        %1110 = vmatpush.msra.mxu0 0.0
        %1111 = vmatpush.msra.mxu0 0.0
        %1112 = vmatpush.msra.mxu0 0.0
        %1113 = vmatpush.msra.mxu0 0.0
        %1114 = vmatpush.msra.mxu0 0.0
        %1115 = vmatpush.msra.mxu0 0.0
        %1116 = vmatpush.msra.mxu0 %v422
        %1117 = vmatpush.msra.mxu0 %v421
        %1118 = vmatpush.msra.mxu0 %v420
        %1119 = vmatpush.msra.mxu0 %v419
        %1120 = vmatmul.f32.gmra.mxu0 %v1081
        %v1121 = vpop.f32.mrf.mxu0
        %v1122 = vadd.f32 %v595, %v1121
        %1123 = vmatmul.f32.gmra.mxu0 %v1084
        %v1124 = vpop.f32.mrf.mxu0
        %v1125 = vadd.f32 %v595, %v1124
        %1126 = vmatmul.f32.gmra.mxu0 %v1087
        %v1127 = vpop.f32.mrf.mxu0
        %v1128 = vadd.f32 %v595, %v1127
        %1129 = vmatmul.f32.gmra.mxu0 %v1090
        %v1130 = vpop.f32.mrf.mxu0
        %v1131 = vadd.f32 %v595, %v1130
        %1132 = vmatmul.f32.gmra.mxu0 %v1093
        %v1133 = vpop.f32.mrf.mxu0
        %v1134 = vadd.f32 %v595, %v1133
        %1135 = vmatmul.f32.gmra.mxu0 %v1096
        %v1136 = vpop.f32.mrf.mxu0
        %v1137 = vadd.f32 %v595, %v1136
        %1138 = vmatmul.f32.gmra.mxu0 %v1099
        %v1139 = vpop.f32.mrf.mxu0
        %v1140 = vadd.f32 %v595, %v1139
        %1141 = vmatmul.f32.gmra.mxu0 %v1102
        %v1142 = vpop.f32.mrf.mxu0
        %v1143 = vadd.f32 %v595, %v1142
        %1144 = vdwg.mxu0
        %s1145 = scalar_lea.vmem %s311, 64
        %1146 = vst.msk [vmem:[%s1145] sm:$0xff] %vm663, %v1122
        %1147 = vst.msk [vmem:[%s1145 + $0x8] sm:$0xff] %vm663, %v1125
        %1148 = vst.msk [vmem:[%s1145 + $0x10] sm:$0xff] %vm663, %v1128
        %1149 = vst.msk [vmem:[%s1145 + $0x18] sm:$0xff] %vm663, %v1131
        %1150 = vst.msk [vmem:[%s1145 + $0x20] sm:$0xff] %vm663, %v1134
        %1151 = vst.msk [vmem:[%s1145 + $0x28] sm:$0xff] %vm663, %v1137
        %1152 = vst.msk [vmem:[%s1145 + $0x30] sm:$0xff] %vm663, %v1140
        %1153 = vst.msk [vmem:[%s1145 + $0x38] sm:$0xff] %vm663, %v1143
        %v1154 = vld [vmem:[#allocation2] sm:$0xf]
        %v1155 = vld [vmem:[#allocation2 + $0x8] sm:$0xf]
        %v1156 = vld [vmem:[#allocation2 + $0x10] sm:$0xf]
        %v1157 = vld [vmem:[#allocation2 + $0x18] sm:$0xf]
        %v1158 = vld [vmem:[#allocation2 + $0x20] sm:$0xf]
        %v1159 = vld [vmem:[#allocation2 + $0x28] sm:$0xf]
        %v1160 = vld [vmem:[#allocation2 + $0x30] sm:$0xf]
        %v1161 = vld [vmem:[#allocation2 + $0x38] sm:$0xf]
        %s1162 = scalar_lea.vmem %s2, 448
        %v1163 = vld [vmem:[%s1162] sm:$0xf]
        %v1164 = vld [vmem:[%s1162 + $0x4] sm:$0xf]
        %v1165 = vld [vmem:[%s1162 + $0x8] sm:$0xf]
        %v1166 = vld [vmem:[%s1162 + $0xc] sm:$0xf]
        %v1167 = vld [vmem:[%s1162 + $0x10] sm:$0xf]
        %v1168 = vld [vmem:[%s1162 + $0x14] sm:$0xf]
        %v1169 = vld [vmem:[%s1162 + $0x18] sm:$0xf]
        %v1170 = vld [vmem:[%s1162 + $0x1c] sm:$0xf]
        %v1171 = vld [vmem:[%s1162 + $0x20] sm:$0xf]
        %v1172 = vld [vmem:[%s1162 + $0x24] sm:$0xf]
        %v1173 = vld [vmem:[%s1162 + $0x28] sm:$0xf]
        %v1174 = vld [vmem:[%s1162 + $0x2c] sm:$0xf]
        %v1175 = vld [vmem:[%s1162 + $0x30] sm:$0xf]
        %v1176 = vld [vmem:[%s1162 + $0x34] sm:$0xf]
        %v1177 = vld [vmem:[%s1162 + $0x38] sm:$0xf]
        %v1178 = vld [vmem:[%s1162 + $0x3c] sm:$0xf]
        %s1179 = scalar_lea.vmem [#allocation2], 8
        %v1180 = vld [vmem:[%s1179] sm:$0xf]
        %v1181 = vld [vmem:[%s1179 + $0x8] sm:$0xf]
        %v1182 = vld [vmem:[%s1179 + $0x10] sm:$0xf]
        %v1183 = vld [vmem:[%s1179 + $0x18] sm:$0xf]
        %v1184 = vld [vmem:[%s1179 + $0x20] sm:$0xf]
        %v1185 = vld [vmem:[%s1179 + $0x28] sm:$0xf]
        %v1186 = vld [vmem:[%s1179 + $0x30] sm:$0xf]
        %v1187 = vld [vmem:[%s1179 + $0x38] sm:$0xf]
        %s1188 = scalar_lea.vmem %s2, 64
        %v1189 = vld [vmem:[%s1188] sm:$0xf]
        %v1190 = vld [vmem:[%s1188 + $0x4] sm:$0xf]
        %v1191 = vld [vmem:[%s1188 + $0x8] sm:$0xf]
        %v1192 = vld [vmem:[%s1188 + $0xc] sm:$0xf]
        %v1193 = vld [vmem:[%s1188 + $0x10] sm:$0xf]
        %v1194 = vld [vmem:[%s1188 + $0x14] sm:$0xf]
        %v1195 = vld [vmem:[%s1188 + $0x18] sm:$0xf]
        %v1196 = vld [vmem:[%s1188 + $0x1c] sm:$0xf]
        %v1197 = vld [vmem:[%s1188 + $0x20] sm:$0xf]
        %v1198 = vld [vmem:[%s1188 + $0x24] sm:$0xf]
        %v1199 = vld [vmem:[%s1188 + $0x28] sm:$0xf]
        %v1200 = vld [vmem:[%s1188 + $0x2c] sm:$0xf]
        %v1201 = vld [vmem:[%s1188 + $0x30] sm:$0xf]
        %v1202 = vld [vmem:[%s1188 + $0x34] sm:$0xf]
        %v1203 = vld [vmem:[%s1188 + $0x38] sm:$0xf]
        %v1204 = vld [vmem:[%s1188 + $0x3c] sm:$0xf]
        %v1213 = vunpack.c.l.b16 %v1180
        %v1214 = vunpack.c.l.b16 %v1181
        %v1215 = vunpack.c.l.b16 %v1182
        %v1216 = vunpack.c.l.b16 %v1183
        %v1217 = vunpack.c.l.b16 %v1184
        %v1218 = vunpack.c.l.b16 %v1185
        %v1219 = vunpack.c.l.b16 %v1186
        %v1220 = vunpack.c.l.b16 %v1187
        %v1221 = vpack.c.b16 %v1214, %v1213
        %v1222 = vpack.c.b16 %v1216, %v1215
        %v1223 = vpack.c.b16 %v1218, %v1217
        %v1224 = vpack.c.b16 %v1220, %v1219
        %v1245 = vunpack.c.l.b16 %v1189
        %v1246 = vunpack.c.l.b16 %v1190
        %v1247 = vunpack.c.l.b16 %v1191
        %v1248 = vunpack.c.l.b16 %v1192
        %v1249 = vunpack.c.l.b16 %v1193
        %v1250 = vunpack.c.l.b16 %v1194
        %v1251 = vunpack.c.l.b16 %v1195
        %v1252 = vunpack.c.l.b16 %v1196
        %v1253 = vunpack.c.l.b16 %v1197
        %v1254 = vunpack.c.l.b16 %v1198
        %v1255 = vunpack.c.l.b16 %v1199
        %v1256 = vunpack.c.l.b16 %v1200
        %v1257 = vunpack.c.l.b16 %v1201
        %v1258 = vunpack.c.l.b16 %v1202
        %v1259 = vunpack.c.l.b16 %v1203
        %v1260 = vunpack.c.l.b16 %v1204
        %v1261 = vpack.c.b16 %v1246, %v1245
        %v1262 = vpack.c.b16 %v1248, %v1247
        %v1263 = vpack.c.b16 %v1250, %v1249
        %v1264 = vpack.c.b16 %v1252, %v1251
        %v1265 = vpack.c.b16 %v1254, %v1253
        %v1266 = vpack.c.b16 %v1256, %v1255
        %v1267 = vpack.c.b16 %v1258, %v1257
        %v1268 = vpack.c.b16 %v1260, %v1259
        %1277 = vmatpush.bf16.msra.mxu0 %v1268
        %1278 = vmatpush.bf16.msra.mxu0 %v1267
        %1279 = vmatpush.bf16.msra.mxu0 %v1266
        %1280 = vmatpush.bf16.msra.mxu0 %v1265
        %1281 = vmatpush.bf16.msra.mxu0 %v1264
        %1282 = vmatpush.bf16.msra.mxu0 %v1263
        %1283 = vmatpush.bf16.msra.mxu0 %v1262
        %1284 = vmatpush.bf16.msra.mxu0 %v1261
        %1285 = vmatmul.bf16.gmra.mxu0 %v1221
        %v1286 = vpop.f32.mrf.mxu0
        %v1287 = vadd.f32 0.0, %v1286
        %v1288 = vpop.f32.mrf.mxu0
        %v1289 = vadd.f32 0.0, %v1288
        %1290 = vmatmul.bf16.gmra.mxu0 %v1222
        %v1291 = vpop.f32.mrf.mxu0
        %v1292 = vadd.f32 0.0, %v1291
        %v1293 = vpop.f32.mrf.mxu0
        %v1294 = vadd.f32 0.0, %v1293
        %1295 = vmatmul.bf16.gmra.mxu0 %v1223
        %v1296 = vpop.f32.mrf.mxu0
        %v1297 = vadd.f32 0.0, %v1296
        %v1298 = vpop.f32.mrf.mxu0
        %v1299 = vadd.f32 0.0, %v1298
        %1300 = vmatmul.bf16.gmra.mxu0 %v1224
        %v1301 = vpop.f32.mrf.mxu0
        %v1302 = vadd.f32 0.0, %v1301
        %v1303 = vpop.f32.mrf.mxu0
        %v1304 = vadd.f32 0.0, %v1303
        %1305 = vdwg.mxu0
        %v1314 = vunpack.c.l.b16 %v1154
        %v1315 = vunpack.c.l.b16 %v1155
        %v1316 = vunpack.c.l.b16 %v1156
        %v1317 = vunpack.c.l.b16 %v1157
        %v1318 = vunpack.c.l.b16 %v1158
        %v1319 = vunpack.c.l.b16 %v1159
        %v1320 = vunpack.c.l.b16 %v1160
        %v1321 = vunpack.c.l.b16 %v1161
        %v1322 = vpack.c.b16 %v1315, %v1314
        %v1323 = vpack.c.b16 %v1317, %v1316
        %v1324 = vpack.c.b16 %v1319, %v1318
        %v1325 = vpack.c.b16 %v1321, %v1320
        %v1346 = vunpack.c.l.b16 %v1163
        %v1347 = vunpack.c.l.b16 %v1164
        %v1348 = vunpack.c.l.b16 %v1165
        %v1349 = vunpack.c.l.b16 %v1166
        %v1350 = vunpack.c.l.b16 %v1167
        %v1351 = vunpack.c.l.b16 %v1168
        %v1352 = vunpack.c.l.b16 %v1169
        %v1353 = vunpack.c.l.b16 %v1170
        %v1354 = vunpack.c.l.b16 %v1171
        %v1355 = vunpack.c.l.b16 %v1172
        %v1356 = vunpack.c.l.b16 %v1173
        %v1357 = vunpack.c.l.b16 %v1174
        %v1358 = vunpack.c.l.b16 %v1175
        %v1359 = vunpack.c.l.b16 %v1176
        %v1360 = vunpack.c.l.b16 %v1177
        %v1361 = vunpack.c.l.b16 %v1178
        %v1362 = vpack.c.b16 %v1347, %v1346
        %v1363 = vpack.c.b16 %v1349, %v1348
        %v1364 = vpack.c.b16 %v1351, %v1350
        %v1365 = vpack.c.b16 %v1353, %v1352
        %v1366 = vpack.c.b16 %v1355, %v1354
        %v1367 = vpack.c.b16 %v1357, %v1356
        %v1368 = vpack.c.b16 %v1359, %v1358
        %v1369 = vpack.c.b16 %v1361, %v1360
        %1378 = vmatpush.bf16.msra.mxu0 %v1369
        %1379 = vmatpush.bf16.msra.mxu0 %v1368
        %1380 = vmatpush.bf16.msra.mxu0 %v1367
        %1381 = vmatpush.bf16.msra.mxu0 %v1366
        %1382 = vmatpush.bf16.msra.mxu0 %v1365
        %1383 = vmatpush.bf16.msra.mxu0 %v1364
        %1384 = vmatpush.bf16.msra.mxu0 %v1363
        %1385 = vmatpush.bf16.msra.mxu0 %v1362
        %1386 = vmatmul.bf16.gmra.mxu0 %v1322
        %v1387 = vpop.f32.mrf.mxu0
        %v1388 = vadd.f32 %v1287, %v1387
        %v1389 = vpop.f32.mrf.mxu0
        %v1390 = vadd.f32 %v1289, %v1389
        %1391 = vmatmul.bf16.gmra.mxu0 %v1323
        %v1392 = vpop.f32.mrf.mxu0
        %v1393 = vadd.f32 %v1292, %v1392
        %v1394 = vpop.f32.mrf.mxu0
        %v1395 = vadd.f32 %v1294, %v1394
        %1396 = vmatmul.bf16.gmra.mxu0 %v1324
        %v1397 = vpop.f32.mrf.mxu0
        %v1398 = vadd.f32 %v1297, %v1397
        %v1399 = vpop.f32.mrf.mxu0
        %v1400 = vadd.f32 %v1299, %v1399
        %1401 = vmatmul.bf16.gmra.mxu0 %v1325
        %v1402 = vpop.f32.mrf.mxu0
        %v1403 = vadd.f32 %v1302, %v1402
        %v1404 = vpop.f32.mrf.mxu0
        %v1405 = vadd.f32 %v1304, %v1404
        %1406 = vdwg.mxu0
        %v1407 = vadd.f32 %v1388, %v450
        %v1408 = vadd.f32 %v1390, %v450
        %v1409 = vadd.f32 %v1393, %v450
        %v1410 = vadd.f32 %v1395, %v450
        %v1411 = vadd.f32 %v1398, %v450
        %v1412 = vadd.f32 %v1400, %v450
        %v1413 = vadd.f32 %v1403, %v450
        %v1414 = vadd.f32 %v1405, %v450
        %vm1415 = vcmp.ge.f32.partialorder %v1407, 0.0
        %vm1416 = vcmp.ge.f32.partialorder %v1408, 0.0
        %vm1417 = vcmp.ge.f32.partialorder %v1409, 0.0
        %vm1418 = vcmp.ge.f32.partialorder %v1410, 0.0
        %vm1419 = vcmp.ge.f32.partialorder %v1411, 0.0
        %vm1420 = vcmp.ge.f32.partialorder %v1412, 0.0
        %vm1421 = vcmp.ge.f32.partialorder %v1413, 0.0
        %vm1422 = vcmp.ge.f32.partialorder %v1414, 0.0
        %v1423 = vmul.f32 %v1407, 0.2
        %v1424 = vmul.f32 %v1408, 0.2
        %v1425 = vmul.f32 %v1409, 0.2
        %v1426 = vmul.f32 %v1410, 0.2
        %v1427 = vmul.f32 %v1411, 0.2
        %v1428 = vmul.f32 %v1412, 0.2
        %v1429 = vmul.f32 %v1413, 0.2
        %v1430 = vmul.f32 %v1414, 0.2
        %v1431 = vsel %vm1415, %v1407, %v1423
        %v1432 = vsel %vm1416, %v1408, %v1424
        %v1433 = vsel %vm1417, %v1409, %v1425
        %v1434 = vsel %vm1418, %v1410, %v1426
        %v1435 = vsel %vm1419, %v1411, %v1427
        %v1436 = vsel %vm1420, %v1412, %v1428
        %v1437 = vsel %vm1421, %v1413, %v1429
        %v1438 = vsel %vm1422, %v1414, %v1430
        %v1439 = vpack.c.bf16 %v1431, %v1431
        %v1440 = vpack.c.bf16 %v1432, %v1432
        %v1441 = vpack.c.bf16 %v1433, %v1433
        %v1442 = vpack.c.bf16 %v1434, %v1434
        %v1443 = vpack.c.bf16 %v1435, %v1435
        %v1444 = vpack.c.bf16 %v1436, %v1436
        %v1445 = vpack.c.bf16 %v1437, %v1437
        %v1446 = vpack.c.bf16 %v1438, %v1438
        %s1447 = scalar_lea.vmem %s289, 64 [#allocation4]
        %1448 = vst.msk [vmem:[%s1447] sm:$0xf] %vm585, %v1439
        %1449 = vst.msk [vmem:[%s1447 + $0x4] sm:$0xf] %vm585, %v1440
        %1450 = vst.msk [vmem:[%s1447 + $0x8] sm:$0xf] %vm585, %v1441
        %1451 = vst.msk [vmem:[%s1447 + $0xc] sm:$0xf] %vm585, %v1442
        %1452 = vst.msk [vmem:[%s1447 + $0x10] sm:$0xf] %vm585, %v1443
        %1453 = vst.msk [vmem:[%s1447 + $0x14] sm:$0xf] %vm585, %v1444
        %1454 = vst.msk [vmem:[%s1447 + $0x18] sm:$0xf] %vm585, %v1445
        %1455 = vst.msk [vmem:[%s1447 + $0x1c] sm:$0xf] %vm585, %v1446
        %v1457 = vsel %vm597, %v1431, 0
        %v1460 = vsel %vm597, %v1432, 0
        %v1463 = vsel %vm597, %v1433, 0
        %v1466 = vsel %vm597, %v1434, 0
        %v1469 = vsel %vm597, %v1435, 0
        %v1472 = vsel %vm597, %v1436, 0
        %v1475 = vsel %vm597, %v1437, 0
        %v1478 = vsel %vm597, %v1438, 0
        %1480 = vmatpush.msra.mxu0 0.0
        %1481 = vmatpush.msra.mxu0 0.0
        %1482 = vmatpush.msra.mxu0 0.0
        %1483 = vmatpush.msra.mxu0 0.0
        %1484 = vmatpush.msra.mxu0 0.0
        %1485 = vmatpush.msra.mxu0 0.0
        %1486 = vmatpush.msra.mxu0 0.0
        %1487 = vmatpush.msra.mxu0 0.0
        %1488 = vmatpush.msra.mxu0 0.0
        %1489 = vmatpush.msra.mxu0 0.0
        %1490 = vmatpush.msra.mxu0 0.0
        %1491 = vmatpush.msra.mxu0 0.0
        %1492 = vmatpush.msra.mxu0 %v422
        %1493 = vmatpush.msra.mxu0 %v421
        %1494 = vmatpush.msra.mxu0 %v420
        %1495 = vmatpush.msra.mxu0 %v419
        %1496 = vmatmul.f32.gmra.mxu0 %v1457
        %v1497 = vpop.f32.mrf.mxu0
        %v1498 = vadd.f32 %v595, %v1497
        %1499 = vmatmul.f32.gmra.mxu0 %v1460
        %v1500 = vpop.f32.mrf.mxu0
        %v1501 = vadd.f32 %v595, %v1500
        %1502 = vmatmul.f32.gmra.mxu0 %v1463
        %v1503 = vpop.f32.mrf.mxu0
        %v1504 = vadd.f32 %v595, %v1503
        %1505 = vmatmul.f32.gmra.mxu0 %v1466
        %v1506 = vpop.f32.mrf.mxu0
        %v1507 = vadd.f32 %v595, %v1506
        %1508 = vmatmul.f32.gmra.mxu0 %v1469
        %v1509 = vpop.f32.mrf.mxu0
        %v1510 = vadd.f32 %v595, %v1509
        %1511 = vmatmul.f32.gmra.mxu0 %v1472
        %v1512 = vpop.f32.mrf.mxu0
        %v1513 = vadd.f32 %v595, %v1512
        %1514 = vmatmul.f32.gmra.mxu0 %v1475
        %v1515 = vpop.f32.mrf.mxu0
        %v1516 = vadd.f32 %v595, %v1515
        %1517 = vmatmul.f32.gmra.mxu0 %v1478
        %v1518 = vpop.f32.mrf.mxu0
        %v1519 = vadd.f32 %v595, %v1518
        %1520 = vdwg.mxu0
        %s1521 = scalar_lea.vmem %s311, 128
        %1522 = vst.msk [vmem:[%s1521] sm:$0xff] %vm663, %v1498
        %1523 = vst.msk [vmem:[%s1521 + $0x8] sm:$0xff] %vm663, %v1501
        %1524 = vst.msk [vmem:[%s1521 + $0x10] sm:$0xff] %vm663, %v1504
        %1525 = vst.msk [vmem:[%s1521 + $0x18] sm:$0xff] %vm663, %v1507
        %1526 = vst.msk [vmem:[%s1521 + $0x20] sm:$0xff] %vm663, %v1510
        %1527 = vst.msk [vmem:[%s1521 + $0x28] sm:$0xff] %vm663, %v1513
        %1528 = vst.msk [vmem:[%s1521 + $0x30] sm:$0xff] %vm663, %v1516
        %1529 = vst.msk [vmem:[%s1521 + $0x38] sm:$0xff] %vm663, %v1519
        %v1530 = vld [vmem:[#allocation2] sm:$0xf]
        %v1531 = vld [vmem:[#allocation2 + $0x8] sm:$0xf]
        %v1532 = vld [vmem:[#allocation2 + $0x10] sm:$0xf]
        %v1533 = vld [vmem:[#allocation2 + $0x18] sm:$0xf]
        %v1534 = vld [vmem:[#allocation2 + $0x20] sm:$0xf]
        %v1535 = vld [vmem:[#allocation2 + $0x28] sm:$0xf]
        %v1536 = vld [vmem:[#allocation2 + $0x30] sm:$0xf]
        %v1537 = vld [vmem:[#allocation2 + $0x38] sm:$0xf]
        %s1538 = scalar_lea.vmem %s2, 512
        %v1539 = vld [vmem:[%s1538] sm:$0xf]
        %v1540 = vld [vmem:[%s1538 + $0x4] sm:$0xf]
        %v1541 = vld [vmem:[%s1538 + $0x8] sm:$0xf]
        %v1542 = vld [vmem:[%s1538 + $0xc] sm:$0xf]
        %v1543 = vld [vmem:[%s1538 + $0x10] sm:$0xf]
        %v1544 = vld [vmem:[%s1538 + $0x14] sm:$0xf]
        %v1545 = vld [vmem:[%s1538 + $0x18] sm:$0xf]
        %v1546 = vld [vmem:[%s1538 + $0x1c] sm:$0xf]
        %v1547 = vld [vmem:[%s1538 + $0x20] sm:$0xf]
        %v1548 = vld [vmem:[%s1538 + $0x24] sm:$0xf]
        %v1549 = vld [vmem:[%s1538 + $0x28] sm:$0xf]
        %v1550 = vld [vmem:[%s1538 + $0x2c] sm:$0xf]
        %v1551 = vld [vmem:[%s1538 + $0x30] sm:$0xf]
        %v1552 = vld [vmem:[%s1538 + $0x34] sm:$0xf]
        %v1553 = vld [vmem:[%s1538 + $0x38] sm:$0xf]
        %v1554 = vld [vmem:[%s1538 + $0x3c] sm:$0xf]
        %v1555 = vld [vmem:[#allocation2 + $0x4] sm:$0x1]
        %v1556 = vld [vmem:[#allocation2 + $0xc] sm:$0x1]
        %v1557 = vld [vmem:[#allocation2 + $0x14] sm:$0x1]
        %v1558 = vld [vmem:[#allocation2 + $0x1c] sm:$0x1]
        %v1559 = vld [vmem:[#allocation2 + $0x24] sm:$0x1]
        %v1560 = vld [vmem:[#allocation2 + $0x2c] sm:$0x1]
        %v1561 = vld [vmem:[#allocation2 + $0x34] sm:$0x1]
        %v1562 = vld [vmem:[#allocation2 + $0x3c] sm:$0x1]
        %v1564 = vshrl.u32 %v1530, 16
        %v1566 = vrot.slane %v1564, 4
        %v1567 = vshll.u32 %v1530, 16
        %v1569 = vrot.slane %v1567, 5
        %v1570 = vor.u32 %v1566, %v1569
        %v1571 = vrot.slane %v1570, 4
        %v1573 = vshll.u32 %v1555, 16
        %v1575 = vrot.slane %v1573, 5
        %v1576 = vsel %vm707, %v1571, %v1575
        %v1578 = vshrl.u32 %v1531, 16
        %v1580 = vrot.slane %v1578, 4
        %v1581 = vshll.u32 %v1531, 16
        %v1583 = vrot.slane %v1581, 5
        %v1584 = vor.u32 %v1580, %v1583
        %v1585 = vrot.slane %v1584, 4
        %v1587 = vshll.u32 %v1556, 16
        %v1589 = vrot.slane %v1587, 5
        %v1590 = vsel %vm707, %v1585, %v1589
        %v1592 = vshrl.u32 %v1532, 16
        %v1594 = vrot.slane %v1592, 4
        %v1595 = vshll.u32 %v1532, 16
        %v1597 = vrot.slane %v1595, 5
        %v1598 = vor.u32 %v1594, %v1597
        %v1599 = vrot.slane %v1598, 4
        %v1601 = vshll.u32 %v1557, 16
        %v1603 = vrot.slane %v1601, 5
        %v1604 = vsel %vm707, %v1599, %v1603
        %v1606 = vshrl.u32 %v1533, 16
        %v1608 = vrot.slane %v1606, 4
        %v1609 = vshll.u32 %v1533, 16
        %v1611 = vrot.slane %v1609, 5
        %v1612 = vor.u32 %v1608, %v1611
        %v1613 = vrot.slane %v1612, 4
        %v1615 = vshll.u32 %v1558, 16
        %v1617 = vrot.slane %v1615, 5
        %v1618 = vsel %vm707, %v1613, %v1617
        %v1620 = vshrl.u32 %v1534, 16
        %v1622 = vrot.slane %v1620, 4
        %v1623 = vshll.u32 %v1534, 16
        %v1625 = vrot.slane %v1623, 5
        %v1626 = vor.u32 %v1622, %v1625
        %v1627 = vrot.slane %v1626, 4
        %v1629 = vshll.u32 %v1559, 16
        %v1631 = vrot.slane %v1629, 5
        %v1632 = vsel %vm707, %v1627, %v1631
        %v1634 = vshrl.u32 %v1535, 16
        %v1636 = vrot.slane %v1634, 4
        %v1637 = vshll.u32 %v1535, 16
        %v1639 = vrot.slane %v1637, 5
        %v1640 = vor.u32 %v1636, %v1639
        %v1641 = vrot.slane %v1640, 4
        %v1643 = vshll.u32 %v1560, 16
        %v1645 = vrot.slane %v1643, 5
        %v1646 = vsel %vm707, %v1641, %v1645
        %v1648 = vshrl.u32 %v1536, 16
        %v1650 = vrot.slane %v1648, 4
        %v1651 = vshll.u32 %v1536, 16
        %v1653 = vrot.slane %v1651, 5
        %v1654 = vor.u32 %v1650, %v1653
        %v1655 = vrot.slane %v1654, 4
        %v1657 = vshll.u32 %v1561, 16
        %v1659 = vrot.slane %v1657, 5
        %v1660 = vsel %vm707, %v1655, %v1659
        %v1662 = vshrl.u32 %v1537, 16
        %v1664 = vrot.slane %v1662, 4
        %v1665 = vshll.u32 %v1537, 16
        %v1667 = vrot.slane %v1665, 5
        %v1668 = vor.u32 %v1664, %v1667
        %v1669 = vrot.slane %v1668, 4
        %v1671 = vshll.u32 %v1562, 16
        %v1673 = vrot.slane %v1671, 5
        %v1674 = vsel %vm707, %v1669, %v1673
        %s1675 = scalar_lea.vmem %s2, 384
        %v1676 = vld [vmem:[%s1675] sm:$0xf]
        %v1677 = vld [vmem:[%s1675 + $0x4] sm:$0xf]
        %v1678 = vld [vmem:[%s1675 + $0x8] sm:$0xf]
        %v1679 = vld [vmem:[%s1675 + $0xc] sm:$0xf]
        %v1680 = vld [vmem:[%s1675 + $0x10] sm:$0xf]
        %v1681 = vld [vmem:[%s1675 + $0x14] sm:$0xf]
        %v1682 = vld [vmem:[%s1675 + $0x18] sm:$0xf]
        %v1683 = vld [vmem:[%s1675 + $0x1c] sm:$0xf]
        %v1684 = vld [vmem:[%s1675 + $0x20] sm:$0xf]
        %v1685 = vld [vmem:[%s1675 + $0x24] sm:$0xf]
        %v1686 = vld [vmem:[%s1675 + $0x28] sm:$0xf]
        %v1687 = vld [vmem:[%s1675 + $0x2c] sm:$0xf]
        %v1688 = vld [vmem:[%s1675 + $0x30] sm:$0xf]
        %v1689 = vld [vmem:[%s1675 + $0x34] sm:$0xf]
        %v1690 = vld [vmem:[%s1675 + $0x38] sm:$0xf]
        %v1691 = vld [vmem:[%s1675 + $0x3c] sm:$0xf]
        %v1692 = vunpack.c.l.b16 %v1576
        %v1693 = vunpack.c.l.b16 %v1590
        %v1694 = vunpack.c.l.b16 %v1604
        %v1695 = vunpack.c.l.b16 %v1618
        %v1696 = vunpack.c.l.b16 %v1632
        %v1697 = vunpack.c.l.b16 %v1646
        %v1698 = vunpack.c.l.b16 %v1660
        %v1699 = vunpack.c.l.b16 %v1674
        %v1700 = vpack.c.b16 %v1693, %v1692
        %v1701 = vpack.c.b16 %v1695, %v1694
        %v1702 = vpack.c.b16 %v1697, %v1696
        %v1703 = vpack.c.b16 %v1699, %v1698
        %v1724 = vunpack.c.l.b16 %v1676
        %v1725 = vunpack.c.l.b16 %v1677
        %v1726 = vunpack.c.l.b16 %v1678
        %v1727 = vunpack.c.l.b16 %v1679
        %v1728 = vunpack.c.l.b16 %v1680
        %v1729 = vunpack.c.l.b16 %v1681
        %v1730 = vunpack.c.l.b16 %v1682
        %v1731 = vunpack.c.l.b16 %v1683
        %v1732 = vunpack.c.l.b16 %v1684
        %v1733 = vunpack.c.l.b16 %v1685
        %v1734 = vunpack.c.l.b16 %v1686
        %v1735 = vunpack.c.l.b16 %v1687
        %v1736 = vunpack.c.l.b16 %v1688
        %v1737 = vunpack.c.l.b16 %v1689
        %v1738 = vunpack.c.l.b16 %v1690
        %v1739 = vunpack.c.l.b16 %v1691
        %v1740 = vpack.c.b16 %v1725, %v1724
        %v1741 = vpack.c.b16 %v1727, %v1726
        %v1742 = vpack.c.b16 %v1729, %v1728
        %v1743 = vpack.c.b16 %v1731, %v1730
        %v1744 = vpack.c.b16 %v1733, %v1732
        %v1745 = vpack.c.b16 %v1735, %v1734
        %v1746 = vpack.c.b16 %v1737, %v1736
        %v1747 = vpack.c.b16 %v1739, %v1738
        %1756 = vmatpush.bf16.msra.mxu0 %v1747
        %1757 = vmatpush.bf16.msra.mxu0 %v1746
        %1758 = vmatpush.bf16.msra.mxu0 %v1745
        %1759 = vmatpush.bf16.msra.mxu0 %v1744
        %1760 = vmatpush.bf16.msra.mxu0 %v1743
        %1761 = vmatpush.bf16.msra.mxu0 %v1742
        %1762 = vmatpush.bf16.msra.mxu0 %v1741
        %1763 = vmatpush.bf16.msra.mxu0 %v1740
        %1764 = vmatmul.bf16.gmra.mxu0 %v1700
        %v1765 = vpop.f32.mrf.mxu0
        %v1766 = vadd.f32 0.0, %v1765
        %v1767 = vpop.f32.mrf.mxu0
        %v1768 = vadd.f32 0.0, %v1767
        %1769 = vmatmul.bf16.gmra.mxu0 %v1701
        %v1770 = vpop.f32.mrf.mxu0
        %v1771 = vadd.f32 0.0, %v1770
        %v1772 = vpop.f32.mrf.mxu0
        %v1773 = vadd.f32 0.0, %v1772
        %1774 = vmatmul.bf16.gmra.mxu0 %v1702
        %v1775 = vpop.f32.mrf.mxu0
        %v1776 = vadd.f32 0.0, %v1775
        %v1777 = vpop.f32.mrf.mxu0
        %v1778 = vadd.f32 0.0, %v1777
        %1779 = vmatmul.bf16.gmra.mxu0 %v1703
        %v1780 = vpop.f32.mrf.mxu0
        %v1781 = vadd.f32 0.0, %v1780
        %v1782 = vpop.f32.mrf.mxu0
        %v1783 = vadd.f32 0.0, %v1782
        %1784 = vdwg.mxu0
        %v1793 = vunpack.c.l.b16 %v1530
        %v1794 = vunpack.c.l.b16 %v1531
        %v1795 = vunpack.c.l.b16 %v1532
        %v1796 = vunpack.c.l.b16 %v1533
        %v1797 = vunpack.c.l.b16 %v1534
        %v1798 = vunpack.c.l.b16 %v1535
        %v1799 = vunpack.c.l.b16 %v1536
        %v1800 = vunpack.c.l.b16 %v1537
        %v1801 = vpack.c.b16 %v1794, %v1793
        %v1802 = vpack.c.b16 %v1796, %v1795
        %v1803 = vpack.c.b16 %v1798, %v1797
        %v1804 = vpack.c.b16 %v1800, %v1799
        %v1825 = vunpack.c.l.b16 %v1539
        %v1826 = vunpack.c.l.b16 %v1540
        %v1827 = vunpack.c.l.b16 %v1541
        %v1828 = vunpack.c.l.b16 %v1542
        %v1829 = vunpack.c.l.b16 %v1543
        %v1830 = vunpack.c.l.b16 %v1544
        %v1831 = vunpack.c.l.b16 %v1545
        %v1832 = vunpack.c.l.b16 %v1546
        %v1833 = vunpack.c.l.b16 %v1547
        %v1834 = vunpack.c.l.b16 %v1548
        %v1835 = vunpack.c.l.b16 %v1549
        %v1836 = vunpack.c.l.b16 %v1550
        %v1837 = vunpack.c.l.b16 %v1551
        %v1838 = vunpack.c.l.b16 %v1552
        %v1839 = vunpack.c.l.b16 %v1553
        %v1840 = vunpack.c.l.b16 %v1554
        %v1841 = vpack.c.b16 %v1826, %v1825
        %v1842 = vpack.c.b16 %v1828, %v1827
        %v1843 = vpack.c.b16 %v1830, %v1829
        %v1844 = vpack.c.b16 %v1832, %v1831
        %v1845 = vpack.c.b16 %v1834, %v1833
        %v1846 = vpack.c.b16 %v1836, %v1835
        %v1847 = vpack.c.b16 %v1838, %v1837
        %v1848 = vpack.c.b16 %v1840, %v1839
        %1857 = vmatpush.bf16.msra.mxu0 %v1848
        %1858 = vmatpush.bf16.msra.mxu0 %v1847
        %1859 = vmatpush.bf16.msra.mxu0 %v1846
        %1860 = vmatpush.bf16.msra.mxu0 %v1845
        %1861 = vmatpush.bf16.msra.mxu0 %v1844
        %1862 = vmatpush.bf16.msra.mxu0 %v1843
        %1863 = vmatpush.bf16.msra.mxu0 %v1842
        %1864 = vmatpush.bf16.msra.mxu0 %v1841
        %1865 = vmatmul.bf16.gmra.mxu0 %v1801
        %v1866 = vpop.f32.mrf.mxu0
        %v1867 = vadd.f32 %v1766, %v1866
        %v1868 = vpop.f32.mrf.mxu0
        %v1869 = vadd.f32 %v1768, %v1868
        %1870 = vmatmul.bf16.gmra.mxu0 %v1802
        %v1871 = vpop.f32.mrf.mxu0
        %v1872 = vadd.f32 %v1771, %v1871
        %v1873 = vpop.f32.mrf.mxu0
        %v1874 = vadd.f32 %v1773, %v1873
        %1875 = vmatmul.bf16.gmra.mxu0 %v1803
        %v1876 = vpop.f32.mrf.mxu0
        %v1877 = vadd.f32 %v1776, %v1876
        %v1878 = vpop.f32.mrf.mxu0
        %v1879 = vadd.f32 %v1778, %v1878
        %1880 = vmatmul.bf16.gmra.mxu0 %v1804
        %v1881 = vpop.f32.mrf.mxu0
        %v1882 = vadd.f32 %v1781, %v1881
        %v1883 = vpop.f32.mrf.mxu0
        %v1884 = vadd.f32 %v1783, %v1883
        %1885 = vdwg.mxu0
        %v1886 = vld [vmem:[%s1179] sm:$0xf]
        %v1887 = vld [vmem:[%s1179 + $0x8] sm:$0xf]
        %v1888 = vld [vmem:[%s1179 + $0x10] sm:$0xf]
        %v1889 = vld [vmem:[%s1179 + $0x18] sm:$0xf]
        %v1890 = vld [vmem:[%s1179 + $0x20] sm:$0xf]
        %v1891 = vld [vmem:[%s1179 + $0x28] sm:$0xf]
        %v1892 = vld [vmem:[%s1179 + $0x30] sm:$0xf]
        %v1893 = vld [vmem:[%s1179 + $0x38] sm:$0xf]
        %s1894 = scalar_lea.vmem %s2, 128
        %v1895 = vld [vmem:[%s1894] sm:$0xf]
        %v1896 = vld [vmem:[%s1894 + $0x4] sm:$0xf]
        %v1897 = vld [vmem:[%s1894 + $0x8] sm:$0xf]
        %v1898 = vld [vmem:[%s1894 + $0xc] sm:$0xf]
        %v1899 = vld [vmem:[%s1894 + $0x10] sm:$0xf]
        %v1900 = vld [vmem:[%s1894 + $0x14] sm:$0xf]
        %v1901 = vld [vmem:[%s1894 + $0x18] sm:$0xf]
        %v1902 = vld [vmem:[%s1894 + $0x1c] sm:$0xf]
        %v1903 = vld [vmem:[%s1894 + $0x20] sm:$0xf]
        %v1904 = vld [vmem:[%s1894 + $0x24] sm:$0xf]
        %v1905 = vld [vmem:[%s1894 + $0x28] sm:$0xf]
        %v1906 = vld [vmem:[%s1894 + $0x2c] sm:$0xf]
        %v1907 = vld [vmem:[%s1894 + $0x30] sm:$0xf]
        %v1908 = vld [vmem:[%s1894 + $0x34] sm:$0xf]
        %v1909 = vld [vmem:[%s1894 + $0x38] sm:$0xf]
        %v1910 = vld [vmem:[%s1894 + $0x3c] sm:$0xf]
        %v1919 = vunpack.c.l.b16 %v1886
        %v1920 = vunpack.c.l.b16 %v1887
        %v1921 = vunpack.c.l.b16 %v1888
        %v1922 = vunpack.c.l.b16 %v1889
        %v1923 = vunpack.c.l.b16 %v1890
        %v1924 = vunpack.c.l.b16 %v1891
        %v1925 = vunpack.c.l.b16 %v1892
        %v1926 = vunpack.c.l.b16 %v1893
        %v1927 = vpack.c.b16 %v1920, %v1919
        %v1928 = vpack.c.b16 %v1922, %v1921
        %v1929 = vpack.c.b16 %v1924, %v1923
        %v1930 = vpack.c.b16 %v1926, %v1925
        %v1951 = vunpack.c.l.b16 %v1895
        %v1952 = vunpack.c.l.b16 %v1896
        %v1953 = vunpack.c.l.b16 %v1897
        %v1954 = vunpack.c.l.b16 %v1898
        %v1955 = vunpack.c.l.b16 %v1899
        %v1956 = vunpack.c.l.b16 %v1900
        %v1957 = vunpack.c.l.b16 %v1901
        %v1958 = vunpack.c.l.b16 %v1902
        %v1959 = vunpack.c.l.b16 %v1903
        %v1960 = vunpack.c.l.b16 %v1904
        %v1961 = vunpack.c.l.b16 %v1905
        %v1962 = vunpack.c.l.b16 %v1906
        %v1963 = vunpack.c.l.b16 %v1907
        %v1964 = vunpack.c.l.b16 %v1908
        %v1965 = vunpack.c.l.b16 %v1909
        %v1966 = vunpack.c.l.b16 %v1910
        %v1967 = vpack.c.b16 %v1952, %v1951
        %v1968 = vpack.c.b16 %v1954, %v1953
        %v1969 = vpack.c.b16 %v1956, %v1955
        %v1970 = vpack.c.b16 %v1958, %v1957
        %v1971 = vpack.c.b16 %v1960, %v1959
        %v1972 = vpack.c.b16 %v1962, %v1961
        %v1973 = vpack.c.b16 %v1964, %v1963
        %v1974 = vpack.c.b16 %v1966, %v1965
        %1983 = vmatpush.bf16.msra.mxu0 %v1974
        %1984 = vmatpush.bf16.msra.mxu0 %v1973
        %1985 = vmatpush.bf16.msra.mxu0 %v1972
        %1986 = vmatpush.bf16.msra.mxu0 %v1971
        %1987 = vmatpush.bf16.msra.mxu0 %v1970
        %1988 = vmatpush.bf16.msra.mxu0 %v1969
        %1989 = vmatpush.bf16.msra.mxu0 %v1968
        %1990 = vmatpush.bf16.msra.mxu0 %v1967
        %1991 = vmatmul.bf16.gmra.mxu0 %v1927
        %v1992 = vpop.f32.mrf.mxu0
        %v1993 = vadd.f32 0.0, %v1992
        %v1994 = vpop.f32.mrf.mxu0
        %v1995 = vadd.f32 0.0, %v1994
        %1996 = vmatmul.bf16.gmra.mxu0 %v1928
        %v1997 = vpop.f32.mrf.mxu0
        %v1998 = vadd.f32 0.0, %v1997
        %v1999 = vpop.f32.mrf.mxu0
        %v2000 = vadd.f32 0.0, %v1999
        %2001 = vmatmul.bf16.gmra.mxu0 %v1929
        %v2002 = vpop.f32.mrf.mxu0
        %v2003 = vadd.f32 0.0, %v2002
        %v2004 = vpop.f32.mrf.mxu0
        %v2005 = vadd.f32 0.0, %v2004
        %2006 = vmatmul.bf16.gmra.mxu0 %v1930
        %v2007 = vpop.f32.mrf.mxu0
        %v2008 = vadd.f32 0.0, %v2007
        %v2009 = vpop.f32.mrf.mxu0
        %v2010 = vadd.f32 0.0, %v2009
        %2011 = vdwg.mxu0
        %v2012 = vadd.f32 %v1867, %v1993
        %v2013 = vadd.f32 %v1869, %v1995
        %v2014 = vadd.f32 %v1872, %v1998
        %v2015 = vadd.f32 %v1874, %v2000
        %v2016 = vadd.f32 %v1877, %v2003
        %v2017 = vadd.f32 %v1879, %v2005
        %v2018 = vadd.f32 %v1882, %v2008
        %v2019 = vadd.f32 %v1884, %v2010
        %v2020 = vld [vmem:[%s1179] sm:$0xf]
        %v2021 = vld [vmem:[%s1179 + $0x4] sm:$0x1]
        %v2022 = vld [vmem:[%s1179 + $0x8] sm:$0xf]
        %v2023 = vld [vmem:[%s1179 + $0xc] sm:$0x1]
        %v2024 = vld [vmem:[%s1179 + $0x10] sm:$0xf]
        %v2025 = vld [vmem:[%s1179 + $0x14] sm:$0x1]
        %v2026 = vld [vmem:[%s1179 + $0x18] sm:$0xf]
        %v2027 = vld [vmem:[%s1179 + $0x1c] sm:$0x1]
        %v2028 = vld [vmem:[%s1179 + $0x20] sm:$0xf]
        %v2029 = vld [vmem:[%s1179 + $0x24] sm:$0x1]
        %v2030 = vld [vmem:[%s1179 + $0x28] sm:$0xf]
        %v2031 = vld [vmem:[%s1179 + $0x2c] sm:$0x1]
        %v2032 = vld [vmem:[%s1179 + $0x30] sm:$0xf]
        %v2033 = vld [vmem:[%s1179 + $0x34] sm:$0x1]
        %v2034 = vld [vmem:[%s1179 + $0x38] sm:$0xf]
        %v2035 = vld [vmem:[%s1179 + $0x3c] sm:$0x1]
        %v2037 = vshrl.u32 %v2020, 16
        %v2039 = vrot.slane %v2037, 4
        %v2040 = vshll.u32 %v2020, 16
        %v2042 = vrot.slane %v2040, 5
        %v2043 = vor.u32 %v2039, %v2042
        %v2044 = vrot.slane %v2043, 4
        %v2046 = vshll.u32 %v2021, 16
        %v2048 = vrot.slane %v2046, 5
        %v2049 = vsel %vm707, %v2044, %v2048
        %v2051 = vshrl.u32 %v2022, 16
        %v2053 = vrot.slane %v2051, 4
        %v2054 = vshll.u32 %v2022, 16
        %v2056 = vrot.slane %v2054, 5
        %v2057 = vor.u32 %v2053, %v2056
        %v2058 = vrot.slane %v2057, 4
        %v2060 = vshll.u32 %v2023, 16
        %v2062 = vrot.slane %v2060, 5
        %v2063 = vsel %vm707, %v2058, %v2062
        %v2065 = vshrl.u32 %v2024, 16
        %v2067 = vrot.slane %v2065, 4
        %v2068 = vshll.u32 %v2024, 16
        %v2070 = vrot.slane %v2068, 5
        %v2071 = vor.u32 %v2067, %v2070
        %v2072 = vrot.slane %v2071, 4
        %v2074 = vshll.u32 %v2025, 16
        %v2076 = vrot.slane %v2074, 5
        %v2077 = vsel %vm707, %v2072, %v2076
        %v2079 = vshrl.u32 %v2026, 16
        %v2081 = vrot.slane %v2079, 4
        %v2082 = vshll.u32 %v2026, 16
        %v2084 = vrot.slane %v2082, 5
        %v2085 = vor.u32 %v2081, %v2084
        %v2086 = vrot.slane %v2085, 4
        %v2088 = vshll.u32 %v2027, 16
        %v2090 = vrot.slane %v2088, 5
        %v2091 = vsel %vm707, %v2086, %v2090
        %v2093 = vshrl.u32 %v2028, 16
        %v2095 = vrot.slane %v2093, 4
        %v2096 = vshll.u32 %v2028, 16
        %v2098 = vrot.slane %v2096, 5
        %v2099 = vor.u32 %v2095, %v2098
        %v2100 = vrot.slane %v2099, 4
        %v2102 = vshll.u32 %v2029, 16
        %v2104 = vrot.slane %v2102, 5
        %v2105 = vsel %vm707, %v2100, %v2104
        %v2107 = vshrl.u32 %v2030, 16
        %v2109 = vrot.slane %v2107, 4
        %v2110 = vshll.u32 %v2030, 16
        %v2112 = vrot.slane %v2110, 5
        %v2113 = vor.u32 %v2109, %v2112
        %v2114 = vrot.slane %v2113, 4
        %v2116 = vshll.u32 %v2031, 16
        %v2118 = vrot.slane %v2116, 5
        %v2119 = vsel %vm707, %v2114, %v2118
        %v2121 = vshrl.u32 %v2032, 16
        %v2123 = vrot.slane %v2121, 4
        %v2124 = vshll.u32 %v2032, 16
        %v2126 = vrot.slane %v2124, 5
        %v2127 = vor.u32 %v2123, %v2126
        %v2128 = vrot.slane %v2127, 4
        %v2130 = vshll.u32 %v2033, 16
        %v2132 = vrot.slane %v2130, 5
        %v2133 = vsel %vm707, %v2128, %v2132
        %v2135 = vshrl.u32 %v2034, 16
        %v2137 = vrot.slane %v2135, 4
        %v2138 = vshll.u32 %v2034, 16
        %v2140 = vrot.slane %v2138, 5
        %v2141 = vor.u32 %v2137, %v2140
        %v2142 = vrot.slane %v2141, 4
        %v2144 = vshll.u32 %v2035, 16
        %v2146 = vrot.slane %v2144, 5
        %v2147 = vsel %vm707, %v2142, %v2146
        %v2148 = vld [vmem:[%s2] sm:$0xf]
        %v2149 = vld [vmem:[%s2 + $0x4] sm:$0xf]
        %v2150 = vld [vmem:[%s2 + $0x8] sm:$0xf]
        %v2151 = vld [vmem:[%s2 + $0xc] sm:$0xf]
        %v2152 = vld [vmem:[%s2 + $0x10] sm:$0xf]
        %v2153 = vld [vmem:[%s2 + $0x14] sm:$0xf]
        %v2154 = vld [vmem:[%s2 + $0x18] sm:$0xf]
        %v2155 = vld [vmem:[%s2 + $0x1c] sm:$0xf]
        %v2156 = vld [vmem:[%s2 + $0x20] sm:$0xf]
        %v2157 = vld [vmem:[%s2 + $0x24] sm:$0xf]
        %v2158 = vld [vmem:[%s2 + $0x28] sm:$0xf]
        %v2159 = vld [vmem:[%s2 + $0x2c] sm:$0xf]
        %v2160 = vld [vmem:[%s2 + $0x30] sm:$0xf]
        %v2161 = vld [vmem:[%s2 + $0x34] sm:$0xf]
        %v2162 = vld [vmem:[%s2 + $0x38] sm:$0xf]
        %v2163 = vld [vmem:[%s2 + $0x3c] sm:$0xf]
        %v2164 = vunpack.c.l.b16 %v2049
        %v2165 = vunpack.c.l.b16 %v2063
        %v2166 = vunpack.c.l.b16 %v2077
        %v2167 = vunpack.c.l.b16 %v2091
        %v2168 = vunpack.c.l.b16 %v2105
        %v2169 = vunpack.c.l.b16 %v2119
        %v2170 = vunpack.c.l.b16 %v2133
        %v2171 = vunpack.c.l.b16 %v2147
        %v2172 = vpack.c.b16 %v2165, %v2164
        %v2173 = vpack.c.b16 %v2167, %v2166
        %v2174 = vpack.c.b16 %v2169, %v2168
        %v2175 = vpack.c.b16 %v2171, %v2170
        %v2196 = vunpack.c.l.b16 %v2148
        %v2197 = vunpack.c.l.b16 %v2149
        %v2198 = vunpack.c.l.b16 %v2150
        %v2199 = vunpack.c.l.b16 %v2151
        %v2200 = vunpack.c.l.b16 %v2152
        %v2201 = vunpack.c.l.b16 %v2153
        %v2202 = vunpack.c.l.b16 %v2154
        %v2203 = vunpack.c.l.b16 %v2155
        %v2204 = vunpack.c.l.b16 %v2156
        %v2205 = vunpack.c.l.b16 %v2157
        %v2206 = vunpack.c.l.b16 %v2158
        %v2207 = vunpack.c.l.b16 %v2159
        %v2208 = vunpack.c.l.b16 %v2160
        %v2209 = vunpack.c.l.b16 %v2161
        %v2210 = vunpack.c.l.b16 %v2162
        %v2211 = vunpack.c.l.b16 %v2163
        %v2212 = vpack.c.b16 %v2197, %v2196
        %v2213 = vpack.c.b16 %v2199, %v2198
        %v2214 = vpack.c.b16 %v2201, %v2200
        %v2215 = vpack.c.b16 %v2203, %v2202
        %v2216 = vpack.c.b16 %v2205, %v2204
        %v2217 = vpack.c.b16 %v2207, %v2206
        %v2218 = vpack.c.b16 %v2209, %v2208
        %v2219 = vpack.c.b16 %v2211, %v2210
        %2228 = vmatpush.bf16.msra.mxu0 %v2219
        %2229 = vmatpush.bf16.msra.mxu0 %v2218
        %2230 = vmatpush.bf16.msra.mxu0 %v2217
        %2231 = vmatpush.bf16.msra.mxu0 %v2216
        %2232 = vmatpush.bf16.msra.mxu0 %v2215
        %2233 = vmatpush.bf16.msra.mxu0 %v2214
        %2234 = vmatpush.bf16.msra.mxu0 %v2213
        %2235 = vmatpush.bf16.msra.mxu0 %v2212
        %2236 = vmatmul.bf16.gmra.mxu0 %v2172
        %v2237 = vpop.f32.mrf.mxu0
        %v2238 = vadd.f32 0.0, %v2237
        %v2239 = vpop.f32.mrf.mxu0
        %v2240 = vadd.f32 0.0, %v2239
        %2241 = vmatmul.bf16.gmra.mxu0 %v2173
        %v2242 = vpop.f32.mrf.mxu0
        %v2243 = vadd.f32 0.0, %v2242
        %v2244 = vpop.f32.mrf.mxu0
        %v2245 = vadd.f32 0.0, %v2244
        %2246 = vmatmul.bf16.gmra.mxu0 %v2174
        %v2247 = vpop.f32.mrf.mxu0
        %v2248 = vadd.f32 0.0, %v2247
        %v2249 = vpop.f32.mrf.mxu0
        %v2250 = vadd.f32 0.0, %v2249
        %2251 = vmatmul.bf16.gmra.mxu0 %v2175
        %v2252 = vpop.f32.mrf.mxu0
        %v2253 = vadd.f32 0.0, %v2252
        %v2254 = vpop.f32.mrf.mxu0
        %v2255 = vadd.f32 0.0, %v2254
        %2256 = vdwg.mxu0
        %v2257 = vadd.f32 %v2012, %v2238
        %v2258 = vadd.f32 %v2013, %v2240
        %v2259 = vadd.f32 %v2014, %v2243
        %v2260 = vadd.f32 %v2015, %v2245
        %v2261 = vadd.f32 %v2016, %v2248
        %v2262 = vadd.f32 %v2017, %v2250
        %v2263 = vadd.f32 %v2018, %v2253
        %v2264 = vadd.f32 %v2019, %v2255
        %v2265 = vadd.f32 %v2257, %v450
        %v2266 = vadd.f32 %v2258, %v450
        %v2267 = vadd.f32 %v2259, %v450
        %v2268 = vadd.f32 %v2260, %v450
        %v2269 = vadd.f32 %v2261, %v450
        %v2270 = vadd.f32 %v2262, %v450
        %v2271 = vadd.f32 %v2263, %v450
        %v2272 = vadd.f32 %v2264, %v450
        %vm2273 = vcmp.ge.f32.partialorder %v2265, 0.0
        %vm2274 = vcmp.ge.f32.partialorder %v2266, 0.0
        %vm2275 = vcmp.ge.f32.partialorder %v2267, 0.0
        %vm2276 = vcmp.ge.f32.partialorder %v2268, 0.0
        %vm2277 = vcmp.ge.f32.partialorder %v2269, 0.0
        %vm2278 = vcmp.ge.f32.partialorder %v2270, 0.0
        %vm2279 = vcmp.ge.f32.partialorder %v2271, 0.0
        %vm2280 = vcmp.ge.f32.partialorder %v2272, 0.0
        %v2281 = vmul.f32 %v2265, 0.2
        %v2282 = vmul.f32 %v2266, 0.2
        %v2283 = vmul.f32 %v2267, 0.2
        %v2284 = vmul.f32 %v2268, 0.2
        %v2285 = vmul.f32 %v2269, 0.2
        %v2286 = vmul.f32 %v2270, 0.2
        %v2287 = vmul.f32 %v2271, 0.2
        %v2288 = vmul.f32 %v2272, 0.2
        %v2289 = vsel %vm2273, %v2265, %v2281
        %v2290 = vsel %vm2274, %v2266, %v2282
        %v2291 = vsel %vm2275, %v2267, %v2283
        %v2292 = vsel %vm2276, %v2268, %v2284
        %v2293 = vsel %vm2277, %v2269, %v2285
        %v2294 = vsel %vm2278, %v2270, %v2286
        %v2295 = vsel %vm2279, %v2271, %v2287
        %v2296 = vsel %vm2280, %v2272, %v2288
        %v2297 = vpack.c.bf16 %v2289, %v2289
        %v2298 = vpack.c.bf16 %v2290, %v2290
        %v2299 = vpack.c.bf16 %v2291, %v2291
        %v2300 = vpack.c.bf16 %v2292, %v2292
        %v2301 = vpack.c.bf16 %v2293, %v2293
        %v2302 = vpack.c.bf16 %v2294, %v2294
        %v2303 = vpack.c.bf16 %v2295, %v2295
        %v2304 = vpack.c.bf16 %v2296, %v2296
        %s2305 = scalar_lea.vmem %s289, 96 [#allocation4]
        %2306 = vst.msk [vmem:[%s2305] sm:$0xf] %vm585, %v2297
        %2307 = vst.msk [vmem:[%s2305 + $0x4] sm:$0xf] %vm585, %v2298
        %2308 = vst.msk [vmem:[%s2305 + $0x8] sm:$0xf] %vm585, %v2299
        %2309 = vst.msk [vmem:[%s2305 + $0xc] sm:$0xf] %vm585, %v2300
        %2310 = vst.msk [vmem:[%s2305 + $0x10] sm:$0xf] %vm585, %v2301
        %2311 = vst.msk [vmem:[%s2305 + $0x14] sm:$0xf] %vm585, %v2302
        %2312 = vst.msk [vmem:[%s2305 + $0x18] sm:$0xf] %vm585, %v2303
        %2313 = vst.msk [vmem:[%s2305 + $0x1c] sm:$0xf] %vm585, %v2304
        %v2315 = vsel %vm597, %v2289, 0
        %v2318 = vsel %vm597, %v2290, 0
        %v2321 = vsel %vm597, %v2291, 0
        %v2324 = vsel %vm597, %v2292, 0
        %v2327 = vsel %vm597, %v2293, 0
        %v2330 = vsel %vm597, %v2294, 0
        %v2333 = vsel %vm597, %v2295, 0
        %v2336 = vsel %vm597, %v2296, 0
        %2338 = vmatpush.msra.mxu0 0.0
        %2339 = vmatpush.msra.mxu0 0.0
        %2340 = vmatpush.msra.mxu0 0.0
        %2341 = vmatpush.msra.mxu0 0.0
        %2342 = vmatpush.msra.mxu0 0.0
        %2343 = vmatpush.msra.mxu0 0.0
        %2344 = vmatpush.msra.mxu0 0.0
        %2345 = vmatpush.msra.mxu0 0.0
        %2346 = vmatpush.msra.mxu0 0.0
        %2347 = vmatpush.msra.mxu0 0.0
        %2348 = vmatpush.msra.mxu0 0.0
        %2349 = vmatpush.msra.mxu0 0.0
        %2350 = vmatpush.msra.mxu0 %v422
        %2351 = vmatpush.msra.mxu0 %v421
        %2352 = vmatpush.msra.mxu0 %v420
        %2353 = vmatpush.msra.mxu0 %v419
        %2354 = vmatmul.f32.gmra.mxu0 %v2315
        %v2355 = vpop.f32.mrf.mxu0
        %v2356 = vadd.f32 %v595, %v2355
        %2357 = vmatmul.f32.gmra.mxu0 %v2318
        %v2358 = vpop.f32.mrf.mxu0
        %v2359 = vadd.f32 %v595, %v2358
        %2360 = vmatmul.f32.gmra.mxu0 %v2321
        %v2361 = vpop.f32.mrf.mxu0
        %v2362 = vadd.f32 %v595, %v2361
        %2363 = vmatmul.f32.gmra.mxu0 %v2324
        %v2364 = vpop.f32.mrf.mxu0
        %v2365 = vadd.f32 %v595, %v2364
        %2366 = vmatmul.f32.gmra.mxu0 %v2327
        %v2367 = vpop.f32.mrf.mxu0
        %v2368 = vadd.f32 %v595, %v2367
        %2369 = vmatmul.f32.gmra.mxu0 %v2330
        %v2370 = vpop.f32.mrf.mxu0
        %v2371 = vadd.f32 %v595, %v2370
        %2372 = vmatmul.f32.gmra.mxu0 %v2333
        %v2373 = vpop.f32.mrf.mxu0
        %v2374 = vadd.f32 %v595, %v2373
        %2375 = vmatmul.f32.gmra.mxu0 %v2336
        %v2376 = vpop.f32.mrf.mxu0
        %v2377 = vadd.f32 %v595, %v2376
        %2378 = vdwg.mxu0
        %s2379 = scalar_lea.vmem %s311, 192
        %2380 = vst.msk [vmem:[%s2379] sm:$0xff] %vm663, %v2356
        %2381 = vst.msk [vmem:[%s2379 + $0x8] sm:$0xff] %vm663, %v2359
        %2382 = vst.msk [vmem:[%s2379 + $0x10] sm:$0xff] %vm663, %v2362
        %2383 = vst.msk [vmem:[%s2379 + $0x18] sm:$0xff] %vm663, %v2365
        %2384 = vst.msk [vmem:[%s2379 + $0x20] sm:$0xff] %vm663, %v2368
        %2385 = vst.msk [vmem:[%s2379 + $0x28] sm:$0xff] %vm663, %v2371
        %2386 = vst.msk [vmem:[%s2379 + $0x30] sm:$0xff] %vm663, %v2374
        %2387 = vst.msk [vmem:[%s2379 + $0x38] sm:$0xff] %vm663, %v2377
        %s2388 = sand.u32 %s168, 1
        %s2389 = scalar_lea.sflag [#allocation5], %s2388
        %s2390 = sand.u32 %s168, 1
        %s2391 = smul.addr %s2390, 128
        %s2392 = scalar_lea.vmem [#allocation4], %s2391
        %p2393 = scmp.lt.s32.totalorder %s24, 1
        %s2394 = scalar_select %p2393, %s24, 1
        %s2395 = smul.addr %s2394, 32
        %s2396 = smul.addr %s2395, 8
        %s2397 = scalar_lea.vmem %s7, %s2396
        // Predicated region
        $region45: #{_lambda_.7} parent=43 // pred_check
          %p2398 = pneg %p178
        $region46: #{_lambda_.7} parent=43 // pred_check_branch
          %2400 = sbr.rel (%p2398) target = $region48
        $region47: #{_lambda_.7} parent=43 // pred_region
          %2402 = vsyncadd %s2389, 0
          %s2403 = smul.addr %s24, 32
          %s2404 = smul.addr %s2403, 4
          %s2405 = scalar_lea.hbm %s6, %s2404
          %s2406 = sshll.u32 %s2392, 4
          %s2407 = int_to_ptr.vmem [resolvable:$true] %s2406
          %s2408 = sshll.u32 %s2405, 4
          %s2409 = int_to_ptr.hbm [resolvable:$true] %s2408
          %2414 = dma.vmem_to_hbm [thread:$0]  %s2407, 2048, %s2409, %s2389, 64, 64, 4
        $region48: #{_lambda_.7} parent=43 // pred_fallthru
          _
        // Predicated region
        $region49: #{_lambda_.7} parent=43 // pred_check
          %p2415 = pneg %p204
        $region50: #{_lambda_.7} parent=43 // pred_check_branch
          %2417 = sbr.rel (%p2415) target = $region52
        $region51: #{_lambda_.7} parent=43 // pred_region
          _
        $region52: #{_lambda_.7} parent=43 // pred_fallthru
          _
      $region44: #{_lambda_.7} parent=5 // pred_fallthru
        _
      %p2418 = scmp.le.s32.totalorder 2, %s19
      // Predicated region
      $region53: #{_lambda_.7} parent=5 // pred_check
        %p2419 = pneg %p2418
      $region54: #{_lambda_.7} parent=5 // pred_check_branch
        %2421 = sbr.rel (%p2419) target = $region56
      $region55: #{_lambda_.7} parent=5 // pred_region
        %s2422 = ssub.s32 %s19, 2
        // Predicated region
        $region57: #{_lambda_.7} parent=55 // pred_check
          %p2423 = pneg %p184
        $region58: #{_lambda_.7} parent=55 // pred_check_branch
          %2425 = sbr.rel (%p2423) target = $region60
        $region59: #{_lambda_.7} parent=55 // pred_region
          %s2426 = sand.u32 %s169, 1
          %s2427 = scalar_lea.sflag [#allocation5], %s2426
          %s2428 = sand.u32 %s169, 1
          %s2429 = smul.addr %s2428, 128
          %s2430 = scalar_lea.vmem [#allocation4], %s2429
          %2432 = dma.done %s2427, 2048
        $region60: #{_lambda_.7} parent=55 // pred_fallthru
          _
        // Predicated region
        $region61: #{_lambda_.7} parent=55 // pred_check
          %p2433 = pneg %p210
        $region62: #{_lambda_.7} parent=55 // pred_check_branch
          %2435 = sbr.rel (%p2433) target = $region64
        $region63: #{_lambda_.7} parent=55 // pred_region
          %p2436 = scmp.lt.s32.totalorder %s25, 1
          %s2437 = scalar_select %p2436, %s25, 1
          %s2438 = smul.addr %s2437, 32
          %s2439 = smul.addr %s2438, 8
          %s2440 = scalar_lea.vmem %s7, %s2439
        $region64: #{_lambda_.7} parent=55 // pred_fallthru
          _
      $region56: #{_lambda_.7} parent=5 // pred_fallthru
        _
    $region6: #{_lambda_.7} parent=1 // loop_footer
      %s23 = sadd.s32 1, %s19
    $region7: #{_lambda_.7} parent=1 // loop_footer_branch
      %18 = sbr.rel target = $region3
    $region8: #{_lambda_.7} parent=1 // loop_exit
      _
    %2441 = vsyncpa [#allocation5], 1
    %s2442 = scalar_lea.sflag [#allocation5], 1
    %2443 = vsyncpa %s2442, 1

</llo_original>
